<compile_context>
chip_gen: v6e
topology: v6e:2x2x1
jax: 0.10.0
libtpu: 0.0.40
codegen_flags: <defaults>
</compile_context>

<pallas_src>
import functools

import jax
import jax.numpy as jnp
from jax.experimental import pallas as pl
from jax.experimental.pallas import tpu as pltpu

# ----------------------------- configuration --------------------------------
NBLOCKS = (1, 1, 1, 1)   # opts.gen.deeplabv2.nblocks (ResNet-101 uses (3,4,23,3))
N_RES = 1                # opts.gen.encoder.n_res
BASE = 8                 # width (real DeepLab uses 64) -- scaled down for the demo
EXPANSION = 4            # Bottleneck.expansion
BN_EPS = 1e-5
IN_EPS = 1e-5

# VMEM budget: sized so double-buffered matmul tiles fit v7x's 64 MiB physical VMEM.
_VMEM_LIMIT = 48 * 1024 * 1024


def _round_up(x, m):
    return (x + m - 1) // m * m


# ------------------------------ Pallas kernels -------------------------------
def _conv_mm_kernel(*refs, apply_relu, has_residual):
    """Gridded GEMM with fused epilogue.

    out = relu?( (A @ B) * scale + shift [+ residual] )
    Grid = (M tiles, N tiles, K tiles); K is the accumulation axis; acc_ref is an
    f32 VMEM scratch accumulator (bf16 operands, f32 accumulate on the MXU).
    """
    if has_residual:
        a_ref, b_ref, scale_ref, shift_ref, res_ref, o_ref, acc_ref = refs
    else:
        a_ref, b_ref, scale_ref, shift_ref, o_ref, acc_ref = refs
        res_ref = None
    kk = pl.program_id(2)

    @pl.when(kk == 0)
    def _():
        acc_ref[...] = jnp.zeros_like(acc_ref)

    acc_ref[...] += jnp.dot(a_ref[...], b_ref[...],
                            preferred_element_type=jnp.float32)

    @pl.when(kk == pl.num_programs(2) - 1)
    def _():
        out = acc_ref[...] * scale_ref[...] + shift_ref[...]
        if has_residual:
            out = out + res_ref[...]
        if apply_relu:
            out = jnp.maximum(out, 0.0)
        o_ref[...] = out


def _maxpool_kernel(*refs):
    """Running max over the 9 (ki,kj) shifted/strided views -- pure VPU maxes."""
    o_ref = refs[-1]
    out = refs[0][...]
    for r in refs[1:-1]:
        out = jnp.maximum(out, r[...])
    o_ref[...] = out


def _instance_norm_kernel(*refs, eps, apply_relu, has_residual):
    """InstanceNorm2d(affine=False) over (H, W), single-pass stats.

    Optionally fuses a ReLU and/or a residual add (resblock epilogue).
    Block = one sample: (1, H, W, C).
    """
    if has_residual:
        x_ref, res_ref, o_ref = refs
    else:
        x_ref, o_ref = refs
        res_ref = None
    x = x_ref[...]
    hw = x.shape[1] * x.shape[2]
    s = jnp.sum(x, axis=(1, 2), keepdims=True)
    ss = jnp.sum(x * x, axis=(1, 2), keepdims=True)
    mean = s / hw
    var = jnp.maximum(ss / hw - mean * mean, 0.0)
    y = (x - mean) * jax.lax.rsqrt(var + eps)
    if has_residual:
        y = y + res_ref[...]
    if apply_relu:
        y = jnp.maximum(y, 0.0)
    o_ref[...] = y


# ----------------------------- kernel wrappers --------------------------------
def _matmul_fused(a, b, scale, shift, *, residual=None, relu=False):
    """out = relu?( (a @ b) * scale + shift [+ residual] ), tiled & pipelined."""
    m, k = a.shape
    n = b.shape[1]

    # --- tile / pad sizes (aligned for MXU & lane layout, fits 64 MiB VMEM) ----
    tm = _round_up(m, 8) if m <= 256 else 256
    mp = _round_up(m, tm)

    if n <= 256:
        tn, np_ = n, n
    else:
        tn = 256
        np_ = _round_up(n, tn)

    kp = k if k <= 128 else _round_up(k, 128)        # e.g. conv1 K=147 -> 256
    if kp <= 512:
        tk = kp
    else:
        tk = next(d for d in (512, 384, 256, 128) if kp % d == 0)

    # --- pad & cast operands (bf16 in, f32 accumulate) --------------------------
    a_p = jnp.pad(a, ((0, mp - m), (0, kp - k))).astype(jnp.bfloat16)
    b_p = jnp.pad(b, ((0, kp - k), (0, np_ - n))).astype(jnp.bfloat16)
    scale_p = jnp.pad(scale.astype(jnp.float32), (0, np_ - n)).reshape(1, np_)
    shift_p = jnp.pad(shift.astype(jnp.float32), (0, np_ - n)).reshape(1, np_)

    in_specs = [
        pl.BlockSpec((tm, tk), lambda i, j, kk: (i, kk)),
        pl.BlockSpec((tk, tn), lambda i, j, kk: (kk, j)),
        pl.BlockSpec((1, tn), lambda i, j, kk: (0, j)),
        pl.BlockSpec((1, tn), lambda i, j, kk: (0, j)),
    ]
    args = [a_p, b_p, scale_p, shift_p]
    has_res = residual is not None
    if has_res:
        res_p = jnp.pad(residual.astype(jnp.float32),
                        ((0, mp - m), (0, np_ - n)))
        in_specs.append(pl.BlockSpec((tm, tn), lambda i, j, kk: (i, j)))
        args.append(res_p)

    flops = 2 * mp * np_ * kp
    bytes_accessed = int(sum(int(x.size) * x.dtype.itemsize for x in args)
                         + mp * np_ * 4)

    out = pl.pallas_call(
        functools.partial(_conv_mm_kernel, apply_relu=relu, has_residual=has_res),
        out_shape=jax.ShapeDtypeStruct((mp, np_), jnp.float32),
        grid=(mp // tm, np_ // tn, kp // tk),
        in_specs=in_specs,
        out_specs=pl.BlockSpec((tm, tn), lambda i, j, kk: (i, j)),
        scratch_shapes=[pltpu.VMEM((tm, tn), jnp.float32)],
        compiler_params=pltpu.CompilerParams(
            dimension_semantics=("parallel", "parallel", "arbitrary"),
            vmem_limit_bytes=_VMEM_LIMIT),
        cost_estimate=pl.CostEstimate(flops=flops, transcendentals=0,
                                      bytes_accessed=bytes_accessed),
    )(*args)
    if mp != m or np_ != n:
        out = out[:m, :n]
    return out


def _im2col(x, kh, kw, stride, padding, dilation):
    """x: NHWC -> (N*Ho*Wo, kh*kw*C) patches ordered (kh, kw, cin).

    1x1 convs are just a (possibly strided) reshape; 3x3/7x7 still materialize
    patches (see TODO at top of file)."""
    if padding:
        x = jnp.pad(x, ((0, 0), (padding, padding), (padding, padding), (0, 0)))
    n, hp, wp, c = x.shape
    ho = (hp - dilation * (kh - 1) - 1) // stride + 1
    wo = (wp - dilation * (kw - 1) - 1) // stride + 1
    cols = []
    for i in range(kh):
        for j in range(kw):
            patch = jax.lax.slice(
                x,
                (0, i * dilation, j * dilation, 0),
                (n, i * dilation + stride * (ho - 1) + 1,
                 j * dilation + stride * (wo - 1) + 1, c),
                (1, stride, stride, 1))
            cols.append(patch)
    patches = cols[0] if len(cols) == 1 else jnp.concatenate(cols, axis=-1)
    return patches.reshape(n * ho * wo, kh * kw * c), (n, ho, wo)


def conv2d(x, w, *, stride=1, padding=0, dilation=1, scale=None, shift=None,
           relu=False, residual=None):
    """NHWC conv with PyTorch-layout weights w: (Cout, Cin, KH, KW).

    Per-channel scale/shift (folded BN or conv bias), optional ReLU and optional
    residual add are fused into the matmul epilogue."""
    cout, cin, kh, kw = w.shape
    a, (n, ho, wo) = _im2col(x, kh, kw, stride, padding, dilation)
    b = jnp.transpose(w, (2, 3, 1, 0)).reshape(kh * kw * cin, cout)
    if scale is None:
        scale = jnp.ones((cout,), jnp.float32)
    if shift is None:
        shift = jnp.zeros((cout,), jnp.float32)
    res2d = None
    if residual is not None:
        res2d = residual.reshape(n * ho * wo, cout)
    out = _matmul_fused(a, b, scale, shift, residual=res2d, relu=relu)
    return out.reshape(n, ho, wo, cout)


def maxpool_3x3_s2_p1_ceil(x):
    """nn.MaxPool2d(kernel_size=3, stride=2, padding=1, ceil_mode=True), NHWC."""
    n, h, w, c = x.shape
    k, s, p = 3, 2, 1

    def out_size(dim):
        o = -(-(dim + 2 * p - k) // s) + 1            # ceil
        if (o - 1) * s >= dim + p:                    # window starts in right padding
            o -= 1
        return o

    ho, wo = out_size(h), out_size(w)
    ph = max((ho - 1) * s + k - (h + p), 0)
    pw = max((wo - 1) * s + k - (w + p), 0)
    xp = jnp.pad(x, ((0, 0), (p, ph), (p, pw), (0, 0)),
                 constant_values=-jnp.inf)

    # 9 shifted, stride-2 views (cheap XLA slices); the kernel is a 9-way VPU max.
    views = []
    for ki in range(k):
        for kj in range(k):
            v = jax.lax.slice(
                xp,
                (0, ki, kj, 0),
                (n, ki + s * (ho - 1) + 1, kj + s * (wo - 1) + 1, c),
                (1, s, s, 1))
            views.append(v)

    spec = pl.BlockSpec((1, ho, wo, c), lambda b: (b, 0, 0, 0))
    return pl.pallas_call(
        _maxpool_kernel,
        out_shape=jax.ShapeDtypeStruct((n, ho, wo, c), x.dtype),
        grid=(n,),
        in_specs=[spec] * len(views),
        out_specs=spec,
        compiler_params=pltpu.CompilerParams(dimension_semantics=("parallel",)),
    )(*views)


def instance_norm(x, *, relu=False, residual=None):
    """InstanceNorm2d(affine=False); optional fused ReLU / residual add."""
    n, h, w, c = x.shape
    spec = pl.BlockSpec((1, h, w, c), lambda b: (b, 0, 0, 0))
    has_res = residual is not None
    args = [x] + ([residual] if has_res else [])
    in_specs = [spec] * len(args)
    # TODO(synk): for very large spatial extents a two-pass spatially-tiled variant
    #             would be needed to stay within VMEM; fine at these sizes.
    return pl.pallas_call(
        functools.partial(_instance_norm_kernel, eps=IN_EPS, apply_relu=relu,
                          has_residual=has_res),
        out_shape=jax.ShapeDtypeStruct(x.shape, x.dtype),
        grid=(n,),
        in_specs=in_specs,
        out_specs=spec,
        compiler_params=pltpu.CompilerParams(dimension_semantics=("parallel",)),
    )(*args)


# ------------------------------- parameters -----------------------------------
def _conv_w(key, cout, cin, k):
    return 0.01 * jax.random.normal(key, (cout, cin, k, k), jnp.float32)


def _bn(key, c):
    k1, k2, k3, k4 = jax.random.split(key, 4)
    return dict(
        gamma=1.0 + 0.1 * jax.random.normal(k1, (c,), jnp.float32),
        beta=0.1 * jax.random.normal(k2, (c,), jnp.float32),
        mean=0.1 * jax.random.normal(k3, (c,), jnp.float32),
        var=0.5 + jax.random.uniform(k4, (c,), jnp.float32),
    )


def _bn_scale_shift(bn):
    scale = bn["gamma"] * jax.lax.rsqrt(bn["var"] + BN_EPS)
    shift = bn["beta"] - bn["mean"] * scale
    return scale, shift


def _bottleneck_params(key, inplanes, planes, has_down):
    ks = jax.random.split(key, 8)
    p = dict(
        conv1_w=_conv_w(ks[0], planes, inplanes, 1), bn1=_bn(ks[1], planes),
        conv2_w=_conv_w(ks[2], planes, planes, 3), bn2=_bn(ks[3], planes),
        conv3_w=_conv_w(ks[4], planes * EXPANSION, planes, 1),
        bn3=_bn(ks[5], planes * EXPANSION),
    )
    if has_down:
        p["down_w"] = _conv_w(ks[6], planes * EXPANSION, inplanes, 1)
        p["down_bn"] = _bn(ks[7], planes * EXPANSION)
    return p


def make_params(key):
    keys = jax.random.split(key, 8)
    params = dict(conv1_w=_conv_w(keys[0], BASE, 3, 7), bn1=_bn(keys[1], BASE))

    layer_cfg = [  # (planes, n_blocks, stride, dilation)
        (BASE, NBLOCKS[0], 1, 1),
        (BASE * 2, NBLOCKS[1], 2, 1),
        (BASE * 4, NBLOCKS[2], 1, 2),
        (BASE * 8, NBLOCKS[3], 1, 4),
    ]
    inplanes = BASE
    layers = []
    for li, (planes, nb, stride, dilation) in enumerate(layer_cfg):
        bkeys = jax.random.split(keys[2 + li], nb)
        has_down = (stride != 1 or inplanes != planes * EXPANSION
                    or dilation in (2, 4))
        blocks = [dict(p=_bottleneck_params(bkeys[0], inplanes, planes, has_down),
                       stride=stride, dilation=dilation)]
        inplanes = planes * EXPANSION
        for i in range(1, nb):
            blocks.append(dict(p=_bottleneck_params(bkeys[i], inplanes, planes, False),
                               stride=1, dilation=dilation))
        layers.append(blocks)
    params["layers"] = layers

    dim = inplanes
    res = []
    rkeys = jax.random.split(keys[6], N_RES)
    for r in range(N_RES):
        rk = jax.random.split(rkeys[r], 4)
        res.append(dict(
            c1_w=_conv_w(rk[0], dim, dim, 3),
            c1_b=0.01 * jax.random.normal(rk[1], (dim,), jnp.float32),
            c2_w=_conv_w(rk[2], dim, dim, 3),
            c2_b=0.01 * jax.random.normal(rk[3], (dim,), jnp.float32),
        ))
    params["resblocks"] = res
    return params, dim


# --------------------------------- forward ------------------------------------
def _bottleneck_forward(block, x):
    p, stride, dilation = block["p"], block["stride"], block["dilation"]
    s1, t1 = _bn_scale_shift(p["bn1"])
    s2, t2 = _bn_scale_shift(p["bn2"])
    s3, t3 = _bn_scale_shift(p["bn3"])

    residual = x
    if "down_w" in p:
        sd, td = _bn_scale_shift(p["down_bn"])
        residual = conv2d(x, p["down_w"], stride=stride, scale=sd, shift=td,
                          relu=False)

    out = conv2d(x, p["conv1_w"], stride=stride, scale=s1, shift=t1, relu=True)
    out = conv2d(out, p["conv2_w"], stride=1, padding=dilation, dilation=dilation,
                 scale=s2, shift=t2, relu=True)
    # conv3 + folded-BN3 + residual add + ReLU all fused in one matmul epilogue.
    out = conv2d(out, p["conv3_w"], scale=s3, shift=t3, relu=True,
                 residual=residual)
    return out


def _resblock_forward(p, x):
    y = jnp.pad(x, ((0, 0), (1, 1), (1, 1), (0, 0)), mode="reflect")
    y = conv2d(y, p["c1_w"], shift=p["c1_b"], relu=False)
    y = instance_norm(y, relu=True)
    y = jnp.pad(y, ((0, 0), (1, 1), (1, 1), (0, 0)), mode="reflect")
    y = conv2d(y, p["c2_w"], shift=p["c2_b"], relu=False)
    # InstanceNorm + residual add fused in one kernel.
    return instance_norm(y, relu=False, residual=x)


def deeplab_encoder_forward(params, x_nchw):
    x = jnp.transpose(x_nchw, (0, 2, 3, 1))            # NCHW -> NHWC
    s1, t1 = _bn_scale_shift(params["bn1"])
    x = conv2d(x, params["conv1_w"], stride=2, padding=3, scale=s1, shift=t1,
               relu=True)
    x = maxpool_3x3_s2_p1_ceil(x)
    for layer in params["layers"]:
        for block in layer:
            x = _bottleneck_forward(block, x)
    for rb in params["resblocks"]:
        x = _resblock_forward(rb, x)
    return jnp.transpose(x, (0, 3, 1, 2))               # NHWC -> NCHW


# ----------------------------------- main --------------------------------------
if __name__ == "__main__":
    key = jax.random.PRNGKey(0)
    pkey, xkey = jax.random.split(key)
    params, out_dim = make_params(pkey)

    # Input matches the module's expectation: NCHW with 3 channels.
    x = jax.random.normal(xkey, (2, 3, 16, 16), jnp.float32)

    fwd = jax.jit(lambda inp: deeplab_encoder_forward(params, inp))
    y = fwd(x)
    y = jax.block_until_ready(y)

    # 16 -> conv1/s2 -> 8 -> maxpool ceil -> 5 -> layer2/s2 -> 3 -> (dilated) -> 3
    assert y.shape == (2, out_dim, 3, 3), y.shape
    assert bool(jnp.all(jnp.isfinite(y)))
    print("KERNEL_OK")
</pallas_src>

<mosaic_0001>
module attributes {stable_mosaic.version = 11 : i64} {
  func.func @_conv_mm_kernel(%arg0: i32, %arg1: i32, %arg2: i32, %arg3: memref<128x256xbf16, #tpu.memory_space<vmem>>, %arg4: memref<256x8xbf16, #tpu.memory_space<vmem>>, %arg5: memref<1x8xf32, #tpu.memory_space<vmem>>, %arg6: memref<1x8xf32, #tpu.memory_space<vmem>>, %arg7: memref<128x8xf32, #tpu.memory_space<vmem>>, %arg8: memref<128x8xf32, #tpu.memory_space<vmem>>) attributes {dimension_semantics = [#tpu.dimension_semantics<parallel>, #tpu.dimension_semantics<parallel>, #tpu.dimension_semantics<arbitrary>], iteration_bounds = array<i64: 1, 1, 1>, scalar_prefetch = 0 : i64, scratch_operands = 1 : i64, tpu.core_type = #tpu.core_type<tc>, window_params = [{transform_indices = @transform_0, window_bounds = array<i64: 128, 256>}, {transform_indices = @transform_1, window_bounds = array<i64: 256, 8>}, {transform_indices = @transform_2, window_bounds = array<i64: 1, 8>}, {transform_indices = @transform_3, window_bounds = array<i64: 1, 8>}, {transform_indices = @transform_4, window_bounds = array<i64: 128, 8>}]} {
    %c0_i32 = arith.constant 0 : i32
    %0 = arith.cmpi eq, %arg2, %c0_i32 : i32
    %1 = arith.extui %0 : i1 to i32
    %c0_i32_0 = arith.constant 0 : i32
    %2 = arith.cmpi ne, %1, %c0_i32_0 : i32
    scf.if %2 {
      %cst_10 = arith.constant 0.000000e+00 : f32
      %12 = vector.broadcast %cst_10 : f32 to vector<128x8xf32>
      %c0_11 = arith.constant 0 : index
      %c0_12 = arith.constant 0 : index
      %13 = vector.load %arg8[%c0_11, %c0_12] : memref<128x8xf32, #tpu.memory_space<vmem>>, vector<128x8xf32>
      tpu.vector_store %arg8[%c0_11, %c0_12], %12 {strides = array<i32>} : memref<128x8xf32, #tpu.memory_space<vmem>>, vector<128x8xf32>,
    } else {
    }
    %c0 = arith.constant 0 : index
    %c0_1 = arith.constant 0 : index
    %3 = vector.load %arg8[%c0, %c0_1] : memref<128x8xf32, #tpu.memory_space<vmem>>, vector<128x8xf32>
    %c0_2 = arith.constant 0 : index
    %c0_3 = arith.constant 0 : index
    %4 = vector.load %arg3[%c0_2, %c0_3] : memref<128x256xbf16, #tpu.memory_space<vmem>>, vector<128x256xbf16>
    %c0_4 = arith.constant 0 : index
    %c0_5 = arith.constant 0 : index
    %5 = vector.load %arg4[%c0_4, %c0_5] : memref<256x8xbf16, #tpu.memory_space<vmem>>, vector<256x8xbf16>
    %cst = arith.constant dense<0.000000e+00> : vector<128x8xf32>
    %6 = tpu.matmul %4, %5, %cst {dimension_numbers = #tpu.dot_dimension_numbers<[1], [0], [0], [1], [0, 0, 1, 1], [], []>} : vector<128x256xbf16>, vector<256x8xbf16>, vector<128x8xf32> -> vector<128x8xf32>
    %7 = arith.addf %3, %6 : vector<128x8xf32>
    %c0_6 = arith.constant 0 : index
    %c0_7 = arith.constant 0 : index
    %8 = vector.load %arg8[%c0_6, %c0_7] : memref<128x8xf32, #tpu.memory_space<vmem>>, vector<128x8xf32>
    tpu.vector_store %arg8[%c0_6, %c0_7], %7 {strides = array<i32>} : memref<128x8xf32, #tpu.memory_space<vmem>>, vector<128x8xf32>,
    %c0_i32_8 = arith.constant 0 : i32
    %9 = arith.cmpi eq, %arg2, %c0_i32_8 : i32
    %10 = arith.extui %9 : i1 to i32
    %c0_i32_9 = arith.constant 0 : i32
    %11 = arith.cmpi ne, %10, %c0_i32_9 : i32
    scf.if %11 {
      %c0_10 = arith.constant 0 : index
      %c0_11 = arith.constant 0 : index
      %12 = vector.load %arg8[%c0_10, %c0_11] : memref<128x8xf32, #tpu.memory_space<vmem>>, vector<128x8xf32>
      %c0_12 = arith.constant 0 : index
      %c0_13 = arith.constant 0 : index
      %13 = vector.load %arg5[%c0_12, %c0_13] : memref<1x8xf32, #tpu.memory_space<vmem>>, vector<1x8xf32>
      %14 = vector.broadcast %13 : vector<1x8xf32> to vector<128x8xf32>
      %15 = arith.mulf %12, %14 : vector<128x8xf32>
      %c0_14 = arith.constant 0 : index
      %c0_15 = arith.constant 0 : index
      %16 = vector.load %arg6[%c0_14, %c0_15] : memref<1x8xf32, #tpu.memory_space<vmem>>, vector<1x8xf32>
      %17 = vector.broadcast %16 : vector<1x8xf32> to vector<128x8xf32>
      %18 = arith.addf %15, %17 : vector<128x8xf32>
      %cst_16 = arith.constant 0.000000e+00 : f32
      %19 = vector.broadcast %cst_16 : f32 to vector<128x8xf32>
      %20 = arith.maximumf %18, %19 : vector<128x8xf32>
      %c0_17 = arith.constant 0 : index
      %c0_18 = arith.constant 0 : index
      %21 = vector.load %arg7[%c0_17, %c0_18] : memref<128x8xf32, #tpu.memory_space<vmem>>, vector<128x8xf32>
      tpu.vector_store %arg7[%c0_17, %c0_18], %20 {strides = array<i32>} : memref<128x8xf32, #tpu.memory_space<vmem>>, vector<128x8xf32>,
    } else {
    }
    return
  }
  func.func @transform_0(%arg0: i32, %arg1: i32, %arg2: i32) -> (i32, i32) {
    %c0_i32 = arith.constant 0 : i32
    return %arg0, %arg2 : i32, i32
  }
  func.func @transform_1(%arg0: i32, %arg1: i32, %arg2: i32) -> (i32, i32) {
    %c0_i32 = arith.constant 0 : i32
    return %arg2, %arg1 : i32, i32
  }
  func.func @transform_2(%arg0: i32, %arg1: i32, %arg2: i32) -> (i32, i32) {
    %c0_i32 = arith.constant 0 : i32
    %c0_i32_0 = arith.constant 0 : i32
    return %c0_i32, %arg1 : i32, i32
  }
  func.func @transform_3(%arg0: i32, %arg1: i32, %arg2: i32) -> (i32, i32) {
    %c0_i32 = arith.constant 0 : i32
    %c0_i32_0 = arith.constant 0 : i32
    return %c0_i32, %arg1 : i32, i32
  }
  func.func @transform_4(%arg0: i32, %arg1: i32, %arg2: i32) -> (i32, i32) {
    %c0_i32 = arith.constant 0 : i32
    return %arg0, %arg1 : i32, i32
  }
}

module attributes {stable_mosaic.version = 11 : i64} {
  func.func @_maxpool_kernel(%arg0: i32, %arg1: memref<1x5x5x8xf32, #tpu.memory_space<vmem>>, %arg2: memref<1x5x5x8xf32, #tpu.memory_space<vmem>>, %arg3: memref<1x5x5x8xf32, #tpu.memory_space<vmem>>, %arg4: memref<1x5x5x8xf32, #tpu.memory_space<vmem>>, %arg5: memref<1x5x5x8xf32, #tpu.memory_space<vmem>>, %arg6: memref<1x5x5x8xf32, #tpu.memory_space<vmem>>, %arg7: memref<1x5x5x8xf32, #tpu.memory_space<vmem>>, %arg8: memref<1x5x5x8xf32, #tpu.memory_space<vmem>>, %arg9: memref<1x5x5x8xf32, #tpu.memory_space<vmem>>, %arg10: memref<1x5x5x8xf32, #tpu.memory_space<vmem>>) attributes {dimension_semantics = [#tpu.dimension_semantics<parallel>], iteration_bounds = array<i64: 2>, scalar_prefetch = 0 : i64, scratch_operands = 0 : i64, tpu.core_type = #tpu.core_type<tc>, window_params = [{transform_indices = @transform_0, window_bounds = array<i64: 1, 5, 5, 8>}, {transform_indices = @transform_1, window_bounds = array<i64: 1, 5, 5, 8>}, {transform_indices = @transform_2, window_bounds = array<i64: 1, 5, 5, 8>}, {transform_indices = @transform_3, window_bounds = array<i64: 1, 5, 5, 8>}, {transform_indices = @transform_4, window_bounds = array<i64: 1, 5, 5, 8>}, {transform_indices = @transform_5, window_bounds = array<i64: 1, 5, 5, 8>}, {transform_indices = @transform_6, window_bounds = array<i64: 1, 5, 5, 8>}, {transform_indices = @transform_7, window_bounds = array<i64: 1, 5, 5, 8>}, {transform_indices = @transform_8, window_bounds = array<i64: 1, 5, 5, 8>}, {transform_indices = @transform_9, window_bounds = array<i64: 1, 5, 5, 8>}]} {
    %c0 = arith.constant 0 : index
    %c0_0 = arith.constant 0 : index
    %c0_1 = arith.constant 0 : index
    %c0_2 = arith.constant 0 : index
    %0 = vector.load %arg1[%c0, %c0_0, %c0_1, %c0_2] : memref<1x5x5x8xf32, #tpu.memory_space<vmem>>, vector<1x5x5x8xf32>
    %c0_3 = arith.constant 0 : index
    %c0_4 = arith.constant 0 : index
    %c0_5 = arith.constant 0 : index
    %c0_6 = arith.constant 0 : index
    %1 = vector.load %arg2[%c0_3, %c0_4, %c0_5, %c0_6] : memref<1x5x5x8xf32, #tpu.memory_space<vmem>>, vector<1x5x5x8xf32>
    %2 = arith.maximumf %0, %1 : vector<1x5x5x8xf32>
    %c0_7 = arith.constant 0 : index
    %c0_8 = arith.constant 0 : index
    %c0_9 = arith.constant 0 : index
    %c0_10 = arith.constant 0 : index
    %3 = vector.load %arg3[%c0_7, %c0_8, %c0_9, %c0_10] : memref<1x5x5x8xf32, #tpu.memory_space<vmem>>, vector<1x5x5x8xf32>
    %4 = arith.maximumf %2, %3 : vector<1x5x5x8xf32>
    %c0_11 = arith.constant 0 : index
    %c0_12 = arith.constant 0 : index
    %c0_13 = arith.constant 0 : index
    %c0_14 = arith.constant 0 : index
    %5 = vector.load %arg4[%c0_11, %c0_12, %c0_13, %c0_14] : memref<1x5x5x8xf32, #tpu.memory_space<vmem>>, vector<1x5x5x8xf32>
    %6 = arith.maximumf %4, %5 : vector<1x5x5x8xf32>
    %c0_15 = arith.constant 0 : index
    %c0_16 = arith.constant 0 : index
    %c0_17 = arith.constant 0 : index
    %c0_18 = arith.constant 0 : index
    %7 = vector.load %arg5[%c0_15, %c0_16, %c0_17, %c0_18] : memref<1x5x5x8xf32, #tpu.memory_space<vmem>>, vector<1x5x5x8xf32>
    %8 = arith.maximumf %6, %7 : vector<1x5x5x8xf32>
    %c0_19 = arith.constant 0 : index
    %c0_20 = arith.constant 0 : index
    %c0_21 = arith.constant 0 : index
    %c0_22 = arith.constant 0 : index
    %9 = vector.load %arg6[%c0_19, %c0_20, %c0_21, %c0_22] : memref<1x5x5x8xf32, #tpu.memory_space<vmem>>, vector<1x5x5x8xf32>
    %10 = arith.maximumf %8, %9 : vector<1x5x5x8xf32>
    %c0_23 = arith.constant 0 : index
    %c0_24 = arith.constant 0 : index
    %c0_25 = arith.constant 0 : index
    %c0_26 = arith.constant 0 : index
    %11 = vector.load %arg7[%c0_23, %c0_24, %c0_25, %c0_26] : memref<1x5x5x8xf32, #tpu.memory_space<vmem>>, vector<1x5x5x8xf32>
    %12 = arith.maximumf %10, %11 : vector<1x5x5x8xf32>
    %c0_27 = arith.constant 0 : index
    %c0_28 = arith.constant 0 : index
    %c0_29 = arith.constant 0 : index
    %c0_30 = arith.constant 0 : index
    %13 = vector.load %arg8[%c0_27, %c0_28, %c0_29, %c0_30] : memref<1x5x5x8xf32, #tpu.memory_space<vmem>>, vector<1x5x5x8xf32>
    %14 = arith.maximumf %12, %13 : vector<1x5x5x8xf32>
    %c0_31 = arith.constant 0 : index
    %c0_32 = arith.constant 0 : index
    %c0_33 = arith.constant 0 : index
    %c0_34 = arith.constant 0 : index
    %15 = vector.load %arg9[%c0_31, %c0_32, %c0_33, %c0_34] : memref<1x5x5x8xf32, #tpu.memory_space<vmem>>, vector<1x5x5x8xf32>
    %16 = arith.maximumf %14, %15 : vector<1x5x5x8xf32>
    %c0_35 = arith.constant 0 : index
    %c0_36 = arith.constant 0 : index
    %c0_37 = arith.constant 0 : index
    %c0_38 = arith.constant 0 : index
    %17 = vector.load %arg10[%c0_35, %c0_36, %c0_37, %c0_38] : memref<1x5x5x8xf32, #tpu.memory_space<vmem>>, vector<1x5x5x8xf32>
    tpu.vector_store %arg10[%c0_35, %c0_36, %c0_37, %c0_38], %16 {strides = array<i32>} : memref<1x5x5x8xf32, #tpu.memory_space<vmem>>, vector<1x5x5x8xf32>,
    return
  }
  func.func @transform_0(%arg0: i32) -> (i32, i32, i32, i32) {
    %c0_i32 = arith.constant 0 : i32
    %c0_i32_0 = arith.constant 0 : i32
    %c0_i32_1 = arith.constant 0 : i32
    %c0_i32_2 = arith.constant 0 : i32
    return %arg0, %c0_i32, %c0_i32_0, %c0_i32_1 : i32, i32, i32, i32
  }
  func.func @transform_1(%arg0: i32) -> (i32, i32, i32, i32) {
    %c0_i32 = arith.constant 0 : i32
    %c0_i32_0 = arith.constant 0 : i32
    %c0_i32_1 = arith.constant 0 : i32
    %c0_i32_2 = arith.constant 0 : i32
    return %arg0, %c0_i32, %c0_i32_0, %c0_i32_1 : i32, i32, i32, i32
  }
  func.func @transform_2(%arg0: i32) -> (i32, i32, i32, i32) {
    %c0_i32 = arith.constant 0 : i32
    %c0_i32_0 = arith.constant 0 : i32
    %c0_i32_1 = arith.constant 0 : i32
    %c0_i32_2 = arith.constant 0 : i32
    return %arg0, %c0_i32, %c0_i32_0, %c0_i32_1 : i32, i32, i32, i32
  }
  func.func @transform_3(%arg0: i32) -> (i32, i32, i32, i32) {
    %c0_i32 = arith.constant 0 : i32
    %c0_i32_0 = arith.constant 0 : i32
    %c0_i32_1 = arith.constant 0 : i32
    %c0_i32_2 = arith.constant 0 : i32
    return %arg0, %c0_i32, %c0_i32_0, %c0_i32_1 : i32, i32, i32, i32
  }
  func.func @transform_4(%arg0: i32) -> (i32, i32, i32, i32) {
    %c0_i32 = arith.constant 0 : i32
    %c0_i32_0 = arith.constant 0 : i32
    %c0_i32_1 = arith.constant 0 : i32
    %c0_i32_2 = arith.constant 0 : i32
    return %arg0, %c0_i32, %c0_i32_0, %c0_i32_1 : i32, i32, i32, i32
  }
  func.func @transform_5(%arg0: i32) -> (i32, i32, i32, i32) {
    %c0_i32 = arith.constant 0 : i32
    %c0_i32_0 = arith.constant 0 : i32
    %c0_i32_1 = arith.constant 0 : i32
    %c0_i32_2 = arith.constant 0 : i32
    return %arg0, %c0_i32, %c0_i32_0, %c0_i32_1 : i32, i32, i32, i32
  }
  func.func @transform_6(%arg0: i32) -> (i32, i32, i32, i32) {
    %c0_i32 = arith.constant 0 : i32
    %c0_i32_0 = arith.constant 0 : i32
    %c0_i32_1 = arith.constant 0 : i32
    %c0_i32_2 = arith.constant 0 : i32
    return %arg0, %c0_i32, %c0_i32_0, %c0_i32_1 : i32, i32, i32, i32
  }
  func.func @transform_7(%arg0: i32) -> (i32, i32, i32, i32) {
    %c0_i32 = arith.constant 0 : i32
    %c0_i32_0 = arith.constant 0 : i32
    %c0_i32_1 = arith.constant 0 : i32
    %c0_i32_2 = arith.constant 0 : i32
    return %arg0, %c0_i32, %c0_i32_0, %c0_i32_1 : i32, i32, i32, i32
  }
  func.func @transform_8(%arg0: i32) -> (i32, i32, i32, i32) {
    %c0_i32 = arith.constant 0 : i32
    %c0_i32_0 = arith.constant 0 : i32
    %c0_i32_1 = arith.constant 0 : i32
    %c0_i32_2 = arith.constant 0 : i32
    return %arg0, %c0_i32, %c0_i32_0, %c0_i32_1 : i32, i32, i32, i32
  }
  func.func @transform_9(%arg0: i32) -> (i32, i32, i32, i32) {
    %c0_i32 = arith.constant 0 : i32
    %c0_i32_0 = arith.constant 0 : i32
    %c0_i32_1 = arith.constant 0 : i32
    %c0_i32_2 = arith.constant 0 : i32
    return %arg0, %c0_i32, %c0_i32_0, %c0_i32_1 : i32, i32, i32, i32
  }
}

module attributes {stable_mosaic.version = 11 : i64} {
  func.func @_conv_mm_kernel(%arg0: i32, %arg1: i32, %arg2: i32, %arg3: memref<56x8xbf16, #tpu.memory_space<vmem>>, %arg4: memref<8x8xbf16, #tpu.memory_space<vmem>>, %arg5: memref<1x8xf32, #tpu.memory_space<vmem>>, %arg6: memref<1x8xf32, #tpu.memory_space<vmem>>, %arg7: memref<56x8xf32, #tpu.memory_space<vmem>>, %arg8: memref<56x8xf32, #tpu.memory_space<vmem>>) attributes {dimension_semantics = [#tpu.dimension_semantics<parallel>, #tpu.dimension_semantics<parallel>, #tpu.dimension_semantics<arbitrary>], iteration_bounds = array<i64: 1, 1, 1>, scalar_prefetch = 0 : i64, scratch_operands = 1 : i64, tpu.core_type = #tpu.core_type<tc>, window_params = [{transform_indices = @transform_0, window_bounds = array<i64: 56, 8>}, {transform_indices = @transform_1, window_bounds = array<i64: 8, 8>}, {transform_indices = @transform_2, window_bounds = array<i64: 1, 8>}, {transform_indices = @transform_3, window_bounds = array<i64: 1, 8>}, {transform_indices = @transform_4, window_bounds = array<i64: 56, 8>}]} {
    %c0_i32 = arith.constant 0 : i32
    %0 = arith.cmpi eq, %arg2, %c0_i32 : i32
    %1 = arith.extui %0 : i1 to i32
    %c0_i32_0 = arith.constant 0 : i32
    %2 = arith.cmpi ne, %1, %c0_i32_0 : i32
    scf.if %2 {
      %cst_10 = arith.constant 0.000000e+00 : f32
      %12 = vector.broadcast %cst_10 : f32 to vector<56x8xf32>
      %c0_11 = arith.constant 0 : index
      %c0_12 = arith.constant 0 : index
      %13 = vector.load %arg8[%c0_11, %c0_12] : memref<56x8xf32, #tpu.memory_space<vmem>>, vector<56x8xf32>
      tpu.vector_store %arg8[%c0_11, %c0_12], %12 {strides = array<i32>} : memref<56x8xf32, #tpu.memory_space<vmem>>, vector<56x8xf32>,
    } else {
    }
    %c0 = arith.constant 0 : index
    %c0_1 = arith.constant 0 : index
    %3 = vector.load %arg8[%c0, %c0_1] : memref<56x8xf32, #tpu.memory_space<vmem>>, vector<56x8xf32>
    %c0_2 = arith.constant 0 : index
    %c0_3 = arith.constant 0 : index
    %4 = vector.load %arg3[%c0_2, %c0_3] : memref<56x8xbf16, #tpu.memory_space<vmem>>, vector<56x8xbf16>
    %c0_4 = arith.constant 0 : index
    %c0_5 = arith.constant 0 : index
    %5 = vector.load %arg4[%c0_4, %c0_5] : memref<8x8xbf16, #tpu.memory_space<vmem>>, vector<8x8xbf16>
    %cst = arith.constant dense<0.000000e+00> : vector<56x8xf32>
    %6 = tpu.matmul %4, %5, %cst {dimension_numbers = #tpu.dot_dimension_numbers<[1], [0], [0], [1], [0, 0, 1, 1], [], []>} : vector<56x8xbf16>, vector<8x8xbf16>, vector<56x8xf32> -> vector<56x8xf32>
    %7 = arith.addf %3, %6 : vector<56x8xf32>
    %c0_6 = arith.constant 0 : index
    %c0_7 = arith.constant 0 : index
    %8 = vector.load %arg8[%c0_6, %c0_7] : memref<56x8xf32, #tpu.memory_space<vmem>>, vector<56x8xf32>
    tpu.vector_store %arg8[%c0_6, %c0_7], %7 {strides = array<i32>} : memref<56x8xf32, #tpu.memory_space<vmem>>, vector<56x8xf32>,
    %c0_i32_8 = arith.constant 0 : i32
    %9 = arith.cmpi eq, %arg2, %c0_i32_8 : i32
    %10 = arith.extui %9 : i1 to i32
    %c0_i32_9 = arith.constant 0 : i32
    %11 = arith.cmpi ne, %10, %c0_i32_9 : i32
    scf.if %11 {
      %c0_10 = arith.constant 0 : index
      %c0_11 = arith.constant 0 : index
      %12 = vector.load %arg8[%c0_10, %c0_11] : memref<56x8xf32, #tpu.memory_space<vmem>>, vector<56x8xf32>
      %c0_12 = arith.constant 0 : index
      %c0_13 = arith.constant 0 : index
      %13 = vector.load %arg5[%c0_12, %c0_13] : memref<1x8xf32, #tpu.memory_space<vmem>>, vector<1x8xf32>
      %14 = vector.broadcast %13 : vector<1x8xf32> to vector<56x8xf32>
      %15 = arith.mulf %12, %14 : vector<56x8xf32>
      %c0_14 = arith.constant 0 : index
      %c0_15 = arith.constant 0 : index
      %16 = vector.load %arg6[%c0_14, %c0_15] : memref<1x8xf32, #tpu.memory_space<vmem>>, vector<1x8xf32>
      %17 = vector.broadcast %16 : vector<1x8xf32> to vector<56x8xf32>
      %18 = arith.addf %15, %17 : vector<56x8xf32>
      %cst_16 = arith.constant 0.000000e+00 : f32
      %19 = vector.broadcast %cst_16 : f32 to vector<56x8xf32>
      %20 = arith.maximumf %18, %19 : vector<56x8xf32>
      %c0_17 = arith.constant 0 : index
      %c0_18 = arith.constant 0 : index
      %21 = vector.load %arg7[%c0_17, %c0_18] : memref<56x8xf32, #tpu.memory_space<vmem>>, vector<56x8xf32>
      tpu.vector_store %arg7[%c0_17, %c0_18], %20 {strides = array<i32>} : memref<56x8xf32, #tpu.memory_space<vmem>>, vector<56x8xf32>,
    } else {
    }
    return
  }
  func.func @transform_0(%arg0: i32, %arg1: i32, %arg2: i32) -> (i32, i32) {
    %c0_i32 = arith.constant 0 : i32
    return %arg0, %arg2 : i32, i32
  }
  func.func @transform_1(%arg0: i32, %arg1: i32, %arg2: i32) -> (i32, i32) {
    %c0_i32 = arith.constant 0 : i32
    return %arg2, %arg1 : i32, i32
  }
  func.func @transform_2(%arg0: i32, %arg1: i32, %arg2: i32) -> (i32, i32) {
    %c0_i32 = arith.constant 0 : i32
    %c0_i32_0 = arith.constant 0 : i32
    return %c0_i32, %arg1 : i32, i32
  }
  func.func @transform_3(%arg0: i32, %arg1: i32, %arg2: i32) -> (i32, i32) {
    %c0_i32 = arith.constant 0 : i32
    %c0_i32_0 = arith.constant 0 : i32
    return %c0_i32, %arg1 : i32, i32
  }
  func.func @transform_4(%arg0: i32, %arg1: i32, %arg2: i32) -> (i32, i32) {
    %c0_i32 = arith.constant 0 : i32
    return %arg0, %arg1 : i32, i32
  }
}

module attributes {stable_mosaic.version = 11 : i64} {
  func.func @_conv_mm_kernel(%arg0: i32, %arg1: i32, %arg2: i32, %arg3: memref<56x8xbf16, #tpu.memory_space<vmem>>, %arg4: memref<8x32xbf16, #tpu.memory_space<vmem>>, %arg5: memref<1x32xf32, #tpu.memory_space<vmem>>, %arg6: memref<1x32xf32, #tpu.memory_space<vmem>>, %arg7: memref<56x32xf32, #tpu.memory_space<vmem>>, %arg8: memref<56x32xf32, #tpu.memory_space<vmem>>) attributes {dimension_semantics = [#tpu.dimension_semantics<parallel>, #tpu.dimension_semantics<parallel>, #tpu.dimension_semantics<arbitrary>], iteration_bounds = array<i64: 1, 1, 1>, scalar_prefetch = 0 : i64, scratch_operands = 1 : i64, tpu.core_type = #tpu.core_type<tc>, window_params = [{transform_indices = @transform_0, window_bounds = array<i64: 56, 8>}, {transform_indices = @transform_1, window_bounds = array<i64: 8, 32>}, {transform_indices = @transform_2, window_bounds = array<i64: 1, 32>}, {transform_indices = @transform_3, window_bounds = array<i64: 1, 32>}, {transform_indices = @transform_4, window_bounds = array<i64: 56, 32>}]} {
    %c0_i32 = arith.constant 0 : i32
    %0 = arith.cmpi eq, %arg2, %c0_i32 : i32
    %1 = arith.extui %0 : i1 to i32
    %c0_i32_0 = arith.constant 0 : i32
    %2 = arith.cmpi ne, %1, %c0_i32_0 : i32
    scf.if %2 {
      %cst_10 = arith.constant 0.000000e+00 : f32
      %12 = vector.broadcast %cst_10 : f32 to vector<56x32xf32>
      %c0_11 = arith.constant 0 : index
      %c0_12 = arith.constant 0 : index
      %13 = vector.load %arg8[%c0_11, %c0_12] : memref<56x32xf32, #tpu.memory_space<vmem>>, vector<56x32xf32>
      tpu.vector_store %arg8[%c0_11, %c0_12], %12 {strides = array<i32>} : memref<56x32xf32, #tpu.memory_space<vmem>>, vector<56x32xf32>,
    } else {
    }
    %c0 = arith.constant 0 : index
    %c0_1 = arith.constant 0 : index
    %3 = vector.load %arg8[%c0, %c0_1] : memref<56x32xf32, #tpu.memory_space<vmem>>, vector<56x32xf32>
    %c0_2 = arith.constant 0 : index
    %c0_3 = arith.constant 0 : index
    %4 = vector.load %arg3[%c0_2, %c0_3] : memref<56x8xbf16, #tpu.memory_space<vmem>>, vector<56x8xbf16>
    %c0_4 = arith.constant 0 : index
    %c0_5 = arith.constant 0 : index
    %5 = vector.load %arg4[%c0_4, %c0_5] : memref<8x32xbf16, #tpu.memory_space<vmem>>, vector<8x32xbf16>
    %cst = arith.constant dense<0.000000e+00> : vector<56x32xf32>
    %6 = tpu.matmul %4, %5, %cst {dimension_numbers = #tpu.dot_dimension_numbers<[1], [0], [0], [1], [0, 0, 1, 1], [], []>} : vector<56x8xbf16>, vector<8x32xbf16>, vector<56x32xf32> -> vector<56x32xf32>
    %7 = arith.addf %3, %6 : vector<56x32xf32>
    %c0_6 = arith.constant 0 : index
    %c0_7 = arith.constant 0 : index
    %8 = vector.load %arg8[%c0_6, %c0_7] : memref<56x32xf32, #tpu.memory_space<vmem>>, vector<56x32xf32>
    tpu.vector_store %arg8[%c0_6, %c0_7], %7 {strides = array<i32>} : memref<56x32xf32, #tpu.memory_space<vmem>>, vector<56x32xf32>,
    %c0_i32_8 = arith.constant 0 : i32
    %9 = arith.cmpi eq, %arg2, %c0_i32_8 : i32
    %10 = arith.extui %9 : i1 to i32
    %c0_i32_9 = arith.constant 0 : i32
    %11 = arith.cmpi ne, %10, %c0_i32_9 : i32
    scf.if %11 {
      %c0_10 = arith.constant 0 : index
      %c0_11 = arith.constant 0 : index
      %12 = vector.load %arg8[%c0_10, %c0_11] : memref<56x32xf32, #tpu.memory_space<vmem>>, vector<56x32xf32>
      %c0_12 = arith.constant 0 : index
      %c0_13 = arith.constant 0 : index
      %13 = vector.load %arg5[%c0_12, %c0_13] : memref<1x32xf32, #tpu.memory_space<vmem>>, vector<1x32xf32>
      %14 = vector.broadcast %13 : vector<1x32xf32> to vector<56x32xf32>
      %15 = arith.mulf %12, %14 : vector<56x32xf32>
      %c0_14 = arith.constant 0 : index
      %c0_15 = arith.constant 0 : index
      %16 = vector.load %arg6[%c0_14, %c0_15] : memref<1x32xf32, #tpu.memory_space<vmem>>, vector<1x32xf32>
      %17 = vector.broadcast %16 : vector<1x32xf32> to vector<56x32xf32>
      %18 = arith.addf %15, %17 : vector<56x32xf32>
      %c0_16 = arith.constant 0 : index
      %c0_17 = arith.constant 0 : index
      %19 = vector.load %arg7[%c0_16, %c0_17] : memref<56x32xf32, #tpu.memory_space<vmem>>, vector<56x32xf32>
      tpu.vector_store %arg7[%c0_16, %c0_17], %18 {strides = array<i32>} : memref<56x32xf32, #tpu.memory_space<vmem>>, vector<56x32xf32>,
    } else {
    }
    return
  }
  func.func @transform_0(%arg0: i32, %arg1: i32, %arg2: i32) -> (i32, i32) {
    %c0_i32 = arith.constant 0 : i32
    return %arg0, %arg2 : i32, i32
  }
  func.func @transform_1(%arg0: i32, %arg1: i32, %arg2: i32) -> (i32, i32) {
    %c0_i32 = arith.constant 0 : i32
    return %arg2, %arg1 : i32, i32
  }
  func.func @transform_2(%arg0: i32, %arg1: i32, %arg2: i32) -> (i32, i32) {
    %c0_i32 = arith.constant 0 : i32
    %c0_i32_0 = arith.constant 0 : i32
    return %c0_i32, %arg1 : i32, i32
  }
  func.func @transform_3(%arg0: i32, %arg1: i32, %arg2: i32) -> (i32, i32) {
    %c0_i32 = arith.constant 0 : i32
    %c0_i32_0 = arith.constant 0 : i32
    return %c0_i32, %arg1 : i32, i32
  }
  func.func @transform_4(%arg0: i32, %arg1: i32, %arg2: i32) -> (i32, i32) {
    %c0_i32 = arith.constant 0 : i32
    return %arg0, %arg1 : i32, i32
  }
}

module attributes {stable_mosaic.version = 11 : i64} {
  func.func @_conv_mm_kernel(%arg0: i32, %arg1: i32, %arg2: i32, %arg3: memref<56x8xbf16, #tpu.memory_space<vmem>>, %arg4: memref<8x32xbf16, #tpu.memory_space<vmem>>, %arg5: memref<1x32xf32, #tpu.memory_space<vmem>>, %arg6: memref<1x32xf32, #tpu.memory_space<vmem>>, %arg7: memref<56x32xf32, #tpu.memory_space<vmem>>, %arg8: memref<56x32xf32, #tpu.memory_space<vmem>>, %arg9: memref<56x32xf32, #tpu.memory_space<vmem>>) attributes {dimension_semantics = [#tpu.dimension_semantics<parallel>, #tpu.dimension_semantics<parallel>, #tpu.dimension_semantics<arbitrary>], iteration_bounds = array<i64: 1, 1, 1>, scalar_prefetch = 0 : i64, scratch_operands = 1 : i64, tpu.core_type = #tpu.core_type<tc>, window_params = [{transform_indices = @transform_0, window_bounds = array<i64: 56, 8>}, {transform_indices = @transform_1, window_bounds = array<i64: 8, 32>}, {transform_indices = @transform_2, window_bounds = array<i64: 1, 32>}, {transform_indices = @transform_3, window_bounds = array<i64: 1, 32>}, {transform_indices = @transform_4, window_bounds = array<i64: 56, 32>}, {transform_indices = @transform_5, window_bounds = array<i64: 56, 32>}]} {
    %c0_i32 = arith.constant 0 : i32
    %0 = arith.cmpi eq, %arg2, %c0_i32 : i32
    %1 = arith.extui %0 : i1 to i32
    %c0_i32_0 = arith.constant 0 : i32
    %2 = arith.cmpi ne, %1, %c0_i32_0 : i32
    scf.if %2 {
      %cst_10 = arith.constant 0.000000e+00 : f32
      %12 = vector.broadcast %cst_10 : f32 to vector<56x32xf32>
      %c0_11 = arith.constant 0 : index
      %c0_12 = arith.constant 0 : index
      %13 = vector.load %arg9[%c0_11, %c0_12] : memref<56x32xf32, #tpu.memory_space<vmem>>, vector<56x32xf32>
      tpu.vector_store %arg9[%c0_11, %c0_12], %12 {strides = array<i32>} : memref<56x32xf32, #tpu.memory_space<vmem>>, vector<56x32xf32>,
    } else {
    }
    %c0 = arith.constant 0 : index
    %c0_1 = arith.constant 0 : index
    %3 = vector.load %arg9[%c0, %c0_1] : memref<56x32xf32, #tpu.memory_space<vmem>>, vector<56x32xf32>
    %c0_2 = arith.constant 0 : index
    %c0_3 = arith.constant 0 : index
    %4 = vector.load %arg3[%c0_2, %c0_3] : memref<56x8xbf16, #tpu.memory_space<vmem>>, vector<56x8xbf16>
    %c0_4 = arith.constant 0 : index
    %c0_5 = arith.constant 0 : index
    %5 = vector.load %arg4[%c0_4, %c0_5] : memref<8x32xbf16, #tpu.memory_space<vmem>>, vector<8x32xbf16>
    %cst = arith.constant dense<0.000000e+00> : vector<56x32xf32>
    %6 = tpu.matmul %4, %5, %cst {dimension_numbers = #tpu.dot_dimension_numbers<[1], [0], [0], [1], [0, 0, 1, 1], [], []>} : vector<56x8xbf16>, vector<8x32xbf16>, vector<56x32xf32> -> vector<56x32xf32>
    %7 = arith.addf %3, %6 : vector<56x32xf32>
    %c0_6 = arith.constant 0 : index
    %c0_7 = arith.constant 0 : index
    %8 = vector.load %arg9[%c0_6, %c0_7] : memref<56x32xf32, #tpu.memory_space<vmem>>, vector<56x32xf32>
    tpu.vector_store %arg9[%c0_6, %c0_7], %7 {strides = array<i32>} : memref<56x32xf32, #tpu.memory_space<vmem>>, vector<56x32xf32>,
    %c0_i32_8 = arith.constant 0 : i32
    %9 = arith.cmpi eq, %arg2, %c0_i32_8 : i32
    %10 = arith.extui %9 : i1 to i32
    %c0_i32_9 = arith.constant 0 : i32
    %11 = arith.cmpi ne, %10, %c0_i32_9 : i32
    scf.if %11 {
      %c0_10 = arith.constant 0 : index
      %c0_11 = arith.constant 0 : index
      %12 = vector.load %arg9[%c0_10, %c0_11] : memref<56x32xf32, #tpu.memory_space<vmem>>, vector<56x32xf32>
      %c0_12 = arith.constant 0 : index
      %c0_13 = arith.constant 0 : index
      %13 = vector.load %arg5[%c0_12, %c0_13] : memref<1x32xf32, #tpu.memory_space<vmem>>, vector<1x32xf32>
      %14 = vector.broadcast %13 : vector<1x32xf32> to vector<56x32xf32>
      %15 = arith.mulf %12, %14 : vector<56x32xf32>
      %c0_14 = arith.constant 0 : index
      %c0_15 = arith.constant 0 : index
      %16 = vector.load %arg6[%c0_14, %c0_15] : memref<1x32xf32, #tpu.memory_space<vmem>>, vector<1x32xf32>
      %17 = vector.broadcast %16 : vector<1x32xf32> to vector<56x32xf32>
      %18 = arith.addf %15, %17 : vector<56x32xf32>
      %c0_16 = arith.constant 0 : index
      %c0_17 = arith.constant 0 : index
      %19 = vector.load %arg7[%c0_16, %c0_17] : memref<56x32xf32, #tpu.memory_space<vmem>>, vector<56x32xf32>
      %20 = arith.addf %18, %19 : vector<56x32xf32>
      %cst_18 = arith.constant 0.000000e+00 : f32
      %21 = vector.broadcast %cst_18 : f32 to vector<56x32xf32>
      %22 = arith.maximumf %20, %21 : vector<56x32xf32>
      %c0_19 = arith.constant 0 : index
      %c0_20 = arith.constant 0 : index
      %23 = vector.load %arg8[%c0_19, %c0_20] : memref<56x32xf32, #tpu.memory_space<vmem>>, vector<56x32xf32>
      tpu.vector_store %arg8[%c0_19, %c0_20], %22 {strides = array<i32>} : memref<56x32xf32, #tpu.memory_space<vmem>>, vector<56x32xf32>,
    } else {
    }
    return
  }
  func.func @transform_0(%arg0: i32, %arg1: i32, %arg2: i32) -> (i32, i32) {
    %c0_i32 = arith.constant 0 : i32
    return %arg0, %arg2 : i32, i32
  }
  func.func @transform_1(%arg0: i32, %arg1: i32, %arg2: i32) -> (i32, i32) {
    %c0_i32 = arith.constant 0 : i32
    return %arg2, %arg1 : i32, i32
  }
  func.func @transform_2(%arg0: i32, %arg1: i32, %arg2: i32) -> (i32, i32) {
    %c0_i32 = arith.constant 0 : i32
    %c0_i32_0 = arith.constant 0 : i32
    return %c0_i32, %arg1 : i32, i32
  }
  func.func @transform_3(%arg0: i32, %arg1: i32, %arg2: i32) -> (i32, i32) {
    %c0_i32 = arith.constant 0 : i32
    %c0_i32_0 = arith.constant 0 : i32
    return %c0_i32, %arg1 : i32, i32
  }
  func.func @transform_4(%arg0: i32, %arg1: i32, %arg2: i32) -> (i32, i32) {
    %c0_i32 = arith.constant 0 : i32
    return %arg0, %arg1 : i32, i32
  }
  func.func @transform_5(%arg0: i32, %arg1: i32, %arg2: i32) -> (i32, i32) {
    %c0_i32 = arith.constant 0 : i32
    return %arg0, %arg1 : i32, i32
  }
}

module attributes {stable_mosaic.version = 11 : i64} {
  func.func @_conv_mm_kernel(%arg0: i32, %arg1: i32, %arg2: i32, %arg3: memref<56x72xbf16, #tpu.memory_space<vmem>>, %arg4: memref<72x8xbf16, #tpu.memory_space<vmem>>, %arg5: memref<1x8xf32, #tpu.memory_space<vmem>>, %arg6: memref<1x8xf32, #tpu.memory_space<vmem>>, %arg7: memref<56x8xf32, #tpu.memory_space<vmem>>, %arg8: memref<56x8xf32, #tpu.memory_space<vmem>>) attributes {dimension_semantics = [#tpu.dimension_semantics<parallel>, #tpu.dimension_semantics<parallel>, #tpu.dimension_semantics<arbitrary>], iteration_bounds = array<i64: 1, 1, 1>, scalar_prefetch = 0 : i64, scratch_operands = 1 : i64, tpu.core_type = #tpu.core_type<tc>, window_params = [{transform_indices = @transform_0, window_bounds = array<i64: 56, 72>}, {transform_indices = @transform_1, window_bounds = array<i64: 72, 8>}, {transform_indices = @transform_2, window_bounds = array<i64: 1, 8>}, {transform_indices = @transform_3, window_bounds = array<i64: 1, 8>}, {transform_indices = @transform_4, window_bounds = array<i64: 56, 8>}]} {
    %c0_i32 = arith.constant 0 : i32
    %0 = arith.cmpi eq, %arg2, %c0_i32 : i32
    %1 = arith.extui %0 : i1 to i32
    %c0_i32_0 = arith.constant 0 : i32
    %2 = arith.cmpi ne, %1, %c0_i32_0 : i32
    scf.if %2 {
      %cst_10 = arith.constant 0.000000e+00 : f32
      %12 = vector.broadcast %cst_10 : f32 to vector<56x8xf32>
      %c0_11 = arith.constant 0 : index
      %c0_12 = arith.constant 0 : index
      %13 = vector.load %arg8[%c0_11, %c0_12] : memref<56x8xf32, #tpu.memory_space<vmem>>, vector<56x8xf32>
      tpu.vector_store %arg8[%c0_11, %c0_12], %12 {strides = array<i32>} : memref<56x8xf32, #tpu.memory_space<vmem>>, vector<56x8xf32>,
    } else {
    }
    %c0 = arith.constant 0 : index
    %c0_1 = arith.constant 0 : index
    %3 = vector.load %arg8[%c0, %c0_1] : memref<56x8xf32, #tpu.memory_space<vmem>>, vector<56x8xf32>
    %c0_2 = arith.constant 0 : index
    %c0_3 = arith.constant 0 : index
    %4 = vector.load %arg3[%c0_2, %c0_3] : memref<56x72xbf16, #tpu.memory_space<vmem>>, vector<56x72xbf16>
    %c0_4 = arith.constant 0 : index
    %c0_5 = arith.constant 0 : index
    %5 = vector.load %arg4[%c0_4, %c0_5] : memref<72x8xbf16, #tpu.memory_space<vmem>>, vector<72x8xbf16>
    %cst = arith.constant dense<0.000000e+00> : vector<56x8xf32>
    %6 = tpu.matmul %4, %5, %cst {dimension_numbers = #tpu.dot_dimension_numbers<[1], [0], [0], [1], [0, 0, 1, 1], [], []>} : vector<56x72xbf16>, vector<72x8xbf16>, vector<56x8xf32> -> vector<56x8xf32>
    %7 = arith.addf %3, %6 : vector<56x8xf32>
    %c0_6 = arith.constant 0 : index
    %c0_7 = arith.constant 0 : index
    %8 = vector.load %arg8[%c0_6, %c0_7] : memref<56x8xf32, #tpu.memory_space<vmem>>, vector<56x8xf32>
    tpu.vector_store %arg8[%c0_6, %c0_7], %7 {strides = array<i32>} : memref<56x8xf32, #tpu.memory_space<vmem>>, vector<56x8xf32>,
    %c0_i32_8 = arith.constant 0 : i32
    %9 = arith.cmpi eq, %arg2, %c0_i32_8 : i32
    %10 = arith.extui %9 : i1 to i32
    %c0_i32_9 = arith.constant 0 : i32
    %11 = arith.cmpi ne, %10, %c0_i32_9 : i32
    scf.if %11 {
      %c0_10 = arith.constant 0 : index
      %c0_11 = arith.constant 0 : index
      %12 = vector.load %arg8[%c0_10, %c0_11] : memref<56x8xf32, #tpu.memory_space<vmem>>, vector<56x8xf32>
      %c0_12 = arith.constant 0 : index
      %c0_13 = arith.constant 0 : index
      %13 = vector.load %arg5[%c0_12, %c0_13] : memref<1x8xf32, #tpu.memory_space<vmem>>, vector<1x8xf32>
      %14 = vector.broadcast %13 : vector<1x8xf32> to vector<56x8xf32>
      %15 = arith.mulf %12, %14 : vector<56x8xf32>
      %c0_14 = arith.constant 0 : index
      %c0_15 = arith.constant 0 : index
      %16 = vector.load %arg6[%c0_14, %c0_15] : memref<1x8xf32, #tpu.memory_space<vmem>>, vector<1x8xf32>
      %17 = vector.broadcast %16 : vector<1x8xf32> to vector<56x8xf32>
      %18 = arith.addf %15, %17 : vector<56x8xf32>
      %cst_16 = arith.constant 0.000000e+00 : f32
      %19 = vector.broadcast %cst_16 : f32 to vector<56x8xf32>
      %20 = arith.maximumf %18, %19 : vector<56x8xf32>
      %c0_17 = arith.constant 0 : index
      %c0_18 = arith.constant 0 : index
      %21 = vector.load %arg7[%c0_17, %c0_18] : memref<56x8xf32, #tpu.memory_space<vmem>>, vector<56x8xf32>
      tpu.vector_store %arg7[%c0_17, %c0_18], %20 {strides = array<i32>} : memref<56x8xf32, #tpu.memory_space<vmem>>, vector<56x8xf32>,
    } else {
    }
    return
  }
  func.func @transform_0(%arg0: i32, %arg1: i32, %arg2: i32) -> (i32, i32) {
    %c0_i32 = arith.constant 0 : i32
    return %arg0, %arg2 : i32, i32
  }
  func.func @transform_1(%arg0: i32, %arg1: i32, %arg2: i32) -> (i32, i32) {
    %c0_i32 = arith.constant 0 : i32
    return %arg2, %arg1 : i32, i32
  }
  func.func @transform_2(%arg0: i32, %arg1: i32, %arg2: i32) -> (i32, i32) {
    %c0_i32 = arith.constant 0 : i32
    %c0_i32_0 = arith.constant 0 : i32
    return %c0_i32, %arg1 : i32, i32
  }
  func.func @transform_3(%arg0: i32, %arg1: i32, %arg2: i32) -> (i32, i32) {
    %c0_i32 = arith.constant 0 : i32
    %c0_i32_0 = arith.constant 0 : i32
    return %c0_i32, %arg1 : i32, i32
  }
  func.func @transform_4(%arg0: i32, %arg1: i32, %arg2: i32) -> (i32, i32) {
    %c0_i32 = arith.constant 0 : i32
    return %arg0, %arg1 : i32, i32
  }
}

module attributes {stable_mosaic.version = 11 : i64} {
  func.func @_conv_mm_kernel(%arg0: i32, %arg1: i32, %arg2: i32, %arg3: memref<24x32xbf16, #tpu.memory_space<vmem>>, %arg4: memref<32x16xbf16, #tpu.memory_space<vmem>>, %arg5: memref<1x16xf32, #tpu.memory_space<vmem>>, %arg6: memref<1x16xf32, #tpu.memory_space<vmem>>, %arg7: memref<24x16xf32, #tpu.memory_space<vmem>>, %arg8: memref<24x16xf32, #tpu.memory_space<vmem>>) attributes {dimension_semantics = [#tpu.dimension_semantics<parallel>, #tpu.dimension_semantics<parallel>, #tpu.dimension_semantics<arbitrary>], iteration_bounds = array<i64: 1, 1, 1>, scalar_prefetch = 0 : i64, scratch_operands = 1 : i64, tpu.core_type = #tpu.core_type<tc>, window_params = [{transform_indices = @transform_0, window_bounds = array<i64: 24, 32>}, {transform_indices = @transform_1, window_bounds = array<i64: 32, 16>}, {transform_indices = @transform_2, window_bounds = array<i64: 1, 16>}, {transform_indices = @transform_3, window_bounds = array<i64: 1, 16>}, {transform_indices = @transform_4, window_bounds = array<i64: 24, 16>}]} {
    %c0_i32 = arith.constant 0 : i32
    %0 = arith.cmpi eq, %arg2, %c0_i32 : i32
    %1 = arith.extui %0 : i1 to i32
    %c0_i32_0 = arith.constant 0 : i32
    %2 = arith.cmpi ne, %1, %c0_i32_0 : i32
    scf.if %2 {
      %cst_10 = arith.constant 0.000000e+00 : f32
      %12 = vector.broadcast %cst_10 : f32 to vector<24x16xf32>
      %c0_11 = arith.constant 0 : index
      %c0_12 = arith.constant 0 : index
      %13 = vector.load %arg8[%c0_11, %c0_12] : memref<24x16xf32, #tpu.memory_space<vmem>>, vector<24x16xf32>
      tpu.vector_store %arg8[%c0_11, %c0_12], %12 {strides = array<i32>} : memref<24x16xf32, #tpu.memory_space<vmem>>, vector<24x16xf32>,
    } else {
    }
    %c0 = arith.constant 0 : index
    %c0_1 = arith.constant 0 : index
    %3 = vector.load %arg8[%c0, %c0_1] : memref<24x16xf32, #tpu.memory_space<vmem>>, vector<24x16xf32>
    %c0_2 = arith.constant 0 : index
    %c0_3 = arith.constant 0 : index
    %4 = vector.load %arg3[%c0_2, %c0_3] : memref<24x32xbf16, #tpu.memory_space<vmem>>, vector<24x32xbf16>
    %c0_4 = arith.constant 0 : index
    %c0_5 = arith.constant 0 : index
    %5 = vector.load %arg4[%c0_4, %c0_5] : memref<32x16xbf16, #tpu.memory_space<vmem>>, vector<32x16xbf16>
    %cst = arith.constant dense<0.000000e+00> : vector<24x16xf32>
    %6 = tpu.matmul %4, %5, %cst {dimension_numbers = #tpu.dot_dimension_numbers<[1], [0], [0], [1], [0, 0, 1, 1], [], []>} : vector<24x32xbf16>, vector<32x16xbf16>, vector<24x16xf32> -> vector<24x16xf32>
    %7 = arith.addf %3, %6 : vector<24x16xf32>
    %c0_6 = arith.constant 0 : index
    %c0_7 = arith.constant 0 : index
    %8 = vector.load %arg8[%c0_6, %c0_7] : memref<24x16xf32, #tpu.memory_space<vmem>>, vector<24x16xf32>
    tpu.vector_store %arg8[%c0_6, %c0_7], %7 {strides = array<i32>} : memref<24x16xf32, #tpu.memory_space<vmem>>, vector<24x16xf32>,
    %c0_i32_8 = arith.constant 0 : i32
    %9 = arith.cmpi eq, %arg2, %c0_i32_8 : i32
    %10 = arith.extui %9 : i1 to i32
    %c0_i32_9 = arith.constant 0 : i32
    %11 = arith.cmpi ne, %10, %c0_i32_9 : i32
    scf.if %11 {
      %c0_10 = arith.constant 0 : index
      %c0_11 = arith.constant 0 : index
      %12 = vector.load %arg8[%c0_10, %c0_11] : memref<24x16xf32, #tpu.memory_space<vmem>>, vector<24x16xf32>
      %c0_12 = arith.constant 0 : index
      %c0_13 = arith.constant 0 : index
      %13 = vector.load %arg5[%c0_12, %c0_13] : memref<1x16xf32, #tpu.memory_space<vmem>>, vector<1x16xf32>
      %14 = vector.broadcast %13 : vector<1x16xf32> to vector<24x16xf32>
      %15 = arith.mulf %12, %14 : vector<24x16xf32>
      %c0_14 = arith.constant 0 : index
      %c0_15 = arith.constant 0 : index
      %16 = vector.load %arg6[%c0_14, %c0_15] : memref<1x16xf32, #tpu.memory_space<vmem>>, vector<1x16xf32>
      %17 = vector.broadcast %16 : vector<1x16xf32> to vector<24x16xf32>
      %18 = arith.addf %15, %17 : vector<24x16xf32>
      %cst_16 = arith.constant 0.000000e+00 : f32
      %19 = vector.broadcast %cst_16 : f32 to vector<24x16xf32>
      %20 = arith.maximumf %18, %19 : vector<24x16xf32>
      %c0_17 = arith.constant 0 : index
      %c0_18 = arith.constant 0 : index
      %21 = vector.load %arg7[%c0_17, %c0_18] : memref<24x16xf32, #tpu.memory_space<vmem>>, vector<24x16xf32>
      tpu.vector_store %arg7[%c0_17, %c0_18], %20 {strides = array<i32>} : memref<24x16xf32, #tpu.memory_space<vmem>>, vector<24x16xf32>,
    } else {
    }
    return
  }
  func.func @transform_0(%arg0: i32, %arg1: i32, %arg2: i32) -> (i32, i32) {
    %c0_i32 = arith.constant 0 : i32
    return %arg0, %arg2 : i32, i32
  }
  func.func @transform_1(%arg0: i32, %arg1: i32, %arg2: i32) -> (i32, i32) {
    %c0_i32 = arith.constant 0 : i32
    return %arg2, %arg1 : i32, i32
  }
  func.func @transform_2(%arg0: i32, %arg1: i32, %arg2: i32) -> (i32, i32) {
    %c0_i32 = arith.constant 0 : i32
    %c0_i32_0 = arith.constant 0 : i32
    return %c0_i32, %arg1 : i32, i32
  }
  func.func @transform_3(%arg0: i32, %arg1: i32, %arg2: i32) -> (i32, i32) {
    %c0_i32 = arith.constant 0 : i32
    %c0_i32_0 = arith.constant 0 : i32
    return %c0_i32, %arg1 : i32, i32
  }
  func.func @transform_4(%arg0: i32, %arg1: i32, %arg2: i32) -> (i32, i32) {
    %c0_i32 = arith.constant 0 : i32
    return %arg0, %arg1 : i32, i32
  }
}

module attributes {stable_mosaic.version = 11 : i64} {
  func.func @_conv_mm_kernel(%arg0: i32, %arg1: i32, %arg2: i32, %arg3: memref<24x32xbf16, #tpu.memory_space<vmem>>, %arg4: memref<32x64xbf16, #tpu.memory_space<vmem>>, %arg5: memref<1x64xf32, #tpu.memory_space<vmem>>, %arg6: memref<1x64xf32, #tpu.memory_space<vmem>>, %arg7: memref<24x64xf32, #tpu.memory_space<vmem>>, %arg8: memref<24x64xf32, #tpu.memory_space<vmem>>) attributes {dimension_semantics = [#tpu.dimension_semantics<parallel>, #tpu.dimension_semantics<parallel>, #tpu.dimension_semantics<arbitrary>], iteration_bounds = array<i64: 1, 1, 1>, scalar_prefetch = 0 : i64, scratch_operands = 1 : i64, tpu.core_type = #tpu.core_type<tc>, window_params = [{transform_indices = @transform_0, window_bounds = array<i64: 24, 32>}, {transform_indices = @transform_1, window_bounds = array<i64: 32, 64>}, {transform_indices = @transform_2, window_bounds = array<i64: 1, 64>}, {transform_indices = @transform_3, window_bounds = array<i64: 1, 64>}, {transform_indices = @transform_4, window_bounds = array<i64: 24, 64>}]} {
    %c0_i32 = arith.constant 0 : i32
    %0 = arith.cmpi eq, %arg2, %c0_i32 : i32
    %1 = arith.extui %0 : i1 to i32
    %c0_i32_0 = arith.constant 0 : i32
    %2 = arith.cmpi ne, %1, %c0_i32_0 : i32
    scf.if %2 {
      %cst_10 = arith.constant 0.000000e+00 : f32
      %12 = vector.broadcast %cst_10 : f32 to vector<24x64xf32>
      %c0_11 = arith.constant 0 : index
      %c0_12 = arith.constant 0 : index
      %13 = vector.load %arg8[%c0_11, %c0_12] : memref<24x64xf32, #tpu.memory_space<vmem>>, vector<24x64xf32>
      tpu.vector_store %arg8[%c0_11, %c0_12], %12 {strides = array<i32>} : memref<24x64xf32, #tpu.memory_space<vmem>>, vector<24x64xf32>,
    } else {
    }
    %c0 = arith.constant 0 : index
    %c0_1 = arith.constant 0 : index
    %3 = vector.load %arg8[%c0, %c0_1] : memref<24x64xf32, #tpu.memory_space<vmem>>, vector<24x64xf32>
    %c0_2 = arith.constant 0 : index
    %c0_3 = arith.constant 0 : index
    %4 = vector.load %arg3[%c0_2, %c0_3] : memref<24x32xbf16, #tpu.memory_space<vmem>>, vector<24x32xbf16>
    %c0_4 = arith.constant 0 : index
    %c0_5 = arith.constant 0 : index
    %5 = vector.load %arg4[%c0_4, %c0_5] : memref<32x64xbf16, #tpu.memory_space<vmem>>, vector<32x64xbf16>
    %cst = arith.constant dense<0.000000e+00> : vector<24x64xf32>
    %6 = tpu.matmul %4, %5, %cst {dimension_numbers = #tpu.dot_dimension_numbers<[1], [0], [0], [1], [0, 0, 1, 1], [], []>} : vector<24x32xbf16>, vector<32x64xbf16>, vector<24x64xf32> -> vector<24x64xf32>
    %7 = arith.addf %3, %6 : vector<24x64xf32>
    %c0_6 = arith.constant 0 : index
    %c0_7 = arith.constant 0 : index
    %8 = vector.load %arg8[%c0_6, %c0_7] : memref<24x64xf32, #tpu.memory_space<vmem>>, vector<24x64xf32>
    tpu.vector_store %arg8[%c0_6, %c0_7], %7 {strides = array<i32>} : memref<24x64xf32, #tpu.memory_space<vmem>>, vector<24x64xf32>,
    %c0_i32_8 = arith.constant 0 : i32
    %9 = arith.cmpi eq, %arg2, %c0_i32_8 : i32
    %10 = arith.extui %9 : i1 to i32
    %c0_i32_9 = arith.constant 0 : i32
    %11 = arith.cmpi ne, %10, %c0_i32_9 : i32
    scf.if %11 {
      %c0_10 = arith.constant 0 : index
      %c0_11 = arith.constant 0 : index
      %12 = vector.load %arg8[%c0_10, %c0_11] : memref<24x64xf32, #tpu.memory_space<vmem>>, vector<24x64xf32>
      %c0_12 = arith.constant 0 : index
      %c0_13 = arith.constant 0 : index
      %13 = vector.load %arg5[%c0_12, %c0_13] : memref<1x64xf32, #tpu.memory_space<vmem>>, vector<1x64xf32>
      %14 = vector.broadcast %13 : vector<1x64xf32> to vector<24x64xf32>
      %15 = arith.mulf %12, %14 : vector<24x64xf32>
      %c0_14 = arith.constant 0 : index
      %c0_15 = arith.constant 0 : index
      %16 = vector.load %arg6[%c0_14, %c0_15] : memref<1x64xf32, #tpu.memory_space<vmem>>, vector<1x64xf32>
      %17 = vector.broadcast %16 : vector<1x64xf32> to vector<24x64xf32>
      %18 = arith.addf %15, %17 : vector<24x64xf32>
      %c0_16 = arith.constant 0 : index
      %c0_17 = arith.constant 0 : index
      %19 = vector.load %arg7[%c0_16, %c0_17] : memref<24x64xf32, #tpu.memory_space<vmem>>, vector<24x64xf32>
      tpu.vector_store %arg7[%c0_16, %c0_17], %18 {strides = array<i32>} : memref<24x64xf32, #tpu.memory_space<vmem>>, vector<24x64xf32>,
    } else {
    }
    return
  }
  func.func @transform_0(%arg0: i32, %arg1: i32, %arg2: i32) -> (i32, i32) {
    %c0_i32 = arith.constant 0 : i32
    return %arg0, %arg2 : i32, i32
  }
  func.func @transform_1(%arg0: i32, %arg1: i32, %arg2: i32) -> (i32, i32) {
    %c0_i32 = arith.constant 0 : i32
    return %arg2, %arg1 : i32, i32
  }
  func.func @transform_2(%arg0: i32, %arg1: i32, %arg2: i32) -> (i32, i32) {
    %c0_i32 = arith.constant 0 : i32
    %c0_i32_0 = arith.constant 0 : i32
    return %c0_i32, %arg1 : i32, i32
  }
  func.func @transform_3(%arg0: i32, %arg1: i32, %arg2: i32) -> (i32, i32) {
    %c0_i32 = arith.constant 0 : i32
    %c0_i32_0 = arith.constant 0 : i32
    return %c0_i32, %arg1 : i32, i32
  }
  func.func @transform_4(%arg0: i32, %arg1: i32, %arg2: i32) -> (i32, i32) {
    %c0_i32 = arith.constant 0 : i32
    return %arg0, %arg1 : i32, i32
  }
}

module attributes {stable_mosaic.version = 11 : i64} {
  func.func @_conv_mm_kernel(%arg0: i32, %arg1: i32, %arg2: i32, %arg3: memref<24x256xbf16, #tpu.memory_space<vmem>>, %arg4: memref<256x16xbf16, #tpu.memory_space<vmem>>, %arg5: memref<1x16xf32, #tpu.memory_space<vmem>>, %arg6: memref<1x16xf32, #tpu.memory_space<vmem>>, %arg7: memref<24x16xf32, #tpu.memory_space<vmem>>, %arg8: memref<24x16xf32, #tpu.memory_space<vmem>>) attributes {dimension_semantics = [#tpu.dimension_semantics<parallel>, #tpu.dimension_semantics<parallel>, #tpu.dimension_semantics<arbitrary>], iteration_bounds = array<i64: 1, 1, 1>, scalar_prefetch = 0 : i64, scratch_operands = 1 : i64, tpu.core_type = #tpu.core_type<tc>, window_params = [{transform_indices = @transform_0, window_bounds = array<i64: 24, 256>}, {transform_indices = @transform_1, window_bounds = array<i64: 256, 16>}, {transform_indices = @transform_2, window_bounds = array<i64: 1, 16>}, {transform_indices = @transform_3, window_bounds = array<i64: 1, 16>}, {transform_indices = @transform_4, window_bounds = array<i64: 24, 16>}]} {
    %c0_i32 = arith.constant 0 : i32
    %0 = arith.cmpi eq, %arg2, %c0_i32 : i32
    %1 = arith.extui %0 : i1 to i32
    %c0_i32_0 = arith.constant 0 : i32
    %2 = arith.cmpi ne, %1, %c0_i32_0 : i32
    scf.if %2 {
      %cst_10 = arith.constant 0.000000e+00 : f32
      %12 = vector.broadcast %cst_10 : f32 to vector<24x16xf32>
      %c0_11 = arith.constant 0 : index
      %c0_12 = arith.constant 0 : index
      %13 = vector.load %arg8[%c0_11, %c0_12] : memref<24x16xf32, #tpu.memory_space<vmem>>, vector<24x16xf32>
      tpu.vector_store %arg8[%c0_11, %c0_12], %12 {strides = array<i32>} : memref<24x16xf32, #tpu.memory_space<vmem>>, vector<24x16xf32>,
    } else {
    }
    %c0 = arith.constant 0 : index
    %c0_1 = arith.constant 0 : index
    %3 = vector.load %arg8[%c0, %c0_1] : memref<24x16xf32, #tpu.memory_space<vmem>>, vector<24x16xf32>
    %c0_2 = arith.constant 0 : index
    %c0_3 = arith.constant 0 : index
    %4 = vector.load %arg3[%c0_2, %c0_3] : memref<24x256xbf16, #tpu.memory_space<vmem>>, vector<24x256xbf16>
    %c0_4 = arith.constant 0 : index
    %c0_5 = arith.constant 0 : index
    %5 = vector.load %arg4[%c0_4, %c0_5] : memref<256x16xbf16, #tpu.memory_space<vmem>>, vector<256x16xbf16>
    %cst = arith.constant dense<0.000000e+00> : vector<24x16xf32>
    %6 = tpu.matmul %4, %5, %cst {dimension_numbers = #tpu.dot_dimension_numbers<[1], [0], [0], [1], [0, 0, 1, 1], [], []>} : vector<24x256xbf16>, vector<256x16xbf16>, vector<24x16xf32> -> vector<24x16xf32>
    %7 = arith.addf %3, %6 : vector<24x16xf32>
    %c0_6 = arith.constant 0 : index
    %c0_7 = arith.constant 0 : index
    %8 = vector.load %arg8[%c0_6, %c0_7] : memref<24x16xf32, #tpu.memory_space<vmem>>, vector<24x16xf32>
    tpu.vector_store %arg8[%c0_6, %c0_7], %7 {strides = array<i32>} : memref<24x16xf32, #tpu.memory_space<vmem>>, vector<24x16xf32>,
    %c0_i32_8 = arith.constant 0 : i32
    %9 = arith.cmpi eq, %arg2, %c0_i32_8 : i32
    %10 = arith.extui %9 : i1 to i32
    %c0_i32_9 = arith.constant 0 : i32
    %11 = arith.cmpi ne, %10, %c0_i32_9 : i32
    scf.if %11 {
      %c0_10 = arith.constant 0 : index
      %c0_11 = arith.constant 0 : index
      %12 = vector.load %arg8[%c0_10, %c0_11] : memref<24x16xf32, #tpu.memory_space<vmem>>, vector<24x16xf32>
      %c0_12 = arith.constant 0 : index
      %c0_13 = arith.constant 0 : index
      %13 = vector.load %arg5[%c0_12, %c0_13] : memref<1x16xf32, #tpu.memory_space<vmem>>, vector<1x16xf32>
      %14 = vector.broadcast %13 : vector<1x16xf32> to vector<24x16xf32>
      %15 = arith.mulf %12, %14 : vector<24x16xf32>
      %c0_14 = arith.constant 0 : index
      %c0_15 = arith.constant 0 : index
      %16 = vector.load %arg6[%c0_14, %c0_15] : memref<1x16xf32, #tpu.memory_space<vmem>>, vector<1x16xf32>
      %17 = vector.broadcast %16 : vector<1x16xf32> to vector<24x16xf32>
      %18 = arith.addf %15, %17 : vector<24x16xf32>
      %cst_16 = arith.constant 0.000000e+00 : f32
      %19 = vector.broadcast %cst_16 : f32 to vector<24x16xf32>
      %20 = arith.maximumf %18, %19 : vector<24x16xf32>
      %c0_17 = arith.constant 0 : index
      %c0_18 = arith.constant 0 : index
      %21 = vector.load %arg7[%c0_17, %c0_18] : memref<24x16xf32, #tpu.memory_space<vmem>>, vector<24x16xf32>
      tpu.vector_store %arg7[%c0_17, %c0_18], %20 {strides = array<i32>} : memref<24x16xf32, #tpu.memory_space<vmem>>, vector<24x16xf32>,
    } else {
    }
    return
  }
  func.func @transform_0(%arg0: i32, %arg1: i32, %arg2: i32) -> (i32, i32) {
    %c0_i32 = arith.constant 0 : i32
    return %arg0, %arg2 : i32, i32
  }
  func.func @transform_1(%arg0: i32, %arg1: i32, %arg2: i32) -> (i32, i32) {
    %c0_i32 = arith.constant 0 : i32
    return %arg2, %arg1 : i32, i32
  }
  func.func @transform_2(%arg0: i32, %arg1: i32, %arg2: i32) -> (i32, i32) {
    %c0_i32 = arith.constant 0 : i32
    %c0_i32_0 = arith.constant 0 : i32
    return %c0_i32, %arg1 : i32, i32
  }
  func.func @transform_3(%arg0: i32, %arg1: i32, %arg2: i32) -> (i32, i32) {
    %c0_i32 = arith.constant 0 : i32
    %c0_i32_0 = arith.constant 0 : i32
    return %c0_i32, %arg1 : i32, i32
  }
  func.func @transform_4(%arg0: i32, %arg1: i32, %arg2: i32) -> (i32, i32) {
    %c0_i32 = arith.constant 0 : i32
    return %arg0, %arg1 : i32, i32
  }
}

module attributes {stable_mosaic.version = 11 : i64} {
  func.func @_conv_mm_kernel(%arg0: i32, %arg1: i32, %arg2: i32, %arg3: memref<24x16xbf16, #tpu.memory_space<vmem>>, %arg4: memref<16x64xbf16, #tpu.memory_space<vmem>>, %arg5: memref<1x64xf32, #tpu.memory_space<vmem>>, %arg6: memref<1x64xf32, #tpu.memory_space<vmem>>, %arg7: memref<24x64xf32, #tpu.memory_space<vmem>>, %arg8: memref<24x64xf32, #tpu.memory_space<vmem>>, %arg9: memref<24x64xf32, #tpu.memory_space<vmem>>) attributes {dimension_semantics = [#tpu.dimension_semantics<parallel>, #tpu.dimension_semantics<parallel>, #tpu.dimension_semantics<arbitrary>], iteration_bounds = array<i64: 1, 1, 1>, scalar_prefetch = 0 : i64, scratch_operands = 1 : i64, tpu.core_type = #tpu.core_type<tc>, window_params = [{transform_indices = @transform_0, window_bounds = array<i64: 24, 16>}, {transform_indices = @transform_1, window_bounds = array<i64: 16, 64>}, {transform_indices = @transform_2, window_bounds = array<i64: 1, 64>}, {transform_indices = @transform_3, window_bounds = array<i64: 1, 64>}, {transform_indices = @transform_4, window_bounds = array<i64: 24, 64>}, {transform_indices = @transform_5, window_bounds = array<i64: 24, 64>}]} {
    %c0_i32 = arith.constant 0 : i32
    %0 = arith.cmpi eq, %arg2, %c0_i32 : i32
    %1 = arith.extui %0 : i1 to i32
    %c0_i32_0 = arith.constant 0 : i32
    %2 = arith.cmpi ne, %1, %c0_i32_0 : i32
    scf.if %2 {
      %cst_10 = arith.constant 0.000000e+00 : f32
      %12 = vector.broadcast %cst_10 : f32 to vector<24x64xf32>
      %c0_11 = arith.constant 0 : index
      %c0_12 = arith.constant 0 : index
      %13 = vector.load %arg9[%c0_11, %c0_12] : memref<24x64xf32, #tpu.memory_space<vmem>>, vector<24x64xf32>
      tpu.vector_store %arg9[%c0_11, %c0_12], %12 {strides = array<i32>} : memref<24x64xf32, #tpu.memory_space<vmem>>, vector<24x64xf32>,
    } else {
    }
    %c0 = arith.constant 0 : index
    %c0_1 = arith.constant 0 : index
    %3 = vector.load %arg9[%c0, %c0_1] : memref<24x64xf32, #tpu.memory_space<vmem>>, vector<24x64xf32>
    %c0_2 = arith.constant 0 : index
    %c0_3 = arith.constant 0 : index
    %4 = vector.load %arg3[%c0_2, %c0_3] : memref<24x16xbf16, #tpu.memory_space<vmem>>, vector<24x16xbf16>
    %c0_4 = arith.constant 0 : index
    %c0_5 = arith.constant 0 : index
    %5 = vector.load %arg4[%c0_4, %c0_5] : memref<16x64xbf16, #tpu.memory_space<vmem>>, vector<16x64xbf16>
    %cst = arith.constant dense<0.000000e+00> : vector<24x64xf32>
    %6 = tpu.matmul %4, %5, %cst {dimension_numbers = #tpu.dot_dimension_numbers<[1], [0], [0], [1], [0, 0, 1, 1], [], []>} : vector<24x16xbf16>, vector<16x64xbf16>, vector<24x64xf32> -> vector<24x64xf32>
    %7 = arith.addf %3, %6 : vector<24x64xf32>
    %c0_6 = arith.constant 0 : index
    %c0_7 = arith.constant 0 : index
    %8 = vector.load %arg9[%c0_6, %c0_7] : memref<24x64xf32, #tpu.memory_space<vmem>>, vector<24x64xf32>
    tpu.vector_store %arg9[%c0_6, %c0_7], %7 {strides = array<i32>} : memref<24x64xf32, #tpu.memory_space<vmem>>, vector<24x64xf32>,
    %c0_i32_8 = arith.constant 0 : i32
    %9 = arith.cmpi eq, %arg2, %c0_i32_8 : i32
    %10 = arith.extui %9 : i1 to i32
    %c0_i32_9 = arith.constant 0 : i32
    %11 = arith.cmpi ne, %10, %c0_i32_9 : i32
    scf.if %11 {
      %c0_10 = arith.constant 0 : index
      %c0_11 = arith.constant 0 : index
      %12 = vector.load %arg9[%c0_10, %c0_11] : memref<24x64xf32, #tpu.memory_space<vmem>>, vector<24x64xf32>
      %c0_12 = arith.constant 0 : index
      %c0_13 = arith.constant 0 : index
      %13 = vector.load %arg5[%c0_12, %c0_13] : memref<1x64xf32, #tpu.memory_space<vmem>>, vector<1x64xf32>
      %14 = vector.broadcast %13 : vector<1x64xf32> to vector<24x64xf32>
      %15 = arith.mulf %12, %14 : vector<24x64xf32>
      %c0_14 = arith.constant 0 : index
      %c0_15 = arith.constant 0 : index
      %16 = vector.load %arg6[%c0_14, %c0_15] : memref<1x64xf32, #tpu.memory_space<vmem>>, vector<1x64xf32>
      %17 = vector.broadcast %16 : vector<1x64xf32> to vector<24x64xf32>
      %18 = arith.addf %15, %17 : vector<24x64xf32>
      %c0_16 = arith.constant 0 : index
      %c0_17 = arith.constant 0 : index
      %19 = vector.load %arg7[%c0_16, %c0_17] : memref<24x64xf32, #tpu.memory_space<vmem>>, vector<24x64xf32>
      %20 = arith.addf %18, %19 : vector<24x64xf32>
      %cst_18 = arith.constant 0.000000e+00 : f32
      %21 = vector.broadcast %cst_18 : f32 to vector<24x64xf32>
      %22 = arith.maximumf %20, %21 : vector<24x64xf32>
      %c0_19 = arith.constant 0 : index
      %c0_20 = arith.constant 0 : index
      %23 = vector.load %arg8[%c0_19, %c0_20] : memref<24x64xf32, #tpu.memory_space<vmem>>, vector<24x64xf32>
      tpu.vector_store %arg8[%c0_19, %c0_20], %22 {strides = array<i32>} : memref<24x64xf32, #tpu.memory_space<vmem>>, vector<24x64xf32>,
    } else {
    }
    return
  }
  func.func @transform_0(%arg0: i32, %arg1: i32, %arg2: i32) -> (i32, i32) {
    %c0_i32 = arith.constant 0 : i32
    return %arg0, %arg2 : i32, i32
  }
  func.func @transform_1(%arg0: i32, %arg1: i32, %arg2: i32) -> (i32, i32) {
    %c0_i32 = arith.constant 0 : i32
    return %arg2, %arg1 : i32, i32
  }
  func.func @transform_2(%arg0: i32, %arg1: i32, %arg2: i32) -> (i32, i32) {
    %c0_i32 = arith.constant 0 : i32
    %c0_i32_0 = arith.constant 0 : i32
    return %c0_i32, %arg1 : i32, i32
  }
  func.func @transform_3(%arg0: i32, %arg1: i32, %arg2: i32) -> (i32, i32) {
    %c0_i32 = arith.constant 0 : i32
    %c0_i32_0 = arith.constant 0 : i32
    return %c0_i32, %arg1 : i32, i32
  }
  func.func @transform_4(%arg0: i32, %arg1: i32, %arg2: i32) -> (i32, i32) {
    %c0_i32 = arith.constant 0 : i32
    return %arg0, %arg1 : i32, i32
  }
  func.func @transform_5(%arg0: i32, %arg1: i32, %arg2: i32) -> (i32, i32) {
    %c0_i32 = arith.constant 0 : i32
    return %arg0, %arg1 : i32, i32
  }
}

module attributes {stable_mosaic.version = 11 : i64} {
  func.func @_conv_mm_kernel(%arg0: i32, %arg1: i32, %arg2: i32, %arg3: memref<24x64xbf16, #tpu.memory_space<vmem>>, %arg4: memref<64x32xbf16, #tpu.memory_space<vmem>>, %arg5: memref<1x32xf32, #tpu.memory_space<vmem>>, %arg6: memref<1x32xf32, #tpu.memory_space<vmem>>, %arg7: memref<24x32xf32, #tpu.memory_space<vmem>>, %arg8: memref<24x32xf32, #tpu.memory_space<vmem>>) attributes {dimension_semantics = [#tpu.dimension_semantics<parallel>, #tpu.dimension_semantics<parallel>, #tpu.dimension_semantics<arbitrary>], iteration_bounds = array<i64: 1, 1, 1>, scalar_prefetch = 0 : i64, scratch_operands = 1 : i64, tpu.core_type = #tpu.core_type<tc>, window_params = [{transform_indices = @transform_0, window_bounds = array<i64: 24, 64>}, {transform_indices = @transform_1, window_bounds = array<i64: 64, 32>}, {transform_indices = @transform_2, window_bounds = array<i64: 1, 32>}, {transform_indices = @transform_3, window_bounds = array<i64: 1, 32>}, {transform_indices = @transform_4, window_bounds = array<i64: 24, 32>}]} {
    %c0_i32 = arith.constant 0 : i32
    %0 = arith.cmpi eq, %arg2, %c0_i32 : i32
    %1 = arith.extui %0 : i1 to i32
    %c0_i32_0 = arith.constant 0 : i32
    %2 = arith.cmpi ne, %1, %c0_i32_0 : i32
    scf.if %2 {
      %cst_10 = arith.constant 0.000000e+00 : f32
      %12 = vector.broadcast %cst_10 : f32 to vector<24x32xf32>
      %c0_11 = arith.constant 0 : index
      %c0_12 = arith.constant 0 : index
      %13 = vector.load %arg8[%c0_11, %c0_12] : memref<24x32xf32, #tpu.memory_space<vmem>>, vector<24x32xf32>
      tpu.vector_store %arg8[%c0_11, %c0_12], %12 {strides = array<i32>} : memref<24x32xf32, #tpu.memory_space<vmem>>, vector<24x32xf32>,
    } else {
    }
    %c0 = arith.constant 0 : index
    %c0_1 = arith.constant 0 : index
    %3 = vector.load %arg8[%c0, %c0_1] : memref<24x32xf32, #tpu.memory_space<vmem>>, vector<24x32xf32>
    %c0_2 = arith.constant 0 : index
    %c0_3 = arith.constant 0 : index
    %4 = vector.load %arg3[%c0_2, %c0_3] : memref<24x64xbf16, #tpu.memory_space<vmem>>, vector<24x64xbf16>
    %c0_4 = arith.constant 0 : index
    %c0_5 = arith.constant 0 : index
    %5 = vector.load %arg4[%c0_4, %c0_5] : memref<64x32xbf16, #tpu.memory_space<vmem>>, vector<64x32xbf16>
    %cst = arith.constant dense<0.000000e+00> : vector<24x32xf32>
    %6 = tpu.matmul %4, %5, %cst {dimension_numbers = #tpu.dot_dimension_numbers<[1], [0], [0], [1], [0, 0, 1, 1], [], []>} : vector<24x64xbf16>, vector<64x32xbf16>, vector<24x32xf32> -> vector<24x32xf32>
    %7 = arith.addf %3, %6 : vector<24x32xf32>
    %c0_6 = arith.constant 0 : index
    %c0_7 = arith.constant 0 : index
    %8 = vector.load %arg8[%c0_6, %c0_7] : memref<24x32xf32, #tpu.memory_space<vmem>>, vector<24x32xf32>
    tpu.vector_store %arg8[%c0_6, %c0_7], %7 {strides = array<i32>} : memref<24x32xf32, #tpu.memory_space<vmem>>, vector<24x32xf32>,
    %c0_i32_8 = arith.constant 0 : i32
    %9 = arith.cmpi eq, %arg2, %c0_i32_8 : i32
    %10 = arith.extui %9 : i1 to i32
    %c0_i32_9 = arith.constant 0 : i32
    %11 = arith.cmpi ne, %10, %c0_i32_9 : i32
    scf.if %11 {
      %c0_10 = arith.constant 0 : index
      %c0_11 = arith.constant 0 : index
      %12 = vector.load %arg8[%c0_10, %c0_11] : memref<24x32xf32, #tpu.memory_space<vmem>>, vector<24x32xf32>
      %c0_12 = arith.constant 0 : index
      %c0_13 = arith.constant 0 : index
      %13 = vector.load %arg5[%c0_12, %c0_13] : memref<1x32xf32, #tpu.memory_space<vmem>>, vector<1x32xf32>
      %14 = vector.broadcast %13 : vector<1x32xf32> to vector<24x32xf32>
      %15 = arith.mulf %12, %14 : vector<24x32xf32>
      %c0_14 = arith.constant 0 : index
      %c0_15 = arith.constant 0 : index
      %16 = vector.load %arg6[%c0_14, %c0_15] : memref<1x32xf32, #tpu.memory_space<vmem>>, vector<1x32xf32>
      %17 = vector.broadcast %16 : vector<1x32xf32> to vector<24x32xf32>
      %18 = arith.addf %15, %17 : vector<24x32xf32>
      %cst_16 = arith.constant 0.000000e+00 : f32
      %19 = vector.broadcast %cst_16 : f32 to vector<24x32xf32>
      %20 = arith.maximumf %18, %19 : vector<24x32xf32>
      %c0_17 = arith.constant 0 : index
      %c0_18 = arith.constant 0 : index
      %21 = vector.load %arg7[%c0_17, %c0_18] : memref<24x32xf32, #tpu.memory_space<vmem>>, vector<24x32xf32>
      tpu.vector_store %arg7[%c0_17, %c0_18], %20 {strides = array<i32>} : memref<24x32xf32, #tpu.memory_space<vmem>>, vector<24x32xf32>,
    } else {
    }
    return
  }
  func.func @transform_0(%arg0: i32, %arg1: i32, %arg2: i32) -> (i32, i32) {
    %c0_i32 = arith.constant 0 : i32
    return %arg0, %arg2 : i32, i32
  }
  func.func @transform_1(%arg0: i32, %arg1: i32, %arg2: i32) -> (i32, i32) {
    %c0_i32 = arith.constant 0 : i32
    return %arg2, %arg1 : i32, i32
  }
  func.func @transform_2(%arg0: i32, %arg1: i32, %arg2: i32) -> (i32, i32) {
    %c0_i32 = arith.constant 0 : i32
    %c0_i32_0 = arith.constant 0 : i32
    return %c0_i32, %arg1 : i32, i32
  }
  func.func @transform_3(%arg0: i32, %arg1: i32, %arg2: i32) -> (i32, i32) {
    %c0_i32 = arith.constant 0 : i32
    %c0_i32_0 = arith.constant 0 : i32
    return %c0_i32, %arg1 : i32, i32
  }
  func.func @transform_4(%arg0: i32, %arg1: i32, %arg2: i32) -> (i32, i32) {
    %c0_i32 = arith.constant 0 : i32
    return %arg0, %arg1 : i32, i32
  }
}

module attributes {stable_mosaic.version = 11 : i64} {
  func.func @_conv_mm_kernel(%arg0: i32, %arg1: i32, %arg2: i32, %arg3: memref<24x64xbf16, #tpu.memory_space<vmem>>, %arg4: memref<64x128xbf16, #tpu.memory_space<vmem>>, %arg5: memref<1x128xf32, #tpu.memory_space<vmem>>, %arg6: memref<1x128xf32, #tpu.memory_space<vmem>>, %arg7: memref<24x128xf32, #tpu.memory_space<vmem>>, %arg8: memref<24x128xf32, #tpu.memory_space<vmem>>) attributes {dimension_semantics = [#tpu.dimension_semantics<parallel>, #tpu.dimension_semantics<parallel>, #tpu.dimension_semantics<arbitrary>], iteration_bounds = array<i64: 1, 1, 1>, scalar_prefetch = 0 : i64, scratch_operands = 1 : i64, tpu.core_type = #tpu.core_type<tc>, window_params = [{transform_indices = @transform_0, window_bounds = array<i64: 24, 64>}, {transform_indices = @transform_1, window_bounds = array<i64: 64, 128>}, {transform_indices = @transform_2, window_bounds = array<i64: 1, 128>}, {transform_indices = @transform_3, window_bounds = array<i64: 1, 128>}, {transform_indices = @transform_4, window_bounds = array<i64: 24, 128>}]} {
    %c0_i32 = arith.constant 0 : i32
    %0 = arith.cmpi eq, %arg2, %c0_i32 : i32
    %1 = arith.extui %0 : i1 to i32
    %c0_i32_0 = arith.constant 0 : i32
    %2 = arith.cmpi ne, %1, %c0_i32_0 : i32
    scf.if %2 {
      %cst_10 = arith.constant 0.000000e+00 : f32
      %12 = vector.broadcast %cst_10 : f32 to vector<24x128xf32>
      %c0_11 = arith.constant 0 : index
      %c0_12 = arith.constant 0 : index
      %13 = vector.load %arg8[%c0_11, %c0_12] : memref<24x128xf32, #tpu.memory_space<vmem>>, vector<24x128xf32>
      tpu.vector_store %arg8[%c0_11, %c0_12], %12 {strides = array<i32>} : memref<24x128xf32, #tpu.memory_space<vmem>>, vector<24x128xf32>,
    } else {
    }
    %c0 = arith.constant 0 : index
    %c0_1 = arith.constant 0 : index
    %3 = vector.load %arg8[%c0, %c0_1] : memref<24x128xf32, #tpu.memory_space<vmem>>, vector<24x128xf32>
    %c0_2 = arith.constant 0 : index
    %c0_3 = arith.constant 0 : index
    %4 = vector.load %arg3[%c0_2, %c0_3] : memref<24x64xbf16, #tpu.memory_space<vmem>>, vector<24x64xbf16>
    %c0_4 = arith.constant 0 : index
    %c0_5 = arith.constant 0 : index
    %5 = vector.load %arg4[%c0_4, %c0_5] : memref<64x128xbf16, #tpu.memory_space<vmem>>, vector<64x128xbf16>
    %cst = arith.constant dense<0.000000e+00> : vector<24x128xf32>
    %6 = tpu.matmul %4, %5, %cst {dimension_numbers = #tpu.dot_dimension_numbers<[1], [0], [0], [1], [0, 0, 1, 1], [], []>} : vector<24x64xbf16>, vector<64x128xbf16>, vector<24x128xf32> -> vector<24x128xf32>
    %7 = arith.addf %3, %6 : vector<24x128xf32>
    %c0_6 = arith.constant 0 : index
    %c0_7 = arith.constant 0 : index
    %8 = vector.load %arg8[%c0_6, %c0_7] : memref<24x128xf32, #tpu.memory_space<vmem>>, vector<24x128xf32>
    tpu.vector_store %arg8[%c0_6, %c0_7], %7 {strides = array<i32>} : memref<24x128xf32, #tpu.memory_space<vmem>>, vector<24x128xf32>,
    %c0_i32_8 = arith.constant 0 : i32
    %9 = arith.cmpi eq, %arg2, %c0_i32_8 : i32
    %10 = arith.extui %9 : i1 to i32
    %c0_i32_9 = arith.constant 0 : i32
    %11 = arith.cmpi ne, %10, %c0_i32_9 : i32
    scf.if %11 {
      %c0_10 = arith.constant 0 : index
      %c0_11 = arith.constant 0 : index
      %12 = vector.load %arg8[%c0_10, %c0_11] : memref<24x128xf32, #tpu.memory_space<vmem>>, vector<24x128xf32>
      %c0_12 = arith.constant 0 : index
      %c0_13 = arith.constant 0 : index
      %13 = vector.load %arg5[%c0_12, %c0_13] : memref<1x128xf32, #tpu.memory_space<vmem>>, vector<1x128xf32>
      %14 = vector.broadcast %13 : vector<1x128xf32> to vector<24x128xf32>
      %15 = arith.mulf %12, %14 : vector<24x128xf32>
      %c0_14 = arith.constant 0 : index
      %c0_15 = arith.constant 0 : index
      %16 = vector.load %arg6[%c0_14, %c0_15] : memref<1x128xf32, #tpu.memory_space<vmem>>, vector<1x128xf32>
      %17 = vector.broadcast %16 : vector<1x128xf32> to vector<24x128xf32>
      %18 = arith.addf %15, %17 : vector<24x128xf32>
      %c0_16 = arith.constant 0 : index
      %c0_17 = arith.constant 0 : index
      %19 = vector.load %arg7[%c0_16, %c0_17] : memref<24x128xf32, #tpu.memory_space<vmem>>, vector<24x128xf32>
      tpu.vector_store %arg7[%c0_16, %c0_17], %18 {strides = array<i32>} : memref<24x128xf32, #tpu.memory_space<vmem>>, vector<24x128xf32>,
    } else {
    }
    return
  }
  func.func @transform_0(%arg0: i32, %arg1: i32, %arg2: i32) -> (i32, i32) {
    %c0_i32 = arith.constant 0 : i32
    return %arg0, %arg2 : i32, i32
  }
  func.func @transform_1(%arg0: i32, %arg1: i32, %arg2: i32) -> (i32, i32) {
    %c0_i32 = arith.constant 0 : i32
    return %arg2, %arg1 : i32, i32
  }
  func.func @transform_2(%arg0: i32, %arg1: i32, %arg2: i32) -> (i32, i32) {
    %c0_i32 = arith.constant 0 : i32
    %c0_i32_0 = arith.constant 0 : i32
    return %c0_i32, %arg1 : i32, i32
  }
  func.func @transform_3(%arg0: i32, %arg1: i32, %arg2: i32) -> (i32, i32) {
    %c0_i32 = arith.constant 0 : i32
    %c0_i32_0 = arith.constant 0 : i32
    return %c0_i32, %arg1 : i32, i32
  }
  func.func @transform_4(%arg0: i32, %arg1: i32, %arg2: i32) -> (i32, i32) {
    %c0_i32 = arith.constant 0 : i32
    return %arg0, %arg1 : i32, i32
  }
}

module attributes {stable_mosaic.version = 11 : i64} {
  func.func @_conv_mm_kernel(%arg0: i32, %arg1: i32, %arg2: i32, %arg3: memref<24x384xbf16, #tpu.memory_space<vmem>>, %arg4: memref<384x32xbf16, #tpu.memory_space<vmem>>, %arg5: memref<1x32xf32, #tpu.memory_space<vmem>>, %arg6: memref<1x32xf32, #tpu.memory_space<vmem>>, %arg7: memref<24x32xf32, #tpu.memory_space<vmem>>, %arg8: memref<24x32xf32, #tpu.memory_space<vmem>>) attributes {dimension_semantics = [#tpu.dimension_semantics<parallel>, #tpu.dimension_semantics<parallel>, #tpu.dimension_semantics<arbitrary>], iteration_bounds = array<i64: 1, 1, 1>, scalar_prefetch = 0 : i64, scratch_operands = 1 : i64, tpu.core_type = #tpu.core_type<tc>, window_params = [{transform_indices = @transform_0, window_bounds = array<i64: 24, 384>}, {transform_indices = @transform_1, window_bounds = array<i64: 384, 32>}, {transform_indices = @transform_2, window_bounds = array<i64: 1, 32>}, {transform_indices = @transform_3, window_bounds = array<i64: 1, 32>}, {transform_indices = @transform_4, window_bounds = array<i64: 24, 32>}]} {
    %c0_i32 = arith.constant 0 : i32
    %0 = arith.cmpi eq, %arg2, %c0_i32 : i32
    %1 = arith.extui %0 : i1 to i32
    %c0_i32_0 = arith.constant 0 : i32
    %2 = arith.cmpi ne, %1, %c0_i32_0 : i32
    scf.if %2 {
      %cst_10 = arith.constant 0.000000e+00 : f32
      %12 = vector.broadcast %cst_10 : f32 to vector<24x32xf32>
      %c0_11 = arith.constant 0 : index
      %c0_12 = arith.constant 0 : index
      %13 = vector.load %arg8[%c0_11, %c0_12] : memref<24x32xf32, #tpu.memory_space<vmem>>, vector<24x32xf32>
      tpu.vector_store %arg8[%c0_11, %c0_12], %12 {strides = array<i32>} : memref<24x32xf32, #tpu.memory_space<vmem>>, vector<24x32xf32>,
    } else {
    }
    %c0 = arith.constant 0 : index
    %c0_1 = arith.constant 0 : index
    %3 = vector.load %arg8[%c0, %c0_1] : memref<24x32xf32, #tpu.memory_space<vmem>>, vector<24x32xf32>
    %c0_2 = arith.constant 0 : index
    %c0_3 = arith.constant 0 : index
    %4 = vector.load %arg3[%c0_2, %c0_3] : memref<24x384xbf16, #tpu.memory_space<vmem>>, vector<24x384xbf16>
    %c0_4 = arith.constant 0 : index
    %c0_5 = arith.constant 0 : index
    %5 = vector.load %arg4[%c0_4, %c0_5] : memref<384x32xbf16, #tpu.memory_space<vmem>>, vector<384x32xbf16>
    %cst = arith.constant dense<0.000000e+00> : vector<24x32xf32>
    %6 = tpu.matmul %4, %5, %cst {dimension_numbers = #tpu.dot_dimension_numbers<[1], [0], [0], [1], [0, 0, 1, 1], [], []>} : vector<24x384xbf16>, vector<384x32xbf16>, vector<24x32xf32> -> vector<24x32xf32>
    %7 = arith.addf %3, %6 : vector<24x32xf32>
    %c0_6 = arith.constant 0 : index
    %c0_7 = arith.constant 0 : index
    %8 = vector.load %arg8[%c0_6, %c0_7] : memref<24x32xf32, #tpu.memory_space<vmem>>, vector<24x32xf32>
    tpu.vector_store %arg8[%c0_6, %c0_7], %7 {strides = array<i32>} : memref<24x32xf32, #tpu.memory_space<vmem>>, vector<24x32xf32>,
    %c0_i32_8 = arith.constant 0 : i32
    %9 = arith.cmpi eq, %arg2, %c0_i32_8 : i32
    %10 = arith.extui %9 : i1 to i32
    %c0_i32_9 = arith.constant 0 : i32
    %11 = arith.cmpi ne, %10, %c0_i32_9 : i32
    scf.if %11 {
      %c0_10 = arith.constant 0 : index
      %c0_11 = arith.constant 0 : index
      %12 = vector.load %arg8[%c0_10, %c0_11] : memref<24x32xf32, #tpu.memory_space<vmem>>, vector<24x32xf32>
      %c0_12 = arith.constant 0 : index
      %c0_13 = arith.constant 0 : index
      %13 = vector.load %arg5[%c0_12, %c0_13] : memref<1x32xf32, #tpu.memory_space<vmem>>, vector<1x32xf32>
      %14 = vector.broadcast %13 : vector<1x32xf32> to vector<24x32xf32>
      %15 = arith.mulf %12, %14 : vector<24x32xf32>
      %c0_14 = arith.constant 0 : index
      %c0_15 = arith.constant 0 : index
      %16 = vector.load %arg6[%c0_14, %c0_15] : memref<1x32xf32, #tpu.memory_space<vmem>>, vector<1x32xf32>
      %17 = vector.broadcast %16 : vector<1x32xf32> to vector<24x32xf32>
      %18 = arith.addf %15, %17 : vector<24x32xf32>
      %cst_16 = arith.constant 0.000000e+00 : f32
      %19 = vector.broadcast %cst_16 : f32 to vector<24x32xf32>
      %20 = arith.maximumf %18, %19 : vector<24x32xf32>
      %c0_17 = arith.constant 0 : index
      %c0_18 = arith.constant 0 : index
      %21 = vector.load %arg7[%c0_17, %c0_18] : memref<24x32xf32, #tpu.memory_space<vmem>>, vector<24x32xf32>
      tpu.vector_store %arg7[%c0_17, %c0_18], %20 {strides = array<i32>} : memref<24x32xf32, #tpu.memory_space<vmem>>, vector<24x32xf32>,
    } else {
    }
    return
  }
  func.func @transform_0(%arg0: i32, %arg1: i32, %arg2: i32) -> (i32, i32) {
    %c0_i32 = arith.constant 0 : i32
    return %arg0, %arg2 : i32, i32
  }
  func.func @transform_1(%arg0: i32, %arg1: i32, %arg2: i32) -> (i32, i32) {
    %c0_i32 = arith.constant 0 : i32
    return %arg2, %arg1 : i32, i32
  }
  func.func @transform_2(%arg0: i32, %arg1: i32, %arg2: i32) -> (i32, i32) {
    %c0_i32 = arith.constant 0 : i32
    %c0_i32_0 = arith.constant 0 : i32
    return %c0_i32, %arg1 : i32, i32
  }
  func.func @transform_3(%arg0: i32, %arg1: i32, %arg2: i32) -> (i32, i32) {
    %c0_i32 = arith.constant 0 : i32
    %c0_i32_0 = arith.constant 0 : i32
    return %c0_i32, %arg1 : i32, i32
  }
  func.func @transform_4(%arg0: i32, %arg1: i32, %arg2: i32) -> (i32, i32) {
    %c0_i32 = arith.constant 0 : i32
    return %arg0, %arg1 : i32, i32
  }
}

module attributes {stable_mosaic.version = 11 : i64} {
  func.func @_conv_mm_kernel(%arg0: i32, %arg1: i32, %arg2: i32, %arg3: memref<24x32xbf16, #tpu.memory_space<vmem>>, %arg4: memref<32x128xbf16, #tpu.memory_space<vmem>>, %arg5: memref<1x128xf32, #tpu.memory_space<vmem>>, %arg6: memref<1x128xf32, #tpu.memory_space<vmem>>, %arg7: memref<24x128xf32, #tpu.memory_space<vmem>>, %arg8: memref<24x128xf32, #tpu.memory_space<vmem>>, %arg9: memref<24x128xf32, #tpu.memory_space<vmem>>) attributes {dimension_semantics = [#tpu.dimension_semantics<parallel>, #tpu.dimension_semantics<parallel>, #tpu.dimension_semantics<arbitrary>], iteration_bounds = array<i64: 1, 1, 1>, scalar_prefetch = 0 : i64, scratch_operands = 1 : i64, tpu.core_type = #tpu.core_type<tc>, window_params = [{transform_indices = @transform_0, window_bounds = array<i64: 24, 32>}, {transform_indices = @transform_1, window_bounds = array<i64: 32, 128>}, {transform_indices = @transform_2, window_bounds = array<i64: 1, 128>}, {transform_indices = @transform_3, window_bounds = array<i64: 1, 128>}, {transform_indices = @transform_4, window_bounds = array<i64: 24, 128>}, {transform_indices = @transform_5, window_bounds = array<i64: 24, 128>}]} {
    %c0_i32 = arith.constant 0 : i32
    %0 = arith.cmpi eq, %arg2, %c0_i32 : i32
    %1 = arith.extui %0 : i1 to i32
    %c0_i32_0 = arith.constant 0 : i32
    %2 = arith.cmpi ne, %1, %c0_i32_0 : i32
    scf.if %2 {
      %cst_10 = arith.constant 0.000000e+00 : f32
      %12 = vector.broadcast %cst_10 : f32 to vector<24x128xf32>
      %c0_11 = arith.constant 0 : index
      %c0_12 = arith.constant 0 : index
      %13 = vector.load %arg9[%c0_11, %c0_12] : memref<24x128xf32, #tpu.memory_space<vmem>>, vector<24x128xf32>
      tpu.vector_store %arg9[%c0_11, %c0_12], %12 {strides = array<i32>} : memref<24x128xf32, #tpu.memory_space<vmem>>, vector<24x128xf32>,
    } else {
    }
    %c0 = arith.constant 0 : index
    %c0_1 = arith.constant 0 : index
    %3 = vector.load %arg9[%c0, %c0_1] : memref<24x128xf32, #tpu.memory_space<vmem>>, vector<24x128xf32>
    %c0_2 = arith.constant 0 : index
    %c0_3 = arith.constant 0 : index
    %4 = vector.load %arg3[%c0_2, %c0_3] : memref<24x32xbf16, #tpu.memory_space<vmem>>, vector<24x32xbf16>
    %c0_4 = arith.constant 0 : index
    %c0_5 = arith.constant 0 : index
    %5 = vector.load %arg4[%c0_4, %c0_5] : memref<32x128xbf16, #tpu.memory_space<vmem>>, vector<32x128xbf16>
    %cst = arith.constant dense<0.000000e+00> : vector<24x128xf32>
    %6 = tpu.matmul %4, %5, %cst {dimension_numbers = #tpu.dot_dimension_numbers<[1], [0], [0], [1], [0, 0, 1, 1], [], []>} : vector<24x32xbf16>, vector<32x128xbf16>, vector<24x128xf32> -> vector<24x128xf32>
    %7 = arith.addf %3, %6 : vector<24x128xf32>
    %c0_6 = arith.constant 0 : index
    %c0_7 = arith.constant 0 : index
    %8 = vector.load %arg9[%c0_6, %c0_7] : memref<24x128xf32, #tpu.memory_space<vmem>>, vector<24x128xf32>
    tpu.vector_store %arg9[%c0_6, %c0_7], %7 {strides = array<i32>} : memref<24x128xf32, #tpu.memory_space<vmem>>, vector<24x128xf32>,
    %c0_i32_8 = arith.constant 0 : i32
    %9 = arith.cmpi eq, %arg2, %c0_i32_8 : i32
    %10 = arith.extui %9 : i1 to i32
    %c0_i32_9 = arith.constant 0 : i32
    %11 = arith.cmpi ne, %10, %c0_i32_9 : i32
    scf.if %11 {
      %c0_10 = arith.constant 0 : index
      %c0_11 = arith.constant 0 : index
      %12 = vector.load %arg9[%c0_10, %c0_11] : memref<24x128xf32, #tpu.memory_space<vmem>>, vector<24x128xf32>
      %c0_12 = arith.constant 0 : index
      %c0_13 = arith.constant 0 : index
      %13 = vector.load %arg5[%c0_12, %c0_13] : memref<1x128xf32, #tpu.memory_space<vmem>>, vector<1x128xf32>
      %14 = vector.broadcast %13 : vector<1x128xf32> to vector<24x128xf32>
      %15 = arith.mulf %12, %14 : vector<24x128xf32>
      %c0_14 = arith.constant 0 : index
      %c0_15 = arith.constant 0 : index
      %16 = vector.load %arg6[%c0_14, %c0_15] : memref<1x128xf32, #tpu.memory_space<vmem>>, vector<1x128xf32>
      %17 = vector.broadcast %16 : vector<1x128xf32> to vector<24x128xf32>
      %18 = arith.addf %15, %17 : vector<24x128xf32>
      %c0_16 = arith.constant 0 : index
      %c0_17 = arith.constant 0 : index
      %19 = vector.load %arg7[%c0_16, %c0_17] : memref<24x128xf32, #tpu.memory_space<vmem>>, vector<24x128xf32>
      %20 = arith.addf %18, %19 : vector<24x128xf32>
      %cst_18 = arith.constant 0.000000e+00 : f32
      %21 = vector.broadcast %cst_18 : f32 to vector<24x128xf32>
      %22 = arith.maximumf %20, %21 : vector<24x128xf32>
      %c0_19 = arith.constant 0 : index
      %c0_20 = arith.constant 0 : index
      %23 = vector.load %arg8[%c0_19, %c0_20] : memref<24x128xf32, #tpu.memory_space<vmem>>, vector<24x128xf32>
      tpu.vector_store %arg8[%c0_19, %c0_20], %22 {strides = array<i32>} : memref<24x128xf32, #tpu.memory_space<vmem>>, vector<24x128xf32>,
    } else {
    }
    return
  }
  func.func @transform_0(%arg0: i32, %arg1: i32, %arg2: i32) -> (i32, i32) {
    %c0_i32 = arith.constant 0 : i32
    return %arg0, %arg2 : i32, i32
  }
  func.func @transform_1(%arg0: i32, %arg1: i32, %arg2: i32) -> (i32, i32) {
    %c0_i32 = arith.constant 0 : i32
    return %arg2, %arg1 : i32, i32
  }
  func.func @transform_2(%arg0: i32, %arg1: i32, %arg2: i32) -> (i32, i32) {
    %c0_i32 = arith.constant 0 : i32
    %c0_i32_0 = arith.constant 0 : i32
    return %c0_i32, %arg1 : i32, i32
  }
  func.func @transform_3(%arg0: i32, %arg1: i32, %arg2: i32) -> (i32, i32) {
    %c0_i32 = arith.constant 0 : i32
    %c0_i32_0 = arith.constant 0 : i32
    return %c0_i32, %arg1 : i32, i32
  }
  func.func @transform_4(%arg0: i32, %arg1: i32, %arg2: i32) -> (i32, i32) {
    %c0_i32 = arith.constant 0 : i32
    return %arg0, %arg1 : i32, i32
  }
  func.func @transform_5(%arg0: i32, %arg1: i32, %arg2: i32) -> (i32, i32) {
    %c0_i32 = arith.constant 0 : i32
    return %arg0, %arg1 : i32, i32
  }
}

module attributes {stable_mosaic.version = 11 : i64} {
  func.func @_conv_mm_kernel(%arg0: i32, %arg1: i32, %arg2: i32, %arg3: memref<24x128xbf16, #tpu.memory_space<vmem>>, %arg4: memref<128x64xbf16, #tpu.memory_space<vmem>>, %arg5: memref<1x64xf32, #tpu.memory_space<vmem>>, %arg6: memref<1x64xf32, #tpu.memory_space<vmem>>, %arg7: memref<24x64xf32, #tpu.memory_space<vmem>>, %arg8: memref<24x64xf32, #tpu.memory_space<vmem>>) attributes {dimension_semantics = [#tpu.dimension_semantics<parallel>, #tpu.dimension_semantics<parallel>, #tpu.dimension_semantics<arbitrary>], iteration_bounds = array<i64: 1, 1, 1>, scalar_prefetch = 0 : i64, scratch_operands = 1 : i64, tpu.core_type = #tpu.core_type<tc>, window_params = [{transform_indices = @transform_0, window_bounds = array<i64: 24, 128>}, {transform_indices = @transform_1, window_bounds = array<i64: 128, 64>}, {transform_indices = @transform_2, window_bounds = array<i64: 1, 64>}, {transform_indices = @transform_3, window_bounds = array<i64: 1, 64>}, {transform_indices = @transform_4, window_bounds = array<i64: 24, 64>}]} {
    %c0_i32 = arith.constant 0 : i32
    %0 = arith.cmpi eq, %arg2, %c0_i32 : i32
    %1 = arith.extui %0 : i1 to i32
    %c0_i32_0 = arith.constant 0 : i32
    %2 = arith.cmpi ne, %1, %c0_i32_0 : i32
    scf.if %2 {
      %cst_10 = arith.constant 0.000000e+00 : f32
      %12 = vector.broadcast %cst_10 : f32 to vector<24x64xf32>
      %c0_11 = arith.constant 0 : index
      %c0_12 = arith.constant 0 : index
      %13 = vector.load %arg8[%c0_11, %c0_12] : memref<24x64xf32, #tpu.memory_space<vmem>>, vector<24x64xf32>
      tpu.vector_store %arg8[%c0_11, %c0_12], %12 {strides = array<i32>} : memref<24x64xf32, #tpu.memory_space<vmem>>, vector<24x64xf32>,
    } else {
    }
    %c0 = arith.constant 0 : index
    %c0_1 = arith.constant 0 : index
    %3 = vector.load %arg8[%c0, %c0_1] : memref<24x64xf32, #tpu.memory_space<vmem>>, vector<24x64xf32>
    %c0_2 = arith.constant 0 : index
    %c0_3 = arith.constant 0 : index
    %4 = vector.load %arg3[%c0_2, %c0_3] : memref<24x128xbf16, #tpu.memory_space<vmem>>, vector<24x128xbf16>
    %c0_4 = arith.constant 0 : index
    %c0_5 = arith.constant 0 : index
    %5 = vector.load %arg4[%c0_4, %c0_5] : memref<128x64xbf16, #tpu.memory_space<vmem>>, vector<128x64xbf16>
    %cst = arith.constant dense<0.000000e+00> : vector<24x64xf32>
    %6 = tpu.matmul %4, %5, %cst {dimension_numbers = #tpu.dot_dimension_numbers<[1], [0], [0], [1], [0, 0, 1, 1], [], []>} : vector<24x128xbf16>, vector<128x64xbf16>, vector<24x64xf32> -> vector<24x64xf32>
    %7 = arith.addf %3, %6 : vector<24x64xf32>
    %c0_6 = arith.constant 0 : index
    %c0_7 = arith.constant 0 : index
    %8 = vector.load %arg8[%c0_6, %c0_7] : memref<24x64xf32, #tpu.memory_space<vmem>>, vector<24x64xf32>
    tpu.vector_store %arg8[%c0_6, %c0_7], %7 {strides = array<i32>} : memref<24x64xf32, #tpu.memory_space<vmem>>, vector<24x64xf32>,
    %c0_i32_8 = arith.constant 0 : i32
    %9 = arith.cmpi eq, %arg2, %c0_i32_8 : i32
    %10 = arith.extui %9 : i1 to i32
    %c0_i32_9 = arith.constant 0 : i32
    %11 = arith.cmpi ne, %10, %c0_i32_9 : i32
    scf.if %11 {
      %c0_10 = arith.constant 0 : index
      %c0_11 = arith.constant 0 : index
      %12 = vector.load %arg8[%c0_10, %c0_11] : memref<24x64xf32, #tpu.memory_space<vmem>>, vector<24x64xf32>
      %c0_12 = arith.constant 0 : index
      %c0_13 = arith.constant 0 : index
      %13 = vector.load %arg5[%c0_12, %c0_13] : memref<1x64xf32, #tpu.memory_space<vmem>>, vector<1x64xf32>
      %14 = vector.broadcast %13 : vector<1x64xf32> to vector<24x64xf32>
      %15 = arith.mulf %12, %14 : vector<24x64xf32>
      %c0_14 = arith.constant 0 : index
      %c0_15 = arith.constant 0 : index
      %16 = vector.load %arg6[%c0_14, %c0_15] : memref<1x64xf32, #tpu.memory_space<vmem>>, vector<1x64xf32>
      %17 = vector.broadcast %16 : vector<1x64xf32> to vector<24x64xf32>
      %18 = arith.addf %15, %17 : vector<24x64xf32>
      %cst_16 = arith.constant 0.000000e+00 : f32
      %19 = vector.broadcast %cst_16 : f32 to vector<24x64xf32>
      %20 = arith.maximumf %18, %19 : vector<24x64xf32>
      %c0_17 = arith.constant 0 : index
      %c0_18 = arith.constant 0 : index
      %21 = vector.load %arg7[%c0_17, %c0_18] : memref<24x64xf32, #tpu.memory_space<vmem>>, vector<24x64xf32>
      tpu.vector_store %arg7[%c0_17, %c0_18], %20 {strides = array<i32>} : memref<24x64xf32, #tpu.memory_space<vmem>>, vector<24x64xf32>,
    } else {
    }
    return
  }
  func.func @transform_0(%arg0: i32, %arg1: i32, %arg2: i32) -> (i32, i32) {
    %c0_i32 = arith.constant 0 : i32
    return %arg0, %arg2 : i32, i32
  }
  func.func @transform_1(%arg0: i32, %arg1: i32, %arg2: i32) -> (i32, i32) {
    %c0_i32 = arith.constant 0 : i32
    return %arg2, %arg1 : i32, i32
  }
  func.func @transform_2(%arg0: i32, %arg1: i32, %arg2: i32) -> (i32, i32) {
    %c0_i32 = arith.constant 0 : i32
    %c0_i32_0 = arith.constant 0 : i32
    return %c0_i32, %arg1 : i32, i32
  }
  func.func @transform_3(%arg0: i32, %arg1: i32, %arg2: i32) -> (i32, i32) {
    %c0_i32 = arith.constant 0 : i32
    %c0_i32_0 = arith.constant 0 : i32
    return %c0_i32, %arg1 : i32, i32
  }
  func.func @transform_4(%arg0: i32, %arg1: i32, %arg2: i32) -> (i32, i32) {
    %c0_i32 = arith.constant 0 : i32
    return %arg0, %arg1 : i32, i32
  }
}

module attributes {stable_mosaic.version = 11 : i64} {
  func.func @_conv_mm_kernel(%arg0: i32, %arg1: i32, %arg2: i32, %arg3: memref<24x128xbf16, #tpu.memory_space<vmem>>, %arg4: memref<128x64xbf16, #tpu.memory_space<vmem>>, %arg5: memref<1x64xf32, #tpu.memory_space<vmem>>, %arg6: memref<1x64xf32, #tpu.memory_space<vmem>>, %arg7: memref<24x64xf32, #tpu.memory_space<vmem>>, %arg8: memref<24x64xf32, #tpu.memory_space<vmem>>) attributes {dimension_semantics = [#tpu.dimension_semantics<parallel>, #tpu.dimension_semantics<parallel>, #tpu.dimension_semantics<arbitrary>], iteration_bounds = array<i64: 1, 1, 5>, scalar_prefetch = 0 : i64, scratch_operands = 1 : i64, tpu.core_type = #tpu.core_type<tc>, window_params = [{transform_indices = @transform_0, window_bounds = array<i64: 24, 128>}, {transform_indices = @transform_1, window_bounds = array<i64: 128, 64>}, {transform_indices = @transform_2, window_bounds = array<i64: 1, 64>}, {transform_indices = @transform_3, window_bounds = array<i64: 1, 64>}, {transform_indices = @transform_4, window_bounds = array<i64: 24, 64>}]} {
    %c0_i32 = arith.constant 0 : i32
    %0 = arith.cmpi eq, %arg2, %c0_i32 : i32
    %1 = arith.extui %0 : i1 to i32
    %c0_i32_0 = arith.constant 0 : i32
    %2 = arith.cmpi ne, %1, %c0_i32_0 : i32
    scf.if %2 {
      %cst_9 = arith.constant 0.000000e+00 : f32
      %12 = vector.broadcast %cst_9 : f32 to vector<24x64xf32>
      %c0_10 = arith.constant 0 : index
      %c0_11 = arith.constant 0 : index
      %13 = vector.load %arg8[%c0_10, %c0_11] : memref<24x64xf32, #tpu.memory_space<vmem>>, vector<24x64xf32>
      tpu.vector_store %arg8[%c0_10, %c0_11], %12 {strides = array<i32>} : memref<24x64xf32, #tpu.memory_space<vmem>>, vector<24x64xf32>,
    } else {
    }
    %c0 = arith.constant 0 : index
    %c0_1 = arith.constant 0 : index
    %3 = vector.load %arg8[%c0, %c0_1] : memref<24x64xf32, #tpu.memory_space<vmem>>, vector<24x64xf32>
    %c0_2 = arith.constant 0 : index
    %c0_3 = arith.constant 0 : index
    %4 = vector.load %arg3[%c0_2, %c0_3] : memref<24x128xbf16, #tpu.memory_space<vmem>>, vector<24x128xbf16>
    %c0_4 = arith.constant 0 : index
    %c0_5 = arith.constant 0 : index
    %5 = vector.load %arg4[%c0_4, %c0_5] : memref<128x64xbf16, #tpu.memory_space<vmem>>, vector<128x64xbf16>
    %cst = arith.constant dense<0.000000e+00> : vector<24x64xf32>
    %6 = tpu.matmul %4, %5, %cst {dimension_numbers = #tpu.dot_dimension_numbers<[1], [0], [0], [1], [0, 0, 1, 1], [], []>} : vector<24x128xbf16>, vector<128x64xbf16>, vector<24x64xf32> -> vector<24x64xf32>
    %7 = arith.addf %3, %6 : vector<24x64xf32>
    %c0_6 = arith.constant 0 : index
    %c0_7 = arith.constant 0 : index
    %8 = vector.load %arg8[%c0_6, %c0_7] : memref<24x64xf32, #tpu.memory_space<vmem>>, vector<24x64xf32>
    tpu.vector_store %arg8[%c0_6, %c0_7], %7 {strides = array<i32>} : memref<24x64xf32, #tpu.memory_space<vmem>>, vector<24x64xf32>,
    %c4_i32 = arith.constant 4 : i32
    %9 = arith.cmpi eq, %arg2, %c4_i32 : i32
    %10 = arith.extui %9 : i1 to i32
    %c0_i32_8 = arith.constant 0 : i32
    %11 = arith.cmpi ne, %10, %c0_i32_8 : i32
    scf.if %11 {
      %c0_9 = arith.constant 0 : index
      %c0_10 = arith.constant 0 : index
      %12 = vector.load %arg8[%c0_9, %c0_10] : memref<24x64xf32, #tpu.memory_space<vmem>>, vector<24x64xf32>
      %c0_11 = arith.constant 0 : index
      %c0_12 = arith.constant 0 : index
      %13 = vector.load %arg5[%c0_11, %c0_12] : memref<1x64xf32, #tpu.memory_space<vmem>>, vector<1x64xf32>
      %14 = vector.broadcast %13 : vector<1x64xf32> to vector<24x64xf32>
      %15 = arith.mulf %12, %14 : vector<24x64xf32>
      %c0_13 = arith.constant 0 : index
      %c0_14 = arith.constant 0 : index
      %16 = vector.load %arg6[%c0_13, %c0_14] : memref<1x64xf32, #tpu.memory_space<vmem>>, vector<1x64xf32>
      %17 = vector.broadcast %16 : vector<1x64xf32> to vector<24x64xf32>
      %18 = arith.addf %15, %17 : vector<24x64xf32>
      %cst_15 = arith.constant 0.000000e+00 : f32
      %19 = vector.broadcast %cst_15 : f32 to vector<24x64xf32>
      %20 = arith.maximumf %18, %19 : vector<24x64xf32>
      %c0_16 = arith.constant 0 : index
      %c0_17 = arith.constant 0 : index
      %21 = vector.load %arg7[%c0_16, %c0_17] : memref<24x64xf32, #tpu.memory_space<vmem>>, vector<24x64xf32>
      tpu.vector_store %arg7[%c0_16, %c0_17], %20 {strides = array<i32>} : memref<24x64xf32, #tpu.memory_space<vmem>>, vector<24x64xf32>,
    } else {
    }
    return
  }
  func.func @transform_0(%arg0: i32, %arg1: i32, %arg2: i32) -> (i32, i32) {
    %c0_i32 = arith.constant 0 : i32
    return %arg0, %arg2 : i32, i32
  }
  func.func @transform_1(%arg0: i32, %arg1: i32, %arg2: i32) -> (i32, i32) {
    %c0_i32 = arith.constant 0 : i32
    return %arg2, %arg1 : i32, i32
  }
  func.func @transform_2(%arg0: i32, %arg1: i32, %arg2: i32) -> (i32, i32) {
    %c0_i32 = arith.constant 0 : i32
    %c0_i32_0 = arith.constant 0 : i32
    return %c0_i32, %arg1 : i32, i32
  }
  func.func @transform_3(%arg0: i32, %arg1: i32, %arg2: i32) -> (i32, i32) {
    %c0_i32 = arith.constant 0 : i32
    %c0_i32_0 = arith.constant 0 : i32
    return %c0_i32, %arg1 : i32, i32
  }
  func.func @transform_4(%arg0: i32, %arg1: i32, %arg2: i32) -> (i32, i32) {
    %c0_i32 = arith.constant 0 : i32
    return %arg0, %arg1 : i32, i32
  }
}

module attributes {stable_mosaic.version = 11 : i64} {
  func.func @_conv_mm_kernel(%arg0: i32, %arg1: i32, %arg2: i32, %arg3: memref<24x128xbf16, #tpu.memory_space<vmem>>, %arg4: memref<128x256xbf16, #tpu.memory_space<vmem>>, %arg5: memref<1x256xf32, #tpu.memory_space<vmem>>, %arg6: memref<1x256xf32, #tpu.memory_space<vmem>>, %arg7: memref<24x256xf32, #tpu.memory_space<vmem>>, %arg8: memref<24x256xf32, #tpu.memory_space<vmem>>) attributes {dimension_semantics = [#tpu.dimension_semantics<parallel>, #tpu.dimension_semantics<parallel>, #tpu.dimension_semantics<arbitrary>], iteration_bounds = array<i64: 1, 1, 1>, scalar_prefetch = 0 : i64, scratch_operands = 1 : i64, tpu.core_type = #tpu.core_type<tc>, window_params = [{transform_indices = @transform_0, window_bounds = array<i64: 24, 128>}, {transform_indices = @transform_1, window_bounds = array<i64: 128, 256>}, {transform_indices = @transform_2, window_bounds = array<i64: 1, 256>}, {transform_indices = @transform_3, window_bounds = array<i64: 1, 256>}, {transform_indices = @transform_4, window_bounds = array<i64: 24, 256>}]} {
    %c0_i32 = arith.constant 0 : i32
    %0 = arith.cmpi eq, %arg2, %c0_i32 : i32
    %1 = arith.extui %0 : i1 to i32
    %c0_i32_0 = arith.constant 0 : i32
    %2 = arith.cmpi ne, %1, %c0_i32_0 : i32
    scf.if %2 {
      %cst_10 = arith.constant 0.000000e+00 : f32
      %12 = vector.broadcast %cst_10 : f32 to vector<24x256xf32>
      %c0_11 = arith.constant 0 : index
      %c0_12 = arith.constant 0 : index
      %13 = vector.load %arg8[%c0_11, %c0_12] : memref<24x256xf32, #tpu.memory_space<vmem>>, vector<24x256xf32>
      tpu.vector_store %arg8[%c0_11, %c0_12], %12 {strides = array<i32>} : memref<24x256xf32, #tpu.memory_space<vmem>>, vector<24x256xf32>,
    } else {
    }
    %c0 = arith.constant 0 : index
    %c0_1 = arith.constant 0 : index
    %3 = vector.load %arg8[%c0, %c0_1] : memref<24x256xf32, #tpu.memory_space<vmem>>, vector<24x256xf32>
    %c0_2 = arith.constant 0 : index
    %c0_3 = arith.constant 0 : index
    %4 = vector.load %arg3[%c0_2, %c0_3] : memref<24x128xbf16, #tpu.memory_space<vmem>>, vector<24x128xbf16>
    %c0_4 = arith.constant 0 : index
    %c0_5 = arith.constant 0 : index
    %5 = vector.load %arg4[%c0_4, %c0_5] : memref<128x256xbf16, #tpu.memory_space<vmem>>, vector<128x256xbf16>
    %cst = arith.constant dense<0.000000e+00> : vector<24x256xf32>
    %6 = tpu.matmul %4, %5, %cst {dimension_numbers = #tpu.dot_dimension_numbers<[1], [0], [0], [1], [0, 0, 1, 1], [], []>} : vector<24x128xbf16>, vector<128x256xbf16>, vector<24x256xf32> -> vector<24x256xf32>
    %7 = arith.addf %3, %6 : vector<24x256xf32>
    %c0_6 = arith.constant 0 : index
    %c0_7 = arith.constant 0 : index
    %8 = vector.load %arg8[%c0_6, %c0_7] : memref<24x256xf32, #tpu.memory_space<vmem>>, vector<24x256xf32>
    tpu.vector_store %arg8[%c0_6, %c0_7], %7 {strides = array<i32>} : memref<24x256xf32, #tpu.memory_space<vmem>>, vector<24x256xf32>,
    %c0_i32_8 = arith.constant 0 : i32
    %9 = arith.cmpi eq, %arg2, %c0_i32_8 : i32
    %10 = arith.extui %9 : i1 to i32
    %c0_i32_9 = arith.constant 0 : i32
    %11 = arith.cmpi ne, %10, %c0_i32_9 : i32
    scf.if %11 {
      %c0_10 = arith.constant 0 : index
      %c0_11 = arith.constant 0 : index
      %12 = vector.load %arg8[%c0_10, %c0_11] : memref<24x256xf32, #tpu.memory_space<vmem>>, vector<24x256xf32>
      %c0_12 = arith.constant 0 : index
      %c0_13 = arith.constant 0 : index
      %13 = vector.load %arg5[%c0_12, %c0_13] : memref<1x256xf32, #tpu.memory_space<vmem>>, vector<1x256xf32>
      %14 = vector.broadcast %13 : vector<1x256xf32> to vector<24x256xf32>
      %15 = arith.mulf %12, %14 : vector<24x256xf32>
      %c0_14 = arith.constant 0 : index
      %c0_15 = arith.constant 0 : index
      %16 = vector.load %arg6[%c0_14, %c0_15] : memref<1x256xf32, #tpu.memory_space<vmem>>, vector<1x256xf32>
      %17 = vector.broadcast %16 : vector<1x256xf32> to vector<24x256xf32>
      %18 = arith.addf %15, %17 : vector<24x256xf32>
      %c0_16 = arith.constant 0 : index
      %c0_17 = arith.constant 0 : index
      %19 = vector.load %arg7[%c0_16, %c0_17] : memref<24x256xf32, #tpu.memory_space<vmem>>, vector<24x256xf32>
      tpu.vector_store %arg7[%c0_16, %c0_17], %18 {strides = array<i32>} : memref<24x256xf32, #tpu.memory_space<vmem>>, vector<24x256xf32>,
    } else {
    }
    return
  }
  func.func @transform_0(%arg0: i32, %arg1: i32, %arg2: i32) -> (i32, i32) {
    %c0_i32 = arith.constant 0 : i32
    return %arg0, %arg2 : i32, i32
  }
  func.func @transform_1(%arg0: i32, %arg1: i32, %arg2: i32) -> (i32, i32) {
    %c0_i32 = arith.constant 0 : i32
    return %arg2, %arg1 : i32, i32
  }
  func.func @transform_2(%arg0: i32, %arg1: i32, %arg2: i32) -> (i32, i32) {
    %c0_i32 = arith.constant 0 : i32
    %c0_i32_0 = arith.constant 0 : i32
    return %c0_i32, %arg1 : i32, i32
  }
  func.func @transform_3(%arg0: i32, %arg1: i32, %arg2: i32) -> (i32, i32) {
    %c0_i32 = arith.constant 0 : i32
    %c0_i32_0 = arith.constant 0 : i32
    return %c0_i32, %arg1 : i32, i32
  }
  func.func @transform_4(%arg0: i32, %arg1: i32, %arg2: i32) -> (i32, i32) {
    %c0_i32 = arith.constant 0 : i32
    return %arg0, %arg1 : i32, i32
  }
}

module attributes {stable_mosaic.version = 11 : i64} {
  func.func @_conv_mm_kernel(%arg0: i32, %arg1: i32, %arg2: i32, %arg3: memref<24x64xbf16, #tpu.memory_space<vmem>>, %arg4: memref<64x256xbf16, #tpu.memory_space<vmem>>, %arg5: memref<1x256xf32, #tpu.memory_space<vmem>>, %arg6: memref<1x256xf32, #tpu.memory_space<vmem>>, %arg7: memref<24x256xf32, #tpu.memory_space<vmem>>, %arg8: memref<24x256xf32, #tpu.memory_space<vmem>>, %arg9: memref<24x256xf32, #tpu.memory_space<vmem>>) attributes {dimension_semantics = [#tpu.dimension_semantics<parallel>, #tpu.dimension_semantics<parallel>, #tpu.dimension_semantics<arbitrary>], iteration_bounds = array<i64: 1, 1, 1>, scalar_prefetch = 0 : i64, scratch_operands = 1 : i64, tpu.core_type = #tpu.core_type<tc>, window_params = [{transform_indices = @transform_0, window_bounds = array<i64: 24, 64>}, {transform_indices = @transform_1, window_bounds = array<i64: 64, 256>}, {transform_indices = @transform_2, window_bounds = array<i64: 1, 256>}, {transform_indices = @transform_3, window_bounds = array<i64: 1, 256>}, {transform_indices = @transform_4, window_bounds = array<i64: 24, 256>}, {transform_indices = @transform_5, window_bounds = array<i64: 24, 256>}]} {
    %c0_i32 = arith.constant 0 : i32
    %0 = arith.cmpi eq, %arg2, %c0_i32 : i32
    %1 = arith.extui %0 : i1 to i32
    %c0_i32_0 = arith.constant 0 : i32
    %2 = arith.cmpi ne, %1, %c0_i32_0 : i32
    scf.if %2 {
      %cst_10 = arith.constant 0.000000e+00 : f32
      %12 = vector.broadcast %cst_10 : f32 to vector<24x256xf32>
      %c0_11 = arith.constant 0 : index
      %c0_12 = arith.constant 0 : index
      %13 = vector.load %arg9[%c0_11, %c0_12] : memref<24x256xf32, #tpu.memory_space<vmem>>, vector<24x256xf32>
      tpu.vector_store %arg9[%c0_11, %c0_12], %12 {strides = array<i32>} : memref<24x256xf32, #tpu.memory_space<vmem>>, vector<24x256xf32>,
    } else {
    }
    %c0 = arith.constant 0 : index
    %c0_1 = arith.constant 0 : index
    %3 = vector.load %arg9[%c0, %c0_1] : memref<24x256xf32, #tpu.memory_space<vmem>>, vector<24x256xf32>
    %c0_2 = arith.constant 0 : index
    %c0_3 = arith.constant 0 : index
    %4 = vector.load %arg3[%c0_2, %c0_3] : memref<24x64xbf16, #tpu.memory_space<vmem>>, vector<24x64xbf16>
    %c0_4 = arith.constant 0 : index
    %c0_5 = arith.constant 0 : index
    %5 = vector.load %arg4[%c0_4, %c0_5] : memref<64x256xbf16, #tpu.memory_space<vmem>>, vector<64x256xbf16>
    %cst = arith.constant dense<0.000000e+00> : vector<24x256xf32>
    %6 = tpu.matmul %4, %5, %cst {dimension_numbers = #tpu.dot_dimension_numbers<[1], [0], [0], [1], [0, 0, 1, 1], [], []>} : vector<24x64xbf16>, vector<64x256xbf16>, vector<24x256xf32> -> vector<24x256xf32>
    %7 = arith.addf %3, %6 : vector<24x256xf32>
    %c0_6 = arith.constant 0 : index
    %c0_7 = arith.constant 0 : index
    %8 = vector.load %arg9[%c0_6, %c0_7] : memref<24x256xf32, #tpu.memory_space<vmem>>, vector<24x256xf32>
    tpu.vector_store %arg9[%c0_6, %c0_7], %7 {strides = array<i32>} : memref<24x256xf32, #tpu.memory_space<vmem>>, vector<24x256xf32>,
    %c0_i32_8 = arith.constant 0 : i32
    %9 = arith.cmpi eq, %arg2, %c0_i32_8 : i32
    %10 = arith.extui %9 : i1 to i32
    %c0_i32_9 = arith.constant 0 : i32
    %11 = arith.cmpi ne, %10, %c0_i32_9 : i32
    scf.if %11 {
      %c0_10 = arith.constant 0 : index
      %c0_11 = arith.constant 0 : index
      %12 = vector.load %arg9[%c0_10, %c0_11] : memref<24x256xf32, #tpu.memory_space<vmem>>, vector<24x256xf32>
      %c0_12 = arith.constant 0 : index
      %c0_13 = arith.constant 0 : index
      %13 = vector.load %arg5[%c0_12, %c0_13] : memref<1x256xf32, #tpu.memory_space<vmem>>, vector<1x256xf32>
      %14 = vector.broadcast %13 : vector<1x256xf32> to vector<24x256xf32>
      %15 = arith.mulf %12, %14 : vector<24x256xf32>
      %c0_14 = arith.constant 0 : index
      %c0_15 = arith.constant 0 : index
      %16 = vector.load %arg6[%c0_14, %c0_15] : memref<1x256xf32, #tpu.memory_space<vmem>>, vector<1x256xf32>
      %17 = vector.broadcast %16 : vector<1x256xf32> to vector<24x256xf32>
      %18 = arith.addf %15, %17 : vector<24x256xf32>
      %c0_16 = arith.constant 0 : index
      %c0_17 = arith.constant 0 : index
      %19 = vector.load %arg7[%c0_16, %c0_17] : memref<24x256xf32, #tpu.memory_space<vmem>>, vector<24x256xf32>
      %20 = arith.addf %18, %19 : vector<24x256xf32>
      %cst_18 = arith.constant 0.000000e+00 : f32
      %21 = vector.broadcast %cst_18 : f32 to vector<24x256xf32>
      %22 = arith.maximumf %20, %21 : vector<24x256xf32>
      %c0_19 = arith.constant 0 : index
      %c0_20 = arith.constant 0 : index
      %23 = vector.load %arg8[%c0_19, %c0_20] : memref<24x256xf32, #tpu.memory_space<vmem>>, vector<24x256xf32>
      tpu.vector_store %arg8[%c0_19, %c0_20], %22 {strides = array<i32>} : memref<24x256xf32, #tpu.memory_space<vmem>>, vector<24x256xf32>,
    } else {
    }
    return
  }
  func.func @transform_0(%arg0: i32, %arg1: i32, %arg2: i32) -> (i32, i32) {
    %c0_i32 = arith.constant 0 : i32
    return %arg0, %arg2 : i32, i32
  }
  func.func @transform_1(%arg0: i32, %arg1: i32, %arg2: i32) -> (i32, i32) {
    %c0_i32 = arith.constant 0 : i32
    return %arg2, %arg1 : i32, i32
  }
  func.func @transform_2(%arg0: i32, %arg1: i32, %arg2: i32) -> (i32, i32) {
    %c0_i32 = arith.constant 0 : i32
    %c0_i32_0 = arith.constant 0 : i32
    return %c0_i32, %arg1 : i32, i32
  }
  func.func @transform_3(%arg0: i32, %arg1: i32, %arg2: i32) -> (i32, i32) {
    %c0_i32 = arith.constant 0 : i32
    %c0_i32_0 = arith.constant 0 : i32
    return %c0_i32, %arg1 : i32, i32
  }
  func.func @transform_4(%arg0: i32, %arg1: i32, %arg2: i32) -> (i32, i32) {
    %c0_i32 = arith.constant 0 : i32
    return %arg0, %arg1 : i32, i32
  }
  func.func @transform_5(%arg0: i32, %arg1: i32, %arg2: i32) -> (i32, i32) {
    %c0_i32 = arith.constant 0 : i32
    return %arg0, %arg1 : i32, i32
  }
}

module attributes {stable_mosaic.version = 11 : i64} {
  func.func @_conv_mm_kernel(%arg0: i32, %arg1: i32, %arg2: i32, %arg3: memref<24x384xbf16, #tpu.memory_space<vmem>>, %arg4: memref<384x256xbf16, #tpu.memory_space<vmem>>, %arg5: memref<1x256xf32, #tpu.memory_space<vmem>>, %arg6: memref<1x256xf32, #tpu.memory_space<vmem>>, %arg7: memref<24x256xf32, #tpu.memory_space<vmem>>, %arg8: memref<24x256xf32, #tpu.memory_space<vmem>>) attributes {dimension_semantics = [#tpu.dimension_semantics<parallel>, #tpu.dimension_semantics<parallel>, #tpu.dimension_semantics<arbitrary>], iteration_bounds = array<i64: 1, 1, 6>, scalar_prefetch = 0 : i64, scratch_operands = 1 : i64, tpu.core_type = #tpu.core_type<tc>, window_params = [{transform_indices = @transform_0, window_bounds = array<i64: 24, 384>}, {transform_indices = @transform_1, window_bounds = array<i64: 384, 256>}, {transform_indices = @transform_2, window_bounds = array<i64: 1, 256>}, {transform_indices = @transform_3, window_bounds = array<i64: 1, 256>}, {transform_indices = @transform_4, window_bounds = array<i64: 24, 256>}]} {
    %c0_i32 = arith.constant 0 : i32
    %0 = arith.cmpi eq, %arg2, %c0_i32 : i32
    %1 = arith.extui %0 : i1 to i32
    %c0_i32_0 = arith.constant 0 : i32
    %2 = arith.cmpi ne, %1, %c0_i32_0 : i32
    scf.if %2 {
      %cst_9 = arith.constant 0.000000e+00 : f32
      %12 = vector.broadcast %cst_9 : f32 to vector<24x256xf32>
      %c0_10 = arith.constant 0 : index
      %c0_11 = arith.constant 0 : index
      %13 = vector.load %arg8[%c0_10, %c0_11] : memref<24x256xf32, #tpu.memory_space<vmem>>, vector<24x256xf32>
      tpu.vector_store %arg8[%c0_10, %c0_11], %12 {strides = array<i32>} : memref<24x256xf32, #tpu.memory_space<vmem>>, vector<24x256xf32>,
    } else {
    }
    %c0 = arith.constant 0 : index
    %c0_1 = arith.constant 0 : index
    %3 = vector.load %arg8[%c0, %c0_1] : memref<24x256xf32, #tpu.memory_space<vmem>>, vector<24x256xf32>
    %c0_2 = arith.constant 0 : index
    %c0_3 = arith.constant 0 : index
    %4 = vector.load %arg3[%c0_2, %c0_3] : memref<24x384xbf16, #tpu.memory_space<vmem>>, vector<24x384xbf16>
    %c0_4 = arith.constant 0 : index
    %c0_5 = arith.constant 0 : index
    %5 = vector.load %arg4[%c0_4, %c0_5] : memref<384x256xbf16, #tpu.memory_space<vmem>>, vector<384x256xbf16>
    %cst = arith.constant dense<0.000000e+00> : vector<24x256xf32>
    %6 = tpu.matmul %4, %5, %cst {dimension_numbers = #tpu.dot_dimension_numbers<[1], [0], [0], [1], [0, 0, 1, 1], [], []>} : vector<24x384xbf16>, vector<384x256xbf16>, vector<24x256xf32> -> vector<24x256xf32>
    %7 = arith.addf %3, %6 : vector<24x256xf32>
    %c0_6 = arith.constant 0 : index
    %c0_7 = arith.constant 0 : index
    %8 = vector.load %arg8[%c0_6, %c0_7] : memref<24x256xf32, #tpu.memory_space<vmem>>, vector<24x256xf32>
    tpu.vector_store %arg8[%c0_6, %c0_7], %7 {strides = array<i32>} : memref<24x256xf32, #tpu.memory_space<vmem>>, vector<24x256xf32>,
    %c5_i32 = arith.constant 5 : i32
    %9 = arith.cmpi eq, %arg2, %c5_i32 : i32
    %10 = arith.extui %9 : i1 to i32
    %c0_i32_8 = arith.constant 0 : i32
    %11 = arith.cmpi ne, %10, %c0_i32_8 : i32
    scf.if %11 {
      %c0_9 = arith.constant 0 : index
      %c0_10 = arith.constant 0 : index
      %12 = vector.load %arg8[%c0_9, %c0_10] : memref<24x256xf32, #tpu.memory_space<vmem>>, vector<24x256xf32>
      %c0_11 = arith.constant 0 : index
      %c0_12 = arith.constant 0 : index
      %13 = vector.load %arg5[%c0_11, %c0_12] : memref<1x256xf32, #tpu.memory_space<vmem>>, vector<1x256xf32>
      %14 = vector.broadcast %13 : vector<1x256xf32> to vector<24x256xf32>
      %15 = arith.mulf %12, %14 : vector<24x256xf32>
      %c0_13 = arith.constant 0 : index
      %c0_14 = arith.constant 0 : index
      %16 = vector.load %arg6[%c0_13, %c0_14] : memref<1x256xf32, #tpu.memory_space<vmem>>, vector<1x256xf32>
      %17 = vector.broadcast %16 : vector<1x256xf32> to vector<24x256xf32>
      %18 = arith.addf %15, %17 : vector<24x256xf32>
      %c0_15 = arith.constant 0 : index
      %c0_16 = arith.constant 0 : index
      %19 = vector.load %arg7[%c0_15, %c0_16] : memref<24x256xf32, #tpu.memory_space<vmem>>, vector<24x256xf32>
      tpu.vector_store %arg7[%c0_15, %c0_16], %18 {strides = array<i32>} : memref<24x256xf32, #tpu.memory_space<vmem>>, vector<24x256xf32>,
    } else {
    }
    return
  }
  func.func @transform_0(%arg0: i32, %arg1: i32, %arg2: i32) -> (i32, i32) {
    %c0_i32 = arith.constant 0 : i32
    return %arg0, %arg2 : i32, i32
  }
  func.func @transform_1(%arg0: i32, %arg1: i32, %arg2: i32) -> (i32, i32) {
    %c0_i32 = arith.constant 0 : i32
    return %arg2, %arg1 : i32, i32
  }
  func.func @transform_2(%arg0: i32, %arg1: i32, %arg2: i32) -> (i32, i32) {
    %c0_i32 = arith.constant 0 : i32
    %c0_i32_0 = arith.constant 0 : i32
    return %c0_i32, %arg1 : i32, i32
  }
  func.func @transform_3(%arg0: i32, %arg1: i32, %arg2: i32) -> (i32, i32) {
    %c0_i32 = arith.constant 0 : i32
    %c0_i32_0 = arith.constant 0 : i32
    return %c0_i32, %arg1 : i32, i32
  }
  func.func @transform_4(%arg0: i32, %arg1: i32, %arg2: i32) -> (i32, i32) {
    %c0_i32 = arith.constant 0 : i32
    return %arg0, %arg1 : i32, i32
  }
}

module attributes {stable_mosaic.version = 11 : i64} {
  func.func @_instance_norm_kernel(%arg0: i32, %arg1: memref<1x3x3x256xf32, #tpu.memory_space<vmem>>, %arg2: memref<1x3x3x256xf32, #tpu.memory_space<vmem>>) attributes {dimension_semantics = [#tpu.dimension_semantics<parallel>], iteration_bounds = array<i64: 2>, scalar_prefetch = 0 : i64, scratch_operands = 0 : i64, tpu.core_type = #tpu.core_type<tc>, window_params = [{transform_indices = @transform_0, window_bounds = array<i64: 1, 3, 3, 256>}, {transform_indices = @transform_1, window_bounds = array<i64: 1, 3, 3, 256>}]} {
    %c0 = arith.constant 0 : index
    %c0_0 = arith.constant 0 : index
    %c0_1 = arith.constant 0 : index
    %c0_2 = arith.constant 0 : index
    %0 = vector.load %arg1[%c0, %c0_0, %c0_1, %c0_2] : memref<1x3x3x256xf32, #tpu.memory_space<vmem>>, vector<1x3x3x256xf32>
    %cst = arith.constant dense<0.000000e+00> : vector<1x256xf32>
    %1 = vector.multi_reduction <add>, %0, %cst [1, 2] : vector<1x3x3x256xf32> to vector<1x256xf32>
    %2 = vector.shape_cast %1 : vector<1x256xf32> to vector<1x1x1x256xf32>
    %3 = arith.mulf %0, %0 : vector<1x3x3x256xf32>
    %cst_3 = arith.constant dense<0.000000e+00> : vector<1x256xf32>
    %4 = vector.multi_reduction <add>, %3, %cst_3 [1, 2] : vector<1x3x3x256xf32> to vector<1x256xf32>
    %5 = vector.shape_cast %4 : vector<1x256xf32> to vector<1x1x1x256xf32>
    %cst_4 = arith.constant 9.000000e+00 : f32
    %6 = vector.broadcast %cst_4 : f32 to vector<1x1x1x256xf32>
    %7 = arith.divf %2, %6 : vector<1x1x1x256xf32>
    %cst_5 = arith.constant 9.000000e+00 : f32
    %8 = vector.broadcast %cst_5 : f32 to vector<1x1x1x256xf32>
    %9 = arith.divf %5, %8 : vector<1x1x1x256xf32>
    %10 = arith.mulf %7, %7 : vector<1x1x1x256xf32>
    %11 = arith.subf %9, %10 : vector<1x1x1x256xf32>
    %cst_6 = arith.constant 0.000000e+00 : f32
    %12 = vector.broadcast %cst_6 : f32 to vector<1x1x1x256xf32>
    %13 = arith.maximumf %11, %12 : vector<1x1x1x256xf32>
    %14 = vector.broadcast %7 : vector<1x1x1x256xf32> to vector<1x3x3x256xf32>
    %15 = arith.subf %0, %14 : vector<1x3x3x256xf32>
    %cst_7 = arith.constant 9.99999974E-6 : f32
    %16 = vector.broadcast %cst_7 : f32 to vector<1x1x1x256xf32>
    %17 = arith.addf %13, %16 : vector<1x1x1x256xf32>
    %18 = math.rsqrt %17 : vector<1x1x1x256xf32>
    %19 = vector.broadcast %18 : vector<1x1x1x256xf32> to vector<1x3x3x256xf32>
    %20 = arith.mulf %15, %19 : vector<1x3x3x256xf32>
    %cst_8 = arith.constant 0.000000e+00 : f32
    %21 = vector.broadcast %cst_8 : f32 to vector<1x3x3x256xf32>
    %22 = arith.maximumf %20, %21 : vector<1x3x3x256xf32>
    %c0_9 = arith.constant 0 : index
    %c0_10 = arith.constant 0 : index
    %c0_11 = arith.constant 0 : index
    %c0_12 = arith.constant 0 : index
    %23 = vector.load %arg2[%c0_9, %c0_10, %c0_11, %c0_12] : memref<1x3x3x256xf32, #tpu.memory_space<vmem>>, vector<1x3x3x256xf32>
    tpu.vector_store %arg2[%c0_9, %c0_10, %c0_11, %c0_12], %22 {strides = array<i32>} : memref<1x3x3x256xf32, #tpu.memory_space<vmem>>, vector<1x3x3x256xf32>,
    return
  }
  func.func @transform_0(%arg0: i32) -> (i32, i32, i32, i32) {
    %c0_i32 = arith.constant 0 : i32
    %c0_i32_0 = arith.constant 0 : i32
    %c0_i32_1 = arith.constant 0 : i32
    %c0_i32_2 = arith.constant 0 : i32
    return %arg0, %c0_i32, %c0_i32_0, %c0_i32_1 : i32, i32, i32, i32
  }
  func.func @transform_1(%arg0: i32) -> (i32, i32, i32, i32) {
    %c0_i32 = arith.constant 0 : i32
    %c0_i32_0 = arith.constant 0 : i32
    %c0_i32_1 = arith.constant 0 : i32
    %c0_i32_2 = arith.constant 0 : i32
    return %arg0, %c0_i32, %c0_i32_0, %c0_i32_1 : i32, i32, i32, i32
  }
}

module attributes {stable_mosaic.version = 11 : i64} {
  func.func @_instance_norm_kernel(%arg0: i32, %arg1: memref<1x3x3x256xf32, #tpu.memory_space<vmem>>, %arg2: memref<1x3x3x256xf32, #tpu.memory_space<vmem>>, %arg3: memref<1x3x3x256xf32, #tpu.memory_space<vmem>>) attributes {dimension_semantics = [#tpu.dimension_semantics<parallel>], iteration_bounds = array<i64: 2>, scalar_prefetch = 0 : i64, scratch_operands = 0 : i64, tpu.core_type = #tpu.core_type<tc>, window_params = [{transform_indices = @transform_0, window_bounds = array<i64: 1, 3, 3, 256>}, {transform_indices = @transform_1, window_bounds = array<i64: 1, 3, 3, 256>}, {transform_indices = @transform_2, window_bounds = array<i64: 1, 3, 3, 256>}]} {
    %c0 = arith.constant 0 : index
    %c0_0 = arith.constant 0 : index
    %c0_1 = arith.constant 0 : index
    %c0_2 = arith.constant 0 : index
    %0 = vector.load %arg1[%c0, %c0_0, %c0_1, %c0_2] : memref<1x3x3x256xf32, #tpu.memory_space<vmem>>, vector<1x3x3x256xf32>
    %cst = arith.constant dense<0.000000e+00> : vector<1x256xf32>
    %1 = vector.multi_reduction <add>, %0, %cst [1, 2] : vector<1x3x3x256xf32> to vector<1x256xf32>
    %2 = vector.shape_cast %1 : vector<1x256xf32> to vector<1x1x1x256xf32>
    %3 = arith.mulf %0, %0 : vector<1x3x3x256xf32>
    %cst_3 = arith.constant dense<0.000000e+00> : vector<1x256xf32>
    %4 = vector.multi_reduction <add>, %3, %cst_3 [1, 2] : vector<1x3x3x256xf32> to vector<1x256xf32>
    %5 = vector.shape_cast %4 : vector<1x256xf32> to vector<1x1x1x256xf32>
    %cst_4 = arith.constant 9.000000e+00 : f32
    %6 = vector.broadcast %cst_4 : f32 to vector<1x1x1x256xf32>
    %7 = arith.divf %2, %6 : vector<1x1x1x256xf32>
    %cst_5 = arith.constant 9.000000e+00 : f32
    %8 = vector.broadcast %cst_5 : f32 to vector<1x1x1x256xf32>
    %9 = arith.divf %5, %8 : vector<1x1x1x256xf32>
    %10 = arith.mulf %7, %7 : vector<1x1x1x256xf32>
    %11 = arith.subf %9, %10 : vector<1x1x1x256xf32>
    %cst_6 = arith.constant 0.000000e+00 : f32
    %12 = vector.broadcast %cst_6 : f32 to vector<1x1x1x256xf32>
    %13 = arith.maximumf %11, %12 : vector<1x1x1x256xf32>
    %14 = vector.broadcast %7 : vector<1x1x1x256xf32> to vector<1x3x3x256xf32>
    %15 = arith.subf %0, %14 : vector<1x3x3x256xf32>
    %cst_7 = arith.constant 9.99999974E-6 : f32
    %16 = vector.broadcast %cst_7 : f32 to vector<1x1x1x256xf32>
    %17 = arith.addf %13, %16 : vector<1x1x1x256xf32>
    %18 = math.rsqrt %17 : vector<1x1x1x256xf32>
    %19 = vector.broadcast %18 : vector<1x1x1x256xf32> to vector<1x3x3x256xf32>
    %20 = arith.mulf %15, %19 : vector<1x3x3x256xf32>
    %c0_8 = arith.constant 0 : index
    %c0_9 = arith.constant 0 : index
    %c0_10 = arith.constant 0 : index
    %c0_11 = arith.constant 0 : index
    %21 = vector.load %arg2[%c0_8, %c0_9, %c0_10, %c0_11] : memref<1x3x3x256xf32, #tpu.memory_space<vmem>>, vector<1x3x3x256xf32>
    %22 = arith.addf %20, %21 : vector<1x3x3x256xf32>
    %c0_12 = arith.constant 0 : index
    %c0_13 = arith.constant 0 : index
    %c0_14 = arith.constant 0 : index
    %c0_15 = arith.constant 0 : index
    %23 = vector.load %arg3[%c0_12, %c0_13, %c0_14, %c0_15] : memref<1x3x3x256xf32, #tpu.memory_space<vmem>>, vector<1x3x3x256xf32>
    tpu.vector_store %arg3[%c0_12, %c0_13, %c0_14, %c0_15], %22 {strides = array<i32>} : memref<1x3x3x256xf32, #tpu.memory_space<vmem>>, vector<1x3x3x256xf32>,
    return
  }
  func.func @transform_0(%arg0: i32) -> (i32, i32, i32, i32) {
    %c0_i32 = arith.constant 0 : i32
    %c0_i32_0 = arith.constant 0 : i32
    %c0_i32_1 = arith.constant 0 : i32
    %c0_i32_2 = arith.constant 0 : i32
    return %arg0, %c0_i32, %c0_i32_0, %c0_i32_1 : i32, i32, i32, i32
  }
  func.func @transform_1(%arg0: i32) -> (i32, i32, i32, i32) {
    %c0_i32 = arith.constant 0 : i32
    %c0_i32_0 = arith.constant 0 : i32
    %c0_i32_1 = arith.constant 0 : i32
    %c0_i32_2 = arith.constant 0 : i32
    return %arg0, %c0_i32, %c0_i32_0, %c0_i32_1 : i32, i32, i32, i32
  }
  func.func @transform_2(%arg0: i32) -> (i32, i32, i32, i32) {
    %c0_i32 = arith.constant 0 : i32
    %c0_i32_0 = arith.constant 0 : i32
    %c0_i32_1 = arith.constant 0 : i32
    %c0_i32_2 = arith.constant 0 : i32
    return %arg0, %c0_i32, %c0_i32_0, %c0_i32_1 : i32, i32, i32, i32
  }
}

</mosaic_0001>

<llo_original>
// kernel: _lambda_.22
$region0: #{_lambda_.22}
  #allocation0 [shape = 'u32[]', space=smem, size = 0x4, offset = 0x4, fixed_abs, tag = 'smem constant byte address 0x4 - core index']
  #allocation1 [shape = 'u32[144,128]{1,0:T(1,128)}', space=vmem, size = 0x12000, scoped, tag = 'internal scratch']
  #allocation2 [shape = 'f32[128,8]{1,0:T(8,128)}', space=vmem, size = 0x10000, scoped, tag = 'scratch operand']
  %s0 = inlined_call_operand.vmem [shape: bf16[128,256], index: 0, kind: input, shape index: {}]
  %s1 = inlined_call_operand.vmem [shape: bf16[256,8], index: 1, kind: input, shape index: {}]
  %s2 = inlined_call_operand.vmem [shape: f32[1,8], index: 2, kind: input, shape index: {}]
  %s3 = inlined_call_operand.vmem [shape: f32[1,8], index: 3, kind: input, shape index: {}]
  %s4 = inlined_call_operand.vmem [shape: f32[128,8], index: 4, kind: output, shape index: {}]
  %s5 = sld [smem:[#allocation0]]
  $region34: #{_lambda_.22} parent=0
    _
  %s7 = ssub.s32 1, %s5
  %s8 = scalar_select 0, %s7, %s5
  // Predicated region
  $region2: #{_lambda_.22} parent=0 // pred_check
    _
  $region3: #{_lambda_.22} parent=0 // pred_check_branch
    %10 = sbr.rel (0) target = $region5
  $region4: #{_lambda_.22} parent=0 // pred_region
    _
  $region5: #{_lambda_.22} parent=0 // pred_fallthru
    _
  // Predicated region
  $region6: #{_lambda_.22} parent=0 // pred_check
    _
  $region7: #{_lambda_.22} parent=0 // pred_check_branch
    %12 = sbr.rel (0) target = $region9
  $region8: #{_lambda_.22} parent=0 // pred_region
    _
  $region9: #{_lambda_.22} parent=0 // pred_fallthru
    _
  // Predicated region
  $region10: #{_lambda_.22} parent=0 // pred_check
    _
  $region11: #{_lambda_.22} parent=0 // pred_check_branch
    %14 = sbr.rel (0) target = $region13
  $region12: #{_lambda_.22} parent=0 // pred_region
    _
  $region13: #{_lambda_.22} parent=0 // pred_fallthru
    _
  // Predicated region
  $region14: #{_lambda_.22} parent=0 // pred_check
    _
  $region15: #{_lambda_.22} parent=0 // pred_check_branch
    %16 = sbr.rel (0) target = $region17
  $region16: #{_lambda_.22} parent=0 // pred_region
    _
  $region17: #{_lambda_.22} parent=0 // pred_fallthru
    _
  %p18 = scmp.eq.s32.totalorder 0, 0
  // Predicated region
  $region18: #{_lambda_.22} parent=0 // pred_check
    %p19 = pneg %p18
  $region19: #{_lambda_.22} parent=0 // pred_check_branch
    %21 = sbr.rel (%p19) target = $region21
  $region20: #{_lambda_.22} parent=0 // pred_region
    %vm22 = vcmask 64512
    %23 = vst.msk [vmem:[#allocation2] sm:$0xff] %vm22, 0.0
    %24 = vst.msk [vmem:[#allocation2 + $0x8] sm:$0xff] %vm22, 0.0
    %25 = vst.msk [vmem:[#allocation2 + $0x10] sm:$0xff] %vm22, 0.0
    %26 = vst.msk [vmem:[#allocation2 + $0x18] sm:$0xff] %vm22, 0.0
    %27 = vst.msk [vmem:[#allocation2 + $0x20] sm:$0xff] %vm22, 0.0
    %28 = vst.msk [vmem:[#allocation2 + $0x28] sm:$0xff] %vm22, 0.0
    %29 = vst.msk [vmem:[#allocation2 + $0x30] sm:$0xff] %vm22, 0.0
    %30 = vst.msk [vmem:[#allocation2 + $0x38] sm:$0xff] %vm22, 0.0
    %31 = vst.msk [vmem:[#allocation2 + $0x40] sm:$0xff] %vm22, 0.0
    %32 = vst.msk [vmem:[#allocation2 + $0x48] sm:$0xff] %vm22, 0.0
    %33 = vst.msk [vmem:[#allocation2 + $0x50] sm:$0xff] %vm22, 0.0
    %34 = vst.msk [vmem:[#allocation2 + $0x58] sm:$0xff] %vm22, 0.0
    %35 = vst.msk [vmem:[#allocation2 + $0x60] sm:$0xff] %vm22, 0.0
    %36 = vst.msk [vmem:[#allocation2 + $0x68] sm:$0xff] %vm22, 0.0
    %37 = vst.msk [vmem:[#allocation2 + $0x70] sm:$0xff] %vm22, 0.0
    %38 = vst.msk [vmem:[#allocation2 + $0x78] sm:$0xff] %vm22, 0.0
  $region21: #{_lambda_.22} parent=0 // pred_fallthru
    _
  %v39 = vld [vmem:[#allocation2] sm:$0xff]
  %v40 = vld [vmem:[#allocation2 + $0x8] sm:$0xff]
  %v41 = vld [vmem:[#allocation2 + $0x10] sm:$0xff]
  %v42 = vld [vmem:[#allocation2 + $0x18] sm:$0xff]
  %v43 = vld [vmem:[#allocation2 + $0x20] sm:$0xff]
  %v44 = vld [vmem:[#allocation2 + $0x28] sm:$0xff]
  %v45 = vld [vmem:[#allocation2 + $0x30] sm:$0xff]
  %v46 = vld [vmem:[#allocation2 + $0x38] sm:$0xff]
  %v47 = vld [vmem:[#allocation2 + $0x40] sm:$0xff]
  %v48 = vld [vmem:[#allocation2 + $0x48] sm:$0xff]
  %v49 = vld [vmem:[#allocation2 + $0x50] sm:$0xff]
  %v50 = vld [vmem:[#allocation2 + $0x58] sm:$0xff]
  %v51 = vld [vmem:[#allocation2 + $0x60] sm:$0xff]
  %v52 = vld [vmem:[#allocation2 + $0x68] sm:$0xff]
  %v53 = vld [vmem:[#allocation2 + $0x70] sm:$0xff]
  %v54 = vld [vmem:[#allocation2 + $0x78] sm:$0xff]
  %v55 = vld [vmem:[%s0] sm:$0xff]
  %v56 = vld [vmem:[%s0 + $0x8] sm:$0xff]
  %v57 = vld [vmem:[%s0 + $0x10] sm:$0xff]
  %v58 = vld [vmem:[%s0 + $0x18] sm:$0xff]
  %v59 = vld [vmem:[%s0 + $0x20] sm:$0xff]
  %v60 = vld [vmem:[%s0 + $0x28] sm:$0xff]
  %v61 = vld [vmem:[%s0 + $0x30] sm:$0xff]
  %v62 = vld [vmem:[%s0 + $0x38] sm:$0xff]
  %v63 = vld [vmem:[%s0 + $0x40] sm:$0xff]
  %v64 = vld [vmem:[%s0 + $0x48] sm:$0xff]
  %v65 = vld [vmem:[%s0 + $0x50] sm:$0xff]
  %v66 = vld [vmem:[%s0 + $0x58] sm:$0xff]
  %v67 = vld [vmem:[%s0 + $0x60] sm:$0xff]
  %v68 = vld [vmem:[%s0 + $0x68] sm:$0xff]
  %v69 = vld [vmem:[%s0 + $0x70] sm:$0xff]
  %v70 = vld [vmem:[%s0 + $0x78] sm:$0xff]
  %v71 = vld [vmem:[%s1] sm:$0xf]
  %v72 = vld [vmem:[%s1 + $0x4] sm:$0xf]
  %v73 = vld [vmem:[%s1 + $0x8] sm:$0xf]
  %v74 = vld [vmem:[%s1 + $0xc] sm:$0xf]
  %v75 = vld [vmem:[%s1 + $0x10] sm:$0xf]
  %v76 = vld [vmem:[%s1 + $0x14] sm:$0xf]
  %v77 = vld [vmem:[%s1 + $0x18] sm:$0xf]
  %v78 = vld [vmem:[%s1 + $0x1c] sm:$0xf]
  %v79 = vld [vmem:[%s1 + $0x20] sm:$0xf]
  %v80 = vld [vmem:[%s1 + $0x24] sm:$0xf]
  %v81 = vld [vmem:[%s1 + $0x28] sm:$0xf]
  %v82 = vld [vmem:[%s1 + $0x2c] sm:$0xf]
  %v83 = vld [vmem:[%s1 + $0x30] sm:$0xf]
  %v84 = vld [vmem:[%s1 + $0x34] sm:$0xf]
  %v85 = vld [vmem:[%s1 + $0x38] sm:$0xf]
  %v86 = vld [vmem:[%s1 + $0x3c] sm:$0xf]
  %v87 = vld [vmem:[%s1 + $0x40] sm:$0xf]
  %v88 = vld [vmem:[%s1 + $0x44] sm:$0xf]
  %v89 = vld [vmem:[%s1 + $0x48] sm:$0xf]
  %v90 = vld [vmem:[%s1 + $0x4c] sm:$0xf]
  %v91 = vld [vmem:[%s1 + $0x50] sm:$0xf]
  %v92 = vld [vmem:[%s1 + $0x54] sm:$0xf]
  %v93 = vld [vmem:[%s1 + $0x58] sm:$0xf]
  %v94 = vld [vmem:[%s1 + $0x5c] sm:$0xf]
  %v95 = vld [vmem:[%s1 + $0x60] sm:$0xf]
  %v96 = vld [vmem:[%s1 + $0x64] sm:$0xf]
  %v97 = vld [vmem:[%s1 + $0x68] sm:$0xf]
  %v98 = vld [vmem:[%s1 + $0x6c] sm:$0xf]
  %v99 = vld [vmem:[%s1 + $0x70] sm:$0xf]
  %v100 = vld [vmem:[%s1 + $0x74] sm:$0xf]
  %v101 = vld [vmem:[%s1 + $0x78] sm:$0xf]
  %v102 = vld [vmem:[%s1 + $0x7c] sm:$0xf]
  %v119 = vunpack.c.l.b16 %v55
  %v120 = vunpack.c.h.b16 %v55
  %v121 = vunpack.c.l.b16 %v56
  %v122 = vunpack.c.h.b16 %v56
  %v123 = vunpack.c.l.b16 %v57
  %v124 = vunpack.c.h.b16 %v57
  %v125 = vunpack.c.l.b16 %v58
  %v126 = vunpack.c.h.b16 %v58
  %v127 = vunpack.c.l.b16 %v59
  %v128 = vunpack.c.h.b16 %v59
  %v129 = vunpack.c.l.b16 %v60
  %v130 = vunpack.c.h.b16 %v60
  %v131 = vunpack.c.l.b16 %v61
  %v132 = vunpack.c.h.b16 %v61
  %v133 = vunpack.c.l.b16 %v62
  %v134 = vunpack.c.h.b16 %v62
  %v135 = vunpack.c.l.b16 %v63
  %v136 = vunpack.c.h.b16 %v63
  %v137 = vunpack.c.l.b16 %v64
  %v138 = vunpack.c.h.b16 %v64
  %v139 = vunpack.c.l.b16 %v65
  %v140 = vunpack.c.h.b16 %v65
  %v141 = vunpack.c.l.b16 %v66
  %v142 = vunpack.c.h.b16 %v66
  %v143 = vunpack.c.l.b16 %v67
  %v144 = vunpack.c.h.b16 %v67
  %v145 = vunpack.c.l.b16 %v68
  %v146 = vunpack.c.h.b16 %v68
  %v147 = vunpack.c.l.b16 %v69
  %v148 = vunpack.c.h.b16 %v69
  %v149 = vunpack.c.l.b16 %v70
  %v150 = vunpack.c.h.b16 %v70
  %v151 = vpack.c.b16 %v121, %v119
  %v152 = vpack.c.b16 %v122, %v120
  %v153 = vpack.c.b16 %v125, %v123
  %v154 = vpack.c.b16 %v126, %v124
  %v155 = vpack.c.b16 %v129, %v127
  %v156 = vpack.c.b16 %v130, %v128
  %v157 = vpack.c.b16 %v133, %v131
  %v158 = vpack.c.b16 %v134, %v132
  %v159 = vpack.c.b16 %v137, %v135
  %v160 = vpack.c.b16 %v138, %v136
  %v161 = vpack.c.b16 %v141, %v139
  %v162 = vpack.c.b16 %v142, %v140
  %v163 = vpack.c.b16 %v145, %v143
  %v164 = vpack.c.b16 %v146, %v144
  %v165 = vpack.c.b16 %v149, %v147
  %v166 = vpack.c.b16 %v150, %v148
  %v215 = vunpack.c.l.b16 %v71
  %v216 = vunpack.c.l.b16 %v72
  %v217 = vunpack.c.l.b16 %v73
  %v218 = vunpack.c.l.b16 %v74
  %v219 = vunpack.c.l.b16 %v75
  %v220 = vunpack.c.l.b16 %v76
  %v221 = vunpack.c.l.b16 %v77
  %v222 = vunpack.c.l.b16 %v78
  %v223 = vunpack.c.l.b16 %v79
  %v224 = vunpack.c.l.b16 %v80
  %v225 = vunpack.c.l.b16 %v81
  %v226 = vunpack.c.l.b16 %v82
  %v227 = vunpack.c.l.b16 %v83
  %v228 = vunpack.c.l.b16 %v84
  %v229 = vunpack.c.l.b16 %v85
  %v230 = vunpack.c.l.b16 %v86
  %v231 = vunpack.c.l.b16 %v87
  %v232 = vunpack.c.l.b16 %v88
  %v233 = vunpack.c.l.b16 %v89
  %v234 = vunpack.c.l.b16 %v90
  %v235 = vunpack.c.l.b16 %v91
  %v236 = vunpack.c.l.b16 %v92
  %v237 = vunpack.c.l.b16 %v93
  %v238 = vunpack.c.l.b16 %v94
  %v239 = vunpack.c.l.b16 %v95
  %v240 = vunpack.c.l.b16 %v96
  %v241 = vunpack.c.l.b16 %v97
  %v242 = vunpack.c.l.b16 %v98
  %v243 = vunpack.c.l.b16 %v99
  %v244 = vunpack.c.l.b16 %v100
  %v245 = vunpack.c.l.b16 %v101
  %v246 = vunpack.c.l.b16 %v102
  %v247 = vpack.c.b16 %v216, %v215
  %v248 = vpack.c.b16 %v218, %v217
  %v249 = vpack.c.b16 %v220, %v219
  %v250 = vpack.c.b16 %v222, %v221
  %v251 = vpack.c.b16 %v224, %v223
  %v252 = vpack.c.b16 %v226, %v225
  %v253 = vpack.c.b16 %v228, %v227
  %v254 = vpack.c.b16 %v230, %v229
  %v255 = vpack.c.b16 %v232, %v231
  %v256 = vpack.c.b16 %v234, %v233
  %v257 = vpack.c.b16 %v236, %v235
  %v258 = vpack.c.b16 %v238, %v237
  %v259 = vpack.c.b16 %v240, %v239
  %v260 = vpack.c.b16 %v242, %v241
  %v261 = vpack.c.b16 %v244, %v243
  %v262 = vpack.c.b16 %v246, %v245
  %279 = vmatprep.subr.bf16.mxu0 0
  %280 = vmatpush1.bf16.msra.mxu0 %v254
  %281 = vmatprep.subr.bf16.mxu0 0
  %282 = vmatpush1.bf16.msra.mxu0 %v253
  %283 = vmatprep.subr.bf16.mxu0 0
  %284 = vmatpush1.bf16.msra.mxu0 %v252
  %285 = vmatprep.subr.bf16.mxu0 0
  %286 = vmatpush1.bf16.msra.mxu0 %v251
  %287 = vmatprep.subr.bf16.mxu0 0
  %288 = vmatpush1.bf16.msra.mxu0 %v250
  %289 = vmatprep.subr.bf16.mxu0 0
  %290 = vmatpush1.bf16.msra.mxu0 %v249
  %291 = vmatprep.subr.bf16.mxu0 0
  %292 = vmatpush1.bf16.msra.mxu0 %v248
  %293 = vmatprep.subr.bf16.mxu0 0
  %294 = vmatpush1.bf16.msra.mxu0 %v247
  %295 = vmatprep.subr.bf16.mxu0 0
  %296 = vmatpush2.bf16.msra.mxu0 %v262
  %297 = vmatprep.subr.bf16.mxu0 0
  %298 = vmatpush2.bf16.msra.mxu0 %v261
  %299 = vmatprep.subr.bf16.mxu0 0
  %300 = vmatpush2.bf16.msra.mxu0 %v260
  %301 = vmatprep.subr.bf16.mxu0 0
  %302 = vmatpush2.bf16.msra.mxu0 %v259
  %303 = vmatprep.subr.bf16.mxu0 0
  %304 = vmatpush2.bf16.msra.mxu0 %v258
  %305 = vmatprep.subr.bf16.mxu0 0
  %306 = vmatpush2.bf16.msra.mxu0 %v257
  %307 = vmatprep.subr.bf16.mxu0 0
  %308 = vmatpush2.bf16.msra.mxu0 %v256
  %309 = vmatprep.subr.bf16.mxu0 0
  %310 = vmatpush2.bf16.msra.mxu0 %v255
  %311 = vmatprep.mubr.bf16.mxu0 %v152
  %312 = vmatmul.mubr.bf16.gmra.mxu0 %v151
  %v313 = vpop.f32.mrf.mxu0
  %v314 = vadd.f32 0.0, %v313
  %v315 = vpop.f32.mrf.mxu0
  %v316 = vpop.f32.mrf.mxu0
  %v317 = vadd.f32 0.0, %v316
  %v318 = vpop.f32.mrf.mxu0
  %319 = vmatprep.mubr.bf16.mxu0 %v154
  %320 = vmatmul.mubr.bf16.gmra.mxu0 %v153
  %v321 = vpop.f32.mrf.mxu0
  %v322 = vadd.f32 0.0, %v321
  %v323 = vpop.f32.mrf.mxu0
  %v324 = vpop.f32.mrf.mxu0
  %v325 = vadd.f32 0.0, %v324
  %v326 = vpop.f32.mrf.mxu0
  %327 = vmatprep.mubr.bf16.mxu0 %v156
  %328 = vmatmul.mubr.bf16.gmra.mxu0 %v155
  %v329 = vpop.f32.mrf.mxu0
  %v330 = vadd.f32 0.0, %v329
  %v331 = vpop.f32.mrf.mxu0
  %v332 = vpop.f32.mrf.mxu0
  %v333 = vadd.f32 0.0, %v332
  %v334 = vpop.f32.mrf.mxu0
  %335 = vmatprep.mubr.bf16.mxu0 %v158
  %336 = vmatmul.mubr.bf16.gmra.mxu0 %v157
  %v337 = vpop.f32.mrf.mxu0
  %v338 = vadd.f32 0.0, %v337
  %v339 = vpop.f32.mrf.mxu0
  %v340 = vpop.f32.mrf.mxu0
  %v341 = vadd.f32 0.0, %v340
  %v342 = vpop.f32.mrf.mxu0
  %343 = vmatprep.mubr.bf16.mxu0 %v160
  %344 = vmatmul.mubr.bf16.gmra.mxu0 %v159
  %v345 = vpop.f32.mrf.mxu0
  %v346 = vadd.f32 0.0, %v345
  %v347 = vpop.f32.mrf.mxu0
  %v348 = vpop.f32.mrf.mxu0
  %v349 = vadd.f32 0.0, %v348
  %v350 = vpop.f32.mrf.mxu0
  %351 = vmatprep.mubr.bf16.mxu0 %v162
  %352 = vmatmul.mubr.bf16.gmra.mxu0 %v161
  %v353 = vpop.f32.mrf.mxu0
  %v354 = vadd.f32 0.0, %v353
  %v355 = vpop.f32.mrf.mxu0
  %v356 = vpop.f32.mrf.mxu0
  %v357 = vadd.f32 0.0, %v356
  %v358 = vpop.f32.mrf.mxu0
  %359 = vmatprep.mubr.bf16.mxu0 %v164
  %360 = vmatmul.mubr.bf16.gmra.mxu0 %v163
  %v361 = vpop.f32.mrf.mxu0
  %v362 = vadd.f32 0.0, %v361
  %v363 = vpop.f32.mrf.mxu0
  %v364 = vpop.f32.mrf.mxu0
  %v365 = vadd.f32 0.0, %v364
  %v366 = vpop.f32.mrf.mxu0
  %367 = vmatprep.mubr.bf16.mxu0 %v166
  %368 = vmatmul.mubr.bf16.gmra.mxu0 %v165
  %v369 = vpop.f32.mrf.mxu0
  %v370 = vadd.f32 0.0, %v369
  %v371 = vpop.f32.mrf.mxu0
  %v372 = vpop.f32.mrf.mxu0
  %v373 = vadd.f32 0.0, %v372
  %v374 = vpop.f32.mrf.mxu0
  %375 = vdwg.mxu0
  %v376 = vadd.f32 %v39, %v314
  %v377 = vadd.f32 %v40, %v317
  %v378 = vadd.f32 %v41, %v322
  %v379 = vadd.f32 %v42, %v325
  %v380 = vadd.f32 %v43, %v330
  %v381 = vadd.f32 %v44, %v333
  %v382 = vadd.f32 %v45, %v338
  %v383 = vadd.f32 %v46, %v341
  %v384 = vadd.f32 %v47, %v346
  %v385 = vadd.f32 %v48, %v349
  %v386 = vadd.f32 %v49, %v354
  %v387 = vadd.f32 %v50, %v357
  %v388 = vadd.f32 %v51, %v362
  %v389 = vadd.f32 %v52, %v365
  %v390 = vadd.f32 %v53, %v370
  %v391 = vadd.f32 %v54, %v373
  %vm392 = vcmask 64512
  %393 = vst.msk [vmem:[#allocation2] sm:$0xff] %vm392, %v376
  %394 = vst.msk [vmem:[#allocation2 + $0x8] sm:$0xff] %vm392, %v377
  %395 = vst.msk [vmem:[#allocation2 + $0x10] sm:$0xff] %vm392, %v378
  %396 = vst.msk [vmem:[#allocation2 + $0x18] sm:$0xff] %vm392, %v379
  %397 = vst.msk [vmem:[#allocation2 + $0x20] sm:$0xff] %vm392, %v380
  %398 = vst.msk [vmem:[#allocation2 + $0x28] sm:$0xff] %vm392, %v381
  %399 = vst.msk [vmem:[#allocation2 + $0x30] sm:$0xff] %vm392, %v382
  %400 = vst.msk [vmem:[#allocation2 + $0x38] sm:$0xff] %vm392, %v383
  %401 = vst.msk [vmem:[#allocation2 + $0x40] sm:$0xff] %vm392, %v384
  %402 = vst.msk [vmem:[#allocation2 + $0x48] sm:$0xff] %vm392, %v385
  %403 = vst.msk [vmem:[#allocation2 + $0x50] sm:$0xff] %vm392, %v386
  %404 = vst.msk [vmem:[#allocation2 + $0x58] sm:$0xff] %vm392, %v387
  %405 = vst.msk [vmem:[#allocation2 + $0x60] sm:$0xff] %vm392, %v388
  %406 = vst.msk [vmem:[#allocation2 + $0x68] sm:$0xff] %vm392, %v389
  %407 = vst.msk [vmem:[#allocation2 + $0x70] sm:$0xff] %vm392, %v390
  %408 = vst.msk [vmem:[#allocation2 + $0x78] sm:$0xff] %vm392, %v391
  // Predicated region
  $region22: #{_lambda_.22} parent=0 // pred_check
    %p409 = pneg %p18
  $region23: #{_lambda_.22} parent=0 // pred_check_branch
    %411 = sbr.rel (%p409) target = $region25
  $region24: #{_lambda_.22} parent=0 // pred_region
    %v412 = vld [vmem:[#allocation2] sm:$0xff]
    %v413 = vld [vmem:[#allocation2 + $0x8] sm:$0xff]
    %v414 = vld [vmem:[#allocation2 + $0x10] sm:$0xff]
    %v415 = vld [vmem:[#allocation2 + $0x18] sm:$0xff]
    %v416 = vld [vmem:[#allocation2 + $0x20] sm:$0xff]
    %v417 = vld [vmem:[#allocation2 + $0x28] sm:$0xff]
    %v418 = vld [vmem:[#allocation2 + $0x30] sm:$0xff]
    %v419 = vld [vmem:[#allocation2 + $0x38] sm:$0xff]
    %v420 = vld [vmem:[#allocation2 + $0x40] sm:$0xff]
    %v421 = vld [vmem:[#allocation2 + $0x48] sm:$0xff]
    %v422 = vld [vmem:[#allocation2 + $0x50] sm:$0xff]
    %v423 = vld [vmem:[#allocation2 + $0x58] sm:$0xff]
    %v424 = vld [vmem:[#allocation2 + $0x60] sm:$0xff]
    %v425 = vld [vmem:[#allocation2 + $0x68] sm:$0xff]
    %v426 = vld [vmem:[#allocation2 + $0x70] sm:$0xff]
    %v427 = vld [vmem:[#allocation2 + $0x78] sm:$0xff]
    %v428 = vld [vmem:[%s2] sm:$0x1]
    %v430 = vlaneseq
    %v431 = vshrl.u32 %v430, 7
    %v432 = vsub.s32 0, %v431
    %v433 = vrot.slane %v428, %v432
    %v435 = vmul.f32 %v412, %v433
    %v436 = vmul.f32 %v413, %v433
    %v437 = vmul.f32 %v414, %v433
    %v438 = vmul.f32 %v415, %v433
    %v439 = vmul.f32 %v416, %v433
    %v440 = vmul.f32 %v417, %v433
    %v441 = vmul.f32 %v418, %v433
    %v442 = vmul.f32 %v419, %v433
    %v443 = vmul.f32 %v420, %v433
    %v444 = vmul.f32 %v421, %v433
    %v445 = vmul.f32 %v422, %v433
    %v446 = vmul.f32 %v423, %v433
    %v447 = vmul.f32 %v424, %v433
    %v448 = vmul.f32 %v425, %v433
    %v449 = vmul.f32 %v426, %v433
    %v450 = vmul.f32 %v427, %v433
    %v451 = vld [vmem:[%s3] sm:$0x1]
    %v453 = vlaneseq
    %v454 = vshrl.u32 %v453, 7
    %v455 = vsub.s32 0, %v454
    %v456 = vrot.slane %v451, %v455
    %v458 = vadd.f32 %v435, %v456
    %v459 = vadd.f32 %v436, %v456
    %v460 = vadd.f32 %v437, %v456
    %v461 = vadd.f32 %v438, %v456
    %v462 = vadd.f32 %v439, %v456
    %v463 = vadd.f32 %v440, %v456
    %v464 = vadd.f32 %v441, %v456
    %v465 = vadd.f32 %v442, %v456
    %v466 = vadd.f32 %v443, %v456
    %v467 = vadd.f32 %v444, %v456
    %v468 = vadd.f32 %v445, %v456
    %v469 = vadd.f32 %v446, %v456
    %v470 = vadd.f32 %v447, %v456
    %v471 = vadd.f32 %v448, %v456
    %v472 = vadd.f32 %v449, %v456
    %v473 = vadd.f32 %v450, %v456
    %v474 = vmax.f32 %v458, 0.0
    %v475 = vmax.f32 %v459, 0.0
    %v476 = vmax.f32 %v460, 0.0
    %v477 = vmax.f32 %v461, 0.0
    %v478 = vmax.f32 %v462, 0.0
    %v479 = vmax.f32 %v463, 0.0
    %v480 = vmax.f32 %v464, 0.0
    %v481 = vmax.f32 %v465, 0.0
    %v482 = vmax.f32 %v466, 0.0
    %v483 = vmax.f32 %v467, 0.0
    %v484 = vmax.f32 %v468, 0.0
    %v485 = vmax.f32 %v469, 0.0
    %v486 = vmax.f32 %v470, 0.0
    %v487 = vmax.f32 %v471, 0.0
    %v488 = vmax.f32 %v472, 0.0
    %v489 = vmax.f32 %v473, 0.0
    %490 = vst.msk [vmem:[%s4] sm:$0xff] %vm392, %v474
    %491 = vst.msk [vmem:[%s4 + $0x8] sm:$0xff] %vm392, %v475
    %492 = vst.msk [vmem:[%s4 + $0x10] sm:$0xff] %vm392, %v476
    %493 = vst.msk [vmem:[%s4 + $0x18] sm:$0xff] %vm392, %v477
    %494 = vst.msk [vmem:[%s4 + $0x20] sm:$0xff] %vm392, %v478
    %495 = vst.msk [vmem:[%s4 + $0x28] sm:$0xff] %vm392, %v479
    %496 = vst.msk [vmem:[%s4 + $0x30] sm:$0xff] %vm392, %v480
    %497 = vst.msk [vmem:[%s4 + $0x38] sm:$0xff] %vm392, %v481
    %498 = vst.msk [vmem:[%s4 + $0x40] sm:$0xff] %vm392, %v482
    %499 = vst.msk [vmem:[%s4 + $0x48] sm:$0xff] %vm392, %v483
    %500 = vst.msk [vmem:[%s4 + $0x50] sm:$0xff] %vm392, %v484
    %501 = vst.msk [vmem:[%s4 + $0x58] sm:$0xff] %vm392, %v485
    %502 = vst.msk [vmem:[%s4 + $0x60] sm:$0xff] %vm392, %v486
    %503 = vst.msk [vmem:[%s4 + $0x68] sm:$0xff] %vm392, %v487
    %504 = vst.msk [vmem:[%s4 + $0x70] sm:$0xff] %vm392, %v488
    %505 = vst.msk [vmem:[%s4 + $0x78] sm:$0xff] %vm392, %v489
  $region25: #{_lambda_.22} parent=0 // pred_fallthru
    _
  // Predicated region
  $region26: #{_lambda_.22} parent=0 // pred_check
    _
  $region27: #{_lambda_.22} parent=0 // pred_check_branch
    %507 = sbr.rel (0) target = $region29
  $region28: #{_lambda_.22} parent=0 // pred_region
    _
  $region29: #{_lambda_.22} parent=0 // pred_fallthru
    _
  // Predicated region
  $region30: #{_lambda_.22} parent=0 // pred_check
    _
  $region31: #{_lambda_.22} parent=0 // pred_check_branch
    %509 = sbr.rel (0) target = $region33
  $region32: #{_lambda_.22} parent=0 // pred_region
    _
  $region33: #{_lambda_.22} parent=0 // pred_fallthru
    _

// kernel: _lambda_.23
$region0: #{_lambda_.23}
  #allocation0 [shape = 'u32[]', space=smem, size = 0x4, offset = 0x4, fixed_abs, tag = 'smem constant byte address 0x4 - core index']
  #allocation1 [shape = 'u32[144,128]{1,0:T(1,128)}', space=vmem, size = 0x12000, scoped, tag = 'internal scratch']
  %s0 = inlined_call_operand.vmem [shape: f32[2,5,5,8], index: 0, kind: input, shape index: {}]
  %s1 = inlined_call_operand.vmem [shape: f32[2,5,5,8], index: 1, kind: input, shape index: {}]
  %s2 = inlined_call_operand.vmem [shape: f32[2,5,5,8], index: 2, kind: input, shape index: {}]
  %s3 = inlined_call_operand.vmem [shape: f32[2,5,5,8], index: 3, kind: input, shape index: {}]
  %s4 = inlined_call_operand.vmem [shape: f32[2,5,5,8], index: 4, kind: input, shape index: {}]
  %s5 = inlined_call_operand.vmem [shape: f32[2,5,5,8], index: 5, kind: input, shape index: {}]
  %s6 = inlined_call_operand.vmem [shape: f32[2,5,5,8], index: 6, kind: input, shape index: {}]
  %s7 = inlined_call_operand.vmem [shape: f32[2,5,5,8], index: 7, kind: input, shape index: {}]
  %s8 = inlined_call_operand.vmem [shape: f32[2,5,5,8], index: 8, kind: input, shape index: {}]
  %s9 = inlined_call_operand.vmem [shape: f32[2,5,5,8], index: 9, kind: output, shape index: {}]
  %s10 = sld [smem:[#allocation0]]
  $region69: #{_lambda_.23} parent=0
    _
  %s12 = ssub.s32 1, %s10
  %s13 = scalar_select 0, %s12, %s10
  loop: start=0, step=1, limit=4
  $region2: #{_lambda_.23} parent=0 // loop_pre_header
    _
  $region3: #{_lambda_.23} parent=0 // loop_header
    %s15 = sphi 0, %s19
    %p16 = scmp.ge.s32.totalorder %s15, 4
    %s25 = sphi 0, %s27
    %s28 = sphi 0, %s25
    %s29 = sphi 0, %s28
    %s45 = sphi 0, %s29
    %s51 = sphi 0, %s53
    %s54 = sphi 0, %s51
    %s55 = sphi 0, %s54
    %s71 = sphi 0, %s55
    %s77 = sphi 0, %s79
    %s80 = sphi 0, %s77
    %s81 = sphi 0, %s80
    %s97 = sphi 0, %s81
    %s103 = sphi 0, %s105
    %s106 = sphi 0, %s103
    %s107 = sphi 0, %s106
    %s123 = sphi 0, %s107
    %s129 = sphi 0, %s131
    %s132 = sphi 0, %s129
    %s133 = sphi 0, %s132
    %s149 = sphi 0, %s133
    %s155 = sphi 0, %s157
    %s158 = sphi 0, %s155
    %s159 = sphi 0, %s158
    %s175 = sphi 0, %s159
    %s181 = sphi 0, %s183
    %s184 = sphi 0, %s181
    %s185 = sphi 0, %s184
    %s201 = sphi 0, %s185
    %s207 = sphi 0, %s209
    %s210 = sphi 0, %s207
    %s211 = sphi 0, %s210
    %s227 = sphi 0, %s211
    %s233 = sphi 0, %s235
    %s236 = sphi 0, %s233
    %s237 = sphi 0, %s236
    %s253 = sphi 0, %s237
    %s259 = sphi 0, %s261
    %s262 = sphi 0, %s259
    %s263 = sphi 0, %s262
    %s279 = sphi 0, %s263
  $region4: #{_lambda_.23} parent=0 // loop_header_branch
    %18 = sbr.rel (%p16) target = $region8
  $region5: #{_lambda_.23} parent=0 // loop_body
    %s20 = ssub.s32 %s15, 1
    %s21 = ssub.s32 %s15, 2
    %s22 = sadd.s32 %s15, 1
    %s23 = ssub.s32 %s15, %s22
    %p24 = scmp.eq.s32.totalorder %s23, 0
    %s26 = sadd.s32 %s25, 1
    %s27 = scalar_select %p24, %s25, %s26
    %p30 = pneg %p24
    %p31 = scmp.eq.s32.totalorder %s15, 1
    %p32 = por %p30, %p31
    %p33 = scmp.ne.s32.totalorder %s25, %s28
    %p34 = scmp.eq.s32.totalorder %s15, 0
    %p35 = por %p33, %p34
    %p36 = scmp.ne.s32.totalorder %s25, %s28
    %p37 = scmp.eq.s32.totalorder %s20, 1
    %p38 = por %p36, %p37
    %p39 = scmp.ne.s32.totalorder %s28, %s29
    %p40 = scmp.eq.s32.totalorder %s20, 0
    %p41 = por %p39, %p40
    %p42 = scmp.ne.s32.totalorder %s28, %s29
    %p43 = scmp.eq.s32.totalorder %s21, 1
    %p44 = por %p42, %p43
    %p46 = scmp.ne.s32.totalorder %s29, %s45
    %p47 = scmp.eq.s32.totalorder %s21, 0
    %p48 = por %p46, %p47
    %s49 = ssub.s32 %s15, %s22
    %p50 = scmp.eq.s32.totalorder %s49, 0
    %s52 = sadd.s32 %s51, 1
    %s53 = scalar_select %p50, %s51, %s52
    %p56 = pneg %p50
    %p57 = scmp.eq.s32.totalorder %s15, 1
    %p58 = por %p56, %p57
    %p59 = scmp.ne.s32.totalorder %s51, %s54
    %p60 = scmp.eq.s32.totalorder %s15, 0
    %p61 = por %p59, %p60
    %p62 = scmp.ne.s32.totalorder %s51, %s54
    %p63 = scmp.eq.s32.totalorder %s20, 1
    %p64 = por %p62, %p63
    %p65 = scmp.ne.s32.totalorder %s54, %s55
    %p66 = scmp.eq.s32.totalorder %s20, 0
    %p67 = por %p65, %p66
    %p68 = scmp.ne.s32.totalorder %s54, %s55
    %p69 = scmp.eq.s32.totalorder %s21, 1
    %p70 = por %p68, %p69
    %p72 = scmp.ne.s32.totalorder %s55, %s71
    %p73 = scmp.eq.s32.totalorder %s21, 0
    %p74 = por %p72, %p73
    %s75 = ssub.s32 %s15, %s22
    %p76 = scmp.eq.s32.totalorder %s75, 0
    %s78 = sadd.s32 %s77, 1
    %s79 = scalar_select %p76, %s77, %s78
    %p82 = pneg %p76
    %p83 = scmp.eq.s32.totalorder %s15, 1
    %p84 = por %p82, %p83
    %p85 = scmp.ne.s32.totalorder %s77, %s80
    %p86 = scmp.eq.s32.totalorder %s15, 0
    %p87 = por %p85, %p86
    %p88 = scmp.ne.s32.totalorder %s77, %s80
    %p89 = scmp.eq.s32.totalorder %s20, 1
    %p90 = por %p88, %p89
    %p91 = scmp.ne.s32.totalorder %s80, %s81
    %p92 = scmp.eq.s32.totalorder %s20, 0
    %p93 = por %p91, %p92
    %p94 = scmp.ne.s32.totalorder %s80, %s81
    %p95 = scmp.eq.s32.totalorder %s21, 1
    %p96 = por %p94, %p95
    %p98 = scmp.ne.s32.totalorder %s81, %s97
    %p99 = scmp.eq.s32.totalorder %s21, 0
    %p100 = por %p98, %p99
    %s101 = ssub.s32 %s15, %s22
    %p102 = scmp.eq.s32.totalorder %s101, 0
    %s104 = sadd.s32 %s103, 1
    %s105 = scalar_select %p102, %s103, %s104
    %p108 = pneg %p102
    %p109 = scmp.eq.s32.totalorder %s15, 1
    %p110 = por %p108, %p109
    %p111 = scmp.ne.s32.totalorder %s103, %s106
    %p112 = scmp.eq.s32.totalorder %s15, 0
    %p113 = por %p111, %p112
    %p114 = scmp.ne.s32.totalorder %s103, %s106
    %p115 = scmp.eq.s32.totalorder %s20, 1
    %p116 = por %p114, %p115
    %p117 = scmp.ne.s32.totalorder %s106, %s107
    %p118 = scmp.eq.s32.totalorder %s20, 0
    %p119 = por %p117, %p118
    %p120 = scmp.ne.s32.totalorder %s106, %s107
    %p121 = scmp.eq.s32.totalorder %s21, 1
    %p122 = por %p120, %p121
    %p124 = scmp.ne.s32.totalorder %s107, %s123
    %p125 = scmp.eq.s32.totalorder %s21, 0
    %p126 = por %p124, %p125
    %s127 = ssub.s32 %s15, %s22
    %p128 = scmp.eq.s32.totalorder %s127, 0
    %s130 = sadd.s32 %s129, 1
    %s131 = scalar_select %p128, %s129, %s130
    %p134 = pneg %p128
    %p135 = scmp.eq.s32.totalorder %s15, 1
    %p136 = por %p134, %p135
    %p137 = scmp.ne.s32.totalorder %s129, %s132
    %p138 = scmp.eq.s32.totalorder %s15, 0
    %p139 = por %p137, %p138
    %p140 = scmp.ne.s32.totalorder %s129, %s132
    %p141 = scmp.eq.s32.totalorder %s20, 1
    %p142 = por %p140, %p141
    %p143 = scmp.ne.s32.totalorder %s132, %s133
    %p144 = scmp.eq.s32.totalorder %s20, 0
    %p145 = por %p143, %p144
    %p146 = scmp.ne.s32.totalorder %s132, %s133
    %p147 = scmp.eq.s32.totalorder %s21, 1
    %p148 = por %p146, %p147
    %p150 = scmp.ne.s32.totalorder %s133, %s149
    %p151 = scmp.eq.s32.totalorder %s21, 0
    %p152 = por %p150, %p151
    %s153 = ssub.s32 %s15, %s22
    %p154 = scmp.eq.s32.totalorder %s153, 0
    %s156 = sadd.s32 %s155, 1
    %s157 = scalar_select %p154, %s155, %s156
    %p160 = pneg %p154
    %p161 = scmp.eq.s32.totalorder %s15, 1
    %p162 = por %p160, %p161
    %p163 = scmp.ne.s32.totalorder %s155, %s158
    %p164 = scmp.eq.s32.totalorder %s15, 0
    %p165 = por %p163, %p164
    %p166 = scmp.ne.s32.totalorder %s155, %s158
    %p167 = scmp.eq.s32.totalorder %s20, 1
    %p168 = por %p166, %p167
    %p169 = scmp.ne.s32.totalorder %s158, %s159
    %p170 = scmp.eq.s32.totalorder %s20, 0
    %p171 = por %p169, %p170
    %p172 = scmp.ne.s32.totalorder %s158, %s159
    %p173 = scmp.eq.s32.totalorder %s21, 1
    %p174 = por %p172, %p173
    %p176 = scmp.ne.s32.totalorder %s159, %s175
    %p177 = scmp.eq.s32.totalorder %s21, 0
    %p178 = por %p176, %p177
    %s179 = ssub.s32 %s15, %s22
    %p180 = scmp.eq.s32.totalorder %s179, 0
    %s182 = sadd.s32 %s181, 1
    %s183 = scalar_select %p180, %s181, %s182
    %p186 = pneg %p180
    %p187 = scmp.eq.s32.totalorder %s15, 1
    %p188 = por %p186, %p187
    %p189 = scmp.ne.s32.totalorder %s181, %s184
    %p190 = scmp.eq.s32.totalorder %s15, 0
    %p191 = por %p189, %p190
    %p192 = scmp.ne.s32.totalorder %s181, %s184
    %p193 = scmp.eq.s32.totalorder %s20, 1
    %p194 = por %p192, %p193
    %p195 = scmp.ne.s32.totalorder %s184, %s185
    %p196 = scmp.eq.s32.totalorder %s20, 0
    %p197 = por %p195, %p196
    %p198 = scmp.ne.s32.totalorder %s184, %s185
    %p199 = scmp.eq.s32.totalorder %s21, 1
    %p200 = por %p198, %p199
    %p202 = scmp.ne.s32.totalorder %s185, %s201
    %p203 = scmp.eq.s32.totalorder %s21, 0
    %p204 = por %p202, %p203
    %s205 = ssub.s32 %s15, %s22
    %p206 = scmp.eq.s32.totalorder %s205, 0
    %s208 = sadd.s32 %s207, 1
    %s209 = scalar_select %p206, %s207, %s208
    %p212 = pneg %p206
    %p213 = scmp.eq.s32.totalorder %s15, 1
    %p214 = por %p212, %p213
    %p215 = scmp.ne.s32.totalorder %s207, %s210
    %p216 = scmp.eq.s32.totalorder %s15, 0
    %p217 = por %p215, %p216
    %p218 = scmp.ne.s32.totalorder %s207, %s210
    %p219 = scmp.eq.s32.totalorder %s20, 1
    %p220 = por %p218, %p219
    %p221 = scmp.ne.s32.totalorder %s210, %s211
    %p222 = scmp.eq.s32.totalorder %s20, 0
    %p223 = por %p221, %p222
    %p224 = scmp.ne.s32.totalorder %s210, %s211
    %p225 = scmp.eq.s32.totalorder %s21, 1
    %p226 = por %p224, %p225
    %p228 = scmp.ne.s32.totalorder %s211, %s227
    %p229 = scmp.eq.s32.totalorder %s21, 0
    %p230 = por %p228, %p229
    %s231 = ssub.s32 %s15, %s22
    %p232 = scmp.eq.s32.totalorder %s231, 0
    %s234 = sadd.s32 %s233, 1
    %s235 = scalar_select %p232, %s233, %s234
    %p238 = pneg %p232
    %p239 = scmp.eq.s32.totalorder %s15, 1
    %p240 = por %p238, %p239
    %p241 = scmp.ne.s32.totalorder %s233, %s236
    %p242 = scmp.eq.s32.totalorder %s15, 0
    %p243 = por %p241, %p242
    %p244 = scmp.ne.s32.totalorder %s233, %s236
    %p245 = scmp.eq.s32.totalorder %s20, 1
    %p246 = por %p244, %p245
    %p247 = scmp.ne.s32.totalorder %s236, %s237
    %p248 = scmp.eq.s32.totalorder %s20, 0
    %p249 = por %p247, %p248
    %p250 = scmp.ne.s32.totalorder %s236, %s237
    %p251 = scmp.eq.s32.totalorder %s21, 1
    %p252 = por %p250, %p251
    %p254 = scmp.ne.s32.totalorder %s237, %s253
    %p255 = scmp.eq.s32.totalorder %s21, 0
    %p256 = por %p254, %p255
    %s257 = ssub.s32 %s15, %s22
    %p258 = scmp.eq.s32.totalorder %s257, 0
    %s260 = sadd.s32 %s259, 1
    %s261 = scalar_select %p258, %s259, %s260
    %p264 = pneg %p258
    %p265 = scmp.eq.s32.totalorder %s15, 1
    %p266 = por %p264, %p265
    %p267 = scmp.ne.s32.totalorder %s259, %s262
    %p268 = scmp.eq.s32.totalorder %s15, 0
    %p269 = por %p267, %p268
    %p270 = scmp.ne.s32.totalorder %s259, %s262
    %p271 = scmp.eq.s32.totalorder %s20, 1
    %p272 = por %p270, %p271
    %p273 = scmp.ne.s32.totalorder %s262, %s263
    %p274 = scmp.eq.s32.totalorder %s20, 0
    %p275 = por %p273, %p274
    %p276 = scmp.ne.s32.totalorder %s262, %s263
    %p277 = scmp.eq.s32.totalorder %s21, 1
    %p278 = por %p276, %p277
    %p280 = scmp.ne.s32.totalorder %s263, %s279
    %p281 = scmp.eq.s32.totalorder %s21, 0
    %p282 = por %p280, %p281
    %p283 = scmp.le.s32.totalorder 1, %s15
    %p284 = scmp.lt.s32.totalorder %s15, 3
    %p285 = pnand %p283, %p284
    %p286 = pneg %p285
    // Predicated region
    $region9: #{_lambda_.23} parent=5 // pred_check
      _
    $region10: #{_lambda_.23} parent=5 // pred_check_branch
      %288 = sbr.rel (%p285) target = $region12
    $region11: #{_lambda_.23} parent=5 // pred_region
      %s289 = ssub.s32 %s15, 1
    $region12: #{_lambda_.23} parent=5 // pred_fallthru
      _
    %p290 = scmp.lt.s32.totalorder %s15, 2
    // Predicated region
    $region13: #{_lambda_.23} parent=5 // pred_check
      %p291 = pneg %p290
    $region14: #{_lambda_.23} parent=5 // pred_check_branch
      %293 = sbr.rel (%p291) target = $region16
    $region15: #{_lambda_.23} parent=5 // pred_region
      // Predicated region
      $region17: #{_lambda_.23} parent=15 // pred_check
        %p294 = pneg %p35
      $region18: #{_lambda_.23} parent=15 // pred_check_branch
        %296 = sbr.rel (%p294) target = $region20
      $region19: #{_lambda_.23} parent=15 // pred_region
        %p297 = scmp.lt.s32.totalorder %s15, 1
        %s298 = scalar_select %p297, %s15, 1
        %s299 = smul.addr %s298, 5
        %s300 = smul.addr %s299, 8
        %s301 = scalar_lea.vmem %s0, %s300
      $region20: #{_lambda_.23} parent=15 // pred_fallthru
        _
      // Predicated region
      $region21: #{_lambda_.23} parent=15 // pred_check
        %p302 = pneg %p61
      $region22: #{_lambda_.23} parent=15 // pred_check_branch
        %304 = sbr.rel (%p302) target = $region24
      $region23: #{_lambda_.23} parent=15 // pred_region
        %p305 = scmp.lt.s32.totalorder %s15, 1
        %s306 = scalar_select %p305, %s15, 1
        %s307 = smul.addr %s306, 5
        %s308 = smul.addr %s307, 8
        %s309 = scalar_lea.vmem %s1, %s308
      $region24: #{_lambda_.23} parent=15 // pred_fallthru
        _
      // Predicated region
      $region25: #{_lambda_.23} parent=15 // pred_check
        %p310 = pneg %p87
      $region26: #{_lambda_.23} parent=15 // pred_check_branch
        %312 = sbr.rel (%p310) target = $region28
      $region27: #{_lambda_.23} parent=15 // pred_region
        %p313 = scmp.lt.s32.totalorder %s15, 1
        %s314 = scalar_select %p313, %s15, 1
        %s315 = smul.addr %s314, 5
        %s316 = smul.addr %s315, 8
        %s317 = scalar_lea.vmem %s2, %s316
      $region28: #{_lambda_.23} parent=15 // pred_fallthru
        _
      // Predicated region
      $region29: #{_lambda_.23} parent=15 // pred_check
        %p318 = pneg %p113
      $region30: #{_lambda_.23} parent=15 // pred_check_branch
        %320 = sbr.rel (%p318) target = $region32
      $region31: #{_lambda_.23} parent=15 // pred_region
        %p321 = scmp.lt.s32.totalorder %s15, 1
        %s322 = scalar_select %p321, %s15, 1
        %s323 = smul.addr %s322, 5
        %s324 = smul.addr %s323, 8
        %s325 = scalar_lea.vmem %s3, %s324
      $region32: #{_lambda_.23} parent=15 // pred_fallthru
        _
      // Predicated region
      $region33: #{_lambda_.23} parent=15 // pred_check
        %p326 = pneg %p139
      $region34: #{_lambda_.23} parent=15 // pred_check_branch
        %328 = sbr.rel (%p326) target = $region36
      $region35: #{_lambda_.23} parent=15 // pred_region
        %p329 = scmp.lt.s32.totalorder %s15, 1
        %s330 = scalar_select %p329, %s15, 1
        %s331 = smul.addr %s330, 5
        %s332 = smul.addr %s331, 8
        %s333 = scalar_lea.vmem %s4, %s332
      $region36: #{_lambda_.23} parent=15 // pred_fallthru
        _
      // Predicated region
      $region37: #{_lambda_.23} parent=15 // pred_check
        %p334 = pneg %p165
      $region38: #{_lambda_.23} parent=15 // pred_check_branch
        %336 = sbr.rel (%p334) target = $region40
      $region39: #{_lambda_.23} parent=15 // pred_region
        %p337 = scmp.lt.s32.totalorder %s15, 1
        %s338 = scalar_select %p337, %s15, 1
        %s339 = smul.addr %s338, 5
        %s340 = smul.addr %s339, 8
        %s341 = scalar_lea.vmem %s5, %s340
      $region40: #{_lambda_.23} parent=15 // pred_fallthru
        _
      // Predicated region
      $region41: #{_lambda_.23} parent=15 // pred_check
        %p342 = pneg %p191
      $region42: #{_lambda_.23} parent=15 // pred_check_branch
        %344 = sbr.rel (%p342) target = $region44
      $region43: #{_lambda_.23} parent=15 // pred_region
        %p345 = scmp.lt.s32.totalorder %s15, 1
        %s346 = scalar_select %p345, %s15, 1
        %s347 = smul.addr %s346, 5
        %s348 = smul.addr %s347, 8
        %s349 = scalar_lea.vmem %s6, %s348
      $region44: #{_lambda_.23} parent=15 // pred_fallthru
        _
      // Predicated region
      $region45: #{_lambda_.23} parent=15 // pred_check
        %p350 = pneg %p217
      $region46: #{_lambda_.23} parent=15 // pred_check_branch
        %352 = sbr.rel (%p350) target = $region48
      $region47: #{_lambda_.23} parent=15 // pred_region
        %p353 = scmp.lt.s32.totalorder %s15, 1
        %s354 = scalar_select %p353, %s15, 1
        %s355 = smul.addr %s354, 5
        %s356 = smul.addr %s355, 8
        %s357 = scalar_lea.vmem %s7, %s356
      $region48: #{_lambda_.23} parent=15 // pred_fallthru
        _
      // Predicated region
      $region49: #{_lambda_.23} parent=15 // pred_check
        %p358 = pneg %p243
      $region50: #{_lambda_.23} parent=15 // pred_check_branch
        %360 = sbr.rel (%p358) target = $region52
      $region51: #{_lambda_.23} parent=15 // pred_region
        %p361 = scmp.lt.s32.totalorder %s15, 1
        %s362 = scalar_select %p361, %s15, 1
        %s363 = smul.addr %s362, 5
        %s364 = smul.addr %s363, 8
        %s365 = scalar_lea.vmem %s8, %s364
      $region52: #{_lambda_.23} parent=15 // pred_fallthru
        _
    $region16: #{_lambda_.23} parent=5 // pred_fallthru
      _
    %p366 = scmp.le.s32.totalorder 1, %s15
    %p367 = scmp.lt.s32.totalorder %s15, 3
    %p368 = pnand %p366, %p367
    %p369 = pneg %p368
    // Predicated region
    $region53: #{_lambda_.23} parent=5 // pred_check
      _
    $region54: #{_lambda_.23} parent=5 // pred_check_branch
      %371 = sbr.rel (%p368) target = $region56
    $region55: #{_lambda_.23} parent=5 // pred_region
      %s372 = ssub.s32 %s15, 1
      %p373 = scmp.lt.s32.totalorder %s20, 1
      %s374 = scalar_select %p373, %s20, 1
      %s375 = smul.addr %s374, 5
      %s376 = smul.addr %s375, 8
      %s377 = scalar_lea.vmem %s0, %s376
      %p378 = pneg %p41
      %p379 = pneg %p38
      %p380 = scmp.lt.s32.totalorder %s20, 1
      %s381 = scalar_select %p380, %s20, 1
      %s382 = smul.addr %s381, 5
      %s383 = smul.addr %s382, 8
      %s384 = scalar_lea.vmem %s1, %s383
      %p385 = pneg %p67
      %p386 = pneg %p64
      %p387 = scmp.lt.s32.totalorder %s20, 1
      %s388 = scalar_select %p387, %s20, 1
      %s389 = smul.addr %s388, 5
      %s390 = smul.addr %s389, 8
      %s391 = scalar_lea.vmem %s2, %s390
      %p392 = pneg %p93
      %p393 = pneg %p90
      %p394 = scmp.lt.s32.totalorder %s20, 1
      %s395 = scalar_select %p394, %s20, 1
      %s396 = smul.addr %s395, 5
      %s397 = smul.addr %s396, 8
      %s398 = scalar_lea.vmem %s3, %s397
      %p399 = pneg %p119
      %p400 = pneg %p116
      %p401 = scmp.lt.s32.totalorder %s20, 1
      %s402 = scalar_select %p401, %s20, 1
      %s403 = smul.addr %s402, 5
      %s404 = smul.addr %s403, 8
      %s405 = scalar_lea.vmem %s4, %s404
      %p406 = pneg %p145
      %p407 = pneg %p142
      %p408 = scmp.lt.s32.totalorder %s20, 1
      %s409 = scalar_select %p408, %s20, 1
      %s410 = smul.addr %s409, 5
      %s411 = smul.addr %s410, 8
      %s412 = scalar_lea.vmem %s5, %s411
      %p413 = pneg %p171
      %p414 = pneg %p168
      %p415 = scmp.lt.s32.totalorder %s20, 1
      %s416 = scalar_select %p415, %s20, 1
      %s417 = smul.addr %s416, 5
      %s418 = smul.addr %s417, 8
      %s419 = scalar_lea.vmem %s6, %s418
      %p420 = pneg %p197
      %p421 = pneg %p194
      %p422 = scmp.lt.s32.totalorder %s20, 1
      %s423 = scalar_select %p422, %s20, 1
      %s424 = smul.addr %s423, 5
      %s425 = smul.addr %s424, 8
      %s426 = scalar_lea.vmem %s7, %s425
      %p427 = pneg %p223
      %p428 = pneg %p220
      %p429 = scmp.lt.s32.totalorder %s20, 1
      %s430 = scalar_select %p429, %s20, 1
      %s431 = smul.addr %s430, 5
      %s432 = smul.addr %s431, 8
      %s433 = scalar_lea.vmem %s8, %s432
      %p434 = pneg %p249
      %p435 = pneg %p246
      %p436 = pneg %p275
      %p437 = pneg %p272
      %p438 = scmp.lt.s32.totalorder %s20, 1
      %s439 = scalar_select %p438, %s20, 1
      %s440 = smul.addr %s439, 5
      %s441 = smul.addr %s440, 8
      %s442 = scalar_lea.vmem %s9, %s441
      %p443 = scmp.lt.s32.totalorder %s20, 1
      %s444 = scalar_select %p443, %s20, 1
      %s445 = smul.addr %s444, 5
      %s446 = smul.addr %s445, 8
      %s447 = scalar_lea.vmem %s0, %s446
      %p448 = scmp.lt.s32.totalorder %s20, 1
      %s449 = scalar_select %p448, %s20, 1
      %s450 = smul.addr %s449, 5
      %s451 = smul.addr %s450, 8
      %s452 = scalar_lea.vmem %s1, %s451
      %p453 = scmp.lt.s32.totalorder %s20, 1
      %s454 = scalar_select %p453, %s20, 1
      %s455 = smul.addr %s454, 5
      %s456 = smul.addr %s455, 8
      %s457 = scalar_lea.vmem %s2, %s456
      %p458 = scmp.lt.s32.totalorder %s20, 1
      %s459 = scalar_select %p458, %s20, 1
      %s460 = smul.addr %s459, 5
      %s461 = smul.addr %s460, 8
      %s462 = scalar_lea.vmem %s3, %s461
      %p463 = scmp.lt.s32.totalorder %s20, 1
      %s464 = scalar_select %p463, %s20, 1
      %s465 = smul.addr %s464, 5
      %s466 = smul.addr %s465, 8
      %s467 = scalar_lea.vmem %s4, %s466
      %p468 = scmp.lt.s32.totalorder %s20, 1
      %s469 = scalar_select %p468, %s20, 1
      %s470 = smul.addr %s469, 5
      %s471 = smul.addr %s470, 8
      %s472 = scalar_lea.vmem %s5, %s471
      %p473 = scmp.lt.s32.totalorder %s20, 1
      %s474 = scalar_select %p473, %s20, 1
      %s475 = smul.addr %s474, 5
      %s476 = smul.addr %s475, 8
      %s477 = scalar_lea.vmem %s6, %s476
      %p478 = scmp.lt.s32.totalorder %s20, 1
      %s479 = scalar_select %p478, %s20, 1
      %s480 = smul.addr %s479, 5
      %s481 = smul.addr %s480, 8
      %s482 = scalar_lea.vmem %s7, %s481
      %p483 = scmp.lt.s32.totalorder %s20, 1
      %s484 = scalar_select %p483, %s20, 1
      %s485 = smul.addr %s484, 5
      %s486 = smul.addr %s485, 8
      %s487 = scalar_lea.vmem %s8, %s486
      %p488 = scmp.lt.s32.totalorder %s20, 1
      %s489 = scalar_select %p488, %s20, 1
      %s490 = smul.addr %s489, 5
      %s491 = smul.addr %s490, 8
      %s492 = scalar_lea.vmem %s9, %s491
      %v493 = vld [vmem:[%s447] sm:$0x1f]
      %v494 = vld [vmem:[%s447 + $0x8] sm:$0x1f]
      %v495 = vld [vmem:[%s447 + $0x10] sm:$0x1f]
      %v496 = vld [vmem:[%s447 + $0x18] sm:$0x1f]
      %v497 = vld [vmem:[%s447 + $0x20] sm:$0x1f]
      %v498 = vld [vmem:[%s452] sm:$0x1f]
      %v499 = vld [vmem:[%s452 + $0x8] sm:$0x1f]
      %v500 = vld [vmem:[%s452 + $0x10] sm:$0x1f]
      %v501 = vld [vmem:[%s452 + $0x18] sm:$0x1f]
      %v502 = vld [vmem:[%s452 + $0x20] sm:$0x1f]
      %v503 = vmax.f32 %v493, %v498
      %v504 = vmax.f32 %v494, %v499
      %v505 = vmax.f32 %v495, %v500
      %v506 = vmax.f32 %v496, %v501
      %v507 = vmax.f32 %v497, %v502
      %v508 = vld [vmem:[%s457] sm:$0x1f]
      %v509 = vld [vmem:[%s457 + $0x8] sm:$0x1f]
      %v510 = vld [vmem:[%s457 + $0x10] sm:$0x1f]
      %v511 = vld [vmem:[%s457 + $0x18] sm:$0x1f]
      %v512 = vld [vmem:[%s457 + $0x20] sm:$0x1f]
      %v513 = vmax.f32 %v503, %v508
      %v514 = vmax.f32 %v504, %v509
      %v515 = vmax.f32 %v505, %v510
      %v516 = vmax.f32 %v506, %v511
      %v517 = vmax.f32 %v507, %v512
      %v518 = vld [vmem:[%s462] sm:$0x1f]
      %v519 = vld [vmem:[%s462 + $0x8] sm:$0x1f]
      %v520 = vld [vmem:[%s462 + $0x10] sm:$0x1f]
      %v521 = vld [vmem:[%s462 + $0x18] sm:$0x1f]
      %v522 = vld [vmem:[%s462 + $0x20] sm:$0x1f]
      %v523 = vmax.f32 %v513, %v518
      %v524 = vmax.f32 %v514, %v519
      %v525 = vmax.f32 %v515, %v520
      %v526 = vmax.f32 %v516, %v521
      %v527 = vmax.f32 %v517, %v522
      %v528 = vld [vmem:[%s467] sm:$0x1f]
      %v529 = vld [vmem:[%s467 + $0x8] sm:$0x1f]
      %v530 = vld [vmem:[%s467 + $0x10] sm:$0x1f]
      %v531 = vld [vmem:[%s467 + $0x18] sm:$0x1f]
      %v532 = vld [vmem:[%s467 + $0x20] sm:$0x1f]
      %v533 = vmax.f32 %v523, %v528
      %v534 = vmax.f32 %v524, %v529
      %v535 = vmax.f32 %v525, %v530
      %v536 = vmax.f32 %v526, %v531
      %v537 = vmax.f32 %v527, %v532
      %v538 = vld [vmem:[%s472] sm:$0x1f]
      %v539 = vld [vmem:[%s472 + $0x8] sm:$0x1f]
      %v540 = vld [vmem:[%s472 + $0x10] sm:$0x1f]
      %v541 = vld [vmem:[%s472 + $0x18] sm:$0x1f]
      %v542 = vld [vmem:[%s472 + $0x20] sm:$0x1f]
      %v543 = vmax.f32 %v533, %v538
      %v544 = vmax.f32 %v534, %v539
      %v545 = vmax.f32 %v535, %v540
      %v546 = vmax.f32 %v536, %v541
      %v547 = vmax.f32 %v537, %v542
      %v548 = vld [vmem:[%s477] sm:$0x1f]
      %v549 = vld [vmem:[%s477 + $0x8] sm:$0x1f]
      %v550 = vld [vmem:[%s477 + $0x10] sm:$0x1f]
      %v551 = vld [vmem:[%s477 + $0x18] sm:$0x1f]
      %v552 = vld [vmem:[%s477 + $0x20] sm:$0x1f]
      %v553 = vmax.f32 %v543, %v548
      %v554 = vmax.f32 %v544, %v549
      %v555 = vmax.f32 %v545, %v550
      %v556 = vmax.f32 %v546, %v551
      %v557 = vmax.f32 %v547, %v552
      %v558 = vld [vmem:[%s482] sm:$0x1f]
      %v559 = vld [vmem:[%s482 + $0x8] sm:$0x1f]
      %v560 = vld [vmem:[%s482 + $0x10] sm:$0x1f]
      %v561 = vld [vmem:[%s482 + $0x18] sm:$0x1f]
      %v562 = vld [vmem:[%s482 + $0x20] sm:$0x1f]
      %v563 = vmax.f32 %v553, %v558
      %v564 = vmax.f32 %v554, %v559
      %v565 = vmax.f32 %v555, %v560
      %v566 = vmax.f32 %v556, %v561
      %v567 = vmax.f32 %v557, %v562
      %v568 = vld [vmem:[%s487] sm:$0x1f]
      %v569 = vld [vmem:[%s487 + $0x8] sm:$0x1f]
      %v570 = vld [vmem:[%s487 + $0x10] sm:$0x1f]
      %v571 = vld [vmem:[%s487 + $0x18] sm:$0x1f]
      %v572 = vld [vmem:[%s487 + $0x20] sm:$0x1f]
      %v573 = vmax.f32 %v563, %v568
      %v574 = vmax.f32 %v564, %v569
      %v575 = vmax.f32 %v565, %v570
      %v576 = vmax.f32 %v566, %v571
      %v577 = vmax.f32 %v567, %v572
      %vm578 = vcmask 61440
      %579 = vst.msk [vmem:[%s492] sm:$0x1f] %vm578, %v573
      %580 = vst.msk [vmem:[%s492 + $0x8] sm:$0x1f] %vm578, %v574
      %581 = vst.msk [vmem:[%s492 + $0x10] sm:$0x1f] %vm578, %v575
      %582 = vst.msk [vmem:[%s492 + $0x18] sm:$0x1f] %vm578, %v576
      %583 = vst.msk [vmem:[%s492 + $0x20] sm:$0x1f] %vm578, %v577
      %p584 = scmp.lt.s32.totalorder %s20, 1
      %s585 = scalar_select %p584, %s20, 1
      %s586 = smul.addr %s585, 5
      %s587 = smul.addr %s586, 8
      %s588 = scalar_lea.vmem %s9, %s587
      // Predicated region
      $region57: #{_lambda_.23} parent=55 // pred_check
        %p589 = pneg %p272
      $region58: #{_lambda_.23} parent=55 // pred_check_branch
        %591 = sbr.rel (%p589) target = $region60
      $region59: #{_lambda_.23} parent=55 // pred_region
        _
      $region60: #{_lambda_.23} parent=55 // pred_fallthru
        _
    $region56: #{_lambda_.23} parent=5 // pred_fallthru
      _
    %p592 = scmp.le.s32.totalorder 2, %s15
    // Predicated region
    $region61: #{_lambda_.23} parent=5 // pred_check
      %p593 = pneg %p592
    $region62: #{_lambda_.23} parent=5 // pred_check_branch
      %595 = sbr.rel (%p593) target = $region64
    $region63: #{_lambda_.23} parent=5 // pred_region
      %s596 = ssub.s32 %s15, 2
      // Predicated region
      $region65: #{_lambda_.23} parent=63 // pred_check
        %p597 = pneg %p278
      $region66: #{_lambda_.23} parent=63 // pred_check_branch
        %599 = sbr.rel (%p597) target = $region68
      $region67: #{_lambda_.23} parent=63 // pred_region
        %p600 = scmp.lt.s32.totalorder %s21, 1
        %s601 = scalar_select %p600, %s21, 1
        %s602 = smul.addr %s601, 5
        %s603 = smul.addr %s602, 8
        %s604 = scalar_lea.vmem %s9, %s603
      $region68: #{_lambda_.23} parent=63 // pred_fallthru
        _
    $region64: #{_lambda_.23} parent=5 // pred_fallthru
      _
  $region6: #{_lambda_.23} parent=0 // loop_footer
    %s19 = sadd.s32 1, %s15
  $region7: #{_lambda_.23} parent=0 // loop_footer_branch
    %14 = sbr.rel target = $region3
  $region8: #{_lambda_.23} parent=0 // loop_exit
    _

// kernel: _lambda_.25
$region0: #{_lambda_.25}
  #allocation0 [shape = 'u32[]', space=smem, size = 0x4, offset = 0x4, fixed_abs, tag = 'smem constant byte address 0x4 - core index']
  #allocation1 [shape = 'u32[144,128]{1,0:T(1,128)}', space=vmem, size = 0x12000, scoped, tag = 'internal scratch']
  #allocation2 [shape = 'f32[56,8]{1,0:T(8,128)}', space=vmem, size = 0x7000, scoped, tag = 'scratch operand']
  %s0 = inlined_call_operand.vmem [shape: bf16[56,8], index: 0, kind: input, shape index: {}]
  %s1 = inlined_call_operand.vmem [shape: bf16[8,8], index: 1, kind: input, shape index: {}]
  %s2 = inlined_call_operand.vmem [shape: f32[1,8], index: 2, kind: input, shape index: {}]
  %s3 = inlined_call_operand.vmem [shape: f32[1,8], index: 3, kind: input, shape index: {}]
  %s4 = inlined_call_operand.vmem [shape: f32[56,8], index: 4, kind: output, shape index: {}]
  %s5 = sld [smem:[#allocation0]]
  $region34: #{_lambda_.25} parent=0
    _
  %s7 = ssub.s32 1, %s5
  %s8 = scalar_select 0, %s7, %s5
  // Predicated region
  $region2: #{_lambda_.25} parent=0 // pred_check
    _
  $region3: #{_lambda_.25} parent=0 // pred_check_branch
    %10 = sbr.rel (0) target = $region5
  $region4: #{_lambda_.25} parent=0 // pred_region
    _
  $region5: #{_lambda_.25} parent=0 // pred_fallthru
    _
  // Predicated region
  $region6: #{_lambda_.25} parent=0 // pred_check
    _
  $region7: #{_lambda_.25} parent=0 // pred_check_branch
    %12 = sbr.rel (0) target = $region9
  $region8: #{_lambda_.25} parent=0 // pred_region
    _
  $region9: #{_lambda_.25} parent=0 // pred_fallthru
    _
  // Predicated region
  $region10: #{_lambda_.25} parent=0 // pred_check
    _
  $region11: #{_lambda_.25} parent=0 // pred_check_branch
    %14 = sbr.rel (0) target = $region13
  $region12: #{_lambda_.25} parent=0 // pred_region
    _
  $region13: #{_lambda_.25} parent=0 // pred_fallthru
    _
  // Predicated region
  $region14: #{_lambda_.25} parent=0 // pred_check
    _
  $region15: #{_lambda_.25} parent=0 // pred_check_branch
    %16 = sbr.rel (0) target = $region17
  $region16: #{_lambda_.25} parent=0 // pred_region
    _
  $region17: #{_lambda_.25} parent=0 // pred_fallthru
    _
  %p18 = scmp.eq.s32.totalorder 0, 0
  // Predicated region
  $region18: #{_lambda_.25} parent=0 // pred_check
    %p19 = pneg %p18
  $region19: #{_lambda_.25} parent=0 // pred_check_branch
    %21 = sbr.rel (%p19) target = $region21
  $region20: #{_lambda_.25} parent=0 // pred_region
    %vm22 = vcmask 64512
    %23 = vst.msk [vmem:[#allocation2] sm:$0xff] %vm22, 0.0
    %24 = vst.msk [vmem:[#allocation2 + $0x8] sm:$0xff] %vm22, 0.0
    %25 = vst.msk [vmem:[#allocation2 + $0x10] sm:$0xff] %vm22, 0.0
    %26 = vst.msk [vmem:[#allocation2 + $0x18] sm:$0xff] %vm22, 0.0
    %27 = vst.msk [vmem:[#allocation2 + $0x20] sm:$0xff] %vm22, 0.0
    %28 = vst.msk [vmem:[#allocation2 + $0x28] sm:$0xff] %vm22, 0.0
    %29 = vst.msk [vmem:[#allocation2 + $0x30] sm:$0xff] %vm22, 0.0
  $region21: #{_lambda_.25} parent=0 // pred_fallthru
    _
  %v30 = vld [vmem:[#allocation2] sm:$0xff]
  %v31 = vld [vmem:[#allocation2 + $0x8] sm:$0xff]
  %v32 = vld [vmem:[#allocation2 + $0x10] sm:$0xff]
  %v33 = vld [vmem:[#allocation2 + $0x18] sm:$0xff]
  %v34 = vld [vmem:[#allocation2 + $0x20] sm:$0xff]
  %v35 = vld [vmem:[#allocation2 + $0x28] sm:$0xff]
  %v36 = vld [vmem:[#allocation2 + $0x30] sm:$0xff]
  %v37 = vld [vmem:[%s0] sm:$0xf]
  %v38 = vld [vmem:[%s0 + $0x4] sm:$0xf]
  %v39 = vld [vmem:[%s0 + $0x8] sm:$0xf]
  %v40 = vld [vmem:[%s0 + $0xc] sm:$0xf]
  %v41 = vld [vmem:[%s0 + $0x10] sm:$0xf]
  %v42 = vld [vmem:[%s0 + $0x14] sm:$0xf]
  %v43 = vld [vmem:[%s0 + $0x18] sm:$0xf]
  %v44 = vld [vmem:[%s1] sm:$0xf]
  %v52 = vunpack.c.l.b16 %v37
  %v53 = vunpack.c.l.b16 %v38
  %v54 = vunpack.c.l.b16 %v39
  %v55 = vunpack.c.l.b16 %v40
  %v56 = vunpack.c.l.b16 %v41
  %v57 = vunpack.c.l.b16 %v42
  %v58 = vunpack.c.l.b16 %v43
  %v59 = vpack.c.b16 %v53, %v52
  %v60 = vpack.c.b16 %v55, %v54
  %v61 = vpack.c.b16 %v57, %v56
  %v62 = vpack.c.b16 %v58, %v58
  %vm63 = vcmask 64512
  %v65 = vsel %vm63, %v59, 0
  %v68 = vsel %vm63, %v60, 0
  %v71 = vsel %vm63, %v61, 0
  %v74 = vsel %vm63, %v62, 0
  %vm76 = vcmask 1043456
  %v78 = vsel %vm76, %v44, 0
  %80 = vmatprep.subr.bf16.mxu0 0
  %81 = vmatpush1.bf16.msra.mxu0 0
  %82 = vmatprep.subr.bf16.mxu0 0
  %83 = vmatpush1.bf16.msra.mxu0 0
  %84 = vmatprep.subr.bf16.mxu0 0
  %85 = vmatpush1.bf16.msra.mxu0 0
  %86 = vmatprep.subr.bf16.mxu0 0
  %87 = vmatpush1.bf16.msra.mxu0 0
  %88 = vmatprep.subr.bf16.mxu0 0
  %89 = vmatpush1.bf16.msra.mxu0 0
  %90 = vmatprep.subr.bf16.mxu0 0
  %91 = vmatpush1.bf16.msra.mxu0 0
  %92 = vmatprep.subr.bf16.mxu0 0
  %93 = vmatpush1.bf16.msra.mxu0 0
  %94 = vmatprep.subr.bf16.mxu0 0
  %95 = vmatpush1.bf16.msra.mxu0 %v78
  %96 = vmatprep.subr.bf16.mxu0 0
  %97 = vmatpush2.bf16.msra.mxu0 0
  %98 = vmatprep.subr.bf16.mxu0 0
  %99 = vmatpush2.bf16.msra.mxu0 0
  %100 = vmatprep.subr.bf16.mxu0 0
  %101 = vmatpush2.bf16.msra.mxu0 0
  %102 = vmatprep.subr.bf16.mxu0 0
  %103 = vmatpush2.bf16.msra.mxu0 0
  %104 = vmatprep.subr.bf16.mxu0 0
  %105 = vmatpush2.bf16.msra.mxu0 0
  %106 = vmatprep.subr.bf16.mxu0 0
  %107 = vmatpush2.bf16.msra.mxu0 0
  %108 = vmatprep.subr.bf16.mxu0 0
  %109 = vmatpush2.bf16.msra.mxu0 0
  %110 = vmatprep.subr.bf16.mxu0 0
  %111 = vmatpush2.bf16.msra.mxu0 0
  %112 = vmatprep.mubr.bf16.mxu0 0
  %113 = vmatmul.mubr.bf16.gmra.mxu0 %v65
  %v114 = vpop.f32.mrf.mxu0
  %v115 = vadd.f32 0.0, %v114
  %v116 = vpop.f32.mrf.mxu0
  %v117 = vpop.f32.mrf.mxu0
  %v118 = vadd.f32 0.0, %v117
  %v119 = vpop.f32.mrf.mxu0
  %120 = vmatprep.mubr.bf16.mxu0 0
  %121 = vmatmul.mubr.bf16.gmra.mxu0 %v68
  %v122 = vpop.f32.mrf.mxu0
  %v123 = vadd.f32 0.0, %v122
  %v124 = vpop.f32.mrf.mxu0
  %v125 = vpop.f32.mrf.mxu0
  %v126 = vadd.f32 0.0, %v125
  %v127 = vpop.f32.mrf.mxu0
  %128 = vmatprep.mubr.bf16.mxu0 0
  %129 = vmatmul.mubr.bf16.gmra.mxu0 %v71
  %v130 = vpop.f32.mrf.mxu0
  %v131 = vadd.f32 0.0, %v130
  %v132 = vpop.f32.mrf.mxu0
  %v133 = vpop.f32.mrf.mxu0
  %v134 = vadd.f32 0.0, %v133
  %v135 = vpop.f32.mrf.mxu0
  %136 = vmatprep.mubr.bf16.mxu0 0
  %137 = vmatmul.mubr.bf16.gmra.mxu0 %v74
  %v138 = vpop.f32.mrf.mxu0
  %v139 = vadd.f32 0.0, %v138
  %v140 = vpop.f32.mrf.mxu0
  %v141 = vpop.f32.mrf.mxu0
  %v142 = vpop.f32.mrf.mxu0
  %143 = vdwg.mxu0
  %v144 = vadd.f32 %v30, %v115
  %v145 = vadd.f32 %v31, %v118
  %v146 = vadd.f32 %v32, %v123
  %v147 = vadd.f32 %v33, %v126
  %v148 = vadd.f32 %v34, %v131
  %v149 = vadd.f32 %v35, %v134
  %v150 = vadd.f32 %v36, %v139
  %151 = vst.msk [vmem:[#allocation2] sm:$0xff] %vm63, %v144
  %152 = vst.msk [vmem:[#allocation2 + $0x8] sm:$0xff] %vm63, %v145
  %153 = vst.msk [vmem:[#allocation2 + $0x10] sm:$0xff] %vm63, %v146
  %154 = vst.msk [vmem:[#allocation2 + $0x18] sm:$0xff] %vm63, %v147
  %155 = vst.msk [vmem:[#allocation2 + $0x20] sm:$0xff] %vm63, %v148
  %156 = vst.msk [vmem:[#allocation2 + $0x28] sm:$0xff] %vm63, %v149
  %157 = vst.msk [vmem:[#allocation2 + $0x30] sm:$0xff] %vm63, %v150
  // Predicated region
  $region22: #{_lambda_.25} parent=0 // pred_check
    %p158 = pneg %p18
  $region23: #{_lambda_.25} parent=0 // pred_check_branch
    %160 = sbr.rel (%p158) target = $region25
  $region24: #{_lambda_.25} parent=0 // pred_region
    %v161 = vld [vmem:[#allocation2] sm:$0xff]
    %v162 = vld [vmem:[#allocation2 + $0x8] sm:$0xff]
    %v163 = vld [vmem:[#allocation2 + $0x10] sm:$0xff]
    %v164 = vld [vmem:[#allocation2 + $0x18] sm:$0xff]
    %v165 = vld [vmem:[#allocation2 + $0x20] sm:$0xff]
    %v166 = vld [vmem:[#allocation2 + $0x28] sm:$0xff]
    %v167 = vld [vmem:[#allocation2 + $0x30] sm:$0xff]
    %v168 = vld [vmem:[%s2] sm:$0x1]
    %v170 = vlaneseq
    %v171 = vshrl.u32 %v170, 7
    %v172 = vsub.s32 0, %v171
    %v173 = vrot.slane %v168, %v172
    %v175 = vmul.f32 %v161, %v173
    %v176 = vmul.f32 %v162, %v173
    %v177 = vmul.f32 %v163, %v173
    %v178 = vmul.f32 %v164, %v173
    %v179 = vmul.f32 %v165, %v173
    %v180 = vmul.f32 %v166, %v173
    %v181 = vmul.f32 %v167, %v173
    %v182 = vld [vmem:[%s3] sm:$0x1]
    %v184 = vlaneseq
    %v185 = vshrl.u32 %v184, 7
    %v186 = vsub.s32 0, %v185
    %v187 = vrot.slane %v182, %v186
    %v189 = vadd.f32 %v175, %v187
    %v190 = vadd.f32 %v176, %v187
    %v191 = vadd.f32 %v177, %v187
    %v192 = vadd.f32 %v178, %v187
    %v193 = vadd.f32 %v179, %v187
    %v194 = vadd.f32 %v180, %v187
    %v195 = vadd.f32 %v181, %v187
    %v196 = vmax.f32 %v189, 0.0
    %v197 = vmax.f32 %v190, 0.0
    %v198 = vmax.f32 %v191, 0.0
    %v199 = vmax.f32 %v192, 0.0
    %v200 = vmax.f32 %v193, 0.0
    %v201 = vmax.f32 %v194, 0.0
    %v202 = vmax.f32 %v195, 0.0
    %203 = vst.msk [vmem:[%s4] sm:$0xff] %vm63, %v196
    %204 = vst.msk [vmem:[%s4 + $0x8] sm:$0xff] %vm63, %v197
    %205 = vst.msk [vmem:[%s4 + $0x10] sm:$0xff] %vm63, %v198
    %206 = vst.msk [vmem:[%s4 + $0x18] sm:$0xff] %vm63, %v199
    %207 = vst.msk [vmem:[%s4 + $0x20] sm:$0xff] %vm63, %v200
    %208 = vst.msk [vmem:[%s4 + $0x28] sm:$0xff] %vm63, %v201
    %209 = vst.msk [vmem:[%s4 + $0x30] sm:$0xff] %vm63, %v202
  $region25: #{_lambda_.25} parent=0 // pred_fallthru
    _
  // Predicated region
  $region26: #{_lambda_.25} parent=0 // pred_check
    _
  $region27: #{_lambda_.25} parent=0 // pred_check_branch
    %211 = sbr.rel (0) target = $region29
  $region28: #{_lambda_.25} parent=0 // pred_region
    _
  $region29: #{_lambda_.25} parent=0 // pred_fallthru
    _
  // Predicated region
  $region30: #{_lambda_.25} parent=0 // pred_check
    _
  $region31: #{_lambda_.25} parent=0 // pred_check_branch
    %213 = sbr.rel (0) target = $region33
  $region32: #{_lambda_.25} parent=0 // pred_region
    _
  $region33: #{_lambda_.25} parent=0 // pred_fallthru
    _

// kernel: _lambda_.24
$region0: #{_lambda_.24}
  #allocation0 [shape = 'u32[]', space=smem, size = 0x4, offset = 0x4, fixed_abs, tag = 'smem constant byte address 0x4 - core index']
  #allocation1 [shape = 'u32[144,128]{1,0:T(1,128)}', space=vmem, size = 0x12000, scoped, tag = 'internal scratch']
  #allocation2 [shape = 'f32[56,32]{1,0:T(8,128)}', space=vmem, size = 0x7000, scoped, tag = 'scratch operand']
  %s0 = inlined_call_operand.vmem [shape: bf16[56,8], index: 0, kind: input, shape index: {}]
  %s1 = inlined_call_operand.vmem [shape: bf16[8,32], index: 1, kind: input, shape index: {}]
  %s2 = inlined_call_operand.vmem [shape: f32[1,32], index: 2, kind: input, shape index: {}]
  %s3 = inlined_call_operand.vmem [shape: f32[1,32], index: 3, kind: input, shape index: {}]
  %s4 = inlined_call_operand.vmem [shape: f32[56,32], index: 4, kind: output, shape index: {}]
  %s5 = sld [smem:[#allocation0]]
  $region34: #{_lambda_.24} parent=0
    _
  %s7 = ssub.s32 1, %s5
  %s8 = scalar_select 0, %s7, %s5
  // Predicated region
  $region2: #{_lambda_.24} parent=0 // pred_check
    _
  $region3: #{_lambda_.24} parent=0 // pred_check_branch
    %10 = sbr.rel (0) target = $region5
  $region4: #{_lambda_.24} parent=0 // pred_region
    _
  $region5: #{_lambda_.24} parent=0 // pred_fallthru
    _
  // Predicated region
  $region6: #{_lambda_.24} parent=0 // pred_check
    _
  $region7: #{_lambda_.24} parent=0 // pred_check_branch
    %12 = sbr.rel (0) target = $region9
  $region8: #{_lambda_.24} parent=0 // pred_region
    _
  $region9: #{_lambda_.24} parent=0 // pred_fallthru
    _
  // Predicated region
  $region10: #{_lambda_.24} parent=0 // pred_check
    _
  $region11: #{_lambda_.24} parent=0 // pred_check_branch
    %14 = sbr.rel (0) target = $region13
  $region12: #{_lambda_.24} parent=0 // pred_region
    _
  $region13: #{_lambda_.24} parent=0 // pred_fallthru
    _
  // Predicated region
  $region14: #{_lambda_.24} parent=0 // pred_check
    _
  $region15: #{_lambda_.24} parent=0 // pred_check_branch
    %16 = sbr.rel (0) target = $region17
  $region16: #{_lambda_.24} parent=0 // pred_region
    _
  $region17: #{_lambda_.24} parent=0 // pred_fallthru
    _
  %p18 = scmp.eq.s32.totalorder 0, 0
  // Predicated region
  $region18: #{_lambda_.24} parent=0 // pred_check
    %p19 = pneg %p18
  $region19: #{_lambda_.24} parent=0 // pred_check_branch
    %21 = sbr.rel (%p19) target = $region21
  $region20: #{_lambda_.24} parent=0 // pred_region
    %vm22 = vcmask 261120
    %23 = vst.msk [vmem:[#allocation2] sm:$0xff] %vm22, 0.0
    %24 = vst.msk [vmem:[#allocation2 + $0x8] sm:$0xff] %vm22, 0.0
    %25 = vst.msk [vmem:[#allocation2 + $0x10] sm:$0xff] %vm22, 0.0
    %26 = vst.msk [vmem:[#allocation2 + $0x18] sm:$0xff] %vm22, 0.0
    %27 = vst.msk [vmem:[#allocation2 + $0x20] sm:$0xff] %vm22, 0.0
    %28 = vst.msk [vmem:[#allocation2 + $0x28] sm:$0xff] %vm22, 0.0
    %29 = vst.msk [vmem:[#allocation2 + $0x30] sm:$0xff] %vm22, 0.0
  $region21: #{_lambda_.24} parent=0 // pred_fallthru
    _
  %v30 = vld [vmem:[#allocation2] sm:$0xff]
  %v31 = vld [vmem:[#allocation2 + $0x8] sm:$0xff]
  %v32 = vld [vmem:[#allocation2 + $0x10] sm:$0xff]
  %v33 = vld [vmem:[#allocation2 + $0x18] sm:$0xff]
  %v34 = vld [vmem:[#allocation2 + $0x20] sm:$0xff]
  %v35 = vld [vmem:[#allocation2 + $0x28] sm:$0xff]
  %v36 = vld [vmem:[#allocation2 + $0x30] sm:$0xff]
  %v37 = vld [vmem:[%s0] sm:$0xf]
  %v38 = vld [vmem:[%s0 + $0x4] sm:$0xf]
  %v39 = vld [vmem:[%s0 + $0x8] sm:$0xf]
  %v40 = vld [vmem:[%s0 + $0xc] sm:$0xf]
  %v41 = vld [vmem:[%s0 + $0x10] sm:$0xf]
  %v42 = vld [vmem:[%s0 + $0x14] sm:$0xf]
  %v43 = vld [vmem:[%s0 + $0x18] sm:$0xf]
  %v44 = vld [vmem:[%s1] sm:$0xf]
  %v52 = vunpack.c.l.b16 %v37
  %v53 = vunpack.c.l.b16 %v38
  %v54 = vunpack.c.l.b16 %v39
  %v55 = vunpack.c.l.b16 %v40
  %v56 = vunpack.c.l.b16 %v41
  %v57 = vunpack.c.l.b16 %v42
  %v58 = vunpack.c.l.b16 %v43
  %v59 = vpack.c.b16 %v53, %v52
  %v60 = vpack.c.b16 %v55, %v54
  %v61 = vpack.c.b16 %v57, %v56
  %v62 = vpack.c.b16 %v58, %v58
  %vm63 = vcmask 64512
  %v65 = vsel %vm63, %v59, 0
  %v68 = vsel %vm63, %v60, 0
  %v71 = vsel %vm63, %v61, 0
  %v74 = vsel %vm63, %v62, 0
  %vm76 = vcmask 1043456
  %v78 = vsel %vm76, %v44, 0
  %80 = vmatprep.subr.bf16.mxu0 0
  %81 = vmatpush1.bf16.msra.mxu0 0
  %82 = vmatprep.subr.bf16.mxu0 0
  %83 = vmatpush1.bf16.msra.mxu0 0
  %84 = vmatprep.subr.bf16.mxu0 0
  %85 = vmatpush1.bf16.msra.mxu0 0
  %86 = vmatprep.subr.bf16.mxu0 0
  %87 = vmatpush1.bf16.msra.mxu0 0
  %88 = vmatprep.subr.bf16.mxu0 0
  %89 = vmatpush1.bf16.msra.mxu0 0
  %90 = vmatprep.subr.bf16.mxu0 0
  %91 = vmatpush1.bf16.msra.mxu0 0
  %92 = vmatprep.subr.bf16.mxu0 0
  %93 = vmatpush1.bf16.msra.mxu0 0
  %94 = vmatprep.subr.bf16.mxu0 0
  %95 = vmatpush1.bf16.msra.mxu0 %v78
  %96 = vmatprep.subr.bf16.mxu0 0
  %97 = vmatpush2.bf16.msra.mxu0 0
  %98 = vmatprep.subr.bf16.mxu0 0
  %99 = vmatpush2.bf16.msra.mxu0 0
  %100 = vmatprep.subr.bf16.mxu0 0
  %101 = vmatpush2.bf16.msra.mxu0 0
  %102 = vmatprep.subr.bf16.mxu0 0
  %103 = vmatpush2.bf16.msra.mxu0 0
  %104 = vmatprep.subr.bf16.mxu0 0
  %105 = vmatpush2.bf16.msra.mxu0 0
  %106 = vmatprep.subr.bf16.mxu0 0
  %107 = vmatpush2.bf16.msra.mxu0 0
  %108 = vmatprep.subr.bf16.mxu0 0
  %109 = vmatpush2.bf16.msra.mxu0 0
  %110 = vmatprep.subr.bf16.mxu0 0
  %111 = vmatpush2.bf16.msra.mxu0 0
  %112 = vmatprep.mubr.bf16.mxu0 0
  %113 = vmatmul.mubr.bf16.gmra.mxu0 %v65
  %v114 = vpop.f32.mrf.mxu0
  %v115 = vadd.f32 0.0, %v114
  %v116 = vpop.f32.mrf.mxu0
  %v117 = vpop.f32.mrf.mxu0
  %v118 = vadd.f32 0.0, %v117
  %v119 = vpop.f32.mrf.mxu0
  %120 = vmatprep.mubr.bf16.mxu0 0
  %121 = vmatmul.mubr.bf16.gmra.mxu0 %v68
  %v122 = vpop.f32.mrf.mxu0
  %v123 = vadd.f32 0.0, %v122
  %v124 = vpop.f32.mrf.mxu0
  %v125 = vpop.f32.mrf.mxu0
  %v126 = vadd.f32 0.0, %v125
  %v127 = vpop.f32.mrf.mxu0
  %128 = vmatprep.mubr.bf16.mxu0 0
  %129 = vmatmul.mubr.bf16.gmra.mxu0 %v71
  %v130 = vpop.f32.mrf.mxu0
  %v131 = vadd.f32 0.0, %v130
  %v132 = vpop.f32.mrf.mxu0
  %v133 = vpop.f32.mrf.mxu0
  %v134 = vadd.f32 0.0, %v133
  %v135 = vpop.f32.mrf.mxu0
  %136 = vmatprep.mubr.bf16.mxu0 0
  %137 = vmatmul.mubr.bf16.gmra.mxu0 %v74
  %v138 = vpop.f32.mrf.mxu0
  %v139 = vadd.f32 0.0, %v138
  %v140 = vpop.f32.mrf.mxu0
  %v141 = vpop.f32.mrf.mxu0
  %v142 = vpop.f32.mrf.mxu0
  %143 = vdwg.mxu0
  %v144 = vadd.f32 %v30, %v115
  %v145 = vadd.f32 %v31, %v118
  %v146 = vadd.f32 %v32, %v123
  %v147 = vadd.f32 %v33, %v126
  %v148 = vadd.f32 %v34, %v131
  %v149 = vadd.f32 %v35, %v134
  %v150 = vadd.f32 %v36, %v139
  %vm151 = vcmask 261120
  %152 = vst.msk [vmem:[#allocation2] sm:$0xff] %vm151, %v144
  %153 = vst.msk [vmem:[#allocation2 + $0x8] sm:$0xff] %vm151, %v145
  %154 = vst.msk [vmem:[#allocation2 + $0x10] sm:$0xff] %vm151, %v146
  %155 = vst.msk [vmem:[#allocation2 + $0x18] sm:$0xff] %vm151, %v147
  %156 = vst.msk [vmem:[#allocation2 + $0x20] sm:$0xff] %vm151, %v148
  %157 = vst.msk [vmem:[#allocation2 + $0x28] sm:$0xff] %vm151, %v149
  %158 = vst.msk [vmem:[#allocation2 + $0x30] sm:$0xff] %vm151, %v150
  // Predicated region
  $region22: #{_lambda_.24} parent=0 // pred_check
    %p159 = pneg %p18
  $region23: #{_lambda_.24} parent=0 // pred_check_branch
    %161 = sbr.rel (%p159) target = $region25
  $region24: #{_lambda_.24} parent=0 // pred_region
    %v162 = vld [vmem:[#allocation2] sm:$0xff]
    %v163 = vld [vmem:[#allocation2 + $0x8] sm:$0xff]
    %v164 = vld [vmem:[#allocation2 + $0x10] sm:$0xff]
    %v165 = vld [vmem:[#allocation2 + $0x18] sm:$0xff]
    %v166 = vld [vmem:[#allocation2 + $0x20] sm:$0xff]
    %v167 = vld [vmem:[#allocation2 + $0x28] sm:$0xff]
    %v168 = vld [vmem:[#allocation2 + $0x30] sm:$0xff]
    %v169 = vld [vmem:[%s2] sm:$0x1]
    %v171 = vlaneseq
    %v172 = vshrl.u32 %v171, 7
    %v173 = vsub.s32 0, %v172
    %v174 = vrot.slane %v169, %v173
    %v176 = vmul.f32 %v162, %v174
    %v177 = vmul.f32 %v163, %v174
    %v178 = vmul.f32 %v164, %v174
    %v179 = vmul.f32 %v165, %v174
    %v180 = vmul.f32 %v166, %v174
    %v181 = vmul.f32 %v167, %v174
    %v182 = vmul.f32 %v168, %v174
    %v183 = vld [vmem:[%s3] sm:$0x1]
    %v185 = vlaneseq
    %v186 = vshrl.u32 %v185, 7
    %v187 = vsub.s32 0, %v186
    %v188 = vrot.slane %v183, %v187
    %v190 = vadd.f32 %v176, %v188
    %v191 = vadd.f32 %v177, %v188
    %v192 = vadd.f32 %v178, %v188
    %v193 = vadd.f32 %v179, %v188
    %v194 = vadd.f32 %v180, %v188
    %v195 = vadd.f32 %v181, %v188
    %v196 = vadd.f32 %v182, %v188
    %197 = vst.msk [vmem:[%s4] sm:$0xff] %vm151, %v190
    %198 = vst.msk [vmem:[%s4 + $0x8] sm:$0xff] %vm151, %v191
    %199 = vst.msk [vmem:[%s4 + $0x10] sm:$0xff] %vm151, %v192
    %200 = vst.msk [vmem:[%s4 + $0x18] sm:$0xff] %vm151, %v193
    %201 = vst.msk [vmem:[%s4 + $0x20] sm:$0xff] %vm151, %v194
    %202 = vst.msk [vmem:[%s4 + $0x28] sm:$0xff] %vm151, %v195
    %203 = vst.msk [vmem:[%s4 + $0x30] sm:$0xff] %vm151, %v196
  $region25: #{_lambda_.24} parent=0 // pred_fallthru
    _
  // Predicated region
  $region26: #{_lambda_.24} parent=0 // pred_check
    _
  $region27: #{_lambda_.24} parent=0 // pred_check_branch
    %205 = sbr.rel (0) target = $region29
  $region28: #{_lambda_.24} parent=0 // pred_region
    _
  $region29: #{_lambda_.24} parent=0 // pred_fallthru
    _
  // Predicated region
  $region30: #{_lambda_.24} parent=0 // pred_check
    _
  $region31: #{_lambda_.24} parent=0 // pred_check_branch
    %207 = sbr.rel (0) target = $region33
  $region32: #{_lambda_.24} parent=0 // pred_region
    _
  $region33: #{_lambda_.24} parent=0 // pred_fallthru
    _

// kernel: _lambda_.27
$region0: #{_lambda_.27}
  #allocation0 [shape = 'u32[]', space=smem, size = 0x4, offset = 0x4, fixed_abs, tag = 'smem constant byte address 0x4 - core index']
  #allocation1 [shape = 'u32[144,128]{1,0:T(1,128)}', space=vmem, size = 0x12000, scoped, tag = 'internal scratch']
  #allocation2 [shape = 'f32[56,32]{1,0:T(8,128)}', space=vmem, size = 0x7000, scoped, tag = 'scratch operand']
  %s0 = inlined_call_operand.vmem [shape: bf16[56,8], index: 0, kind: input, shape index: {}]
  %s1 = inlined_call_operand.vmem [shape: bf16[8,32], index: 1, kind: input, shape index: {}]
  %s2 = inlined_call_operand.vmem [shape: f32[1,32], index: 2, kind: input, shape index: {}]
  %s3 = inlined_call_operand.vmem [shape: f32[1,32], index: 3, kind: input, shape index: {}]
  %s4 = inlined_call_operand.vmem [shape: f32[56,32], index: 4, kind: input, shape index: {}]
  %s5 = inlined_call_operand.vmem [shape: f32[56,32], index: 5, kind: output, shape index: {}]
  %s6 = sld [smem:[#allocation0]]
  $region38: #{_lambda_.27} parent=0
    _
  %s8 = ssub.s32 1, %s6
  %s9 = scalar_select 0, %s8, %s6
  // Predicated region
  $region2: #{_lambda_.27} parent=0 // pred_check
    _
  $region3: #{_lambda_.27} parent=0 // pred_check_branch
    %11 = sbr.rel (0) target = $region5
  $region4: #{_lambda_.27} parent=0 // pred_region
    _
  $region5: #{_lambda_.27} parent=0 // pred_fallthru
    _
  // Predicated region
  $region6: #{_lambda_.27} parent=0 // pred_check
    _
  $region7: #{_lambda_.27} parent=0 // pred_check_branch
    %13 = sbr.rel (0) target = $region9
  $region8: #{_lambda_.27} parent=0 // pred_region
    _
  $region9: #{_lambda_.27} parent=0 // pred_fallthru
    _
  // Predicated region
  $region10: #{_lambda_.27} parent=0 // pred_check
    _
  $region11: #{_lambda_.27} parent=0 // pred_check_branch
    %15 = sbr.rel (0) target = $region13
  $region12: #{_lambda_.27} parent=0 // pred_region
    _
  $region13: #{_lambda_.27} parent=0 // pred_fallthru
    _
  // Predicated region
  $region14: #{_lambda_.27} parent=0 // pred_check
    _
  $region15: #{_lambda_.27} parent=0 // pred_check_branch
    %17 = sbr.rel (0) target = $region17
  $region16: #{_lambda_.27} parent=0 // pred_region
    _
  $region17: #{_lambda_.27} parent=0 // pred_fallthru
    _
  // Predicated region
  $region18: #{_lambda_.27} parent=0 // pred_check
    _
  $region19: #{_lambda_.27} parent=0 // pred_check_branch
    %19 = sbr.rel (0) target = $region21
  $region20: #{_lambda_.27} parent=0 // pred_region
    _
  $region21: #{_lambda_.27} parent=0 // pred_fallthru
    _
  %p21 = scmp.eq.s32.totalorder 0, 0
  // Predicated region
  $region22: #{_lambda_.27} parent=0 // pred_check
    %p22 = pneg %p21
  $region23: #{_lambda_.27} parent=0 // pred_check_branch
    %24 = sbr.rel (%p22) target = $region25
  $region24: #{_lambda_.27} parent=0 // pred_region
    %vm25 = vcmask 261120
    %26 = vst.msk [vmem:[#allocation2] sm:$0xff] %vm25, 0.0
    %27 = vst.msk [vmem:[#allocation2 + $0x8] sm:$0xff] %vm25, 0.0
    %28 = vst.msk [vmem:[#allocation2 + $0x10] sm:$0xff] %vm25, 0.0
    %29 = vst.msk [vmem:[#allocation2 + $0x18] sm:$0xff] %vm25, 0.0
    %30 = vst.msk [vmem:[#allocation2 + $0x20] sm:$0xff] %vm25, 0.0
    %31 = vst.msk [vmem:[#allocation2 + $0x28] sm:$0xff] %vm25, 0.0
    %32 = vst.msk [vmem:[#allocation2 + $0x30] sm:$0xff] %vm25, 0.0
  $region25: #{_lambda_.27} parent=0 // pred_fallthru
    _
  %v33 = vld [vmem:[#allocation2] sm:$0xff]
  %v34 = vld [vmem:[#allocation2 + $0x8] sm:$0xff]
  %v35 = vld [vmem:[#allocation2 + $0x10] sm:$0xff]
  %v36 = vld [vmem:[#allocation2 + $0x18] sm:$0xff]
  %v37 = vld [vmem:[#allocation2 + $0x20] sm:$0xff]
  %v38 = vld [vmem:[#allocation2 + $0x28] sm:$0xff]
  %v39 = vld [vmem:[#allocation2 + $0x30] sm:$0xff]
  %v40 = vld [vmem:[%s0] sm:$0xf]
  %v41 = vld [vmem:[%s0 + $0x4] sm:$0xf]
  %v42 = vld [vmem:[%s0 + $0x8] sm:$0xf]
  %v43 = vld [vmem:[%s0 + $0xc] sm:$0xf]
  %v44 = vld [vmem:[%s0 + $0x10] sm:$0xf]
  %v45 = vld [vmem:[%s0 + $0x14] sm:$0xf]
  %v46 = vld [vmem:[%s0 + $0x18] sm:$0xf]
  %v47 = vld [vmem:[%s1] sm:$0xf]
  %v55 = vunpack.c.l.b16 %v40
  %v56 = vunpack.c.l.b16 %v41
  %v57 = vunpack.c.l.b16 %v42
  %v58 = vunpack.c.l.b16 %v43
  %v59 = vunpack.c.l.b16 %v44
  %v60 = vunpack.c.l.b16 %v45
  %v61 = vunpack.c.l.b16 %v46
  %v62 = vpack.c.b16 %v56, %v55
  %v63 = vpack.c.b16 %v58, %v57
  %v64 = vpack.c.b16 %v60, %v59
  %v65 = vpack.c.b16 %v61, %v61
  %vm66 = vcmask 64512
  %v68 = vsel %vm66, %v62, 0
  %v71 = vsel %vm66, %v63, 0
  %v74 = vsel %vm66, %v64, 0
  %v77 = vsel %vm66, %v65, 0
  %vm79 = vcmask 1043456
  %v81 = vsel %vm79, %v47, 0
  %83 = vmatprep.subr.bf16.mxu0 0
  %84 = vmatpush1.bf16.msra.mxu0 0
  %85 = vmatprep.subr.bf16.mxu0 0
  %86 = vmatpush1.bf16.msra.mxu0 0
  %87 = vmatprep.subr.bf16.mxu0 0
  %88 = vmatpush1.bf16.msra.mxu0 0
  %89 = vmatprep.subr.bf16.mxu0 0
  %90 = vmatpush1.bf16.msra.mxu0 0
  %91 = vmatprep.subr.bf16.mxu0 0
  %92 = vmatpush1.bf16.msra.mxu0 0
  %93 = vmatprep.subr.bf16.mxu0 0
  %94 = vmatpush1.bf16.msra.mxu0 0
  %95 = vmatprep.subr.bf16.mxu0 0
  %96 = vmatpush1.bf16.msra.mxu0 0
  %97 = vmatprep.subr.bf16.mxu0 0
  %98 = vmatpush1.bf16.msra.mxu0 %v81
  %99 = vmatprep.subr.bf16.mxu0 0
  %100 = vmatpush2.bf16.msra.mxu0 0
  %101 = vmatprep.subr.bf16.mxu0 0
  %102 = vmatpush2.bf16.msra.mxu0 0
  %103 = vmatprep.subr.bf16.mxu0 0
  %104 = vmatpush2.bf16.msra.mxu0 0
  %105 = vmatprep.subr.bf16.mxu0 0
  %106 = vmatpush2.bf16.msra.mxu0 0
  %107 = vmatprep.subr.bf16.mxu0 0
  %108 = vmatpush2.bf16.msra.mxu0 0
  %109 = vmatprep.subr.bf16.mxu0 0
  %110 = vmatpush2.bf16.msra.mxu0 0
  %111 = vmatprep.subr.bf16.mxu0 0
  %112 = vmatpush2.bf16.msra.mxu0 0
  %113 = vmatprep.subr.bf16.mxu0 0
  %114 = vmatpush2.bf16.msra.mxu0 0
  %115 = vmatprep.mubr.bf16.mxu0 0
  %116 = vmatmul.mubr.bf16.gmra.mxu0 %v68
  %v117 = vpop.f32.mrf.mxu0
  %v118 = vadd.f32 0.0, %v117
  %v119 = vpop.f32.mrf.mxu0
  %v120 = vpop.f32.mrf.mxu0
  %v121 = vadd.f32 0.0, %v120
  %v122 = vpop.f32.mrf.mxu0
  %123 = vmatprep.mubr.bf16.mxu0 0
  %124 = vmatmul.mubr.bf16.gmra.mxu0 %v71
  %v125 = vpop.f32.mrf.mxu0
  %v126 = vadd.f32 0.0, %v125
  %v127 = vpop.f32.mrf.mxu0
  %v128 = vpop.f32.mrf.mxu0
  %v129 = vadd.f32 0.0, %v128
  %v130 = vpop.f32.mrf.mxu0
  %131 = vmatprep.mubr.bf16.mxu0 0
  %132 = vmatmul.mubr.bf16.gmra.mxu0 %v74
  %v133 = vpop.f32.mrf.mxu0
  %v134 = vadd.f32 0.0, %v133
  %v135 = vpop.f32.mrf.mxu0
  %v136 = vpop.f32.mrf.mxu0
  %v137 = vadd.f32 0.0, %v136
  %v138 = vpop.f32.mrf.mxu0
  %139 = vmatprep.mubr.bf16.mxu0 0
  %140 = vmatmul.mubr.bf16.gmra.mxu0 %v77
  %v141 = vpop.f32.mrf.mxu0
  %v142 = vadd.f32 0.0, %v141
  %v143 = vpop.f32.mrf.mxu0
  %v144 = vpop.f32.mrf.mxu0
  %v145 = vpop.f32.mrf.mxu0
  %146 = vdwg.mxu0
  %v147 = vadd.f32 %v33, %v118
  %v148 = vadd.f32 %v34, %v121
  %v149 = vadd.f32 %v35, %v126
  %v150 = vadd.f32 %v36, %v129
  %v151 = vadd.f32 %v37, %v134
  %v152 = vadd.f32 %v38, %v137
  %v153 = vadd.f32 %v39, %v142
  %vm154 = vcmask 261120
  %155 = vst.msk [vmem:[#allocation2] sm:$0xff] %vm154, %v147
  %156 = vst.msk [vmem:[#allocation2 + $0x8] sm:$0xff] %vm154, %v148
  %157 = vst.msk [vmem:[#allocation2 + $0x10] sm:$0xff] %vm154, %v149
  %158 = vst.msk [vmem:[#allocation2 + $0x18] sm:$0xff] %vm154, %v150
  %159 = vst.msk [vmem:[#allocation2 + $0x20] sm:$0xff] %vm154, %v151
  %160 = vst.msk [vmem:[#allocation2 + $0x28] sm:$0xff] %vm154, %v152
  %161 = vst.msk [vmem:[#allocation2 + $0x30] sm:$0xff] %vm154, %v153
  // Predicated region
  $region26: #{_lambda_.27} parent=0 // pred_check
    %p162 = pneg %p21
  $region27: #{_lambda_.27} parent=0 // pred_check_branch
    %164 = sbr.rel (%p162) target = $region29
  $region28: #{_lambda_.27} parent=0 // pred_region
    %v165 = vld [vmem:[#allocation2] sm:$0xff]
    %v166 = vld [vmem:[#allocation2 + $0x8] sm:$0xff]
    %v167 = vld [vmem:[#allocation2 + $0x10] sm:$0xff]
    %v168 = vld [vmem:[#allocation2 + $0x18] sm:$0xff]
    %v169 = vld [vmem:[#allocation2 + $0x20] sm:$0xff]
    %v170 = vld [vmem:[#allocation2 + $0x28] sm:$0xff]
    %v171 = vld [vmem:[#allocation2 + $0x30] sm:$0xff]
    %v172 = vld [vmem:[%s2] sm:$0x1]
    %v174 = vlaneseq
    %v175 = vshrl.u32 %v174, 7
    %v176 = vsub.s32 0, %v175
    %v177 = vrot.slane %v172, %v176
    %v179 = vmul.f32 %v165, %v177
    %v180 = vmul.f32 %v166, %v177
    %v181 = vmul.f32 %v167, %v177
    %v182 = vmul.f32 %v168, %v177
    %v183 = vmul.f32 %v169, %v177
    %v184 = vmul.f32 %v170, %v177
    %v185 = vmul.f32 %v171, %v177
    %v186 = vld [vmem:[%s3] sm:$0x1]
    %v188 = vlaneseq
    %v189 = vshrl.u32 %v188, 7
    %v190 = vsub.s32 0, %v189
    %v191 = vrot.slane %v186, %v190
    %v193 = vadd.f32 %v179, %v191
    %v194 = vadd.f32 %v180, %v191
    %v195 = vadd.f32 %v181, %v191
    %v196 = vadd.f32 %v182, %v191
    %v197 = vadd.f32 %v183, %v191
    %v198 = vadd.f32 %v184, %v191
    %v199 = vadd.f32 %v185, %v191
    %v200 = vld [vmem:[%s4] sm:$0xff]
    %v201 = vld [vmem:[%s4 + $0x8] sm:$0xff]
    %v202 = vld [vmem:[%s4 + $0x10] sm:$0xff]
    %v203 = vld [vmem:[%s4 + $0x18] sm:$0xff]
    %v204 = vld [vmem:[%s4 + $0x20] sm:$0xff]
    %v205 = vld [vmem:[%s4 + $0x28] sm:$0xff]
    %v206 = vld [vmem:[%s4 + $0x30] sm:$0xff]
    %v207 = vadd.f32 %v193, %v200
    %v208 = vadd.f32 %v194, %v201
    %v209 = vadd.f32 %v195, %v202
    %v210 = vadd.f32 %v196, %v203
    %v211 = vadd.f32 %v197, %v204
    %v212 = vadd.f32 %v198, %v205
    %v213 = vadd.f32 %v199, %v206
    %v214 = vmax.f32 %v207, 0.0
    %v215 = vmax.f32 %v208, 0.0
    %v216 = vmax.f32 %v209, 0.0
    %v217 = vmax.f32 %v210, 0.0
    %v218 = vmax.f32 %v211, 0.0
    %v219 = vmax.f32 %v212, 0.0
    %v220 = vmax.f32 %v213, 0.0
    %221 = vst.msk [vmem:[%s5] sm:$0xff] %vm154, %v214
    %222 = vst.msk [vmem:[%s5 + $0x8] sm:$0xff] %vm154, %v215
    %223 = vst.msk [vmem:[%s5 + $0x10] sm:$0xff] %vm154, %v216
    %224 = vst.msk [vmem:[%s5 + $0x18] sm:$0xff] %vm154, %v217
    %225 = vst.msk [vmem:[%s5 + $0x20] sm:$0xff] %vm154, %v218
    %226 = vst.msk [vmem:[%s5 + $0x28] sm:$0xff] %vm154, %v219
    %227 = vst.msk [vmem:[%s5 + $0x30] sm:$0xff] %vm154, %v220
  $region29: #{_lambda_.27} parent=0 // pred_fallthru
    _
  // Predicated region
  $region30: #{_lambda_.27} parent=0 // pred_check
    _
  $region31: #{_lambda_.27} parent=0 // pred_check_branch
    %229 = sbr.rel (0) target = $region33
  $region32: #{_lambda_.27} parent=0 // pred_region
    _
  $region33: #{_lambda_.27} parent=0 // pred_fallthru
    _
  // Predicated region
  $region34: #{_lambda_.27} parent=0 // pred_check
    _
  $region35: #{_lambda_.27} parent=0 // pred_check_branch
    %231 = sbr.rel (0) target = $region37
  $region36: #{_lambda_.27} parent=0 // pred_region
    _
  $region37: #{_lambda_.27} parent=0 // pred_fallthru
    _

// kernel: _lambda_.26
$region0: #{_lambda_.26}
  #allocation0 [shape = 'u32[]', space=smem, size = 0x4, offset = 0x4, fixed_abs, tag = 'smem constant byte address 0x4 - core index']
  #allocation1 [shape = 'u32[144,128]{1,0:T(1,128)}', space=vmem, size = 0x12000, scoped, tag = 'internal scratch']
  #allocation2 [shape = 'f32[56,8]{1,0:T(8,128)}', space=vmem, size = 0x7000, scoped, tag = 'scratch operand']
  %s0 = inlined_call_operand.vmem [shape: bf16[56,72], index: 0, kind: input, shape index: {}]
  %s1 = inlined_call_operand.vmem [shape: bf16[72,8], index: 1, kind: input, shape index: {}]
  %s2 = inlined_call_operand.hbm [shape: f32[1,8], index: 2, kind: input, shape index: {}]
  %s3 = inlined_call_operand.hbm [shape: f32[1,8], index: 3, kind: input, shape index: {}]
  %s4 = inlined_call_operand.vmem [shape: f32[56,8], index: 4, kind: output, shape index: {}]
  %s5 = sld [smem:[#allocation0]]
  $region42: #{_lambda_.26} parent=0
    _
  %s7 = ssub.s32 1, %s5
  %s8 = scalar_select 0, %s7, %s5
  $region1: #{_lambda_.26} parent=0
    #allocation3 [shape = 'u8[512]{0}', space=vmem, size = 0x400, scoped, tag = 'input window, operand 2, single buffered']
    #allocation4 [shape = 's32[1]{0}', space=sflag, size = 0x4, scoped, tag = 'scoped memory for _lambda_.26']
    #allocation5 [shape = 'u8[512]{0}', space=vmem, size = 0x400, scoped, tag = 'input window, operand 3, single buffered']
    #allocation6 [shape = 's32[1]{0}', space=sflag, size = 0x4, scoped, tag = 'scoped memory for _lambda_.26']
    %9 = vsyncpa [#allocation4], 0
    %10 = vsyncpa [#allocation6], 0
    // Predicated region
    $region2: #{_lambda_.26} parent=1 // pred_check
      _
    $region3: #{_lambda_.26} parent=1 // pred_check_branch
      %12 = sbr.rel (0) target = $region5
    $region4: #{_lambda_.26} parent=1 // pred_region
      _
    $region5: #{_lambda_.26} parent=1 // pred_fallthru
      _
    // Predicated region
    $region6: #{_lambda_.26} parent=1 // pred_check
      _
    $region7: #{_lambda_.26} parent=1 // pred_check_branch
      %14 = sbr.rel (0) target = $region9
    $region8: #{_lambda_.26} parent=1 // pred_region
      _
    $region9: #{_lambda_.26} parent=1 // pred_fallthru
      _
    // Predicated region
    $region10: #{_lambda_.26} parent=1 // pred_check
      _
    $region11: #{_lambda_.26} parent=1 // pred_check_branch
      %16 = sbr.rel (0) target = $region13
    $region12: #{_lambda_.26} parent=1 // pred_region
      %s18 = ssub.s32 16, 16
      %19 = vsyncadd [#allocation4], %s18
      %s21 = sshll.u32 [#allocation3], 4
      %s22 = int_to_ptr.vmem [resolvable:$true] %s21
      %24 = dma.hbm_to_vmem [thread:$0]  %s2, 16, %s22, [#allocation4]
    $region13: #{_lambda_.26} parent=1 // pred_fallthru
      _
    // Predicated region
    $region14: #{_lambda_.26} parent=1 // pred_check
      _
    $region15: #{_lambda_.26} parent=1 // pred_check_branch
      %26 = sbr.rel (0) target = $region17
    $region16: #{_lambda_.26} parent=1 // pred_region
      %s28 = ssub.s32 16, 16
      %29 = vsyncadd [#allocation6], %s28
      %s31 = sshll.u32 [#allocation5], 4
      %s32 = int_to_ptr.vmem [resolvable:$true] %s31
      %34 = dma.hbm_to_vmem [thread:$0]  %s3, 16, %s32, [#allocation6]
    $region17: #{_lambda_.26} parent=1 // pred_fallthru
      _
    // Predicated region
    $region18: #{_lambda_.26} parent=1 // pred_check
      _
    $region19: #{_lambda_.26} parent=1 // pred_check_branch
      %36 = sbr.rel (0) target = $region21
    $region20: #{_lambda_.26} parent=1 // pred_region
      %37 = dma.done [#allocation4], 16
    $region21: #{_lambda_.26} parent=1 // pred_fallthru
      _
    // Predicated region
    $region22: #{_lambda_.26} parent=1 // pred_check
      _
    $region23: #{_lambda_.26} parent=1 // pred_check_branch
      %39 = sbr.rel (0) target = $region25
    $region24: #{_lambda_.26} parent=1 // pred_region
      %40 = dma.done [#allocation6], 16
    $region25: #{_lambda_.26} parent=1 // pred_fallthru
      _
    %p42 = scmp.eq.s32.totalorder 0, 0
    // Predicated region
    $region26: #{_lambda_.26} parent=1 // pred_check
      %p43 = pneg %p42
    $region27: #{_lambda_.26} parent=1 // pred_check_branch
      %45 = sbr.rel (%p43) target = $region29
    $region28: #{_lambda_.26} parent=1 // pred_region
      %vm46 = vcmask 64512
      %47 = vst.msk [vmem:[#allocation2] sm:$0xff] %vm46, 0.0
      %48 = vst.msk [vmem:[#allocation2 + $0x8] sm:$0xff] %vm46, 0.0
      %49 = vst.msk [vmem:[#allocation2 + $0x10] sm:$0xff] %vm46, 0.0
      %50 = vst.msk [vmem:[#allocation2 + $0x18] sm:$0xff] %vm46, 0.0
      %51 = vst.msk [vmem:[#allocation2 + $0x20] sm:$0xff] %vm46, 0.0
      %52 = vst.msk [vmem:[#allocation2 + $0x28] sm:$0xff] %vm46, 0.0
      %53 = vst.msk [vmem:[#allocation2 + $0x30] sm:$0xff] %vm46, 0.0
    $region29: #{_lambda_.26} parent=1 // pred_fallthru
      _
    %v54 = vld [vmem:[#allocation2] sm:$0xff]
    %v55 = vld [vmem:[#allocation2 + $0x8] sm:$0xff]
    %v56 = vld [vmem:[#allocation2 + $0x10] sm:$0xff]
    %v57 = vld [vmem:[#allocation2 + $0x18] sm:$0xff]
    %v58 = vld [vmem:[#allocation2 + $0x20] sm:$0xff]
    %v59 = vld [vmem:[#allocation2 + $0x28] sm:$0xff]
    %v60 = vld [vmem:[#allocation2 + $0x30] sm:$0xff]
    %v61 = vld [vmem:[%s0] sm:$0xf]
    %v62 = vld [vmem:[%s0 + $0x4] sm:$0xf]
    %v63 = vld [vmem:[%s0 + $0x8] sm:$0xf]
    %v64 = vld [vmem:[%s0 + $0xc] sm:$0xf]
    %v65 = vld [vmem:[%s0 + $0x10] sm:$0xf]
    %v66 = vld [vmem:[%s0 + $0x14] sm:$0xf]
    %v67 = vld [vmem:[%s0 + $0x18] sm:$0xf]
    %v68 = vld [vmem:[%s1] sm:$0xf]
    %v69 = vld [vmem:[%s1 + $0x4] sm:$0xf]
    %v70 = vld [vmem:[%s1 + $0x8] sm:$0xf]
    %v71 = vld [vmem:[%s1 + $0xc] sm:$0xf]
    %v72 = vld [vmem:[%s1 + $0x10] sm:$0xf]
    %v73 = vld [vmem:[%s1 + $0x14] sm:$0xf]
    %v74 = vld [vmem:[%s1 + $0x18] sm:$0xf]
    %v75 = vld [vmem:[%s1 + $0x1c] sm:$0xf]
    %v76 = vld [vmem:[%s1 + $0x20] sm:$0xf]
    %v84 = vunpack.c.l.b16 %v61
    %v85 = vunpack.c.l.b16 %v62
    %v86 = vunpack.c.l.b16 %v63
    %v87 = vunpack.c.l.b16 %v64
    %v88 = vunpack.c.l.b16 %v65
    %v89 = vunpack.c.l.b16 %v66
    %v90 = vunpack.c.l.b16 %v67
    %v91 = vpack.c.b16 %v85, %v84
    %v92 = vpack.c.b16 %v87, %v86
    %v93 = vpack.c.b16 %v89, %v88
    %v94 = vpack.c.b16 %v90, %v90
    %v104 = vunpack.c.l.b16 %v68
    %v105 = vunpack.c.l.b16 %v69
    %v106 = vunpack.c.l.b16 %v70
    %v107 = vunpack.c.l.b16 %v71
    %v108 = vunpack.c.l.b16 %v72
    %v109 = vunpack.c.l.b16 %v73
    %v110 = vunpack.c.l.b16 %v74
    %v111 = vunpack.c.l.b16 %v75
    %v112 = vunpack.c.l.b16 %v76
    %v113 = vpack.c.b16 %v105, %v104
    %v114 = vpack.c.b16 %v107, %v106
    %v115 = vpack.c.b16 %v109, %v108
    %v116 = vpack.c.b16 %v111, %v110
    %v117 = vpack.c.b16 %v112, %v112
    %vm122 = vcmask 588800
    %v124 = vsel %vm122, %v91, 0
    %v127 = vsel %vm122, %v92, 0
    %v130 = vsel %vm122, %v93, 0
    %v133 = vsel %vm122, %v94, 0
    %vm135 = vcmask 1043456
    %v137 = vsel %vm135, %v117, 0
    %139 = vmatprep.subr.bf16.mxu0 0
    %140 = vmatpush1.bf16.msra.mxu0 0
    %141 = vmatprep.subr.bf16.mxu0 0
    %142 = vmatpush1.bf16.msra.mxu0 0
    %143 = vmatprep.subr.bf16.mxu0 0
    %144 = vmatpush1.bf16.msra.mxu0 0
    %145 = vmatprep.subr.bf16.mxu0 0
    %146 = vmatpush1.bf16.msra.mxu0 %v137
    %147 = vmatprep.subr.bf16.mxu0 0
    %148 = vmatpush1.bf16.msra.mxu0 %v116
    %149 = vmatprep.subr.bf16.mxu0 0
    %150 = vmatpush1.bf16.msra.mxu0 %v115
    %151 = vmatprep.subr.bf16.mxu0 0
    %152 = vmatpush1.bf16.msra.mxu0 %v114
    %153 = vmatprep.subr.bf16.mxu0 0
    %154 = vmatpush1.bf16.msra.mxu0 %v113
    %155 = vmatprep.subr.bf16.mxu0 0
    %156 = vmatpush2.bf16.msra.mxu0 0
    %157 = vmatprep.subr.bf16.mxu0 0
    %158 = vmatpush2.bf16.msra.mxu0 0
    %159 = vmatprep.subr.bf16.mxu0 0
    %160 = vmatpush2.bf16.msra.mxu0 0
    %161 = vmatprep.subr.bf16.mxu0 0
    %162 = vmatpush2.bf16.msra.mxu0 0
    %163 = vmatprep.subr.bf16.mxu0 0
    %164 = vmatpush2.bf16.msra.mxu0 0
    %165 = vmatprep.subr.bf16.mxu0 0
    %166 = vmatpush2.bf16.msra.mxu0 0
    %167 = vmatprep.subr.bf16.mxu0 0
    %168 = vmatpush2.bf16.msra.mxu0 0
    %169 = vmatprep.subr.bf16.mxu0 0
    %170 = vmatpush2.bf16.msra.mxu0 0
    %171 = vmatprep.mubr.bf16.mxu0 0
    %172 = vmatmul.mubr.bf16.gmra.mxu0 %v124
    %v173 = vpop.f32.mrf.mxu0
    %v174 = vadd.f32 0.0, %v173
    %v175 = vpop.f32.mrf.mxu0
    %v176 = vpop.f32.mrf.mxu0
    %v177 = vadd.f32 0.0, %v176
    %v178 = vpop.f32.mrf.mxu0
    %179 = vmatprep.mubr.bf16.mxu0 0
    %180 = vmatmul.mubr.bf16.gmra.mxu0 %v127
    %v181 = vpop.f32.mrf.mxu0
    %v182 = vadd.f32 0.0, %v181
    %v183 = vpop.f32.mrf.mxu0
    %v184 = vpop.f32.mrf.mxu0
    %v185 = vadd.f32 0.0, %v184
    %v186 = vpop.f32.mrf.mxu0
    %187 = vmatprep.mubr.bf16.mxu0 0
    %188 = vmatmul.mubr.bf16.gmra.mxu0 %v130
    %v189 = vpop.f32.mrf.mxu0
    %v190 = vadd.f32 0.0, %v189
    %v191 = vpop.f32.mrf.mxu0
    %v192 = vpop.f32.mrf.mxu0
    %v193 = vadd.f32 0.0, %v192
    %v194 = vpop.f32.mrf.mxu0
    %195 = vmatprep.mubr.bf16.mxu0 0
    %196 = vmatmul.mubr.bf16.gmra.mxu0 %v133
    %v197 = vpop.f32.mrf.mxu0
    %v198 = vadd.f32 0.0, %v197
    %v199 = vpop.f32.mrf.mxu0
    %v200 = vpop.f32.mrf.mxu0
    %v201 = vpop.f32.mrf.mxu0
    %202 = vdwg.mxu0
    %v203 = vadd.f32 %v54, %v174
    %v204 = vadd.f32 %v55, %v177
    %v205 = vadd.f32 %v56, %v182
    %v206 = vadd.f32 %v57, %v185
    %v207 = vadd.f32 %v58, %v190
    %v208 = vadd.f32 %v59, %v193
    %v209 = vadd.f32 %v60, %v198
    %vm210 = vcmask 64512
    %211 = vst.msk [vmem:[#allocation2] sm:$0xff] %vm210, %v203
    %212 = vst.msk [vmem:[#allocation2 + $0x8] sm:$0xff] %vm210, %v204
    %213 = vst.msk [vmem:[#allocation2 + $0x10] sm:$0xff] %vm210, %v205
    %214 = vst.msk [vmem:[#allocation2 + $0x18] sm:$0xff] %vm210, %v206
    %215 = vst.msk [vmem:[#allocation2 + $0x20] sm:$0xff] %vm210, %v207
    %216 = vst.msk [vmem:[#allocation2 + $0x28] sm:$0xff] %vm210, %v208
    %217 = vst.msk [vmem:[#allocation2 + $0x30] sm:$0xff] %vm210, %v209
    // Predicated region
    $region30: #{_lambda_.26} parent=1 // pred_check
      %p218 = pneg %p42
    $region31: #{_lambda_.26} parent=1 // pred_check_branch
      %220 = sbr.rel (%p218) target = $region33
    $region32: #{_lambda_.26} parent=1 // pred_region
      %v221 = vld [vmem:[#allocation2] sm:$0xff]
      %v222 = vld [vmem:[#allocation2 + $0x8] sm:$0xff]
      %v223 = vld [vmem:[#allocation2 + $0x10] sm:$0xff]
      %v224 = vld [vmem:[#allocation2 + $0x18] sm:$0xff]
      %v225 = vld [vmem:[#allocation2 + $0x20] sm:$0xff]
      %v226 = vld [vmem:[#allocation2 + $0x28] sm:$0xff]
      %v227 = vld [vmem:[#allocation2 + $0x30] sm:$0xff]
      %v228 = vld [vmem:[#allocation3] sm:$0x1]
      %v230 = vlaneseq
      %v231 = vshrl.u32 %v230, 7
      %v232 = vsub.s32 0, %v231
      %v233 = vrot.slane %v228, %v232
      %v235 = vmul.f32 %v221, %v233
      %v236 = vmul.f32 %v222, %v233
      %v237 = vmul.f32 %v223, %v233
      %v238 = vmul.f32 %v224, %v233
      %v239 = vmul.f32 %v225, %v233
      %v240 = vmul.f32 %v226, %v233
      %v241 = vmul.f32 %v227, %v233
      %v242 = vld [vmem:[#allocation5] sm:$0x1]
      %v244 = vlaneseq
      %v245 = vshrl.u32 %v244, 7
      %v246 = vsub.s32 0, %v245
      %v247 = vrot.slane %v242, %v246
      %v249 = vadd.f32 %v235, %v247
      %v250 = vadd.f32 %v236, %v247
      %v251 = vadd.f32 %v237, %v247
      %v252 = vadd.f32 %v238, %v247
      %v253 = vadd.f32 %v239, %v247
      %v254 = vadd.f32 %v240, %v247
      %v255 = vadd.f32 %v241, %v247
      %v256 = vmax.f32 %v249, 0.0
      %v257 = vmax.f32 %v250, 0.0
      %v258 = vmax.f32 %v251, 0.0
      %v259 = vmax.f32 %v252, 0.0
      %v260 = vmax.f32 %v253, 0.0
      %v261 = vmax.f32 %v254, 0.0
      %v262 = vmax.f32 %v255, 0.0
      %263 = vst.msk [vmem:[%s4] sm:$0xff] %vm210, %v256
      %264 = vst.msk [vmem:[%s4 + $0x8] sm:$0xff] %vm210, %v257
      %265 = vst.msk [vmem:[%s4 + $0x10] sm:$0xff] %vm210, %v258
      %266 = vst.msk [vmem:[%s4 + $0x18] sm:$0xff] %vm210, %v259
      %267 = vst.msk [vmem:[%s4 + $0x20] sm:$0xff] %vm210, %v260
      %268 = vst.msk [vmem:[%s4 + $0x28] sm:$0xff] %vm210, %v261
      %269 = vst.msk [vmem:[%s4 + $0x30] sm:$0xff] %vm210, %v262
    $region33: #{_lambda_.26} parent=1 // pred_fallthru
      _
    // Predicated region
    $region34: #{_lambda_.26} parent=1 // pred_check
      _
    $region35: #{_lambda_.26} parent=1 // pred_check_branch
      %271 = sbr.rel (0) target = $region37
    $region36: #{_lambda_.26} parent=1 // pred_region
      _
    $region37: #{_lambda_.26} parent=1 // pred_fallthru
      _
    // Predicated region
    $region38: #{_lambda_.26} parent=1 // pred_check
      _
    $region39: #{_lambda_.26} parent=1 // pred_check_branch
      %273 = sbr.rel (0) target = $region41
    $region40: #{_lambda_.26} parent=1 // pred_region
      _
    $region41: #{_lambda_.26} parent=1 // pred_fallthru
      _
    %274 = vsyncpa [#allocation4], 1
    %275 = vsyncpa [#allocation6], 1

// kernel: _lambda_.29
$region0: #{_lambda_.29}
  #allocation0 [shape = 'u32[]', space=smem, size = 0x4, offset = 0x4, fixed_abs, tag = 'smem constant byte address 0x4 - core index']
  #allocation1 [shape = 'u32[144,128]{1,0:T(1,128)}', space=vmem, size = 0x12000, scoped, tag = 'internal scratch']
  #allocation2 [shape = 'f32[24,16]{1,0:T(8,128)}', space=vmem, size = 0x3000, scoped, tag = 'scratch operand']
  %s0 = inlined_call_operand.vmem [shape: bf16[24,32], index: 0, kind: input, shape index: {}]
  %s1 = inlined_call_operand.vmem [shape: bf16[32,16], index: 1, kind: input, shape index: {}]
  %s2 = inlined_call_operand.vmem [shape: f32[1,16], index: 2, kind: input, shape index: {}]
  %s3 = inlined_call_operand.vmem [shape: f32[1,16], index: 3, kind: input, shape index: {}]
  %s4 = inlined_call_operand.vmem [shape: f32[24,16], index: 4, kind: output, shape index: {}]
  %s5 = sld [smem:[#allocation0]]
  $region34: #{_lambda_.29} parent=0
    _
  %s7 = ssub.s32 1, %s5
  %s8 = scalar_select 0, %s7, %s5
  // Predicated region
  $region2: #{_lambda_.29} parent=0 // pred_check
    _
  $region3: #{_lambda_.29} parent=0 // pred_check_branch
    %10 = sbr.rel (0) target = $region5
  $region4: #{_lambda_.29} parent=0 // pred_region
    _
  $region5: #{_lambda_.29} parent=0 // pred_fallthru
    _
  // Predicated region
  $region6: #{_lambda_.29} parent=0 // pred_check
    _
  $region7: #{_lambda_.29} parent=0 // pred_check_branch
    %12 = sbr.rel (0) target = $region9
  $region8: #{_lambda_.29} parent=0 // pred_region
    _
  $region9: #{_lambda_.29} parent=0 // pred_fallthru
    _
  // Predicated region
  $region10: #{_lambda_.29} parent=0 // pred_check
    _
  $region11: #{_lambda_.29} parent=0 // pred_check_branch
    %14 = sbr.rel (0) target = $region13
  $region12: #{_lambda_.29} parent=0 // pred_region
    _
  $region13: #{_lambda_.29} parent=0 // pred_fallthru
    _
  // Predicated region
  $region14: #{_lambda_.29} parent=0 // pred_check
    _
  $region15: #{_lambda_.29} parent=0 // pred_check_branch
    %16 = sbr.rel (0) target = $region17
  $region16: #{_lambda_.29} parent=0 // pred_region
    _
  $region17: #{_lambda_.29} parent=0 // pred_fallthru
    _
  %p18 = scmp.eq.s32.totalorder 0, 0
  // Predicated region
  $region18: #{_lambda_.29} parent=0 // pred_check
    %p19 = pneg %p18
  $region19: #{_lambda_.29} parent=0 // pred_check_branch
    %21 = sbr.rel (%p19) target = $region21
  $region20: #{_lambda_.29} parent=0 // pred_region
    %vm22 = vcmask 130048
    %23 = vst.msk [vmem:[#allocation2] sm:$0xff] %vm22, 0.0
    %24 = vst.msk [vmem:[#allocation2 + $0x8] sm:$0xff] %vm22, 0.0
    %25 = vst.msk [vmem:[#allocation2 + $0x10] sm:$0xff] %vm22, 0.0
  $region21: #{_lambda_.29} parent=0 // pred_fallthru
    _
  %v26 = vld [vmem:[#allocation2] sm:$0xff]
  %v27 = vld [vmem:[#allocation2 + $0x8] sm:$0xff]
  %v28 = vld [vmem:[#allocation2 + $0x10] sm:$0xff]
  %v29 = vld [vmem:[%s0] sm:$0xf]
  %v30 = vld [vmem:[%s0 + $0x4] sm:$0xf]
  %v31 = vld [vmem:[%s0 + $0x8] sm:$0xf]
  %v32 = vld [vmem:[%s1] sm:$0xf]
  %v33 = vld [vmem:[%s1 + $0x4] sm:$0xf]
  %v34 = vld [vmem:[%s1 + $0x8] sm:$0xf]
  %v35 = vld [vmem:[%s1 + $0xc] sm:$0xf]
  %v39 = vunpack.c.l.b16 %v29
  %v40 = vunpack.c.l.b16 %v30
  %v41 = vunpack.c.l.b16 %v31
  %v42 = vpack.c.b16 %v40, %v39
  %v43 = vpack.c.b16 %v41, %v41
  %v48 = vunpack.c.l.b16 %v32
  %v49 = vunpack.c.l.b16 %v33
  %v50 = vunpack.c.l.b16 %v34
  %v51 = vunpack.c.l.b16 %v35
  %v52 = vpack.c.b16 %v49, %v48
  %v53 = vpack.c.b16 %v51, %v50
  %vm56 = vcmask 261120
  %v58 = vsel %vm56, %v42, 0
  %v61 = vsel %vm56, %v43, 0
  %63 = vmatprep.subr.bf16.mxu0 0
  %64 = vmatpush1.bf16.msra.mxu0 0
  %65 = vmatprep.subr.bf16.mxu0 0
  %66 = vmatpush1.bf16.msra.mxu0 0
  %67 = vmatprep.subr.bf16.mxu0 0
  %68 = vmatpush1.bf16.msra.mxu0 0
  %69 = vmatprep.subr.bf16.mxu0 0
  %70 = vmatpush1.bf16.msra.mxu0 0
  %71 = vmatprep.subr.bf16.mxu0 0
  %72 = vmatpush1.bf16.msra.mxu0 0
  %73 = vmatprep.subr.bf16.mxu0 0
  %74 = vmatpush1.bf16.msra.mxu0 0
  %75 = vmatprep.subr.bf16.mxu0 0
  %76 = vmatpush1.bf16.msra.mxu0 %v53
  %77 = vmatprep.subr.bf16.mxu0 0
  %78 = vmatpush1.bf16.msra.mxu0 %v52
  %79 = vmatprep.subr.bf16.mxu0 0
  %80 = vmatpush2.bf16.msra.mxu0 0
  %81 = vmatprep.subr.bf16.mxu0 0
  %82 = vmatpush2.bf16.msra.mxu0 0
  %83 = vmatprep.subr.bf16.mxu0 0
  %84 = vmatpush2.bf16.msra.mxu0 0
  %85 = vmatprep.subr.bf16.mxu0 0
  %86 = vmatpush2.bf16.msra.mxu0 0
  %87 = vmatprep.subr.bf16.mxu0 0
  %88 = vmatpush2.bf16.msra.mxu0 0
  %89 = vmatprep.subr.bf16.mxu0 0
  %90 = vmatpush2.bf16.msra.mxu0 0
  %91 = vmatprep.subr.bf16.mxu0 0
  %92 = vmatpush2.bf16.msra.mxu0 0
  %93 = vmatprep.subr.bf16.mxu0 0
  %94 = vmatpush2.bf16.msra.mxu0 0
  %95 = vmatprep.mubr.bf16.mxu0 0
  %96 = vmatmul.mubr.bf16.gmra.mxu0 %v58
  %v97 = vpop.f32.mrf.mxu0
  %v98 = vadd.f32 0.0, %v97
  %v99 = vpop.f32.mrf.mxu0
  %v100 = vpop.f32.mrf.mxu0
  %v101 = vadd.f32 0.0, %v100
  %v102 = vpop.f32.mrf.mxu0
  %103 = vmatprep.mubr.bf16.mxu0 0
  %104 = vmatmul.mubr.bf16.gmra.mxu0 %v61
  %v105 = vpop.f32.mrf.mxu0
  %v106 = vadd.f32 0.0, %v105
  %v107 = vpop.f32.mrf.mxu0
  %v108 = vpop.f32.mrf.mxu0
  %v109 = vpop.f32.mrf.mxu0
  %110 = vdwg.mxu0
  %v111 = vadd.f32 %v26, %v98
  %v112 = vadd.f32 %v27, %v101
  %v113 = vadd.f32 %v28, %v106
  %vm114 = vcmask 130048
  %115 = vst.msk [vmem:[#allocation2] sm:$0xff] %vm114, %v111
  %116 = vst.msk [vmem:[#allocation2 + $0x8] sm:$0xff] %vm114, %v112
  %117 = vst.msk [vmem:[#allocation2 + $0x10] sm:$0xff] %vm114, %v113
  // Predicated region
  $region22: #{_lambda_.29} parent=0 // pred_check
    %p118 = pneg %p18
  $region23: #{_lambda_.29} parent=0 // pred_check_branch
    %120 = sbr.rel (%p118) target = $region25
  $region24: #{_lambda_.29} parent=0 // pred_region
    %v121 = vld [vmem:[#allocation2] sm:$0xff]
    %v122 = vld [vmem:[#allocation2 + $0x8] sm:$0xff]
    %v123 = vld [vmem:[#allocation2 + $0x10] sm:$0xff]
    %v124 = vld [vmem:[%s2] sm:$0x1]
    %v126 = vlaneseq
    %v127 = vshrl.u32 %v126, 7
    %v128 = vsub.s32 0, %v127
    %v129 = vrot.slane %v124, %v128
    %v131 = vmul.f32 %v121, %v129
    %v132 = vmul.f32 %v122, %v129
    %v133 = vmul.f32 %v123, %v129
    %v134 = vld [vmem:[%s3] sm:$0x1]
    %v136 = vlaneseq
    %v137 = vshrl.u32 %v136, 7
    %v138 = vsub.s32 0, %v137
    %v139 = vrot.slane %v134, %v138
    %v141 = vadd.f32 %v131, %v139
    %v142 = vadd.f32 %v132, %v139
    %v143 = vadd.f32 %v133, %v139
    %v144 = vmax.f32 %v141, 0.0
    %v145 = vmax.f32 %v142, 0.0
    %v146 = vmax.f32 %v143, 0.0
    %147 = vst.msk [vmem:[%s4] sm:$0xff] %vm114, %v144
    %148 = vst.msk [vmem:[%s4 + $0x8] sm:$0xff] %vm114, %v145
    %149 = vst.msk [vmem:[%s4 + $0x10] sm:$0xff] %vm114, %v146
  $region25: #{_lambda_.29} parent=0 // pred_fallthru
    _
  // Predicated region
  $region26: #{_lambda_.29} parent=0 // pred_check
    _
  $region27: #{_lambda_.29} parent=0 // pred_check_branch
    %151 = sbr.rel (0) target = $region29
  $region28: #{_lambda_.29} parent=0 // pred_region
    _
  $region29: #{_lambda_.29} parent=0 // pred_fallthru
    _
  // Predicated region
  $region30: #{_lambda_.29} parent=0 // pred_check
    _
  $region31: #{_lambda_.29} parent=0 // pred_check_branch
    %153 = sbr.rel (0) target = $region33
  $region32: #{_lambda_.29} parent=0 // pred_region
    _
  $region33: #{_lambda_.29} parent=0 // pred_fallthru
    _

// kernel: _lambda_.28
$region0: #{_lambda_.28}
  #allocation0 [shape = 'u32[]', space=smem, size = 0x4, offset = 0x4, fixed_abs, tag = 'smem constant byte address 0x4 - core index']
  #allocation1 [shape = 'u32[144,128]{1,0:T(1,128)}', space=vmem, size = 0x12000, scoped, tag = 'internal scratch']
  #allocation2 [shape = 'f32[24,64]{1,0:T(8,128)}', space=vmem, size = 0x3000, scoped, tag = 'scratch operand']
  %s0 = inlined_call_operand.vmem [shape: bf16[24,32], index: 0, kind: input, shape index: {}]
  %s1 = inlined_call_operand.vmem [shape: bf16[32,64], index: 1, kind: input, shape index: {}]
  %s2 = inlined_call_operand.vmem [shape: f32[1,64], index: 2, kind: input, shape index: {}]
  %s3 = inlined_call_operand.vmem [shape: f32[1,64], index: 3, kind: input, shape index: {}]
  %s4 = inlined_call_operand.vmem [shape: f32[24,64], index: 4, kind: output, shape index: {}]
  %s5 = sld [smem:[#allocation0]]
  $region34: #{_lambda_.28} parent=0
    _
  %s7 = ssub.s32 1, %s5
  %s8 = scalar_select 0, %s7, %s5
  // Predicated region
  $region2: #{_lambda_.28} parent=0 // pred_check
    _
  $region3: #{_lambda_.28} parent=0 // pred_check_branch
    %10 = sbr.rel (0) target = $region5
  $region4: #{_lambda_.28} parent=0 // pred_region
    _
  $region5: #{_lambda_.28} parent=0 // pred_fallthru
    _
  // Predicated region
  $region6: #{_lambda_.28} parent=0 // pred_check
    _
  $region7: #{_lambda_.28} parent=0 // pred_check_branch
    %12 = sbr.rel (0) target = $region9
  $region8: #{_lambda_.28} parent=0 // pred_region
    _
  $region9: #{_lambda_.28} parent=0 // pred_fallthru
    _
  // Predicated region
  $region10: #{_lambda_.28} parent=0 // pred_check
    _
  $region11: #{_lambda_.28} parent=0 // pred_check_branch
    %14 = sbr.rel (0) target = $region13
  $region12: #{_lambda_.28} parent=0 // pred_region
    _
  $region13: #{_lambda_.28} parent=0 // pred_fallthru
    _
  // Predicated region
  $region14: #{_lambda_.28} parent=0 // pred_check
    _
  $region15: #{_lambda_.28} parent=0 // pred_check_branch
    %16 = sbr.rel (0) target = $region17
  $region16: #{_lambda_.28} parent=0 // pred_region
    _
  $region17: #{_lambda_.28} parent=0 // pred_fallthru
    _
  %p18 = scmp.eq.s32.totalorder 0, 0
  // Predicated region
  $region18: #{_lambda_.28} parent=0 // pred_check
    %p19 = pneg %p18
  $region19: #{_lambda_.28} parent=0 // pred_check_branch
    %21 = sbr.rel (%p19) target = $region21
  $region20: #{_lambda_.28} parent=0 // pred_region
    %vm22 = vcmask 523264
    %23 = vst.msk [vmem:[#allocation2] sm:$0xff] %vm22, 0.0
    %24 = vst.msk [vmem:[#allocation2 + $0x8] sm:$0xff] %vm22, 0.0
    %25 = vst.msk [vmem:[#allocation2 + $0x10] sm:$0xff] %vm22, 0.0
  $region21: #{_lambda_.28} parent=0 // pred_fallthru
    _
  %v26 = vld [vmem:[#allocation2] sm:$0xff]
  %v27 = vld [vmem:[#allocation2 + $0x8] sm:$0xff]
  %v28 = vld [vmem:[#allocation2 + $0x10] sm:$0xff]
  %v29 = vld [vmem:[%s0] sm:$0xf]
  %v30 = vld [vmem:[%s0 + $0x4] sm:$0xf]
  %v31 = vld [vmem:[%s0 + $0x8] sm:$0xf]
  %v32 = vld [vmem:[%s1] sm:$0xf]
  %v33 = vld [vmem:[%s1 + $0x4] sm:$0xf]
  %v34 = vld [vmem:[%s1 + $0x8] sm:$0xf]
  %v35 = vld [vmem:[%s1 + $0xc] sm:$0xf]
  %v39 = vunpack.c.l.b16 %v29
  %v40 = vunpack.c.l.b16 %v30
  %v41 = vunpack.c.l.b16 %v31
  %v42 = vpack.c.b16 %v40, %v39
  %v43 = vpack.c.b16 %v41, %v41
  %v48 = vunpack.c.l.b16 %v32
  %v49 = vunpack.c.l.b16 %v33
  %v50 = vunpack.c.l.b16 %v34
  %v51 = vunpack.c.l.b16 %v35
  %v52 = vpack.c.b16 %v49, %v48
  %v53 = vpack.c.b16 %v51, %v50
  %vm56 = vcmask 261120
  %v58 = vsel %vm56, %v42, 0
  %v61 = vsel %vm56, %v43, 0
  %63 = vmatprep.subr.bf16.mxu0 0
  %64 = vmatpush1.bf16.msra.mxu0 0
  %65 = vmatprep.subr.bf16.mxu0 0
  %66 = vmatpush1.bf16.msra.mxu0 0
  %67 = vmatprep.subr.bf16.mxu0 0
  %68 = vmatpush1.bf16.msra.mxu0 0
  %69 = vmatprep.subr.bf16.mxu0 0
  %70 = vmatpush1.bf16.msra.mxu0 0
  %71 = vmatprep.subr.bf16.mxu0 0
  %72 = vmatpush1.bf16.msra.mxu0 0
  %73 = vmatprep.subr.bf16.mxu0 0
  %74 = vmatpush1.bf16.msra.mxu0 0
  %75 = vmatprep.subr.bf16.mxu0 0
  %76 = vmatpush1.bf16.msra.mxu0 %v53
  %77 = vmatprep.subr.bf16.mxu0 0
  %78 = vmatpush1.bf16.msra.mxu0 %v52
  %79 = vmatprep.subr.bf16.mxu0 0
  %80 = vmatpush2.bf16.msra.mxu0 0
  %81 = vmatprep.subr.bf16.mxu0 0
  %82 = vmatpush2.bf16.msra.mxu0 0
  %83 = vmatprep.subr.bf16.mxu0 0
  %84 = vmatpush2.bf16.msra.mxu0 0
  %85 = vmatprep.subr.bf16.mxu0 0
  %86 = vmatpush2.bf16.msra.mxu0 0
  %87 = vmatprep.subr.bf16.mxu0 0
  %88 = vmatpush2.bf16.msra.mxu0 0
  %89 = vmatprep.subr.bf16.mxu0 0
  %90 = vmatpush2.bf16.msra.mxu0 0
  %91 = vmatprep.subr.bf16.mxu0 0
  %92 = vmatpush2.bf16.msra.mxu0 0
  %93 = vmatprep.subr.bf16.mxu0 0
  %94 = vmatpush2.bf16.msra.mxu0 0
  %95 = vmatprep.mubr.bf16.mxu0 0
  %96 = vmatmul.mubr.bf16.gmra.mxu0 %v58
  %v97 = vpop.f32.mrf.mxu0
  %v98 = vadd.f32 0.0, %v97
  %v99 = vpop.f32.mrf.mxu0
  %v100 = vpop.f32.mrf.mxu0
  %v101 = vadd.f32 0.0, %v100
  %v102 = vpop.f32.mrf.mxu0
  %103 = vmatprep.mubr.bf16.mxu0 0
  %104 = vmatmul.mubr.bf16.gmra.mxu0 %v61
  %v105 = vpop.f32.mrf.mxu0
  %v106 = vadd.f32 0.0, %v105
  %v107 = vpop.f32.mrf.mxu0
  %v108 = vpop.f32.mrf.mxu0
  %v109 = vpop.f32.mrf.mxu0
  %110 = vdwg.mxu0
  %v111 = vadd.f32 %v26, %v98
  %v112 = vadd.f32 %v27, %v101
  %v113 = vadd.f32 %v28, %v106
  %vm114 = vcmask 523264
  %115 = vst.msk [vmem:[#allocation2] sm:$0xff] %vm114, %v111
  %116 = vst.msk [vmem:[#allocation2 + $0x8] sm:$0xff] %vm114, %v112
  %117 = vst.msk [vmem:[#allocation2 + $0x10] sm:$0xff] %vm114, %v113
  // Predicated region
  $region22: #{_lambda_.28} parent=0 // pred_check
    %p118 = pneg %p18
  $region23: #{_lambda_.28} parent=0 // pred_check_branch
    %120 = sbr.rel (%p118) target = $region25
  $region24: #{_lambda_.28} parent=0 // pred_region
    %v121 = vld [vmem:[#allocation2] sm:$0xff]
    %v122 = vld [vmem:[#allocation2 + $0x8] sm:$0xff]
    %v123 = vld [vmem:[#allocation2 + $0x10] sm:$0xff]
    %v124 = vld [vmem:[%s2] sm:$0x1]
    %v126 = vlaneseq
    %v127 = vshrl.u32 %v126, 7
    %v128 = vsub.s32 0, %v127
    %v129 = vrot.slane %v124, %v128
    %v131 = vmul.f32 %v121, %v129
    %v132 = vmul.f32 %v122, %v129
    %v133 = vmul.f32 %v123, %v129
    %v134 = vld [vmem:[%s3] sm:$0x1]
    %v136 = vlaneseq
    %v137 = vshrl.u32 %v136, 7
    %v138 = vsub.s32 0, %v137
    %v139 = vrot.slane %v134, %v138
    %v141 = vadd.f32 %v131, %v139
    %v142 = vadd.f32 %v132, %v139
    %v143 = vadd.f32 %v133, %v139
    %144 = vst.msk [vmem:[%s4] sm:$0xff] %vm114, %v141
    %145 = vst.msk [vmem:[%s4 + $0x8] sm:$0xff] %vm114, %v142
    %146 = vst.msk [vmem:[%s4 + $0x10] sm:$0xff] %vm114, %v143
  $region25: #{_lambda_.28} parent=0 // pred_fallthru
    _
  // Predicated region
  $region26: #{_lambda_.28} parent=0 // pred_check
    _
  $region27: #{_lambda_.28} parent=0 // pred_check_branch
    %148 = sbr.rel (0) target = $region29
  $region28: #{_lambda_.28} parent=0 // pred_region
    _
  $region29: #{_lambda_.28} parent=0 // pred_fallthru
    _
  // Predicated region
  $region30: #{_lambda_.28} parent=0 // pred_check
    _
  $region31: #{_lambda_.28} parent=0 // pred_check_branch
    %150 = sbr.rel (0) target = $region33
  $region32: #{_lambda_.28} parent=0 // pred_region
    _
  $region33: #{_lambda_.28} parent=0 // pred_fallthru
    _

// kernel: _lambda_.31
$region0: #{_lambda_.31}
  #allocation0 [shape = 'u32[]', space=smem, size = 0x4, offset = 0x4, fixed_abs, tag = 'smem constant byte address 0x4 - core index']
  #allocation1 [shape = 'u32[144,128]{1,0:T(1,128)}', space=vmem, size = 0x12000, scoped, tag = 'internal scratch']
  #allocation2 [shape = 'f32[24,64]{1,0:T(8,128)}', space=vmem, size = 0x3000, scoped, tag = 'scratch operand']
  %s0 = inlined_call_operand.vmem [shape: bf16[24,16], index: 0, kind: input, shape index: {}]
  %s1 = inlined_call_operand.vmem [shape: bf16[16,64], index: 1, kind: input, shape index: {}]
  %s2 = inlined_call_operand.hbm [shape: f32[1,64], index: 2, kind: input, shape index: {}]
  %s3 = inlined_call_operand.hbm [shape: f32[1,64], index: 3, kind: input, shape index: {}]
  %s4 = inlined_call_operand.vmem [shape: f32[24,64], index: 4, kind: input, shape index: {}]
  %s5 = inlined_call_operand.vmem [shape: f32[24,64], index: 5, kind: output, shape index: {}]
  %s6 = sld [smem:[#allocation0]]
  $region46: #{_lambda_.31} parent=0
    _
  %s8 = ssub.s32 1, %s6
  %s9 = scalar_select 0, %s8, %s6
  $region1: #{_lambda_.31} parent=0
    #allocation3 [shape = 'u8[512]{0}', space=vmem, size = 0x400, scoped, tag = 'input window, operand 2, single buffered']
    #allocation4 [shape = 's32[1]{0}', space=sflag, size = 0x4, scoped, tag = 'scoped memory for _lambda_.31']
    #allocation5 [shape = 'u8[512]{0}', space=vmem, size = 0x400, scoped, tag = 'input window, operand 3, single buffered']
    #allocation6 [shape = 's32[1]{0}', space=sflag, size = 0x4, scoped, tag = 'scoped memory for _lambda_.31']
    %10 = vsyncpa [#allocation4], 0
    %11 = vsyncpa [#allocation6], 0
    // Predicated region
    $region2: #{_lambda_.31} parent=1 // pred_check
      _
    $region3: #{_lambda_.31} parent=1 // pred_check_branch
      %13 = sbr.rel (0) target = $region5
    $region4: #{_lambda_.31} parent=1 // pred_region
      _
    $region5: #{_lambda_.31} parent=1 // pred_fallthru
      _
    // Predicated region
    $region6: #{_lambda_.31} parent=1 // pred_check
      _
    $region7: #{_lambda_.31} parent=1 // pred_check_branch
      %15 = sbr.rel (0) target = $region9
    $region8: #{_lambda_.31} parent=1 // pred_region
      _
    $region9: #{_lambda_.31} parent=1 // pred_fallthru
      _
    // Predicated region
    $region10: #{_lambda_.31} parent=1 // pred_check
      _
    $region11: #{_lambda_.31} parent=1 // pred_check_branch
      %17 = sbr.rel (0) target = $region13
    $region12: #{_lambda_.31} parent=1 // pred_region
      %s19 = ssub.s32 16, 16
      %20 = vsyncadd [#allocation4], %s19
      %s22 = sshll.u32 [#allocation3], 4
      %s23 = int_to_ptr.vmem [resolvable:$true] %s22
      %25 = dma.hbm_to_vmem [thread:$0]  %s2, 16, %s23, [#allocation4]
    $region13: #{_lambda_.31} parent=1 // pred_fallthru
      _
    // Predicated region
    $region14: #{_lambda_.31} parent=1 // pred_check
      _
    $region15: #{_lambda_.31} parent=1 // pred_check_branch
      %27 = sbr.rel (0) target = $region17
    $region16: #{_lambda_.31} parent=1 // pred_region
      %s29 = ssub.s32 16, 16
      %30 = vsyncadd [#allocation6], %s29
      %s32 = sshll.u32 [#allocation5], 4
      %s33 = int_to_ptr.vmem [resolvable:$true] %s32
      %35 = dma.hbm_to_vmem [thread:$0]  %s3, 16, %s33, [#allocation6]
    $region17: #{_lambda_.31} parent=1 // pred_fallthru
      _
    // Predicated region
    $region18: #{_lambda_.31} parent=1 // pred_check
      _
    $region19: #{_lambda_.31} parent=1 // pred_check_branch
      %37 = sbr.rel (0) target = $region21
    $region20: #{_lambda_.31} parent=1 // pred_region
      _
    $region21: #{_lambda_.31} parent=1 // pred_fallthru
      _
    // Predicated region
    $region22: #{_lambda_.31} parent=1 // pred_check
      _
    $region23: #{_lambda_.31} parent=1 // pred_check_branch
      %39 = sbr.rel (0) target = $region25
    $region24: #{_lambda_.31} parent=1 // pred_region
      %40 = dma.done [#allocation4], 16
    $region25: #{_lambda_.31} parent=1 // pred_fallthru
      _
    // Predicated region
    $region26: #{_lambda_.31} parent=1 // pred_check
      _
    $region27: #{_lambda_.31} parent=1 // pred_check_branch
      %42 = sbr.rel (0) target = $region29
    $region28: #{_lambda_.31} parent=1 // pred_region
      %43 = dma.done [#allocation6], 16
    $region29: #{_lambda_.31} parent=1 // pred_fallthru
      _
    %p45 = scmp.eq.s32.totalorder 0, 0
    // Predicated region
    $region30: #{_lambda_.31} parent=1 // pred_check
      %p46 = pneg %p45
    $region31: #{_lambda_.31} parent=1 // pred_check_branch
      %48 = sbr.rel (%p46) target = $region33
    $region32: #{_lambda_.31} parent=1 // pred_region
      %vm49 = vcmask 523264
      %50 = vst.msk [vmem:[#allocation2] sm:$0xff] %vm49, 0.0
      %51 = vst.msk [vmem:[#allocation2 + $0x8] sm:$0xff] %vm49, 0.0
      %52 = vst.msk [vmem:[#allocation2 + $0x10] sm:$0xff] %vm49, 0.0
    $region33: #{_lambda_.31} parent=1 // pred_fallthru
      _
    %v53 = vld [vmem:[#allocation2] sm:$0xff]
    %v54 = vld [vmem:[#allocation2 + $0x8] sm:$0xff]
    %v55 = vld [vmem:[#allocation2 + $0x10] sm:$0xff]
    %v56 = vld [vmem:[%s0] sm:$0xf]
    %v57 = vld [vmem:[%s0 + $0x4] sm:$0xf]
    %v58 = vld [vmem:[%s0 + $0x8] sm:$0xf]
    %v59 = vld [vmem:[%s1] sm:$0xf]
    %v60 = vld [vmem:[%s1 + $0x4] sm:$0xf]
    %v64 = vunpack.c.l.b16 %v56
    %v65 = vunpack.c.l.b16 %v57
    %v66 = vunpack.c.l.b16 %v58
    %v67 = vpack.c.b16 %v65, %v64
    %v68 = vpack.c.b16 %v66, %v66
    %v71 = vunpack.c.l.b16 %v59
    %v72 = vunpack.c.l.b16 %v60
    %v73 = vpack.c.b16 %v72, %v71
    %vm75 = vcmask 130048
    %v77 = vsel %vm75, %v67, 0
    %v80 = vsel %vm75, %v68, 0
    %82 = vmatprep.subr.bf16.mxu0 0
    %83 = vmatpush1.bf16.msra.mxu0 0
    %84 = vmatprep.subr.bf16.mxu0 0
    %85 = vmatpush1.bf16.msra.mxu0 0
    %86 = vmatprep.subr.bf16.mxu0 0
    %87 = vmatpush1.bf16.msra.mxu0 0
    %88 = vmatprep.subr.bf16.mxu0 0
    %89 = vmatpush1.bf16.msra.mxu0 0
    %90 = vmatprep.subr.bf16.mxu0 0
    %91 = vmatpush1.bf16.msra.mxu0 0
    %92 = vmatprep.subr.bf16.mxu0 0
    %93 = vmatpush1.bf16.msra.mxu0 0
    %94 = vmatprep.subr.bf16.mxu0 0
    %95 = vmatpush1.bf16.msra.mxu0 0
    %96 = vmatprep.subr.bf16.mxu0 0
    %97 = vmatpush1.bf16.msra.mxu0 %v73
    %98 = vmatprep.subr.bf16.mxu0 0
    %99 = vmatpush2.bf16.msra.mxu0 0
    %100 = vmatprep.subr.bf16.mxu0 0
    %101 = vmatpush2.bf16.msra.mxu0 0
    %102 = vmatprep.subr.bf16.mxu0 0
    %103 = vmatpush2.bf16.msra.mxu0 0
    %104 = vmatprep.subr.bf16.mxu0 0
    %105 = vmatpush2.bf16.msra.mxu0 0
    %106 = vmatprep.subr.bf16.mxu0 0
    %107 = vmatpush2.bf16.msra.mxu0 0
    %108 = vmatprep.subr.bf16.mxu0 0
    %109 = vmatpush2.bf16.msra.mxu0 0
    %110 = vmatprep.subr.bf16.mxu0 0
    %111 = vmatpush2.bf16.msra.mxu0 0
    %112 = vmatprep.subr.bf16.mxu0 0
    %113 = vmatpush2.bf16.msra.mxu0 0
    %114 = vmatprep.mubr.bf16.mxu0 0
    %115 = vmatmul.mubr.bf16.gmra.mxu0 %v77
    %v116 = vpop.f32.mrf.mxu0
    %v117 = vadd.f32 0.0, %v116
    %v118 = vpop.f32.mrf.mxu0
    %v119 = vpop.f32.mrf.mxu0
    %v120 = vadd.f32 0.0, %v119
    %v121 = vpop.f32.mrf.mxu0
    %122 = vmatprep.mubr.bf16.mxu0 0
    %123 = vmatmul.mubr.bf16.gmra.mxu0 %v80
    %v124 = vpop.f32.mrf.mxu0
    %v125 = vadd.f32 0.0, %v124
    %v126 = vpop.f32.mrf.mxu0
    %v127 = vpop.f32.mrf.mxu0
    %v128 = vpop.f32.mrf.mxu0
    %129 = vdwg.mxu0
    %v130 = vadd.f32 %v53, %v117
    %v131 = vadd.f32 %v54, %v120
    %v132 = vadd.f32 %v55, %v125
    %vm133 = vcmask 523264
    %134 = vst.msk [vmem:[#allocation2] sm:$0xff] %vm133, %v130
    %135 = vst.msk [vmem:[#allocation2 + $0x8] sm:$0xff] %vm133, %v131
    %136 = vst.msk [vmem:[#allocation2 + $0x10] sm:$0xff] %vm133, %v132
    // Predicated region
    $region34: #{_lambda_.31} parent=1 // pred_check
      %p137 = pneg %p45
    $region35: #{_lambda_.31} parent=1 // pred_check_branch
      %139 = sbr.rel (%p137) target = $region37
    $region36: #{_lambda_.31} parent=1 // pred_region
      %v140 = vld [vmem:[#allocation2] sm:$0xff]
      %v141 = vld [vmem:[#allocation2 + $0x8] sm:$0xff]
      %v142 = vld [vmem:[#allocation2 + $0x10] sm:$0xff]
      %v143 = vld [vmem:[#allocation3] sm:$0x1]
      %v145 = vlaneseq
      %v146 = vshrl.u32 %v145, 7
      %v147 = vsub.s32 0, %v146
      %v148 = vrot.slane %v143, %v147
      %v150 = vmul.f32 %v140, %v148
      %v151 = vmul.f32 %v141, %v148
      %v152 = vmul.f32 %v142, %v148
      %v153 = vld [vmem:[#allocation5] sm:$0x1]
      %v155 = vlaneseq
      %v156 = vshrl.u32 %v155, 7
      %v157 = vsub.s32 0, %v156
      %v158 = vrot.slane %v153, %v157
      %v160 = vadd.f32 %v150, %v158
      %v161 = vadd.f32 %v151, %v158
      %v162 = vadd.f32 %v152, %v158
      %v163 = vld [vmem:[%s4] sm:$0xff]
      %v164 = vld [vmem:[%s4 + $0x8] sm:$0xff]
      %v165 = vld [vmem:[%s4 + $0x10] sm:$0xff]
      %v166 = vadd.f32 %v160, %v163
      %v167 = vadd.f32 %v161, %v164
      %v168 = vadd.f32 %v162, %v165
      %v169 = vmax.f32 %v166, 0.0
      %v170 = vmax.f32 %v167, 0.0
      %v171 = vmax.f32 %v168, 0.0
      %172 = vst.msk [vmem:[%s5] sm:$0xff] %vm133, %v169
      %173 = vst.msk [vmem:[%s5 + $0x8] sm:$0xff] %vm133, %v170
      %174 = vst.msk [vmem:[%s5 + $0x10] sm:$0xff] %vm133, %v171
    $region37: #{_lambda_.31} parent=1 // pred_fallthru
      _
    // Predicated region
    $region38: #{_lambda_.31} parent=1 // pred_check
      _
    $region39: #{_lambda_.31} parent=1 // pred_check_branch
      %176 = sbr.rel (0) target = $region41
    $region40: #{_lambda_.31} parent=1 // pred_region
      _
    $region41: #{_lambda_.31} parent=1 // pred_fallthru
      _
    // Predicated region
    $region42: #{_lambda_.31} parent=1 // pred_check
      _
    $region43: #{_lambda_.31} parent=1 // pred_check_branch
      %178 = sbr.rel (0) target = $region45
    $region44: #{_lambda_.31} parent=1 // pred_region
      _
    $region45: #{_lambda_.31} parent=1 // pred_fallthru
      _
    %179 = vsyncpa [#allocation4], 1
    %180 = vsyncpa [#allocation6], 1

// kernel: _lambda_.30
$region0: #{_lambda_.30}
  #allocation0 [shape = 'u32[]', space=smem, size = 0x4, offset = 0x4, fixed_abs, tag = 'smem constant byte address 0x4 - core index']
  #allocation1 [shape = 'u32[144,128]{1,0:T(1,128)}', space=vmem, size = 0x12000, scoped, tag = 'internal scratch']
  #allocation2 [shape = 'f32[24,16]{1,0:T(8,128)}', space=vmem, size = 0x3000, scoped, tag = 'scratch operand']
  %s0 = inlined_call_operand.vmem [shape: bf16[24,256], index: 0, kind: input, shape index: {}]
  %s1 = inlined_call_operand.vmem [shape: bf16[256,16], index: 1, kind: input, shape index: {}]
  %s2 = inlined_call_operand.hbm [shape: f32[1,16], index: 2, kind: input, shape index: {}]
  %s3 = inlined_call_operand.hbm [shape: f32[1,16], index: 3, kind: input, shape index: {}]
  %s4 = inlined_call_operand.vmem [shape: f32[24,16], index: 4, kind: output, shape index: {}]
  %s5 = sld [smem:[#allocation0]]
  $region42: #{_lambda_.30} parent=0
    _
  %s7 = ssub.s32 1, %s5
  %s8 = scalar_select 0, %s7, %s5
  $region1: #{_lambda_.30} parent=0
    #allocation3 [shape = 'u8[512]{0}', space=vmem, size = 0x400, scoped, tag = 'input window, operand 2, single buffered']
    #allocation4 [shape = 's32[1]{0}', space=sflag, size = 0x4, scoped, tag = 'scoped memory for _lambda_.30']
    #allocation5 [shape = 'u8[512]{0}', space=vmem, size = 0x400, scoped, tag = 'input window, operand 3, single buffered']
    #allocation6 [shape = 's32[1]{0}', space=sflag, size = 0x4, scoped, tag = 'scoped memory for _lambda_.30']
    %9 = vsyncpa [#allocation4], 0
    %10 = vsyncpa [#allocation6], 0
    // Predicated region
    $region2: #{_lambda_.30} parent=1 // pred_check
      _
    $region3: #{_lambda_.30} parent=1 // pred_check_branch
      %12 = sbr.rel (0) target = $region5
    $region4: #{_lambda_.30} parent=1 // pred_region
      _
    $region5: #{_lambda_.30} parent=1 // pred_fallthru
      _
    // Predicated region
    $region6: #{_lambda_.30} parent=1 // pred_check
      _
    $region7: #{_lambda_.30} parent=1 // pred_check_branch
      %14 = sbr.rel (0) target = $region9
    $region8: #{_lambda_.30} parent=1 // pred_region
      _
    $region9: #{_lambda_.30} parent=1 // pred_fallthru
      _
    // Predicated region
    $region10: #{_lambda_.30} parent=1 // pred_check
      _
    $region11: #{_lambda_.30} parent=1 // pred_check_branch
      %16 = sbr.rel (0) target = $region13
    $region12: #{_lambda_.30} parent=1 // pred_region
      %s18 = ssub.s32 16, 16
      %19 = vsyncadd [#allocation4], %s18
      %s21 = sshll.u32 [#allocation3], 4
      %s22 = int_to_ptr.vmem [resolvable:$true] %s21
      %24 = dma.hbm_to_vmem [thread:$0]  %s2, 16, %s22, [#allocation4]
    $region13: #{_lambda_.30} parent=1 // pred_fallthru
      _
    // Predicated region
    $region14: #{_lambda_.30} parent=1 // pred_check
      _
    $region15: #{_lambda_.30} parent=1 // pred_check_branch
      %26 = sbr.rel (0) target = $region17
    $region16: #{_lambda_.30} parent=1 // pred_region
      %s28 = ssub.s32 16, 16
      %29 = vsyncadd [#allocation6], %s28
      %s31 = sshll.u32 [#allocation5], 4
      %s32 = int_to_ptr.vmem [resolvable:$true] %s31
      %34 = dma.hbm_to_vmem [thread:$0]  %s3, 16, %s32, [#allocation6]
    $region17: #{_lambda_.30} parent=1 // pred_fallthru
      _
    // Predicated region
    $region18: #{_lambda_.30} parent=1 // pred_check
      _
    $region19: #{_lambda_.30} parent=1 // pred_check_branch
      %36 = sbr.rel (0) target = $region21
    $region20: #{_lambda_.30} parent=1 // pred_region
      %37 = dma.done [#allocation4], 16
    $region21: #{_lambda_.30} parent=1 // pred_fallthru
      _
    // Predicated region
    $region22: #{_lambda_.30} parent=1 // pred_check
      _
    $region23: #{_lambda_.30} parent=1 // pred_check_branch
      %39 = sbr.rel (0) target = $region25
    $region24: #{_lambda_.30} parent=1 // pred_region
      %40 = dma.done [#allocation6], 16
    $region25: #{_lambda_.30} parent=1 // pred_fallthru
      _
    %p42 = scmp.eq.s32.totalorder 0, 0
    // Predicated region
    $region26: #{_lambda_.30} parent=1 // pred_check
      %p43 = pneg %p42
    $region27: #{_lambda_.30} parent=1 // pred_check_branch
      %45 = sbr.rel (%p43) target = $region29
    $region28: #{_lambda_.30} parent=1 // pred_region
      %vm46 = vcmask 130048
      %47 = vst.msk [vmem:[#allocation2] sm:$0xff] %vm46, 0.0
      %48 = vst.msk [vmem:[#allocation2 + $0x8] sm:$0xff] %vm46, 0.0
      %49 = vst.msk [vmem:[#allocation2 + $0x10] sm:$0xff] %vm46, 0.0
    $region29: #{_lambda_.30} parent=1 // pred_fallthru
      _
    %v50 = vld [vmem:[#allocation2] sm:$0xff]
    %v51 = vld [vmem:[#allocation2 + $0x8] sm:$0xff]
    %v52 = vld [vmem:[#allocation2 + $0x10] sm:$0xff]
    %v53 = vld [vmem:[%s0] sm:$0xff]
    %v54 = vld [vmem:[%s0 + $0x8] sm:$0xff]
    %v55 = vld [vmem:[%s0 + $0x10] sm:$0xff]
    %v56 = vld [vmem:[%s1] sm:$0xf]
    %v57 = vld [vmem:[%s1 + $0x4] sm:$0xf]
    %v58 = vld [vmem:[%s1 + $0x8] sm:$0xf]
    %v59 = vld [vmem:[%s1 + $0xc] sm:$0xf]
    %v60 = vld [vmem:[%s1 + $0x10] sm:$0xf]
    %v61 = vld [vmem:[%s1 + $0x14] sm:$0xf]
    %v62 = vld [vmem:[%s1 + $0x18] sm:$0xf]
    %v63 = vld [vmem:[%s1 + $0x1c] sm:$0xf]
    %v64 = vld [vmem:[%s1 + $0x20] sm:$0xf]
    %v65 = vld [vmem:[%s1 + $0x24] sm:$0xf]
    %v66 = vld [vmem:[%s1 + $0x28] sm:$0xf]
    %v67 = vld [vmem:[%s1 + $0x2c] sm:$0xf]
    %v68 = vld [vmem:[%s1 + $0x30] sm:$0xf]
    %v69 = vld [vmem:[%s1 + $0x34] sm:$0xf]
    %v70 = vld [vmem:[%s1 + $0x38] sm:$0xf]
    %v71 = vld [vmem:[%s1 + $0x3c] sm:$0xf]
    %v72 = vld [vmem:[%s1 + $0x40] sm:$0xf]
    %v73 = vld [vmem:[%s1 + $0x44] sm:$0xf]
    %v74 = vld [vmem:[%s1 + $0x48] sm:$0xf]
    %v75 = vld [vmem:[%s1 + $0x4c] sm:$0xf]
    %v76 = vld [vmem:[%s1 + $0x50] sm:$0xf]
    %v77 = vld [vmem:[%s1 + $0x54] sm:$0xf]
    %v78 = vld [vmem:[%s1 + $0x58] sm:$0xf]
    %v79 = vld [vmem:[%s1 + $0x5c] sm:$0xf]
    %v80 = vld [vmem:[%s1 + $0x60] sm:$0xf]
    %v81 = vld [vmem:[%s1 + $0x64] sm:$0xf]
    %v82 = vld [vmem:[%s1 + $0x68] sm:$0xf]
    %v83 = vld [vmem:[%s1 + $0x6c] sm:$0xf]
    %v84 = vld [vmem:[%s1 + $0x70] sm:$0xf]
    %v85 = vld [vmem:[%s1 + $0x74] sm:$0xf]
    %v86 = vld [vmem:[%s1 + $0x78] sm:$0xf]
    %v87 = vld [vmem:[%s1 + $0x7c] sm:$0xf]
    %v91 = vunpack.c.l.b16 %v53
    %v92 = vunpack.c.h.b16 %v53
    %v93 = vunpack.c.l.b16 %v54
    %v94 = vunpack.c.h.b16 %v54
    %v95 = vunpack.c.l.b16 %v55
    %v96 = vunpack.c.h.b16 %v55
    %v97 = vpack.c.b16 %v93, %v91
    %v98 = vpack.c.b16 %v94, %v92
    %v99 = vpack.c.b16 %v95, %v95
    %v100 = vpack.c.b16 %v96, %v96
    %v137 = vunpack.c.l.b16 %v56
    %v138 = vunpack.c.l.b16 %v57
    %v139 = vunpack.c.l.b16 %v58
    %v140 = vunpack.c.l.b16 %v59
    %v141 = vunpack.c.l.b16 %v60
    %v142 = vunpack.c.l.b16 %v61
    %v143 = vunpack.c.l.b16 %v62
    %v144 = vunpack.c.l.b16 %v63
    %v145 = vunpack.c.l.b16 %v64
    %v146 = vunpack.c.l.b16 %v65
    %v147 = vunpack.c.l.b16 %v66
    %v148 = vunpack.c.l.b16 %v67
    %v149 = vunpack.c.l.b16 %v68
    %v150 = vunpack.c.l.b16 %v69
    %v151 = vunpack.c.l.b16 %v70
    %v152 = vunpack.c.l.b16 %v71
    %v153 = vunpack.c.l.b16 %v72
    %v154 = vunpack.c.l.b16 %v73
    %v155 = vunpack.c.l.b16 %v74
    %v156 = vunpack.c.l.b16 %v75
    %v157 = vunpack.c.l.b16 %v76
    %v158 = vunpack.c.l.b16 %v77
    %v159 = vunpack.c.l.b16 %v78
    %v160 = vunpack.c.l.b16 %v79
    %v161 = vunpack.c.l.b16 %v80
    %v162 = vunpack.c.l.b16 %v81
    %v163 = vunpack.c.l.b16 %v82
    %v164 = vunpack.c.l.b16 %v83
    %v165 = vunpack.c.l.b16 %v84
    %v166 = vunpack.c.l.b16 %v85
    %v167 = vunpack.c.l.b16 %v86
    %v168 = vunpack.c.l.b16 %v87
    %v169 = vpack.c.b16 %v138, %v137
    %v170 = vpack.c.b16 %v140, %v139
    %v171 = vpack.c.b16 %v142, %v141
    %v172 = vpack.c.b16 %v144, %v143
    %v173 = vpack.c.b16 %v146, %v145
    %v174 = vpack.c.b16 %v148, %v147
    %v175 = vpack.c.b16 %v150, %v149
    %v176 = vpack.c.b16 %v152, %v151
    %v177 = vpack.c.b16 %v154, %v153
    %v178 = vpack.c.b16 %v156, %v155
    %v179 = vpack.c.b16 %v158, %v157
    %v180 = vpack.c.b16 %v160, %v159
    %v181 = vpack.c.b16 %v162, %v161
    %v182 = vpack.c.b16 %v164, %v163
    %v183 = vpack.c.b16 %v166, %v165
    %v184 = vpack.c.b16 %v168, %v167
    %201 = vmatprep.subr.bf16.mxu0 0
    %202 = vmatpush1.bf16.msra.mxu0 %v176
    %203 = vmatprep.subr.bf16.mxu0 0
    %204 = vmatpush1.bf16.msra.mxu0 %v175
    %205 = vmatprep.subr.bf16.mxu0 0
    %206 = vmatpush1.bf16.msra.mxu0 %v174
    %207 = vmatprep.subr.bf16.mxu0 0
    %208 = vmatpush1.bf16.msra.mxu0 %v173
    %209 = vmatprep.subr.bf16.mxu0 0
    %210 = vmatpush1.bf16.msra.mxu0 %v172
    %211 = vmatprep.subr.bf16.mxu0 0
    %212 = vmatpush1.bf16.msra.mxu0 %v171
    %213 = vmatprep.subr.bf16.mxu0 0
    %214 = vmatpush1.bf16.msra.mxu0 %v170
    %215 = vmatprep.subr.bf16.mxu0 0
    %216 = vmatpush1.bf16.msra.mxu0 %v169
    %217 = vmatprep.subr.bf16.mxu0 0
    %218 = vmatpush2.bf16.msra.mxu0 %v184
    %219 = vmatprep.subr.bf16.mxu0 0
    %220 = vmatpush2.bf16.msra.mxu0 %v183
    %221 = vmatprep.subr.bf16.mxu0 0
    %222 = vmatpush2.bf16.msra.mxu0 %v182
    %223 = vmatprep.subr.bf16.mxu0 0
    %224 = vmatpush2.bf16.msra.mxu0 %v181
    %225 = vmatprep.subr.bf16.mxu0 0
    %226 = vmatpush2.bf16.msra.mxu0 %v180
    %227 = vmatprep.subr.bf16.mxu0 0
    %228 = vmatpush2.bf16.msra.mxu0 %v179
    %229 = vmatprep.subr.bf16.mxu0 0
    %230 = vmatpush2.bf16.msra.mxu0 %v178
    %231 = vmatprep.subr.bf16.mxu0 0
    %232 = vmatpush2.bf16.msra.mxu0 %v177
    %233 = vmatprep.mubr.bf16.mxu0 %v98
    %234 = vmatmul.mubr.bf16.gmra.mxu0 %v97
    %v235 = vpop.f32.mrf.mxu0
    %v236 = vadd.f32 0.0, %v235
    %v237 = vpop.f32.mrf.mxu0
    %v238 = vpop.f32.mrf.mxu0
    %v239 = vadd.f32 0.0, %v238
    %v240 = vpop.f32.mrf.mxu0
    %241 = vmatprep.mubr.bf16.mxu0 %v100
    %242 = vmatmul.mubr.bf16.gmra.mxu0 %v99
    %v243 = vpop.f32.mrf.mxu0
    %v244 = vadd.f32 0.0, %v243
    %v245 = vpop.f32.mrf.mxu0
    %v246 = vpop.f32.mrf.mxu0
    %v247 = vpop.f32.mrf.mxu0
    %248 = vdwg.mxu0
    %v249 = vadd.f32 %v50, %v236
    %v250 = vadd.f32 %v51, %v239
    %v251 = vadd.f32 %v52, %v244
    %vm252 = vcmask 130048
    %253 = vst.msk [vmem:[#allocation2] sm:$0xff] %vm252, %v249
    %254 = vst.msk [vmem:[#allocation2 + $0x8] sm:$0xff] %vm252, %v250
    %255 = vst.msk [vmem:[#allocation2 + $0x10] sm:$0xff] %vm252, %v251
    // Predicated region
    $region30: #{_lambda_.30} parent=1 // pred_check
      %p256 = pneg %p42
    $region31: #{_lambda_.30} parent=1 // pred_check_branch
      %258 = sbr.rel (%p256) target = $region33
    $region32: #{_lambda_.30} parent=1 // pred_region
      %v259 = vld [vmem:[#allocation2] sm:$0xff]
      %v260 = vld [vmem:[#allocation2 + $0x8] sm:$0xff]
      %v261 = vld [vmem:[#allocation2 + $0x10] sm:$0xff]
      %v262 = vld [vmem:[#allocation3] sm:$0x1]
      %v264 = vlaneseq
      %v265 = vshrl.u32 %v264, 7
      %v266 = vsub.s32 0, %v265
      %v267 = vrot.slane %v262, %v266
      %v269 = vmul.f32 %v259, %v267
      %v270 = vmul.f32 %v260, %v267
      %v271 = vmul.f32 %v261, %v267
      %v272 = vld [vmem:[#allocation5] sm:$0x1]
      %v274 = vlaneseq
      %v275 = vshrl.u32 %v274, 7
      %v276 = vsub.s32 0, %v275
      %v277 = vrot.slane %v272, %v276
      %v279 = vadd.f32 %v269, %v277
      %v280 = vadd.f32 %v270, %v277
      %v281 = vadd.f32 %v271, %v277
      %v282 = vmax.f32 %v279, 0.0
      %v283 = vmax.f32 %v280, 0.0
      %v284 = vmax.f32 %v281, 0.0
      %285 = vst.msk [vmem:[%s4] sm:$0xff] %vm252, %v282
      %286 = vst.msk [vmem:[%s4 + $0x8] sm:$0xff] %vm252, %v283
      %287 = vst.msk [vmem:[%s4 + $0x10] sm:$0xff] %vm252, %v284
    $region33: #{_lambda_.30} parent=1 // pred_fallthru
      _
    // Predicated region
    $region34: #{_lambda_.30} parent=1 // pred_check
      _
    $region35: #{_lambda_.30} parent=1 // pred_check_branch
      %289 = sbr.rel (0) target = $region37
    $region36: #{_lambda_.30} parent=1 // pred_region
      _
    $region37: #{_lambda_.30} parent=1 // pred_fallthru
      _
    // Predicated region
    $region38: #{_lambda_.30} parent=1 // pred_check
      _
    $region39: #{_lambda_.30} parent=1 // pred_check_branch
      %291 = sbr.rel (0) target = $region41
    $region40: #{_lambda_.30} parent=1 // pred_region
      _
    $region41: #{_lambda_.30} parent=1 // pred_fallthru
      _
    %292 = vsyncpa [#allocation4], 1
    %293 = vsyncpa [#allocation6], 1

// kernel: _lambda_.33
$region0: #{_lambda_.33}
  #allocation0 [shape = 'u32[]', space=smem, size = 0x4, offset = 0x4, fixed_abs, tag = 'smem constant byte address 0x4 - core index']
  #allocation1 [shape = 'u32[144,128]{1,0:T(1,128)}', space=vmem, size = 0x12000, scoped, tag = 'internal scratch']
  #allocation2 [shape = 'f32[24,32]{1,0:T(8,128)}', space=vmem, size = 0x3000, scoped, tag = 'scratch operand']
  %s0 = inlined_call_operand.vmem [shape: bf16[24,64], index: 0, kind: input, shape index: {}]
  %s1 = inlined_call_operand.vmem [shape: bf16[64,32], index: 1, kind: input, shape index: {}]
  %s2 = inlined_call_operand.vmem [shape: f32[1,32], index: 2, kind: input, shape index: {}]
  %s3 = inlined_call_operand.hbm [shape: f32[1,32], index: 3, kind: input, shape index: {}]
  %s4 = inlined_call_operand.vmem [shape: f32[24,32], index: 4, kind: output, shape index: {}]
  %s5 = sld [smem:[#allocation0]]
  $region38: #{_lambda_.33} parent=0
    _
  %s7 = ssub.s32 1, %s5
  %s8 = scalar_select 0, %s7, %s5
  $region1: #{_lambda_.33} parent=0
    #allocation3 [shape = 'u8[512]{0}', space=vmem, size = 0x400, scoped, tag = 'input window, operand 3, single buffered']
    #allocation4 [shape = 's32[1]{0}', space=sflag, size = 0x4, scoped, tag = 'scoped memory for _lambda_.33']
    %9 = vsyncpa [#allocation4], 0
    // Predicated region
    $region2: #{_lambda_.33} parent=1 // pred_check
      _
    $region3: #{_lambda_.33} parent=1 // pred_check_branch
      %11 = sbr.rel (0) target = $region5
    $region4: #{_lambda_.33} parent=1 // pred_region
      _
    $region5: #{_lambda_.33} parent=1 // pred_fallthru
      _
    // Predicated region
    $region6: #{_lambda_.33} parent=1 // pred_check
      _
    $region7: #{_lambda_.33} parent=1 // pred_check_branch
      %13 = sbr.rel (0) target = $region9
    $region8: #{_lambda_.33} parent=1 // pred_region
      _
    $region9: #{_lambda_.33} parent=1 // pred_fallthru
      _
    // Predicated region
    $region10: #{_lambda_.33} parent=1 // pred_check
      _
    $region11: #{_lambda_.33} parent=1 // pred_check_branch
      %15 = sbr.rel (0) target = $region13
    $region12: #{_lambda_.33} parent=1 // pred_region
      _
    $region13: #{_lambda_.33} parent=1 // pred_fallthru
      _
    // Predicated region
    $region14: #{_lambda_.33} parent=1 // pred_check
      _
    $region15: #{_lambda_.33} parent=1 // pred_check_branch
      %17 = sbr.rel (0) target = $region17
    $region16: #{_lambda_.33} parent=1 // pred_region
      %s19 = ssub.s32 16, 16
      %20 = vsyncadd [#allocation4], %s19
      %s22 = sshll.u32 [#allocation3], 4
      %s23 = int_to_ptr.vmem [resolvable:$true] %s22
      %25 = dma.hbm_to_vmem [thread:$0]  %s3, 16, %s23, [#allocation4]
    $region17: #{_lambda_.33} parent=1 // pred_fallthru
      _
    // Predicated region
    $region18: #{_lambda_.33} parent=1 // pred_check
      _
    $region19: #{_lambda_.33} parent=1 // pred_check_branch
      %27 = sbr.rel (0) target = $region21
    $region20: #{_lambda_.33} parent=1 // pred_region
      %28 = dma.done [#allocation4], 16
    $region21: #{_lambda_.33} parent=1 // pred_fallthru
      _
    %p30 = scmp.eq.s32.totalorder 0, 0
    // Predicated region
    $region22: #{_lambda_.33} parent=1 // pred_check
      %p31 = pneg %p30
    $region23: #{_lambda_.33} parent=1 // pred_check_branch
      %33 = sbr.rel (%p31) target = $region25
    $region24: #{_lambda_.33} parent=1 // pred_region
      %vm34 = vcmask 261120
      %35 = vst.msk [vmem:[#allocation2] sm:$0xff] %vm34, 0.0
      %36 = vst.msk [vmem:[#allocation2 + $0x8] sm:$0xff] %vm34, 0.0
      %37 = vst.msk [vmem:[#allocation2 + $0x10] sm:$0xff] %vm34, 0.0
    $region25: #{_lambda_.33} parent=1 // pred_fallthru
      _
    %v38 = vld [vmem:[#allocation2] sm:$0xff]
    %v39 = vld [vmem:[#allocation2 + $0x8] sm:$0xff]
    %v40 = vld [vmem:[#allocation2 + $0x10] sm:$0xff]
    %v41 = vld [vmem:[%s0] sm:$0xf]
    %v42 = vld [vmem:[%s0 + $0x4] sm:$0xf]
    %v43 = vld [vmem:[%s0 + $0x8] sm:$0xf]
    %v44 = vld [vmem:[%s1] sm:$0xf]
    %v45 = vld [vmem:[%s1 + $0x4] sm:$0xf]
    %v46 = vld [vmem:[%s1 + $0x8] sm:$0xf]
    %v47 = vld [vmem:[%s1 + $0xc] sm:$0xf]
    %v48 = vld [vmem:[%s1 + $0x10] sm:$0xf]
    %v49 = vld [vmem:[%s1 + $0x14] sm:$0xf]
    %v50 = vld [vmem:[%s1 + $0x18] sm:$0xf]
    %v51 = vld [vmem:[%s1 + $0x1c] sm:$0xf]
    %v55 = vunpack.c.l.b16 %v41
    %v56 = vunpack.c.l.b16 %v42
    %v57 = vunpack.c.l.b16 %v43
    %v58 = vpack.c.b16 %v56, %v55
    %v59 = vpack.c.b16 %v57, %v57
    %v68 = vunpack.c.l.b16 %v44
    %v69 = vunpack.c.l.b16 %v45
    %v70 = vunpack.c.l.b16 %v46
    %v71 = vunpack.c.l.b16 %v47
    %v72 = vunpack.c.l.b16 %v48
    %v73 = vunpack.c.l.b16 %v49
    %v74 = vunpack.c.l.b16 %v50
    %v75 = vunpack.c.l.b16 %v51
    %v76 = vpack.c.b16 %v69, %v68
    %v77 = vpack.c.b16 %v71, %v70
    %v78 = vpack.c.b16 %v73, %v72
    %v79 = vpack.c.b16 %v75, %v74
    %vm84 = vcmask 523264
    %v86 = vsel %vm84, %v58, 0
    %v89 = vsel %vm84, %v59, 0
    %91 = vmatprep.subr.bf16.mxu0 0
    %92 = vmatpush1.bf16.msra.mxu0 0
    %93 = vmatprep.subr.bf16.mxu0 0
    %94 = vmatpush1.bf16.msra.mxu0 0
    %95 = vmatprep.subr.bf16.mxu0 0
    %96 = vmatpush1.bf16.msra.mxu0 0
    %97 = vmatprep.subr.bf16.mxu0 0
    %98 = vmatpush1.bf16.msra.mxu0 0
    %99 = vmatprep.subr.bf16.mxu0 0
    %100 = vmatpush1.bf16.msra.mxu0 %v79
    %101 = vmatprep.subr.bf16.mxu0 0
    %102 = vmatpush1.bf16.msra.mxu0 %v78
    %103 = vmatprep.subr.bf16.mxu0 0
    %104 = vmatpush1.bf16.msra.mxu0 %v77
    %105 = vmatprep.subr.bf16.mxu0 0
    %106 = vmatpush1.bf16.msra.mxu0 %v76
    %107 = vmatprep.subr.bf16.mxu0 0
    %108 = vmatpush2.bf16.msra.mxu0 0
    %109 = vmatprep.subr.bf16.mxu0 0
    %110 = vmatpush2.bf16.msra.mxu0 0
    %111 = vmatprep.subr.bf16.mxu0 0
    %112 = vmatpush2.bf16.msra.mxu0 0
    %113 = vmatprep.subr.bf16.mxu0 0
    %114 = vmatpush2.bf16.msra.mxu0 0
    %115 = vmatprep.subr.bf16.mxu0 0
    %116 = vmatpush2.bf16.msra.mxu0 0
    %117 = vmatprep.subr.bf16.mxu0 0
    %118 = vmatpush2.bf16.msra.mxu0 0
    %119 = vmatprep.subr.bf16.mxu0 0
    %120 = vmatpush2.bf16.msra.mxu0 0
    %121 = vmatprep.subr.bf16.mxu0 0
    %122 = vmatpush2.bf16.msra.mxu0 0
    %123 = vmatprep.mubr.bf16.mxu0 0
    %124 = vmatmul.mubr.bf16.gmra.mxu0 %v86
    %v125 = vpop.f32.mrf.mxu0
    %v126 = vadd.f32 0.0, %v125
    %v127 = vpop.f32.mrf.mxu0
    %v128 = vpop.f32.mrf.mxu0
    %v129 = vadd.f32 0.0, %v128
    %v130 = vpop.f32.mrf.mxu0
    %131 = vmatprep.mubr.bf16.mxu0 0
    %132 = vmatmul.mubr.bf16.gmra.mxu0 %v89
    %v133 = vpop.f32.mrf.mxu0
    %v134 = vadd.f32 0.0, %v133
    %v135 = vpop.f32.mrf.mxu0
    %v136 = vpop.f32.mrf.mxu0
    %v137 = vpop.f32.mrf.mxu0
    %138 = vdwg.mxu0
    %v139 = vadd.f32 %v38, %v126
    %v140 = vadd.f32 %v39, %v129
    %v141 = vadd.f32 %v40, %v134
    %vm142 = vcmask 261120
    %143 = vst.msk [vmem:[#allocation2] sm:$0xff] %vm142, %v139
    %144 = vst.msk [vmem:[#allocation2 + $0x8] sm:$0xff] %vm142, %v140
    %145 = vst.msk [vmem:[#allocation2 + $0x10] sm:$0xff] %vm142, %v141
    // Predicated region
    $region26: #{_lambda_.33} parent=1 // pred_check
      %p146 = pneg %p30
    $region27: #{_lambda_.33} parent=1 // pred_check_branch
      %148 = sbr.rel (%p146) target = $region29
    $region28: #{_lambda_.33} parent=1 // pred_region
      %v149 = vld [vmem:[#allocation2] sm:$0xff]
      %v150 = vld [vmem:[#allocation2 + $0x8] sm:$0xff]
      %v151 = vld [vmem:[#allocation2 + $0x10] sm:$0xff]
      %v152 = vld [vmem:[%s2] sm:$0x1]
      %v154 = vlaneseq
      %v155 = vshrl.u32 %v154, 7
      %v156 = vsub.s32 0, %v155
      %v157 = vrot.slane %v152, %v156
      %v159 = vmul.f32 %v149, %v157
      %v160 = vmul.f32 %v150, %v157
      %v161 = vmul.f32 %v151, %v157
      %v162 = vld [vmem:[#allocation3] sm:$0x1]
      %v164 = vlaneseq
      %v165 = vshrl.u32 %v164, 7
      %v166 = vsub.s32 0, %v165
      %v167 = vrot.slane %v162, %v166
      %v169 = vadd.f32 %v159, %v167
      %v170 = vadd.f32 %v160, %v167
      %v171 = vadd.f32 %v161, %v167
      %v172 = vmax.f32 %v169, 0.0
      %v173 = vmax.f32 %v170, 0.0
      %v174 = vmax.f32 %v171, 0.0
      %175 = vst.msk [vmem:[%s4] sm:$0xff] %vm142, %v172
      %176 = vst.msk [vmem:[%s4 + $0x8] sm:$0xff] %vm142, %v173
      %177 = vst.msk [vmem:[%s4 + $0x10] sm:$0xff] %vm142, %v174
    $region29: #{_lambda_.33} parent=1 // pred_fallthru
      _
    // Predicated region
    $region30: #{_lambda_.33} parent=1 // pred_check
      _
    $region31: #{_lambda_.33} parent=1 // pred_check_branch
      %179 = sbr.rel (0) target = $region33
    $region32: #{_lambda_.33} parent=1 // pred_region
      _
    $region33: #{_lambda_.33} parent=1 // pred_fallthru
      _
    // Predicated region
    $region34: #{_lambda_.33} parent=1 // pred_check
      _
    $region35: #{_lambda_.33} parent=1 // pred_check_branch
      %181 = sbr.rel (0) target = $region37
    $region36: #{_lambda_.33} parent=1 // pred_region
      _
    $region37: #{_lambda_.33} parent=1 // pred_fallthru
      _
    %182 = vsyncpa [#allocation4], 1

// kernel: _lambda_.32
$region0: #{_lambda_.32}
  #allocation0 [shape = 'u32[]', space=smem, size = 0x4, offset = 0x4, fixed_abs, tag = 'smem constant byte address 0x4 - core index']
  #allocation1 [shape = 'u32[144,128]{1,0:T(1,128)}', space=vmem, size = 0x12000, scoped, tag = 'internal scratch']
  #allocation2 [shape = 'f32[24,128]{1,0:T(8,128)}', space=vmem, size = 0x3000, scoped, tag = 'scratch operand']
  %s0 = inlined_call_operand.vmem [shape: bf16[24,64], index: 0, kind: input, shape index: {}]
  %s1 = inlined_call_operand.vmem [shape: bf16[64,128], index: 1, kind: input, shape index: {}]
  %s2 = inlined_call_operand.vmem [shape: f32[1,128], index: 2, kind: input, shape index: {}]
  %s3 = inlined_call_operand.vmem [shape: f32[1,128], index: 3, kind: input, shape index: {}]
  %s4 = inlined_call_operand.vmem [shape: f32[24,128], index: 4, kind: output, shape index: {}]
  %s5 = sld [smem:[#allocation0]]
  $region34: #{_lambda_.32} parent=0
    _
  %s7 = ssub.s32 1, %s5
  %s8 = scalar_select 0, %s7, %s5
  // Predicated region
  $region2: #{_lambda_.32} parent=0 // pred_check
    _
  $region3: #{_lambda_.32} parent=0 // pred_check_branch
    %10 = sbr.rel (0) target = $region5
  $region4: #{_lambda_.32} parent=0 // pred_region
    _
  $region5: #{_lambda_.32} parent=0 // pred_fallthru
    _
  // Predicated region
  $region6: #{_lambda_.32} parent=0 // pred_check
    _
  $region7: #{_lambda_.32} parent=0 // pred_check_branch
    %12 = sbr.rel (0) target = $region9
  $region8: #{_lambda_.32} parent=0 // pred_region
    _
  $region9: #{_lambda_.32} parent=0 // pred_fallthru
    _
  // Predicated region
  $region10: #{_lambda_.32} parent=0 // pred_check
    _
  $region11: #{_lambda_.32} parent=0 // pred_check_branch
    %14 = sbr.rel (0) target = $region13
  $region12: #{_lambda_.32} parent=0 // pred_region
    _
  $region13: #{_lambda_.32} parent=0 // pred_fallthru
    _
  // Predicated region
  $region14: #{_lambda_.32} parent=0 // pred_check
    _
  $region15: #{_lambda_.32} parent=0 // pred_check_branch
    %16 = sbr.rel (0) target = $region17
  $region16: #{_lambda_.32} parent=0 // pred_region
    _
  $region17: #{_lambda_.32} parent=0 // pred_fallthru
    _
  %p18 = scmp.eq.s32.totalorder 0, 0
  // Predicated region
  $region18: #{_lambda_.32} parent=0 // pred_check
    %p19 = pneg %p18
  $region19: #{_lambda_.32} parent=0 // pred_check_branch
    %21 = sbr.rel (%p19) target = $region21
  $region20: #{_lambda_.32} parent=0 // pred_region
    %22 = vst [vmem:[#allocation2] sm:$0xff] 0.0
    %23 = vst [vmem:[#allocation2 + $0x8] sm:$0xff] 0.0
    %24 = vst [vmem:[#allocation2 + $0x10] sm:$0xff] 0.0
  $region21: #{_lambda_.32} parent=0 // pred_fallthru
    _
  %v25 = vld [vmem:[#allocation2] sm:$0xff]
  %v26 = vld [vmem:[#allocation2 + $0x8] sm:$0xff]
  %v27 = vld [vmem:[#allocation2 + $0x10] sm:$0xff]
  %v28 = vld [vmem:[%s0] sm:$0xf]
  %v29 = vld [vmem:[%s0 + $0x4] sm:$0xf]
  %v30 = vld [vmem:[%s0 + $0x8] sm:$0xf]
  %v31 = vld [vmem:[%s1] sm:$0xf]
  %v32 = vld [vmem:[%s1 + $0x4] sm:$0xf]
  %v33 = vld [vmem:[%s1 + $0x8] sm:$0xf]
  %v34 = vld [vmem:[%s1 + $0xc] sm:$0xf]
  %v35 = vld [vmem:[%s1 + $0x10] sm:$0xf]
  %v36 = vld [vmem:[%s1 + $0x14] sm:$0xf]
  %v37 = vld [vmem:[%s1 + $0x18] sm:$0xf]
  %v38 = vld [vmem:[%s1 + $0x1c] sm:$0xf]
  %v42 = vunpack.c.l.b16 %v28
  %v43 = vunpack.c.l.b16 %v29
  %v44 = vunpack.c.l.b16 %v30
  %v45 = vpack.c.b16 %v43, %v42
  %v46 = vpack.c.b16 %v44, %v44
  %v55 = vunpack.c.l.b16 %v31
  %v56 = vunpack.c.l.b16 %v32
  %v57 = vunpack.c.l.b16 %v33
  %v58 = vunpack.c.l.b16 %v34
  %v59 = vunpack.c.l.b16 %v35
  %v60 = vunpack.c.l.b16 %v36
  %v61 = vunpack.c.l.b16 %v37
  %v62 = vunpack.c.l.b16 %v38
  %v63 = vpack.c.b16 %v56, %v55
  %v64 = vpack.c.b16 %v58, %v57
  %v65 = vpack.c.b16 %v60, %v59
  %v66 = vpack.c.b16 %v62, %v61
  %vm71 = vcmask 523264
  %v73 = vsel %vm71, %v45, 0
  %v76 = vsel %vm71, %v46, 0
  %78 = vmatprep.subr.bf16.mxu0 0
  %79 = vmatpush1.bf16.msra.mxu0 0
  %80 = vmatprep.subr.bf16.mxu0 0
  %81 = vmatpush1.bf16.msra.mxu0 0
  %82 = vmatprep.subr.bf16.mxu0 0
  %83 = vmatpush1.bf16.msra.mxu0 0
  %84 = vmatprep.subr.bf16.mxu0 0
  %85 = vmatpush1.bf16.msra.mxu0 0
  %86 = vmatprep.subr.bf16.mxu0 0
  %87 = vmatpush1.bf16.msra.mxu0 %v66
  %88 = vmatprep.subr.bf16.mxu0 0
  %89 = vmatpush1.bf16.msra.mxu0 %v65
  %90 = vmatprep.subr.bf16.mxu0 0
  %91 = vmatpush1.bf16.msra.mxu0 %v64
  %92 = vmatprep.subr.bf16.mxu0 0
  %93 = vmatpush1.bf16.msra.mxu0 %v63
  %94 = vmatprep.subr.bf16.mxu0 0
  %95 = vmatpush2.bf16.msra.mxu0 0
  %96 = vmatprep.subr.bf16.mxu0 0
  %97 = vmatpush2.bf16.msra.mxu0 0
  %98 = vmatprep.subr.bf16.mxu0 0
  %99 = vmatpush2.bf16.msra.mxu0 0
  %100 = vmatprep.subr.bf16.mxu0 0
  %101 = vmatpush2.bf16.msra.mxu0 0
  %102 = vmatprep.subr.bf16.mxu0 0
  %103 = vmatpush2.bf16.msra.mxu0 0
  %104 = vmatprep.subr.bf16.mxu0 0
  %105 = vmatpush2.bf16.msra.mxu0 0
  %106 = vmatprep.subr.bf16.mxu0 0
  %107 = vmatpush2.bf16.msra.mxu0 0
  %108 = vmatprep.subr.bf16.mxu0 0
  %109 = vmatpush2.bf16.msra.mxu0 0
  %110 = vmatprep.mubr.bf16.mxu0 0
  %111 = vmatmul.mubr.bf16.gmra.mxu0 %v73
  %v112 = vpop.f32.mrf.mxu0
  %v113 = vadd.f32 0.0, %v112
  %v114 = vpop.f32.mrf.mxu0
  %v115 = vpop.f32.mrf.mxu0
  %v116 = vadd.f32 0.0, %v115
  %v117 = vpop.f32.mrf.mxu0
  %118 = vmatprep.mubr.bf16.mxu0 0
  %119 = vmatmul.mubr.bf16.gmra.mxu0 %v76
  %v120 = vpop.f32.mrf.mxu0
  %v121 = vadd.f32 0.0, %v120
  %v122 = vpop.f32.mrf.mxu0
  %v123 = vpop.f32.mrf.mxu0
  %v124 = vpop.f32.mrf.mxu0
  %125 = vdwg.mxu0
  %v126 = vadd.f32 %v25, %v113
  %v127 = vadd.f32 %v26, %v116
  %v128 = vadd.f32 %v27, %v121
  %129 = vst [vmem:[#allocation2] sm:$0xff] %v126
  %130 = vst [vmem:[#allocation2 + $0x8] sm:$0xff] %v127
  %131 = vst [vmem:[#allocation2 + $0x10] sm:$0xff] %v128
  // Predicated region
  $region22: #{_lambda_.32} parent=0 // pred_check
    %p132 = pneg %p18
  $region23: #{_lambda_.32} parent=0 // pred_check_branch
    %134 = sbr.rel (%p132) target = $region25
  $region24: #{_lambda_.32} parent=0 // pred_region
    %v135 = vld [vmem:[#allocation2] sm:$0xff]
    %v136 = vld [vmem:[#allocation2 + $0x8] sm:$0xff]
    %v137 = vld [vmem:[#allocation2 + $0x10] sm:$0xff]
    %v138 = vld [vmem:[%s2] sm:$0x1]
    %v140 = vlaneseq
    %v141 = vshrl.u32 %v140, 7
    %v142 = vsub.s32 0, %v141
    %v143 = vrot.slane %v138, %v142
    %v145 = vmul.f32 %v135, %v143
    %v146 = vmul.f32 %v136, %v143
    %v147 = vmul.f32 %v137, %v143
    %v148 = vld [vmem:[%s3] sm:$0x1]
    %v150 = vlaneseq
    %v151 = vshrl.u32 %v150, 7
    %v152 = vsub.s32 0, %v151
    %v153 = vrot.slane %v148, %v152
    %v155 = vadd.f32 %v145, %v153
    %v156 = vadd.f32 %v146, %v153
    %v157 = vadd.f32 %v147, %v153
    %158 = vst [vmem:[%s4] sm:$0xff] %v155
    %159 = vst [vmem:[%s4 + $0x8] sm:$0xff] %v156
    %160 = vst [vmem:[%s4 + $0x10] sm:$0xff] %v157
  $region25: #{_lambda_.32} parent=0 // pred_fallthru
    _
  // Predicated region
  $region26: #{_lambda_.32} parent=0 // pred_check
    _
  $region27: #{_lambda_.32} parent=0 // pred_check_branch
    %162 = sbr.rel (0) target = $region29
  $region28: #{_lambda_.32} parent=0 // pred_region
    _
  $region29: #{_lambda_.32} parent=0 // pred_fallthru
    _
  // Predicated region
  $region30: #{_lambda_.32} parent=0 // pred_check
    _
  $region31: #{_lambda_.32} parent=0 // pred_check_branch
    %164 = sbr.rel (0) target = $region33
  $region32: #{_lambda_.32} parent=0 // pred_region
    _
  $region33: #{_lambda_.32} parent=0 // pred_fallthru
    _

// kernel: _lambda_.35
$region0: #{_lambda_.35}
  #allocation0 [shape = 'u32[]', space=smem, size = 0x4, offset = 0x4, fixed_abs, tag = 'smem constant byte address 0x4 - core index']
  #allocation1 [shape = 'u32[144,128]{1,0:T(1,128)}', space=vmem, size = 0x12000, scoped, tag = 'internal scratch']
  #allocation2 [shape = 'f32[24,128]{1,0:T(8,128)}', space=vmem, size = 0x3000, scoped, tag = 'scratch operand']
  %s0 = inlined_call_operand.vmem [shape: bf16[24,32], index: 0, kind: input, shape index: {}]
  %s1 = inlined_call_operand.vmem [shape: bf16[32,128], index: 1, kind: input, shape index: {}]
  %s2 = inlined_call_operand.vmem [shape: f32[1,128], index: 2, kind: input, shape index: {}]
  %s3 = inlined_call_operand.vmem [shape: f32[1,128], index: 3, kind: input, shape index: {}]
  %s4 = inlined_call_operand.vmem [shape: f32[24,128], index: 4, kind: input, shape index: {}]
  %s5 = inlined_call_operand.vmem [shape: f32[24,128], index: 5, kind: output, shape index: {}]
  %s6 = sld [smem:[#allocation0]]
  $region38: #{_lambda_.35} parent=0
    _
  %s8 = ssub.s32 1, %s6
  %s9 = scalar_select 0, %s8, %s6
  // Predicated region
  $region2: #{_lambda_.35} parent=0 // pred_check
    _
  $region3: #{_lambda_.35} parent=0 // pred_check_branch
    %11 = sbr.rel (0) target = $region5
  $region4: #{_lambda_.35} parent=0 // pred_region
    _
  $region5: #{_lambda_.35} parent=0 // pred_fallthru
    _
  // Predicated region
  $region6: #{_lambda_.35} parent=0 // pred_check
    _
  $region7: #{_lambda_.35} parent=0 // pred_check_branch
    %13 = sbr.rel (0) target = $region9
  $region8: #{_lambda_.35} parent=0 // pred_region
    _
  $region9: #{_lambda_.35} parent=0 // pred_fallthru
    _
  // Predicated region
  $region10: #{_lambda_.35} parent=0 // pred_check
    _
  $region11: #{_lambda_.35} parent=0 // pred_check_branch
    %15 = sbr.rel (0) target = $region13
  $region12: #{_lambda_.35} parent=0 // pred_region
    _
  $region13: #{_lambda_.35} parent=0 // pred_fallthru
    _
  // Predicated region
  $region14: #{_lambda_.35} parent=0 // pred_check
    _
  $region15: #{_lambda_.35} parent=0 // pred_check_branch
    %17 = sbr.rel (0) target = $region17
  $region16: #{_lambda_.35} parent=0 // pred_region
    _
  $region17: #{_lambda_.35} parent=0 // pred_fallthru
    _
  // Predicated region
  $region18: #{_lambda_.35} parent=0 // pred_check
    _
  $region19: #{_lambda_.35} parent=0 // pred_check_branch
    %19 = sbr.rel (0) target = $region21
  $region20: #{_lambda_.35} parent=0 // pred_region
    _
  $region21: #{_lambda_.35} parent=0 // pred_fallthru
    _
  %p21 = scmp.eq.s32.totalorder 0, 0
  // Predicated region
  $region22: #{_lambda_.35} parent=0 // pred_check
    %p22 = pneg %p21
  $region23: #{_lambda_.35} parent=0 // pred_check_branch
    %24 = sbr.rel (%p22) target = $region25
  $region24: #{_lambda_.35} parent=0 // pred_region
    %25 = vst [vmem:[#allocation2] sm:$0xff] 0.0
    %26 = vst [vmem:[#allocation2 + $0x8] sm:$0xff] 0.0
    %27 = vst [vmem:[#allocation2 + $0x10] sm:$0xff] 0.0
  $region25: #{_lambda_.35} parent=0 // pred_fallthru
    _
  %v28 = vld [vmem:[#allocation2] sm:$0xff]
  %v29 = vld [vmem:[#allocation2 + $0x8] sm:$0xff]
  %v30 = vld [vmem:[#allocation2 + $0x10] sm:$0xff]
  %v31 = vld [vmem:[%s0] sm:$0xf]
  %v32 = vld [vmem:[%s0 + $0x4] sm:$0xf]
  %v33 = vld [vmem:[%s0 + $0x8] sm:$0xf]
  %v34 = vld [vmem:[%s1] sm:$0xf]
  %v35 = vld [vmem:[%s1 + $0x4] sm:$0xf]
  %v36 = vld [vmem:[%s1 + $0x8] sm:$0xf]
  %v37 = vld [vmem:[%s1 + $0xc] sm:$0xf]
  %v41 = vunpack.c.l.b16 %v31
  %v42 = vunpack.c.l.b16 %v32
  %v43 = vunpack.c.l.b16 %v33
  %v44 = vpack.c.b16 %v42, %v41
  %v45 = vpack.c.b16 %v43, %v43
  %v50 = vunpack.c.l.b16 %v34
  %v51 = vunpack.c.l.b16 %v35
  %v52 = vunpack.c.l.b16 %v36
  %v53 = vunpack.c.l.b16 %v37
  %v54 = vpack.c.b16 %v51, %v50
  %v55 = vpack.c.b16 %v53, %v52
  %vm58 = vcmask 261120
  %v60 = vsel %vm58, %v44, 0
  %v63 = vsel %vm58, %v45, 0
  %65 = vmatprep.subr.bf16.mxu0 0
  %66 = vmatpush1.bf16.msra.mxu0 0
  %67 = vmatprep.subr.bf16.mxu0 0
  %68 = vmatpush1.bf16.msra.mxu0 0
  %69 = vmatprep.subr.bf16.mxu0 0
  %70 = vmatpush1.bf16.msra.mxu0 0
  %71 = vmatprep.subr.bf16.mxu0 0
  %72 = vmatpush1.bf16.msra.mxu0 0
  %73 = vmatprep.subr.bf16.mxu0 0
  %74 = vmatpush1.bf16.msra.mxu0 0
  %75 = vmatprep.subr.bf16.mxu0 0
  %76 = vmatpush1.bf16.msra.mxu0 0
  %77 = vmatprep.subr.bf16.mxu0 0
  %78 = vmatpush1.bf16.msra.mxu0 %v55
  %79 = vmatprep.subr.bf16.mxu0 0
  %80 = vmatpush1.bf16.msra.mxu0 %v54
  %81 = vmatprep.subr.bf16.mxu0 0
  %82 = vmatpush2.bf16.msra.mxu0 0
  %83 = vmatprep.subr.bf16.mxu0 0
  %84 = vmatpush2.bf16.msra.mxu0 0
  %85 = vmatprep.subr.bf16.mxu0 0
  %86 = vmatpush2.bf16.msra.mxu0 0
  %87 = vmatprep.subr.bf16.mxu0 0
  %88 = vmatpush2.bf16.msra.mxu0 0
  %89 = vmatprep.subr.bf16.mxu0 0
  %90 = vmatpush2.bf16.msra.mxu0 0
  %91 = vmatprep.subr.bf16.mxu0 0
  %92 = vmatpush2.bf16.msra.mxu0 0
  %93 = vmatprep.subr.bf16.mxu0 0
  %94 = vmatpush2.bf16.msra.mxu0 0
  %95 = vmatprep.subr.bf16.mxu0 0
  %96 = vmatpush2.bf16.msra.mxu0 0
  %97 = vmatprep.mubr.bf16.mxu0 0
  %98 = vmatmul.mubr.bf16.gmra.mxu0 %v60
  %v99 = vpop.f32.mrf.mxu0
  %v100 = vadd.f32 0.0, %v99
  %v101 = vpop.f32.mrf.mxu0
  %v102 = vpop.f32.mrf.mxu0
  %v103 = vadd.f32 0.0, %v102
  %v104 = vpop.f32.mrf.mxu0
  %105 = vmatprep.mubr.bf16.mxu0 0
  %106 = vmatmul.mubr.bf16.gmra.mxu0 %v63
  %v107 = vpop.f32.mrf.mxu0
  %v108 = vadd.f32 0.0, %v107
  %v109 = vpop.f32.mrf.mxu0
  %v110 = vpop.f32.mrf.mxu0
  %v111 = vpop.f32.mrf.mxu0
  %112 = vdwg.mxu0
  %v113 = vadd.f32 %v28, %v100
  %v114 = vadd.f32 %v29, %v103
  %v115 = vadd.f32 %v30, %v108
  %116 = vst [vmem:[#allocation2] sm:$0xff] %v113
  %117 = vst [vmem:[#allocation2 + $0x8] sm:$0xff] %v114
  %118 = vst [vmem:[#allocation2 + $0x10] sm:$0xff] %v115
  // Predicated region
  $region26: #{_lambda_.35} parent=0 // pred_check
    %p119 = pneg %p21
  $region27: #{_lambda_.35} parent=0 // pred_check_branch
    %121 = sbr.rel (%p119) target = $region29
  $region28: #{_lambda_.35} parent=0 // pred_region
    %v122 = vld [vmem:[#allocation2] sm:$0xff]
    %v123 = vld [vmem:[#allocation2 + $0x8] sm:$0xff]
    %v124 = vld [vmem:[#allocation2 + $0x10] sm:$0xff]
    %v125 = vld [vmem:[%s2] sm:$0x1]
    %v127 = vlaneseq
    %v128 = vshrl.u32 %v127, 7
    %v129 = vsub.s32 0, %v128
    %v130 = vrot.slane %v125, %v129
    %v132 = vmul.f32 %v122, %v130
    %v133 = vmul.f32 %v123, %v130
    %v134 = vmul.f32 %v124, %v130
    %v135 = vld [vmem:[%s3] sm:$0x1]
    %v137 = vlaneseq
    %v138 = vshrl.u32 %v137, 7
    %v139 = vsub.s32 0, %v138
    %v140 = vrot.slane %v135, %v139
    %v142 = vadd.f32 %v132, %v140
    %v143 = vadd.f32 %v133, %v140
    %v144 = vadd.f32 %v134, %v140
    %v145 = vld [vmem:[%s4] sm:$0xff]
    %v146 = vld [vmem:[%s4 + $0x8] sm:$0xff]
    %v147 = vld [vmem:[%s4 + $0x10] sm:$0xff]
    %v148 = vadd.f32 %v142, %v145
    %v149 = vadd.f32 %v143, %v146
    %v150 = vadd.f32 %v144, %v147
    %v151 = vmax.f32 %v148, 0.0
    %v152 = vmax.f32 %v149, 0.0
    %v153 = vmax.f32 %v150, 0.0
    %154 = vst [vmem:[%s5] sm:$0xff] %v151
    %155 = vst [vmem:[%s5 + $0x8] sm:$0xff] %v152
    %156 = vst [vmem:[%s5 + $0x10] sm:$0xff] %v153
  $region29: #{_lambda_.35} parent=0 // pred_fallthru
    _
  // Predicated region
  $region30: #{_lambda_.35} parent=0 // pred_check
    _
  $region31: #{_lambda_.35} parent=0 // pred_check_branch
    %158 = sbr.rel (0) target = $region33
  $region32: #{_lambda_.35} parent=0 // pred_region
    _
  $region33: #{_lambda_.35} parent=0 // pred_fallthru
    _
  // Predicated region
  $region34: #{_lambda_.35} parent=0 // pred_check
    _
  $region35: #{_lambda_.35} parent=0 // pred_check_branch
    %160 = sbr.rel (0) target = $region37
  $region36: #{_lambda_.35} parent=0 // pred_region
    _
  $region37: #{_lambda_.35} parent=0 // pred_fallthru
    _

// kernel: _lambda_.34
$region0: #{_lambda_.34}
  #allocation0 [shape = 'u32[]', space=smem, size = 0x4, offset = 0x4, fixed_abs, tag = 'smem constant byte address 0x4 - core index']
  #allocation1 [shape = 'u32[144,128]{1,0:T(1,128)}', space=vmem, size = 0x12000, scoped, tag = 'internal scratch']
  #allocation2 [shape = 'f32[24,32]{1,0:T(8,128)}', space=vmem, size = 0x3000, scoped, tag = 'scratch operand']
  %s0 = inlined_call_operand.vmem [shape: bf16[24,384], index: 0, kind: input, shape index: {}]
  %s1 = inlined_call_operand.vmem [shape: bf16[384,32], index: 1, kind: input, shape index: {}]
  %s2 = inlined_call_operand.vmem [shape: f32[1,32], index: 2, kind: input, shape index: {}]
  %s3 = inlined_call_operand.vmem [shape: f32[1,32], index: 3, kind: input, shape index: {}]
  %s4 = inlined_call_operand.vmem [shape: f32[24,32], index: 4, kind: output, shape index: {}]
  %s5 = sld [smem:[#allocation0]]
  $region34: #{_lambda_.34} parent=0
    _
  %s7 = ssub.s32 1, %s5
  %s8 = scalar_select 0, %s7, %s5
  // Predicated region
  $region2: #{_lambda_.34} parent=0 // pred_check
    _
  $region3: #{_lambda_.34} parent=0 // pred_check_branch
    %10 = sbr.rel (0) target = $region5
  $region4: #{_lambda_.34} parent=0 // pred_region
    _
  $region5: #{_lambda_.34} parent=0 // pred_fallthru
    _
  // Predicated region
  $region6: #{_lambda_.34} parent=0 // pred_check
    _
  $region7: #{_lambda_.34} parent=0 // pred_check_branch
    %12 = sbr.rel (0) target = $region9
  $region8: #{_lambda_.34} parent=0 // pred_region
    _
  $region9: #{_lambda_.34} parent=0 // pred_fallthru
    _
  // Predicated region
  $region10: #{_lambda_.34} parent=0 // pred_check
    _
  $region11: #{_lambda_.34} parent=0 // pred_check_branch
    %14 = sbr.rel (0) target = $region13
  $region12: #{_lambda_.34} parent=0 // pred_region
    _
  $region13: #{_lambda_.34} parent=0 // pred_fallthru
    _
  // Predicated region
  $region14: #{_lambda_.34} parent=0 // pred_check
    _
  $region15: #{_lambda_.34} parent=0 // pred_check_branch
    %16 = sbr.rel (0) target = $region17
  $region16: #{_lambda_.34} parent=0 // pred_region
    _
  $region17: #{_lambda_.34} parent=0 // pred_fallthru
    _
  %p18 = scmp.eq.s32.totalorder 0, 0
  // Predicated region
  $region18: #{_lambda_.34} parent=0 // pred_check
    %p19 = pneg %p18
  $region19: #{_lambda_.34} parent=0 // pred_check_branch
    %21 = sbr.rel (%p19) target = $region21
  $region20: #{_lambda_.34} parent=0 // pred_region
    %vm22 = vcmask 261120
    %23 = vst.msk [vmem:[#allocation2] sm:$0xff] %vm22, 0.0
    %24 = vst.msk [vmem:[#allocation2 + $0x8] sm:$0xff] %vm22, 0.0
    %25 = vst.msk [vmem:[#allocation2 + $0x10] sm:$0xff] %vm22, 0.0
  $region21: #{_lambda_.34} parent=0 // pred_fallthru
    _
  %v26 = vld [vmem:[#allocation2] sm:$0xff]
  %v27 = vld [vmem:[#allocation2 + $0x8] sm:$0xff]
  %v28 = vld [vmem:[#allocation2 + $0x10] sm:$0xff]
  %v29 = vld [vmem:[%s0] sm:$0xff]
  %v30 = vld [vmem:[%s0 + $0x8] sm:$0xf]
  %v31 = vld [vmem:[%s0 + $0xc] sm:$0xff]
  %v32 = vld [vmem:[%s0 + $0x14] sm:$0xf]
  %v33 = vld [vmem:[%s0 + $0x18] sm:$0xff]
  %v34 = vld [vmem:[%s0 + $0x20] sm:$0xf]
  %v35 = vld [vmem:[%s1] sm:$0xf]
  %v36 = vld [vmem:[%s1 + $0x4] sm:$0xf]
  %v37 = vld [vmem:[%s1 + $0x8] sm:$0xf]
  %v38 = vld [vmem:[%s1 + $0xc] sm:$0xf]
  %v39 = vld [vmem:[%s1 + $0x10] sm:$0xf]
  %v40 = vld [vmem:[%s1 + $0x14] sm:$0xf]
  %v41 = vld [vmem:[%s1 + $0x18] sm:$0xf]
  %v42 = vld [vmem:[%s1 + $0x1c] sm:$0xf]
  %v43 = vld [vmem:[%s1 + $0x20] sm:$0xf]
  %v44 = vld [vmem:[%s1 + $0x24] sm:$0xf]
  %v45 = vld [vmem:[%s1 + $0x28] sm:$0xf]
  %v46 = vld [vmem:[%s1 + $0x2c] sm:$0xf]
  %v47 = vld [vmem:[%s1 + $0x30] sm:$0xf]
  %v48 = vld [vmem:[%s1 + $0x34] sm:$0xf]
  %v49 = vld [vmem:[%s1 + $0x38] sm:$0xf]
  %v50 = vld [vmem:[%s1 + $0x3c] sm:$0xf]
  %v51 = vld [vmem:[%s1 + $0x40] sm:$0xf]
  %v52 = vld [vmem:[%s1 + $0x44] sm:$0xf]
  %v53 = vld [vmem:[%s1 + $0x48] sm:$0xf]
  %v54 = vld [vmem:[%s1 + $0x4c] sm:$0xf]
  %v55 = vld [vmem:[%s1 + $0x50] sm:$0xf]
  %v56 = vld [vmem:[%s1 + $0x54] sm:$0xf]
  %v57 = vld [vmem:[%s1 + $0x58] sm:$0xf]
  %v58 = vld [vmem:[%s1 + $0x5c] sm:$0xf]
  %v59 = vld [vmem:[%s1 + $0x60] sm:$0xf]
  %v60 = vld [vmem:[%s1 + $0x64] sm:$0xf]
  %v61 = vld [vmem:[%s1 + $0x68] sm:$0xf]
  %v62 = vld [vmem:[%s1 + $0x6c] sm:$0xf]
  %v63 = vld [vmem:[%s1 + $0x70] sm:$0xf]
  %v64 = vld [vmem:[%s1 + $0x74] sm:$0xf]
  %v65 = vld [vmem:[%s1 + $0x78] sm:$0xf]
  %v66 = vld [vmem:[%s1 + $0x7c] sm:$0xf]
  %v67 = vld [vmem:[%s1 + $0x80] sm:$0xf]
  %v68 = vld [vmem:[%s1 + $0x84] sm:$0xf]
  %v69 = vld [vmem:[%s1 + $0x88] sm:$0xf]
  %v70 = vld [vmem:[%s1 + $0x8c] sm:$0xf]
  %v71 = vld [vmem:[%s1 + $0x90] sm:$0xf]
  %v72 = vld [vmem:[%s1 + $0x94] sm:$0xf]
  %v73 = vld [vmem:[%s1 + $0x98] sm:$0xf]
  %v74 = vld [vmem:[%s1 + $0x9c] sm:$0xf]
  %v75 = vld [vmem:[%s1 + $0xa0] sm:$0xf]
  %v76 = vld [vmem:[%s1 + $0xa4] sm:$0xf]
  %v77 = vld [vmem:[%s1 + $0xa8] sm:$0xf]
  %v78 = vld [vmem:[%s1 + $0xac] sm:$0xf]
  %v79 = vld [vmem:[%s1 + $0xb0] sm:$0xf]
  %v80 = vld [vmem:[%s1 + $0xb4] sm:$0xf]
  %v81 = vld [vmem:[%s1 + $0xb8] sm:$0xf]
  %v82 = vld [vmem:[%s1 + $0xbc] sm:$0xf]
  %v89 = vunpack.c.l.b16 %v29
  %v90 = vunpack.c.h.b16 %v29
  %v91 = vunpack.c.l.b16 %v30
  %v92 = vunpack.c.l.b16 %v31
  %v93 = vunpack.c.h.b16 %v31
  %v94 = vunpack.c.l.b16 %v32
  %v95 = vunpack.c.l.b16 %v33
  %v96 = vunpack.c.h.b16 %v33
  %v97 = vunpack.c.l.b16 %v34
  %v98 = vpack.c.b16 %v92, %v89
  %v99 = vpack.c.b16 %v93, %v90
  %v100 = vpack.c.b16 %v94, %v91
  %v101 = vpack.c.b16 %v95, %v95
  %v102 = vpack.c.b16 %v96, %v96
  %v103 = vpack.c.b16 %v97, %v97
  %v158 = vunpack.c.l.b16 %v35
  %v159 = vunpack.c.l.b16 %v36
  %v160 = vunpack.c.l.b16 %v37
  %v161 = vunpack.c.l.b16 %v38
  %v162 = vunpack.c.l.b16 %v39
  %v163 = vunpack.c.l.b16 %v40
  %v164 = vunpack.c.l.b16 %v41
  %v165 = vunpack.c.l.b16 %v42
  %v166 = vunpack.c.l.b16 %v43
  %v167 = vunpack.c.l.b16 %v44
  %v168 = vunpack.c.l.b16 %v45
  %v169 = vunpack.c.l.b16 %v46
  %v170 = vunpack.c.l.b16 %v47
  %v171 = vunpack.c.l.b16 %v48
  %v172 = vunpack.c.l.b16 %v49
  %v173 = vunpack.c.l.b16 %v50
  %v174 = vunpack.c.l.b16 %v51
  %v175 = vunpack.c.l.b16 %v52
  %v176 = vunpack.c.l.b16 %v53
  %v177 = vunpack.c.l.b16 %v54
  %v178 = vunpack.c.l.b16 %v55
  %v179 = vunpack.c.l.b16 %v56
  %v180 = vunpack.c.l.b16 %v57
  %v181 = vunpack.c.l.b16 %v58
  %v182 = vunpack.c.l.b16 %v59
  %v183 = vunpack.c.l.b16 %v60
  %v184 = vunpack.c.l.b16 %v61
  %v185 = vunpack.c.l.b16 %v62
  %v186 = vunpack.c.l.b16 %v63
  %v187 = vunpack.c.l.b16 %v64
  %v188 = vunpack.c.l.b16 %v65
  %v189 = vunpack.c.l.b16 %v66
  %v190 = vunpack.c.l.b16 %v67
  %v191 = vunpack.c.l.b16 %v68
  %v192 = vunpack.c.l.b16 %v69
  %v193 = vunpack.c.l.b16 %v70
  %v194 = vunpack.c.l.b16 %v71
  %v195 = vunpack.c.l.b16 %v72
  %v196 = vunpack.c.l.b16 %v73
  %v197 = vunpack.c.l.b16 %v74
  %v198 = vunpack.c.l.b16 %v75
  %v199 = vunpack.c.l.b16 %v76
  %v200 = vunpack.c.l.b16 %v77
  %v201 = vunpack.c.l.b16 %v78
  %v202 = vunpack.c.l.b16 %v79
  %v203 = vunpack.c.l.b16 %v80
  %v204 = vunpack.c.l.b16 %v81
  %v205 = vunpack.c.l.b16 %v82
  %v206 = vpack.c.b16 %v159, %v158
  %v207 = vpack.c.b16 %v161, %v160
  %v208 = vpack.c.b16 %v163, %v162
  %v209 = vpack.c.b16 %v165, %v164
  %v210 = vpack.c.b16 %v167, %v166
  %v211 = vpack.c.b16 %v169, %v168
  %v212 = vpack.c.b16 %v171, %v170
  %v213 = vpack.c.b16 %v173, %v172
  %v214 = vpack.c.b16 %v175, %v174
  %v215 = vpack.c.b16 %v177, %v176
  %v216 = vpack.c.b16 %v179, %v178
  %v217 = vpack.c.b16 %v181, %v180
  %v218 = vpack.c.b16 %v183, %v182
  %v219 = vpack.c.b16 %v185, %v184
  %v220 = vpack.c.b16 %v187, %v186
  %v221 = vpack.c.b16 %v189, %v188
  %v222 = vpack.c.b16 %v191, %v190
  %v223 = vpack.c.b16 %v193, %v192
  %v224 = vpack.c.b16 %v195, %v194
  %v225 = vpack.c.b16 %v197, %v196
  %v226 = vpack.c.b16 %v199, %v198
  %v227 = vpack.c.b16 %v201, %v200
  %v228 = vpack.c.b16 %v203, %v202
  %v229 = vpack.c.b16 %v205, %v204
  %254 = vmatprep.subr.bf16.mxu0 0
  %255 = vmatpush1.bf16.msra.mxu0 %v213
  %256 = vmatprep.subr.bf16.mxu0 0
  %257 = vmatpush1.bf16.msra.mxu0 %v212
  %258 = vmatprep.subr.bf16.mxu0 0
  %259 = vmatpush1.bf16.msra.mxu0 %v211
  %260 = vmatprep.subr.bf16.mxu0 0
  %261 = vmatpush1.bf16.msra.mxu0 %v210
  %262 = vmatprep.subr.bf16.mxu0 0
  %263 = vmatpush1.bf16.msra.mxu0 %v209
  %264 = vmatprep.subr.bf16.mxu0 0
  %265 = vmatpush1.bf16.msra.mxu0 %v208
  %266 = vmatprep.subr.bf16.mxu0 0
  %267 = vmatpush1.bf16.msra.mxu0 %v207
  %268 = vmatprep.subr.bf16.mxu0 0
  %269 = vmatpush1.bf16.msra.mxu0 %v206
  %270 = vmatprep.subr.bf16.mxu0 0
  %271 = vmatpush2.bf16.msra.mxu0 %v221
  %272 = vmatprep.subr.bf16.mxu0 0
  %273 = vmatpush2.bf16.msra.mxu0 %v220
  %274 = vmatprep.subr.bf16.mxu0 0
  %275 = vmatpush2.bf16.msra.mxu0 %v219
  %276 = vmatprep.subr.bf16.mxu0 0
  %277 = vmatpush2.bf16.msra.mxu0 %v218
  %278 = vmatprep.subr.bf16.mxu0 0
  %279 = vmatpush2.bf16.msra.mxu0 %v217
  %280 = vmatprep.subr.bf16.mxu0 0
  %281 = vmatpush2.bf16.msra.mxu0 %v216
  %282 = vmatprep.subr.bf16.mxu0 0
  %283 = vmatpush2.bf16.msra.mxu0 %v215
  %284 = vmatprep.subr.bf16.mxu0 0
  %285 = vmatpush2.bf16.msra.mxu0 %v214
  %286 = vmatprep.mubr.bf16.mxu0 %v99
  %287 = vmatmul.mubr.bf16.gmra.mxu0 %v98
  %v288 = vpop.f32.mrf.mxu0
  %v289 = vadd.f32 0.0, %v288
  %v290 = vpop.f32.mrf.mxu0
  %v291 = vpop.f32.mrf.mxu0
  %v292 = vadd.f32 0.0, %v291
  %v293 = vpop.f32.mrf.mxu0
  %294 = vmatprep.mubr.bf16.mxu0 %v102
  %295 = vmatmul.mubr.bf16.gmra.mxu0 %v101
  %v296 = vpop.f32.mrf.mxu0
  %v297 = vadd.f32 0.0, %v296
  %v298 = vpop.f32.mrf.mxu0
  %v299 = vpop.f32.mrf.mxu0
  %v300 = vpop.f32.mrf.mxu0
  %301 = vdwg.mxu0
  %302 = vmatprep.subr.bf16.mxu0 0
  %303 = vmatpush1.bf16.msra.mxu0 %v229
  %304 = vmatprep.subr.bf16.mxu0 0
  %305 = vmatpush1.bf16.msra.mxu0 %v228
  %306 = vmatprep.subr.bf16.mxu0 0
  %307 = vmatpush1.bf16.msra.mxu0 %v227
  %308 = vmatprep.subr.bf16.mxu0 0
  %309 = vmatpush1.bf16.msra.mxu0 %v226
  %310 = vmatprep.subr.bf16.mxu0 0
  %311 = vmatpush1.bf16.msra.mxu0 %v225
  %312 = vmatprep.subr.bf16.mxu0 0
  %313 = vmatpush1.bf16.msra.mxu0 %v224
  %314 = vmatprep.subr.bf16.mxu0 0
  %315 = vmatpush1.bf16.msra.mxu0 %v223
  %316 = vmatprep.subr.bf16.mxu0 0
  %317 = vmatpush1.bf16.msra.mxu0 %v222
  %318 = vmatprep.subr.bf16.mxu0 0
  %319 = vmatpush2.bf16.msra.mxu0 0
  %320 = vmatprep.subr.bf16.mxu0 0
  %321 = vmatpush2.bf16.msra.mxu0 0
  %322 = vmatprep.subr.bf16.mxu0 0
  %323 = vmatpush2.bf16.msra.mxu0 0
  %324 = vmatprep.subr.bf16.mxu0 0
  %325 = vmatpush2.bf16.msra.mxu0 0
  %326 = vmatprep.subr.bf16.mxu0 0
  %327 = vmatpush2.bf16.msra.mxu0 0
  %328 = vmatprep.subr.bf16.mxu0 0
  %329 = vmatpush2.bf16.msra.mxu0 0
  %330 = vmatprep.subr.bf16.mxu0 0
  %331 = vmatpush2.bf16.msra.mxu0 0
  %332 = vmatprep.subr.bf16.mxu0 0
  %333 = vmatpush2.bf16.msra.mxu0 0
  %334 = vmatprep.mubr.bf16.mxu0 0
  %335 = vmatmul.mubr.bf16.gmra.mxu0 %v100
  %v336 = vpop.f32.mrf.mxu0
  %v337 = vadd.f32 %v289, %v336
  %v338 = vpop.f32.mrf.mxu0
  %v339 = vpop.f32.mrf.mxu0
  %v340 = vadd.f32 %v292, %v339
  %v341 = vpop.f32.mrf.mxu0
  %342 = vmatprep.mubr.bf16.mxu0 0
  %343 = vmatmul.mubr.bf16.gmra.mxu0 %v103
  %v344 = vpop.f32.mrf.mxu0
  %v345 = vadd.f32 %v297, %v344
  %v346 = vpop.f32.mrf.mxu0
  %v347 = vpop.f32.mrf.mxu0
  %v348 = vpop.f32.mrf.mxu0
  %349 = vdwg.mxu0
  %v350 = vadd.f32 %v26, %v337
  %v351 = vadd.f32 %v27, %v340
  %v352 = vadd.f32 %v28, %v345
  %vm353 = vcmask 261120
  %354 = vst.msk [vmem:[#allocation2] sm:$0xff] %vm353, %v350
  %355 = vst.msk [vmem:[#allocation2 + $0x8] sm:$0xff] %vm353, %v351
  %356 = vst.msk [vmem:[#allocation2 + $0x10] sm:$0xff] %vm353, %v352
  // Predicated region
  $region22: #{_lambda_.34} parent=0 // pred_check
    %p357 = pneg %p18
  $region23: #{_lambda_.34} parent=0 // pred_check_branch
    %359 = sbr.rel (%p357) target = $region25
  $region24: #{_lambda_.34} parent=0 // pred_region
    %v360 = vld [vmem:[#allocation2] sm:$0xff]
    %v361 = vld [vmem:[#allocation2 + $0x8] sm:$0xff]
    %v362 = vld [vmem:[#allocation2 + $0x10] sm:$0xff]
    %v363 = vld [vmem:[%s2] sm:$0x1]
    %v365 = vlaneseq
    %v366 = vshrl.u32 %v365, 7
    %v367 = vsub.s32 0, %v366
    %v368 = vrot.slane %v363, %v367
    %v370 = vmul.f32 %v360, %v368
    %v371 = vmul.f32 %v361, %v368
    %v372 = vmul.f32 %v362, %v368
    %v373 = vld [vmem:[%s3] sm:$0x1]
    %v375 = vlaneseq
    %v376 = vshrl.u32 %v375, 7
    %v377 = vsub.s32 0, %v376
    %v378 = vrot.slane %v373, %v377
    %v380 = vadd.f32 %v370, %v378
    %v381 = vadd.f32 %v371, %v378
    %v382 = vadd.f32 %v372, %v378
    %v383 = vmax.f32 %v380, 0.0
    %v384 = vmax.f32 %v381, 0.0
    %v385 = vmax.f32 %v382, 0.0
    %386 = vst.msk [vmem:[%s4] sm:$0xff] %vm353, %v383
    %387 = vst.msk [vmem:[%s4 + $0x8] sm:$0xff] %vm353, %v384
    %388 = vst.msk [vmem:[%s4 + $0x10] sm:$0xff] %vm353, %v385
  $region25: #{_lambda_.34} parent=0 // pred_fallthru
    _
  // Predicated region
  $region26: #{_lambda_.34} parent=0 // pred_check
    _
  $region27: #{_lambda_.34} parent=0 // pred_check_branch
    %390 = sbr.rel (0) target = $region29
  $region28: #{_lambda_.34} parent=0 // pred_region
    _
  $region29: #{_lambda_.34} parent=0 // pred_fallthru
    _
  // Predicated region
  $region30: #{_lambda_.34} parent=0 // pred_check
    _
  $region31: #{_lambda_.34} parent=0 // pred_check_branch
    %392 = sbr.rel (0) target = $region33
  $region32: #{_lambda_.34} parent=0 // pred_region
    _
  $region33: #{_lambda_.34} parent=0 // pred_fallthru
    _

// kernel: _lambda_.37
$region0: #{_lambda_.37}
  #allocation0 [shape = 'u32[]', space=smem, size = 0x4, offset = 0x4, fixed_abs, tag = 'smem constant byte address 0x4 - core index']
  #allocation1 [shape = 'u32[144,128]{1,0:T(1,128)}', space=vmem, size = 0x12000, scoped, tag = 'internal scratch']
  #allocation2 [shape = 'f32[24,64]{1,0:T(8,128)}', space=vmem, size = 0x3000, scoped, tag = 'scratch operand']
  %s0 = inlined_call_operand.vmem [shape: bf16[24,128], index: 0, kind: input, shape index: {}]
  %s1 = inlined_call_operand.vmem [shape: bf16[128,64], index: 1, kind: input, shape index: {}]
  %s2 = inlined_call_operand.vmem [shape: f32[1,64], index: 2, kind: input, shape index: {}]
  %s3 = inlined_call_operand.vmem [shape: f32[1,64], index: 3, kind: input, shape index: {}]
  %s4 = inlined_call_operand.vmem [shape: f32[24,64], index: 4, kind: output, shape index: {}]
  %s5 = sld [smem:[#allocation0]]
  $region34: #{_lambda_.37} parent=0
    _
  %s7 = ssub.s32 1, %s5
  %s8 = scalar_select 0, %s7, %s5
  // Predicated region
  $region2: #{_lambda_.37} parent=0 // pred_check
    _
  $region3: #{_lambda_.37} parent=0 // pred_check_branch
    %10 = sbr.rel (0) target = $region5
  $region4: #{_lambda_.37} parent=0 // pred_region
    _
  $region5: #{_lambda_.37} parent=0 // pred_fallthru
    _
  // Predicated region
  $region6: #{_lambda_.37} parent=0 // pred_check
    _
  $region7: #{_lambda_.37} parent=0 // pred_check_branch
    %12 = sbr.rel (0) target = $region9
  $region8: #{_lambda_.37} parent=0 // pred_region
    _
  $region9: #{_lambda_.37} parent=0 // pred_fallthru
    _
  // Predicated region
  $region10: #{_lambda_.37} parent=0 // pred_check
    _
  $region11: #{_lambda_.37} parent=0 // pred_check_branch
    %14 = sbr.rel (0) target = $region13
  $region12: #{_lambda_.37} parent=0 // pred_region
    _
  $region13: #{_lambda_.37} parent=0 // pred_fallthru
    _
  // Predicated region
  $region14: #{_lambda_.37} parent=0 // pred_check
    _
  $region15: #{_lambda_.37} parent=0 // pred_check_branch
    %16 = sbr.rel (0) target = $region17
  $region16: #{_lambda_.37} parent=0 // pred_region
    _
  $region17: #{_lambda_.37} parent=0 // pred_fallthru
    _
  %p18 = scmp.eq.s32.totalorder 0, 0
  // Predicated region
  $region18: #{_lambda_.37} parent=0 // pred_check
    %p19 = pneg %p18
  $region19: #{_lambda_.37} parent=0 // pred_check_branch
    %21 = sbr.rel (%p19) target = $region21
  $region20: #{_lambda_.37} parent=0 // pred_region
    %vm22 = vcmask 523264
    %23 = vst.msk [vmem:[#allocation2] sm:$0xff] %vm22, 0.0
    %24 = vst.msk [vmem:[#allocation2 + $0x8] sm:$0xff] %vm22, 0.0
    %25 = vst.msk [vmem:[#allocation2 + $0x10] sm:$0xff] %vm22, 0.0
  $region21: #{_lambda_.37} parent=0 // pred_fallthru
    _
  %v26 = vld [vmem:[#allocation2] sm:$0xff]
  %v27 = vld [vmem:[#allocation2 + $0x8] sm:$0xff]
  %v28 = vld [vmem:[#allocation2 + $0x10] sm:$0xff]
  %v29 = vld [vmem:[%s0] sm:$0xf]
  %v30 = vld [vmem:[%s0 + $0x4] sm:$0xf]
  %v31 = vld [vmem:[%s0 + $0x8] sm:$0xf]
  %v32 = vld [vmem:[%s1] sm:$0xf]
  %v33 = vld [vmem:[%s1 + $0x4] sm:$0xf]
  %v34 = vld [vmem:[%s1 + $0x8] sm:$0xf]
  %v35 = vld [vmem:[%s1 + $0xc] sm:$0xf]
  %v36 = vld [vmem:[%s1 + $0x10] sm:$0xf]
  %v37 = vld [vmem:[%s1 + $0x14] sm:$0xf]
  %v38 = vld [vmem:[%s1 + $0x18] sm:$0xf]
  %v39 = vld [vmem:[%s1 + $0x1c] sm:$0xf]
  %v40 = vld [vmem:[%s1 + $0x20] sm:$0xf]
  %v41 = vld [vmem:[%s1 + $0x24] sm:$0xf]
  %v42 = vld [vmem:[%s1 + $0x28] sm:$0xf]
  %v43 = vld [vmem:[%s1 + $0x2c] sm:$0xf]
  %v44 = vld [vmem:[%s1 + $0x30] sm:$0xf]
  %v45 = vld [vmem:[%s1 + $0x34] sm:$0xf]
  %v46 = vld [vmem:[%s1 + $0x38] sm:$0xf]
  %v47 = vld [vmem:[%s1 + $0x3c] sm:$0xf]
  %v51 = vunpack.c.l.b16 %v29
  %v52 = vunpack.c.l.b16 %v30
  %v53 = vunpack.c.l.b16 %v31
  %v54 = vpack.c.b16 %v52, %v51
  %v55 = vpack.c.b16 %v53, %v53
  %v74 = vunpack.c.l.b16 %v32
  %v75 = vunpack.c.l.b16 %v33
  %v76 = vunpack.c.l.b16 %v34
  %v77 = vunpack.c.l.b16 %v35
  %v78 = vunpack.c.l.b16 %v36
  %v79 = vunpack.c.l.b16 %v37
  %v80 = vunpack.c.l.b16 %v38
  %v81 = vunpack.c.l.b16 %v39
  %v82 = vunpack.c.l.b16 %v40
  %v83 = vunpack.c.l.b16 %v41
  %v84 = vunpack.c.l.b16 %v42
  %v85 = vunpack.c.l.b16 %v43
  %v86 = vunpack.c.l.b16 %v44
  %v87 = vunpack.c.l.b16 %v45
  %v88 = vunpack.c.l.b16 %v46
  %v89 = vunpack.c.l.b16 %v47
  %v90 = vpack.c.b16 %v75, %v74
  %v91 = vpack.c.b16 %v77, %v76
  %v92 = vpack.c.b16 %v79, %v78
  %v93 = vpack.c.b16 %v81, %v80
  %v94 = vpack.c.b16 %v83, %v82
  %v95 = vpack.c.b16 %v85, %v84
  %v96 = vpack.c.b16 %v87, %v86
  %v97 = vpack.c.b16 %v89, %v88
  %106 = vmatprep.subr.bf16.mxu0 0
  %107 = vmatpush1.bf16.msra.mxu0 %v97
  %108 = vmatprep.subr.bf16.mxu0 0
  %109 = vmatpush1.bf16.msra.mxu0 %v96
  %110 = vmatprep.subr.bf16.mxu0 0
  %111 = vmatpush1.bf16.msra.mxu0 %v95
  %112 = vmatprep.subr.bf16.mxu0 0
  %113 = vmatpush1.bf16.msra.mxu0 %v94
  %114 = vmatprep.subr.bf16.mxu0 0
  %115 = vmatpush1.bf16.msra.mxu0 %v93
  %116 = vmatprep.subr.bf16.mxu0 0
  %117 = vmatpush1.bf16.msra.mxu0 %v92
  %118 = vmatprep.subr.bf16.mxu0 0
  %119 = vmatpush1.bf16.msra.mxu0 %v91
  %120 = vmatprep.subr.bf16.mxu0 0
  %121 = vmatpush1.bf16.msra.mxu0 %v90
  %122 = vmatprep.subr.bf16.mxu0 0
  %123 = vmatpush2.bf16.msra.mxu0 0
  %124 = vmatprep.subr.bf16.mxu0 0
  %125 = vmatpush2.bf16.msra.mxu0 0
  %126 = vmatprep.subr.bf16.mxu0 0
  %127 = vmatpush2.bf16.msra.mxu0 0
  %128 = vmatprep.subr.bf16.mxu0 0
  %129 = vmatpush2.bf16.msra.mxu0 0
  %130 = vmatprep.subr.bf16.mxu0 0
  %131 = vmatpush2.bf16.msra.mxu0 0
  %132 = vmatprep.subr.bf16.mxu0 0
  %133 = vmatpush2.bf16.msra.mxu0 0
  %134 = vmatprep.subr.bf16.mxu0 0
  %135 = vmatpush2.bf16.msra.mxu0 0
  %136 = vmatprep.subr.bf16.mxu0 0
  %137 = vmatpush2.bf16.msra.mxu0 0
  %138 = vmatprep.mubr.bf16.mxu0 0
  %139 = vmatmul.mubr.bf16.gmra.mxu0 %v54
  %v140 = vpop.f32.mrf.mxu0
  %v141 = vadd.f32 0.0, %v140
  %v142 = vpop.f32.mrf.mxu0
  %v143 = vpop.f32.mrf.mxu0
  %v144 = vadd.f32 0.0, %v143
  %v145 = vpop.f32.mrf.mxu0
  %146 = vmatprep.mubr.bf16.mxu0 0
  %147 = vmatmul.mubr.bf16.gmra.mxu0 %v55
  %v148 = vpop.f32.mrf.mxu0
  %v149 = vadd.f32 0.0, %v148
  %v150 = vpop.f32.mrf.mxu0
  %v151 = vpop.f32.mrf.mxu0
  %v152 = vpop.f32.mrf.mxu0
  %153 = vdwg.mxu0
  %v154 = vadd.f32 %v26, %v141
  %v155 = vadd.f32 %v27, %v144
  %v156 = vadd.f32 %v28, %v149
  %vm157 = vcmask 523264
  %158 = vst.msk [vmem:[#allocation2] sm:$0xff] %vm157, %v154
  %159 = vst.msk [vmem:[#allocation2 + $0x8] sm:$0xff] %vm157, %v155
  %160 = vst.msk [vmem:[#allocation2 + $0x10] sm:$0xff] %vm157, %v156
  // Predicated region
  $region22: #{_lambda_.37} parent=0 // pred_check
    %p161 = pneg %p18
  $region23: #{_lambda_.37} parent=0 // pred_check_branch
    %163 = sbr.rel (%p161) target = $region25
  $region24: #{_lambda_.37} parent=0 // pred_region
    %v164 = vld [vmem:[#allocation2] sm:$0xff]
    %v165 = vld [vmem:[#allocation2 + $0x8] sm:$0xff]
    %v166 = vld [vmem:[#allocation2 + $0x10] sm:$0xff]
    %v167 = vld [vmem:[%s2] sm:$0x1]
    %v169 = vlaneseq
    %v170 = vshrl.u32 %v169, 7
    %v171 = vsub.s32 0, %v170
    %v172 = vrot.slane %v167, %v171
    %v174 = vmul.f32 %v164, %v172
    %v175 = vmul.f32 %v165, %v172
    %v176 = vmul.f32 %v166, %v172
    %v177 = vld [vmem:[%s3] sm:$0x1]
    %v179 = vlaneseq
    %v180 = vshrl.u32 %v179, 7
    %v181 = vsub.s32 0, %v180
    %v182 = vrot.slane %v177, %v181
    %v184 = vadd.f32 %v174, %v182
    %v185 = vadd.f32 %v175, %v182
    %v186 = vadd.f32 %v176, %v182
    %v187 = vmax.f32 %v184, 0.0
    %v188 = vmax.f32 %v185, 0.0
    %v189 = vmax.f32 %v186, 0.0
    %190 = vst.msk [vmem:[%s4] sm:$0xff] %vm157, %v187
    %191 = vst.msk [vmem:[%s4 + $0x8] sm:$0xff] %vm157, %v188
    %192 = vst.msk [vmem:[%s4 + $0x10] sm:$0xff] %vm157, %v189
  $region25: #{_lambda_.37} parent=0 // pred_fallthru
    _
  // Predicated region
  $region26: #{_lambda_.37} parent=0 // pred_check
    _
  $region27: #{_lambda_.37} parent=0 // pred_check_branch
    %194 = sbr.rel (0) target = $region29
  $region28: #{_lambda_.37} parent=0 // pred_region
    _
  $region29: #{_lambda_.37} parent=0 // pred_fallthru
    _
  // Predicated region
  $region30: #{_lambda_.37} parent=0 // pred_check
    _
  $region31: #{_lambda_.37} parent=0 // pred_check_branch
    %196 = sbr.rel (0) target = $region33
  $region32: #{_lambda_.37} parent=0 // pred_region
    _
  $region33: #{_lambda_.37} parent=0 // pred_fallthru
    _

// kernel: _lambda_.38
$region0: #{_lambda_.38}
  #allocation0 [shape = 'u32[]', space=smem, size = 0x4, offset = 0x4, fixed_abs, tag = 'smem constant byte address 0x4 - core index']
  #allocation1 [shape = 'u32[144,128]{1,0:T(1,128)}', space=vmem, size = 0x12000, scoped, tag = 'internal scratch']
  #allocation2 [shape = 'f32[24,64]{1,0:T(8,128)}', space=vmem, size = 0x3000, scoped, tag = 'scratch operand']
  %s0 = inlined_call_operand.vmem [shape: bf16[24,640], index: 0, kind: input, shape index: {}]
  %s1 = inlined_call_operand.vmem [shape: bf16[640,64], index: 1, kind: input, shape index: {}]
  %s2 = inlined_call_operand.vmem [shape: f32[1,64], index: 2, kind: input, shape index: {}]
  %s3 = inlined_call_operand.vmem [shape: f32[1,64], index: 3, kind: input, shape index: {}]
  %s4 = inlined_call_operand.vmem [shape: f32[24,64], index: 4, kind: output, shape index: {}]
  %s5 = sld [smem:[#allocation0]]
  $region98: #{_lambda_.38} parent=0
    _
  %s7 = ssub.s32 1, %s5
  %s8 = scalar_select 0, %s7, %s5
  $region1: #{_lambda_.38} parent=0
    #allocation3 [shape = 'u8[12288]{0}', space=vmem, size = 0x3000, scoped, tag = 'input window, operand 0']
    loop: start=0, step=1, limit=7
    $region2: #{_lambda_.38} parent=1 // loop_pre_header
      _
    $region3: #{_lambda_.38} parent=1 // loop_header
      %s10 = sphi 0, %s14
      %p11 = scmp.ge.s32.totalorder %s10, 7
      %s17 = sphi 0, %s36
      %s18 = sphi 0, %s32
      %s19 = sphi 0, %s28
      %s20 = sphi 0, %s17
      %s21 = sphi 0, %s18
      %s22 = sphi 0, %s19
      %s23 = sphi 0, %s20
      %s24 = sphi 0, %s21
      %s25 = sphi 0, %s22
      %s41 = sphi 0, %s43
      %s44 = sphi 0, %s41
      %s45 = sphi 0, %s44
      %s61 = sphi 0, %s45
      %s69 = sphi 0, %s71
      %s72 = sphi 0, %s69
      %s73 = sphi 0, %s72
      %s89 = sphi 0, %s73
      %s95 = sphi 0, %s97
      %s98 = sphi 0, %s95
      %s99 = sphi 0, %s98
      %s115 = sphi 0, %s99
      %s121 = sphi 0, %s123
      %s124 = sphi 0, %s121
      %s125 = sphi 0, %s124
      %s141 = sphi 0, %s125
      %s149 = sphi 0, %s151
      %s152 = sphi 0, %s149
      %s153 = sphi 0, %s152
      %s169 = sphi 0, %s153
    $region4: #{_lambda_.38} parent=1 // loop_header_branch
      %13 = sbr.rel (%p11) target = $region8
    $region5: #{_lambda_.38} parent=1 // loop_body
      %s15 = ssub.s32 %s10, 1
      %s16 = ssub.s32 %s10, 2
      %s26 = sadd.s32 1, %s19
      %p27 = scmp.ge.s32.totalorder %s26, 5
      %s28 = scalar_select %p27, 0, %s26
      %s29 = sadd.s32 1, %s18
      %s30 = scalar_select %p27, %s29, %s18
      %p31 = scmp.ge.s32.totalorder %s30, 1
      %s32 = scalar_select %p31, 0, %s30
      %s33 = sadd.s32 1, %s17
      %s34 = scalar_select %p31, %s33, %s17
      %p35 = scmp.ge.s32.totalorder %s34, 1
      %s36 = scalar_select %p35, 0, %s34
      %s37 = ssub.s32 %s17, %s36
      %s38 = ssub.s32 %s19, %s28
      %s39 = sor.u32 %s37, %s38
      %p40 = scmp.eq.s32.totalorder %s39, 0
      %s42 = sadd.s32 %s41, 1
      %s43 = scalar_select %p40, %s41, %s42
      %p46 = pneg %p40
      %p47 = scmp.eq.s32.totalorder %s10, 4
      %p48 = por %p46, %p47
      %p49 = scmp.ne.s32.totalorder %s41, %s44
      %p50 = scmp.eq.s32.totalorder %s10, 0
      %p51 = por %p49, %p50
      %p52 = scmp.ne.s32.totalorder %s41, %s44
      %p53 = scmp.eq.s32.totalorder %s15, 4
      %p54 = por %p52, %p53
      %p55 = scmp.ne.s32.totalorder %s44, %s45
      %p56 = scmp.eq.s32.totalorder %s15, 0
      %p57 = por %p55, %p56
      %p58 = scmp.ne.s32.totalorder %s44, %s45
      %p59 = scmp.eq.s32.totalorder %s16, 4
      %p60 = por %p58, %p59
      %p62 = scmp.ne.s32.totalorder %s45, %s61
      %p63 = scmp.eq.s32.totalorder %s16, 0
      %p64 = por %p62, %p63
      %s65 = ssub.s32 %s19, %s28
      %s66 = ssub.s32 %s18, %s32
      %s67 = sor.u32 %s65, %s66
      %p68 = scmp.eq.s32.totalorder %s67, 0
      %s70 = sadd.s32 %s69, 1
      %s71 = scalar_select %p68, %s69, %s70
      %p74 = pneg %p68
      %p75 = scmp.eq.s32.totalorder %s10, 4
      %p76 = por %p74, %p75
      %p77 = scmp.ne.s32.totalorder %s69, %s72
      %p78 = scmp.eq.s32.totalorder %s10, 0
      %p79 = por %p77, %p78
      %p80 = scmp.ne.s32.totalorder %s69, %s72
      %p81 = scmp.eq.s32.totalorder %s15, 4
      %p82 = por %p80, %p81
      %p83 = scmp.ne.s32.totalorder %s72, %s73
      %p84 = scmp.eq.s32.totalorder %s15, 0
      %p85 = por %p83, %p84
      %p86 = scmp.ne.s32.totalorder %s72, %s73
      %p87 = scmp.eq.s32.totalorder %s16, 4
      %p88 = por %p86, %p87
      %p90 = scmp.ne.s32.totalorder %s73, %s89
      %p91 = scmp.eq.s32.totalorder %s16, 0
      %p92 = por %p90, %p91
      %s93 = ssub.s32 %s18, %s32
      %p94 = scmp.eq.s32.totalorder %s93, 0
      %s96 = sadd.s32 %s95, 1
      %s97 = scalar_select %p94, %s95, %s96
      %p100 = pneg %p94
      %p101 = scmp.eq.s32.totalorder %s10, 4
      %p102 = por %p100, %p101
      %p103 = scmp.ne.s32.totalorder %s95, %s98
      %p104 = scmp.eq.s32.totalorder %s10, 0
      %p105 = por %p103, %p104
      %p106 = scmp.ne.s32.totalorder %s95, %s98
      %p107 = scmp.eq.s32.totalorder %s15, 4
      %p108 = por %p106, %p107
      %p109 = scmp.ne.s32.totalorder %s98, %s99
      %p110 = scmp.eq.s32.totalorder %s15, 0
      %p111 = por %p109, %p110
      %p112 = scmp.ne.s32.totalorder %s98, %s99
      %p113 = scmp.eq.s32.totalorder %s16, 4
      %p114 = por %p112, %p113
      %p116 = scmp.ne.s32.totalorder %s99, %s115
      %p117 = scmp.eq.s32.totalorder %s16, 0
      %p118 = por %p116, %p117
      %s119 = ssub.s32 %s18, %s32
      %p120 = scmp.eq.s32.totalorder %s119, 0
      %s122 = sadd.s32 %s121, 1
      %s123 = scalar_select %p120, %s121, %s122
      %p126 = pneg %p120
      %p127 = scmp.eq.s32.totalorder %s10, 4
      %p128 = por %p126, %p127
      %p129 = scmp.ne.s32.totalorder %s121, %s124
      %p130 = scmp.eq.s32.totalorder %s10, 0
      %p131 = por %p129, %p130
      %p132 = scmp.ne.s32.totalorder %s121, %s124
      %p133 = scmp.eq.s32.totalorder %s15, 4
      %p134 = por %p132, %p133
      %p135 = scmp.ne.s32.totalorder %s124, %s125
      %p136 = scmp.eq.s32.totalorder %s15, 0
      %p137 = por %p135, %p136
      %p138 = scmp.ne.s32.totalorder %s124, %s125
      %p139 = scmp.eq.s32.totalorder %s16, 4
      %p140 = por %p138, %p139
      %p142 = scmp.ne.s32.totalorder %s125, %s141
      %p143 = scmp.eq.s32.totalorder %s16, 0
      %p144 = por %p142, %p143
      %s145 = ssub.s32 %s17, %s36
      %s146 = ssub.s32 %s18, %s32
      %s147 = sor.u32 %s145, %s146
      %p148 = scmp.eq.s32.totalorder %s147, 0
      %s150 = sadd.s32 %s149, 1
      %s151 = scalar_select %p148, %s149, %s150
      %p154 = pneg %p148
      %p155 = scmp.eq.s32.totalorder %s10, 4
      %p156 = por %p154, %p155
      %p157 = scmp.ne.s32.totalorder %s149, %s152
      %p158 = scmp.eq.s32.totalorder %s10, 0
      %p159 = por %p157, %p158
      %p160 = scmp.ne.s32.totalorder %s149, %s152
      %p161 = scmp.eq.s32.totalorder %s15, 4
      %p162 = por %p160, %p161
      %p163 = scmp.ne.s32.totalorder %s152, %s153
      %p164 = scmp.eq.s32.totalorder %s15, 0
      %p165 = por %p163, %p164
      %p166 = scmp.ne.s32.totalorder %s152, %s153
      %p167 = scmp.eq.s32.totalorder %s16, 4
      %p168 = por %p166, %p167
      %p170 = scmp.ne.s32.totalorder %s153, %s169
      %p171 = scmp.eq.s32.totalorder %s16, 0
      %p172 = por %p170, %p171
      %p173 = scmp.le.s32.totalorder 1, %s10
      %p174 = scmp.lt.s32.totalorder %s10, 6
      %p175 = pnand %p173, %p174
      %p176 = pneg %p175
      // Predicated region
      $region9: #{_lambda_.38} parent=5 // pred_check
        _
      $region10: #{_lambda_.38} parent=5 // pred_check_branch
        %178 = sbr.rel (%p175) target = $region12
      $region11: #{_lambda_.38} parent=5 // pred_region
        %s179 = ssub.s32 %s10, 1
        // Predicated region
        $region13: #{_lambda_.38} parent=11 // pred_check
          %p180 = pneg %p111
        $region14: #{_lambda_.38} parent=11 // pred_check_branch
          %182 = sbr.rel (%p180) target = $region16
        $region15: #{_lambda_.38} parent=11 // pred_region
          %p183 = scmp.lt.s32.totalorder %s21, 0
          %s184 = scalar_select %p183, %s21, 0
          %s185 = scalar_lea.vmem %s2, %s184
        $region16: #{_lambda_.38} parent=11 // pred_fallthru
          _
        // Predicated region
        $region17: #{_lambda_.38} parent=11 // pred_check
          %p186 = pneg %p137
        $region18: #{_lambda_.38} parent=11 // pred_check_branch
          %188 = sbr.rel (%p186) target = $region20
        $region19: #{_lambda_.38} parent=11 // pred_region
          %p189 = scmp.lt.s32.totalorder %s21, 0
          %s190 = scalar_select %p189, %s21, 0
          %s191 = scalar_lea.vmem %s3, %s190
        $region20: #{_lambda_.38} parent=11 // pred_fallthru
          _
      $region12: #{_lambda_.38} parent=5 // pred_fallthru
        _
      %p192 = scmp.lt.s32.totalorder %s10, 5
      // Predicated region
      $region21: #{_lambda_.38} parent=5 // pred_check
        %p193 = pneg %p192
      $region22: #{_lambda_.38} parent=5 // pred_check_branch
        %195 = sbr.rel (%p193) target = $region24
      $region23: #{_lambda_.38} parent=5 // pred_region
        // Predicated region
        $region25: #{_lambda_.38} parent=23 // pred_check
          %p196 = pneg %p51
        $region26: #{_lambda_.38} parent=23 // pred_check_branch
          %198 = sbr.rel (%p196) target = $region28
        $region27: #{_lambda_.38} parent=23 // pred_region
          %s199 = sand.u32 %s41, 1
          %s200 = sand.u32 %s41, 1
          %s201 = smul.addr %s200, 12
          %s202 = scalar_lea.vmem [#allocation3], %s201
          %s203 = smul.u32 3, %s17
          %s204 = smul.addr %s203, 5
          %s205 = sadd.s32 %s19, %s204
          %s206 = smul.addr %s205, 4
          %s207 = scalar_lea.vmem %s0, %s206
          // Predicated region
          $region29: #{_lambda_.38} parent=27 // pred_check
            _
          $region30: #{_lambda_.38} parent=27 // pred_check_branch
            %209 = sbr.rel (0) target = $region32
          $region31: #{_lambda_.38} parent=27 // pred_region
            // Predicated region
            $region33: #{_lambda_.38} parent=31 // pred_check
              _
            $region34: #{_lambda_.38} parent=31 // pred_check_branch
              %211 = sbr.rel target = $region36
            $region35: #{_lambda_.38} parent=31 // pred_region
              // Predicated region
              $region48: #{_lambda_.38} parent=35 // pred_check
                _
              $region49: #{_lambda_.38} parent=35 // pred_check_branch
                %231 = sbr.rel (0) target = $region51
              $region50: #{_lambda_.38} parent=35 // pred_region
                loop: start=0, step=1, limit=1
                $region52: #{_lambda_.38} parent=50 // loop_pre_header
                  _
                $region53: #{_lambda_.38} parent=50 // loop_header
                  %s233 = sphi 0, %s237
                  %p234 = scmp.ge.s32.totalorder %s233, 1
                  %s238 = sphi %s207, %s207
                  %s239 = sphi %s202, %s202
                $region54: #{_lambda_.38} parent=50 // loop_header_branch
                  %236 = sbr.rel (%p234) target = $region58
                $region55: #{_lambda_.38} parent=50 // loop_body
                  _
                $region56: #{_lambda_.38} parent=50 // loop_footer
                  %s237 = sadd.s32 1, %s233
                $region57: #{_lambda_.38} parent=50 // loop_footer_branch
                  %232 = sbr.rel target = $region53
                $region58: #{_lambda_.38} parent=50 // loop_exit
                  _
                %s241 = ssub.s32 16, 1
                loop: start=0, step=1, limit=1
                $region59: #{_lambda_.38} parent=50 // loop_pre_header
                  _
                $region60: #{_lambda_.38} parent=50 // loop_header
                  %s243 = sphi 0, %s247
                  %p244 = scmp.ge.s32.totalorder %s243, 1
                  %s248 = sphi %s207, %s207
                  %s249 = sphi %s202, %s202
                $region61: #{_lambda_.38} parent=50 // loop_header_branch
                  %246 = sbr.rel (%p244) target = $region65
                $region62: #{_lambda_.38} parent=50 // loop_body
                  %v250 = vld [vmem:[%s248] sm:%s241]
                  %251 = vst [vmem:[%s249] sm:%s241] %v250
                  %v252 = vld [vmem:[%s248 + $0x14] sm:%s241]
                  %253 = vst [vmem:[%s249 + $0x4] sm:%s241] %v252
                  %v254 = vld [vmem:[%s248 + $0x28] sm:%s241]
                  %255 = vst [vmem:[%s249 + $0x8] sm:%s241] %v254
                $region63: #{_lambda_.38} parent=50 // loop_footer
                  %s247 = sadd.s32 1, %s243
                $region64: #{_lambda_.38} parent=50 // loop_footer_branch
                  %242 = sbr.rel target = $region60
                $region65: #{_lambda_.38} parent=50 // loop_exit
                  _
              $region51: #{_lambda_.38} parent=35 // pred_fallthru
                _
            $region36: #{_lambda_.38} parent=31 // pred_fallthru
              _
            // Predicated region
            $region37: #{_lambda_.38} parent=31 // pred_check
              _
            $region38: #{_lambda_.38} parent=31 // pred_check_branch
              %213 = sbr.rel (0) target = $region40
            $region39: #{_lambda_.38} parent=31 // pred_region
              %s215 = ssub.s32 16, 1
              loop: start=0, step=1, limit=1
              $region41: #{_lambda_.38} parent=39 // loop_pre_header
                _
              $region42: #{_lambda_.38} parent=39 // loop_header
                %s217 = sphi 0, %s221
                %p218 = scmp.ge.s32.totalorder %s217, 1
                %s222 = sphi %s207, %s207
                %s223 = sphi %s202, %s202
              $region43: #{_lambda_.38} parent=39 // loop_header_branch
                %220 = sbr.rel (%p218) target = $region47
              $region44: #{_lambda_.38} parent=39 // loop_body
                %v224 = vld [vmem:[%s222] sm:%s215]
                %225 = vst [vmem:[%s223] sm:%s215] %v224
                %v226 = vld [vmem:[%s222 + $0x14] sm:%s215]
                %227 = vst [vmem:[%s223 + $0x4] sm:%s215] %v226
                %v228 = vld [vmem:[%s222 + $0x28] sm:%s215]
                %229 = vst [vmem:[%s223 + $0x8] sm:%s215] %v228
              $region45: #{_lambda_.38} parent=39 // loop_footer
                %s221 = sadd.s32 1, %s217
              $region46: #{_lambda_.38} parent=39 // loop_footer_branch
                %216 = sbr.rel target = $region42
              $region47: #{_lambda_.38} parent=39 // loop_exit
                _
            $region40: #{_lambda_.38} parent=31 // pred_fallthru
              _
          $region32: #{_lambda_.38} parent=27 // pred_fallthru
            _
          %256 = vnop
        $region28: #{_lambda_.38} parent=23 // pred_fallthru
          _
        // Predicated region
        $region66: #{_lambda_.38} parent=23 // pred_check
          %p257 = pneg %p79
        $region67: #{_lambda_.38} parent=23 // pred_check_branch
          %259 = sbr.rel (%p257) target = $region69
        $region68: #{_lambda_.38} parent=23 // pred_region
          %s260 = smul.u32 16, %s19
          %p261 = scmp.lt.s32.totalorder %s260, 79
          %s262 = scalar_select %p261, %s260, 79
          %p263 = scmp.lt.s32.totalorder %s18, 0
          %s264 = scalar_select %p263, %s18, 0
          %s265 = sadd.s32 %s264, %s262
          %s266 = smul.addr %s265, 4
          %s267 = scalar_lea.vmem %s1, %s266
          %s268 = smul.u32 16, %s19
        $region69: #{_lambda_.38} parent=23 // pred_fallthru
          _
      $region24: #{_lambda_.38} parent=5 // pred_fallthru
        _
      %p269 = scmp.le.s32.totalorder 1, %s10
      %p270 = scmp.lt.s32.totalorder %s10, 6
      %p271 = pnand %p269, %p270
      %p272 = pneg %p271
      // Predicated region
      $region70: #{_lambda_.38} parent=5 // pred_check
        _
      $region71: #{_lambda_.38} parent=5 // pred_check_branch
        %274 = sbr.rel (%p271) target = $region73
      $region72: #{_lambda_.38} parent=5 // pred_region
        %s275 = ssub.s32 %s10, 1
        %s276 = sand.u32 %s44, 1
        %s277 = sand.u32 %s44, 1
        %s278 = smul.addr %s277, 12
        %s279 = scalar_lea.vmem [#allocation3], %s278
        // Predicated region
        $region74: #{_lambda_.38} parent=72 // pred_check
          %p280 = pneg %p57
        $region75: #{_lambda_.38} parent=72 // pred_check_branch
          %282 = sbr.rel (%p280) target = $region77
        $region76: #{_lambda_.38} parent=72 // pred_region
          _
        $region77: #{_lambda_.38} parent=72 // pred_fallthru
          _
        %s283 = sand.u32 %s44, 1
        %s284 = sand.u32 %s44, 1
        %s285 = smul.addr %s284, 12
        %s286 = scalar_lea.vmem [#allocation3], %s285
        %p287 = pneg %p57
        %p288 = pneg %p54
        %s289 = smul.u32 16, %s22
        %p290 = scmp.lt.s32.totalorder %s289, 79
        %s291 = scalar_select %p290, %s289, 79
        %p292 = scmp.lt.s32.totalorder %s21, 0
        %s293 = scalar_select %p292, %s21, 0
        %s294 = sadd.s32 %s293, %s291
        %s295 = smul.addr %s294, 4
        %s296 = scalar_lea.vmem %s1, %s295
        %p297 = pneg %p85
        %p298 = pneg %p82
        %p299 = scmp.lt.s32.totalorder %s21, 0
        %s300 = scalar_select %p299, %s21, 0
        %s301 = scalar_lea.vmem %s2, %s300
        %p302 = pneg %p111
        %p303 = pneg %p108
        %p304 = scmp.lt.s32.totalorder %s21, 0
        %s305 = scalar_select %p304, %s21, 0
        %s306 = scalar_lea.vmem %s3, %s305
        %p307 = pneg %p137
        %p308 = pneg %p134
        %p309 = pneg %p165
        %p310 = pneg %p162
        %s311 = smul.u32 3, %s20
        %p312 = scmp.lt.s32.totalorder %s311, 2
        %s313 = scalar_select %p312, %s311, 2
        %p314 = scmp.lt.s32.totalorder %s21, 0
        %s315 = scalar_select %p314, %s21, 0
        %s316 = sadd.s32 %s315, %s313
        %s317 = smul.addr %s316, 8
        %s318 = scalar_lea.vmem %s4, %s317
        %s319 = smul.u32 3, %s20
        %s320 = smul.u32 16, %s22
        %p321 = scmp.lt.s32.totalorder %s320, 79
        %s322 = scalar_select %p321, %s320, 79
        %p323 = scmp.lt.s32.totalorder %s21, 0
        %s324 = scalar_select %p323, %s21, 0
        %s325 = sadd.s32 %s324, %s322
        %s326 = smul.addr %s325, 4
        %s327 = scalar_lea.vmem %s1, %s326
        %s328 = smul.u32 16, %s22
        %p329 = scmp.lt.s32.totalorder %s21, 0
        %s330 = scalar_select %p329, %s21, 0
        %s331 = scalar_lea.vmem %s2, %s330
        %p332 = scmp.lt.s32.totalorder %s21, 0
        %s333 = scalar_select %p332, %s21, 0
        %s334 = scalar_lea.vmem %s3, %s333
        %s335 = smul.u32 3, %s20
        %p336 = scmp.lt.s32.totalorder %s335, 2
        %s337 = scalar_select %p336, %s335, 2
        %p338 = scmp.lt.s32.totalorder %s21, 0
        %s339 = scalar_select %p338, %s21, 0
        %s340 = sadd.s32 %s339, %s337
        %s341 = smul.addr %s340, 8
        %s342 = scalar_lea.vmem %s4, %s341
        %s343 = smul.u32 3, %s20
        %p345 = scmp.eq.s32.totalorder %s22, 0
        // Predicated region
        $region78: #{_lambda_.38} parent=72 // pred_check
          %p346 = pneg %p345
        $region79: #{_lambda_.38} parent=72 // pred_check_branch
          %348 = sbr.rel (%p346) target = $region81
        $region80: #{_lambda_.38} parent=72 // pred_region
          %vm349 = vcmask 523264
          %350 = vst.msk [vmem:[#allocation2] sm:$0xff] %vm349, 0.0
          %351 = vst.msk [vmem:[#allocation2 + $0x8] sm:$0xff] %vm349, 0.0
          %352 = vst.msk [vmem:[#allocation2 + $0x10] sm:$0xff] %vm349, 0.0
        $region81: #{_lambda_.38} parent=72 // pred_fallthru
          _
        %v353 = vld [vmem:[#allocation2] sm:$0xff]
        %v354 = vld [vmem:[#allocation2 + $0x8] sm:$0xff]
        %v355 = vld [vmem:[#allocation2 + $0x10] sm:$0xff]
        %v356 = vld [vmem:[%s279] sm:$0xf]
        %v357 = vld [vmem:[%s279 + $0x4] sm:$0xf]
        %v358 = vld [vmem:[%s279 + $0x8] sm:$0xf]
        %v359 = vld [vmem:[%s327] sm:$0xf]
        %v360 = vld [vmem:[%s327 + $0x4] sm:$0xf]
        %v361 = vld [vmem:[%s327 + $0x8] sm:$0xf]
        %v362 = vld [vmem:[%s327 + $0xc] sm:$0xf]
        %v363 = vld [vmem:[%s327 + $0x10] sm:$0xf]
        %v364 = vld [vmem:[%s327 + $0x14] sm:$0xf]
        %v365 = vld [vmem:[%s327 + $0x18] sm:$0xf]
        %v366 = vld [vmem:[%s327 + $0x1c] sm:$0xf]
        %v367 = vld [vmem:[%s327 + $0x20] sm:$0xf]
        %v368 = vld [vmem:[%s327 + $0x24] sm:$0xf]
        %v369 = vld [vmem:[%s327 + $0x28] sm:$0xf]
        %v370 = vld [vmem:[%s327 + $0x2c] sm:$0xf]
        %v371 = vld [vmem:[%s327 + $0x30] sm:$0xf]
        %v372 = vld [vmem:[%s327 + $0x34] sm:$0xf]
        %v373 = vld [vmem:[%s327 + $0x38] sm:$0xf]
        %v374 = vld [vmem:[%s327 + $0x3c] sm:$0xf]
        %v378 = vunpack.c.l.b16 %v356
        %v379 = vunpack.c.l.b16 %v357
        %v380 = vunpack.c.l.b16 %v358
        %v381 = vpack.c.b16 %v379, %v378
        %v382 = vpack.c.b16 %v380, %v380
        %v401 = vunpack.c.l.b16 %v359
        %v402 = vunpack.c.l.b16 %v360
        %v403 = vunpack.c.l.b16 %v361
        %v404 = vunpack.c.l.b16 %v362
        %v405 = vunpack.c.l.b16 %v363
        %v406 = vunpack.c.l.b16 %v364
        %v407 = vunpack.c.l.b16 %v365
        %v408 = vunpack.c.l.b16 %v366
        %v409 = vunpack.c.l.b16 %v367
        %v410 = vunpack.c.l.b16 %v368
        %v411 = vunpack.c.l.b16 %v369
        %v412 = vunpack.c.l.b16 %v370
        %v413 = vunpack.c.l.b16 %v371
        %v414 = vunpack.c.l.b16 %v372
        %v415 = vunpack.c.l.b16 %v373
        %v416 = vunpack.c.l.b16 %v374
        %v417 = vpack.c.b16 %v402, %v401
        %v418 = vpack.c.b16 %v404, %v403
        %v419 = vpack.c.b16 %v406, %v405
        %v420 = vpack.c.b16 %v408, %v407
        %v421 = vpack.c.b16 %v410, %v409
        %v422 = vpack.c.b16 %v412, %v411
        %v423 = vpack.c.b16 %v414, %v413
        %v424 = vpack.c.b16 %v416, %v415
        %433 = vmatprep.subr.bf16.mxu0 0
        %434 = vmatpush1.bf16.msra.mxu0 %v424
        %435 = vmatprep.subr.bf16.mxu0 0
        %436 = vmatpush1.bf16.msra.mxu0 %v423
        %437 = vmatprep.subr.bf16.mxu0 0
        %438 = vmatpush1.bf16.msra.mxu0 %v422
        %439 = vmatprep.subr.bf16.mxu0 0
        %440 = vmatpush1.bf16.msra.mxu0 %v421
        %441 = vmatprep.subr.bf16.mxu0 0
        %442 = vmatpush1.bf16.msra.mxu0 %v420
        %443 = vmatprep.subr.bf16.mxu0 0
        %444 = vmatpush1.bf16.msra.mxu0 %v419
        %445 = vmatprep.subr.bf16.mxu0 0
        %446 = vmatpush1.bf16.msra.mxu0 %v418
        %447 = vmatprep.subr.bf16.mxu0 0
        %448 = vmatpush1.bf16.msra.mxu0 %v417
        %449 = vmatprep.subr.bf16.mxu0 0
        %450 = vmatpush2.bf16.msra.mxu0 0
        %451 = vmatprep.subr.bf16.mxu0 0
        %452 = vmatpush2.bf16.msra.mxu0 0
        %453 = vmatprep.subr.bf16.mxu0 0
        %454 = vmatpush2.bf16.msra.mxu0 0
        %455 = vmatprep.subr.bf16.mxu0 0
        %456 = vmatpush2.bf16.msra.mxu0 0
        %457 = vmatprep.subr.bf16.mxu0 0
        %458 = vmatpush2.bf16.msra.mxu0 0
        %459 = vmatprep.subr.bf16.mxu0 0
        %460 = vmatpush2.bf16.msra.mxu0 0
        %461 = vmatprep.subr.bf16.mxu0 0
        %462 = vmatpush2.bf16.msra.mxu0 0
        %463 = vmatprep.subr.bf16.mxu0 0
        %464 = vmatpush2.bf16.msra.mxu0 0
        %465 = vmatprep.mubr.bf16.mxu0 0
        %466 = vmatmul.mubr.bf16.gmra.mxu0 %v381
        %v467 = vpop.f32.mrf.mxu0
        %v468 = vadd.f32 0.0, %v467
        %v469 = vpop.f32.mrf.mxu0
        %v470 = vpop.f32.mrf.mxu0
        %v471 = vadd.f32 0.0, %v470
        %v472 = vpop.f32.mrf.mxu0
        %473 = vmatprep.mubr.bf16.mxu0 0
        %474 = vmatmul.mubr.bf16.gmra.mxu0 %v382
        %v475 = vpop.f32.mrf.mxu0
        %v476 = vadd.f32 0.0, %v475
        %v477 = vpop.f32.mrf.mxu0
        %v478 = vpop.f32.mrf.mxu0
        %v479 = vpop.f32.mrf.mxu0
        %480 = vdwg.mxu0
        %v481 = vadd.f32 %v353, %v468
        %v482 = vadd.f32 %v354, %v471
        %v483 = vadd.f32 %v355, %v476
        %vm484 = vcmask 523264
        %485 = vst.msk [vmem:[#allocation2] sm:$0xff] %vm484, %v481
        %486 = vst.msk [vmem:[#allocation2 + $0x8] sm:$0xff] %vm484, %v482
        %487 = vst.msk [vmem:[#allocation2 + $0x10] sm:$0xff] %vm484, %v483
        %p488 = scmp.eq.s32.totalorder %s22, 4
        // Predicated region
        $region82: #{_lambda_.38} parent=72 // pred_check
          %p489 = pneg %p488
        $region83: #{_lambda_.38} parent=72 // pred_check_branch
          %491 = sbr.rel (%p489) target = $region85
        $region84: #{_lambda_.38} parent=72 // pred_region
          %v492 = vld [vmem:[#allocation2] sm:$0xff]
          %v493 = vld [vmem:[#allocation2 + $0x8] sm:$0xff]
          %v494 = vld [vmem:[#allocation2 + $0x10] sm:$0xff]
          %v495 = vld [vmem:[%s331] sm:$0x1]
          %v497 = vlaneseq
          %v498 = vshrl.u32 %v497, 7
          %v499 = vsub.s32 0, %v498
          %v500 = vrot.slane %v495, %v499
          %v502 = vmul.f32 %v492, %v500
          %v503 = vmul.f32 %v493, %v500
          %v504 = vmul.f32 %v494, %v500
          %v505 = vld [vmem:[%s334] sm:$0x1]
          %v507 = vlaneseq
          %v508 = vshrl.u32 %v507, 7
          %v509 = vsub.s32 0, %v508
          %v510 = vrot.slane %v505, %v509
          %v512 = vadd.f32 %v502, %v510
          %v513 = vadd.f32 %v503, %v510
          %v514 = vadd.f32 %v504, %v510
          %v515 = vmax.f32 %v512, 0.0
          %v516 = vmax.f32 %v513, 0.0
          %v517 = vmax.f32 %v514, 0.0
          %518 = vst.msk [vmem:[%s342] sm:$0xff] %vm484, %v515
          %519 = vst.msk [vmem:[%s342 + $0x8] sm:$0xff] %vm484, %v516
          %520 = vst.msk [vmem:[%s342 + $0x10] sm:$0xff] %vm484, %v517
        $region85: #{_lambda_.38} parent=72 // pred_fallthru
          _
        %s521 = smul.u32 3, %s20
        %p522 = scmp.lt.s32.totalorder %s521, 2
        %s523 = scalar_select %p522, %s521, 2
        %p524 = scmp.lt.s32.totalorder %s21, 0
        %s525 = scalar_select %p524, %s21, 0
        %s526 = sadd.s32 %s525, %s523
        %s527 = smul.addr %s526, 8
        %s528 = scalar_lea.vmem %s4, %s527
        // Predicated region
        $region86: #{_lambda_.38} parent=72 // pred_check
          %p529 = pneg %p162
        $region87: #{_lambda_.38} parent=72 // pred_check_branch
          %531 = sbr.rel (%p529) target = $region89
        $region88: #{_lambda_.38} parent=72 // pred_region
          %s532 = smul.u32 3, %s20
        $region89: #{_lambda_.38} parent=72 // pred_fallthru
          _
        // Predicated region
        $region90: #{_lambda_.38} parent=72 // pred_check
          %p533 = pneg %p162
        $region91: #{_lambda_.38} parent=72 // pred_check_branch
          %535 = sbr.rel (%p533) target = $region93
        $region92: #{_lambda_.38} parent=72 // pred_region
          %s536 = smul.u32 3, %s20
          %p537 = scmp.lt.s32.totalorder %s536, 2
          %s538 = scalar_select %p537, %s536, 2
          %p539 = scmp.lt.s32.totalorder %s21, 0
          %s540 = scalar_select %p539, %s21, 0
          %s541 = sadd.s32 %s540, %s538
          %s542 = smul.addr %s541, 8
          %s543 = scalar_lea.vmem %s4, %s542
        $region93: #{_lambda_.38} parent=72 // pred_fallthru
          _
      $region73: #{_lambda_.38} parent=5 // pred_fallthru
        _
      %p544 = scmp.le.s32.totalorder 2, %s10
      // Predicated region
      $region94: #{_lambda_.38} parent=5 // pred_check
        %p545 = pneg %p544
      $region95: #{_lambda_.38} parent=5 // pred_check_branch
        %547 = sbr.rel (%p545) target = $region97
      $region96: #{_lambda_.38} parent=5 // pred_region
        %s548 = ssub.s32 %s10, 2
      $region97: #{_lambda_.38} parent=5 // pred_fallthru
        _
    $region6: #{_lambda_.38} parent=1 // loop_footer
      %s14 = sadd.s32 1, %s10
    $region7: #{_lambda_.38} parent=1 // loop_footer_branch
      %9 = sbr.rel target = $region3
    $region8: #{_lambda_.38} parent=1 // loop_exit
      _

// kernel: _lambda_.36
$region0: #{_lambda_.36}
  #allocation0 [shape = 'u32[]', space=smem, size = 0x4, offset = 0x4, fixed_abs, tag = 'smem constant byte address 0x4 - core index']
  #allocation1 [shape = 'u32[144,128]{1,0:T(1,128)}', space=vmem, size = 0x12000, scoped, tag = 'internal scratch']
  #allocation2 [shape = 'f32[24,256]{1,0:T(8,128)}', space=vmem, size = 0x6000, scoped, tag = 'scratch operand']
  %s0 = inlined_call_operand.vmem [shape: bf16[24,128], index: 0, kind: input, shape index: {}]
  %s1 = inlined_call_operand.vmem [shape: bf16[128,256], index: 1, kind: input, shape index: {}]
  %s2 = inlined_call_operand.vmem [shape: f32[1,256], index: 2, kind: input, shape index: {}]
  %s3 = inlined_call_operand.vmem [shape: f32[1,256], index: 3, kind: input, shape index: {}]
  %s4 = inlined_call_operand.vmem [shape: f32[24,256], index: 4, kind: output, shape index: {}]
  %s5 = sld [smem:[#allocation0]]
  $region34: #{_lambda_.36} parent=0
    _
  %s7 = ssub.s32 1, %s5
  %s8 = scalar_select 0, %s7, %s5
  // Predicated region
  $region2: #{_lambda_.36} parent=0 // pred_check
    _
  $region3: #{_lambda_.36} parent=0 // pred_check_branch
    %10 = sbr.rel (0) target = $region5
  $region4: #{_lambda_.36} parent=0 // pred_region
    _
  $region5: #{_lambda_.36} parent=0 // pred_fallthru
    _
  // Predicated region
  $region6: #{_lambda_.36} parent=0 // pred_check
    _
  $region7: #{_lambda_.36} parent=0 // pred_check_branch
    %12 = sbr.rel (0) target = $region9
  $region8: #{_lambda_.36} parent=0 // pred_region
    _
  $region9: #{_lambda_.36} parent=0 // pred_fallthru
    _
  // Predicated region
  $region10: #{_lambda_.36} parent=0 // pred_check
    _
  $region11: #{_lambda_.36} parent=0 // pred_check_branch
    %14 = sbr.rel (0) target = $region13
  $region12: #{_lambda_.36} parent=0 // pred_region
    _
  $region13: #{_lambda_.36} parent=0 // pred_fallthru
    _
  // Predicated region
  $region14: #{_lambda_.36} parent=0 // pred_check
    _
  $region15: #{_lambda_.36} parent=0 // pred_check_branch
    %16 = sbr.rel (0) target = $region17
  $region16: #{_lambda_.36} parent=0 // pred_region
    _
  $region17: #{_lambda_.36} parent=0 // pred_fallthru
    _
  %p18 = scmp.eq.s32.totalorder 0, 0
  // Predicated region
  $region18: #{_lambda_.36} parent=0 // pred_check
    %p19 = pneg %p18
  $region19: #{_lambda_.36} parent=0 // pred_check_branch
    %21 = sbr.rel (%p19) target = $region21
  $region20: #{_lambda_.36} parent=0 // pred_region
    %22 = vst [vmem:[#allocation2] sm:$0xff] 0.0
    %23 = vst [vmem:[#allocation2 + $0x8] sm:$0xff] 0.0
    %24 = vst [vmem:[#allocation2 + $0x10] sm:$0xff] 0.0
    %25 = vst [vmem:[#allocation2 + $0x18] sm:$0xff] 0.0
    %26 = vst [vmem:[#allocation2 + $0x20] sm:$0xff] 0.0
    %27 = vst [vmem:[#allocation2 + $0x28] sm:$0xff] 0.0
  $region21: #{_lambda_.36} parent=0 // pred_fallthru
    _
  %v28 = vld [vmem:[#allocation2] sm:$0xff]
  %v29 = vld [vmem:[#allocation2 + $0x8] sm:$0xff]
  %v30 = vld [vmem:[#allocation2 + $0x10] sm:$0xff]
  %v31 = vld [vmem:[#allocation2 + $0x18] sm:$0xff]
  %v32 = vld [vmem:[#allocation2 + $0x20] sm:$0xff]
  %v33 = vld [vmem:[#allocation2 + $0x28] sm:$0xff]
  %v34 = vld [vmem:[%s0] sm:$0xf]
  %v35 = vld [vmem:[%s0 + $0x4] sm:$0xf]
  %v36 = vld [vmem:[%s0 + $0x8] sm:$0xf]
  %v37 = vld [vmem:[%s1] sm:$0xff]
  %v38 = vld [vmem:[%s1 + $0x8] sm:$0xff]
  %v39 = vld [vmem:[%s1 + $0x10] sm:$0xff]
  %v40 = vld [vmem:[%s1 + $0x18] sm:$0xff]
  %v41 = vld [vmem:[%s1 + $0x20] sm:$0xff]
  %v42 = vld [vmem:[%s1 + $0x28] sm:$0xff]
  %v43 = vld [vmem:[%s1 + $0x30] sm:$0xff]
  %v44 = vld [vmem:[%s1 + $0x38] sm:$0xff]
  %v45 = vld [vmem:[%s1 + $0x40] sm:$0xff]
  %v46 = vld [vmem:[%s1 + $0x48] sm:$0xff]
  %v47 = vld [vmem:[%s1 + $0x50] sm:$0xff]
  %v48 = vld [vmem:[%s1 + $0x58] sm:$0xff]
  %v49 = vld [vmem:[%s1 + $0x60] sm:$0xff]
  %v50 = vld [vmem:[%s1 + $0x68] sm:$0xff]
  %v51 = vld [vmem:[%s1 + $0x70] sm:$0xff]
  %v52 = vld [vmem:[%s1 + $0x78] sm:$0xff]
  %v56 = vunpack.c.l.b16 %v34
  %v57 = vunpack.c.l.b16 %v35
  %v58 = vunpack.c.l.b16 %v36
  %v59 = vpack.c.b16 %v57, %v56
  %v60 = vpack.c.b16 %v58, %v58
  %v79 = vunpack.c.l.b16 %v37
  %v80 = vunpack.c.h.b16 %v37
  %v81 = vunpack.c.l.b16 %v38
  %v82 = vunpack.c.h.b16 %v38
  %v83 = vunpack.c.l.b16 %v39
  %v84 = vunpack.c.h.b16 %v39
  %v85 = vunpack.c.l.b16 %v40
  %v86 = vunpack.c.h.b16 %v40
  %v87 = vunpack.c.l.b16 %v41
  %v88 = vunpack.c.h.b16 %v41
  %v89 = vunpack.c.l.b16 %v42
  %v90 = vunpack.c.h.b16 %v42
  %v91 = vunpack.c.l.b16 %v43
  %v92 = vunpack.c.h.b16 %v43
  %v93 = vunpack.c.l.b16 %v44
  %v94 = vunpack.c.h.b16 %v44
  %v95 = vunpack.c.l.b16 %v45
  %v96 = vunpack.c.h.b16 %v45
  %v97 = vunpack.c.l.b16 %v46
  %v98 = vunpack.c.h.b16 %v46
  %v99 = vunpack.c.l.b16 %v47
  %v100 = vunpack.c.h.b16 %v47
  %v101 = vunpack.c.l.b16 %v48
  %v102 = vunpack.c.h.b16 %v48
  %v103 = vunpack.c.l.b16 %v49
  %v104 = vunpack.c.h.b16 %v49
  %v105 = vunpack.c.l.b16 %v50
  %v106 = vunpack.c.h.b16 %v50
  %v107 = vunpack.c.l.b16 %v51
  %v108 = vunpack.c.h.b16 %v51
  %v109 = vunpack.c.l.b16 %v52
  %v110 = vunpack.c.h.b16 %v52
  %v111 = vpack.c.b16 %v81, %v79
  %v112 = vpack.c.b16 %v82, %v80
  %v113 = vpack.c.b16 %v85, %v83
  %v114 = vpack.c.b16 %v86, %v84
  %v115 = vpack.c.b16 %v89, %v87
  %v116 = vpack.c.b16 %v90, %v88
  %v117 = vpack.c.b16 %v93, %v91
  %v118 = vpack.c.b16 %v94, %v92
  %v119 = vpack.c.b16 %v97, %v95
  %v120 = vpack.c.b16 %v98, %v96
  %v121 = vpack.c.b16 %v101, %v99
  %v122 = vpack.c.b16 %v102, %v100
  %v123 = vpack.c.b16 %v105, %v103
  %v124 = vpack.c.b16 %v106, %v104
  %v125 = vpack.c.b16 %v109, %v107
  %v126 = vpack.c.b16 %v110, %v108
  %143 = vmatprep.subr.bf16.mxu0 %v126
  %144 = vmatpush1.bf16.msra.mxu0 %v125
  %145 = vmatprep.subr.bf16.mxu0 %v124
  %146 = vmatpush1.bf16.msra.mxu0 %v123
  %147 = vmatprep.subr.bf16.mxu0 %v122
  %148 = vmatpush1.bf16.msra.mxu0 %v121
  %149 = vmatprep.subr.bf16.mxu0 %v120
  %150 = vmatpush1.bf16.msra.mxu0 %v119
  %151 = vmatprep.subr.bf16.mxu0 %v118
  %152 = vmatpush1.bf16.msra.mxu0 %v117
  %153 = vmatprep.subr.bf16.mxu0 %v116
  %154 = vmatpush1.bf16.msra.mxu0 %v115
  %155 = vmatprep.subr.bf16.mxu0 %v114
  %156 = vmatpush1.bf16.msra.mxu0 %v113
  %157 = vmatprep.subr.bf16.mxu0 %v112
  %158 = vmatpush1.bf16.msra.mxu0 %v111
  %159 = vmatprep.subr.bf16.mxu0 0
  %160 = vmatpush2.bf16.msra.mxu0 0
  %161 = vmatprep.subr.bf16.mxu0 0
  %162 = vmatpush2.bf16.msra.mxu0 0
  %163 = vmatprep.subr.bf16.mxu0 0
  %164 = vmatpush2.bf16.msra.mxu0 0
  %165 = vmatprep.subr.bf16.mxu0 0
  %166 = vmatpush2.bf16.msra.mxu0 0
  %167 = vmatprep.subr.bf16.mxu0 0
  %168 = vmatpush2.bf16.msra.mxu0 0
  %169 = vmatprep.subr.bf16.mxu0 0
  %170 = vmatpush2.bf16.msra.mxu0 0
  %171 = vmatprep.subr.bf16.mxu0 0
  %172 = vmatpush2.bf16.msra.mxu0 0
  %173 = vmatprep.subr.bf16.mxu0 0
  %174 = vmatpush2.bf16.msra.mxu0 0
  %175 = vmatprep.mubr.bf16.mxu0 0
  %176 = vmatmul.mubr.bf16.gmra.mxu0 %v59
  %v177 = vpop.f32.mrf.mxu0
  %v178 = vadd.f32 0.0, %v177
  %v179 = vpop.f32.mrf.mxu0
  %v180 = vadd.f32 0.0, %v179
  %v181 = vpop.f32.mrf.mxu0
  %v182 = vadd.f32 0.0, %v181
  %v183 = vpop.f32.mrf.mxu0
  %v184 = vadd.f32 0.0, %v183
  %185 = vmatprep.mubr.bf16.mxu0 0
  %186 = vmatmul.mubr.bf16.gmra.mxu0 %v60
  %v187 = vpop.f32.mrf.mxu0
  %v188 = vadd.f32 0.0, %v187
  %v189 = vpop.f32.mrf.mxu0
  %v190 = vadd.f32 0.0, %v189
  %v191 = vpop.f32.mrf.mxu0
  %v192 = vpop.f32.mrf.mxu0
  %193 = vdwg.mxu0
  %v194 = vadd.f32 %v28, %v178
  %v195 = vadd.f32 %v29, %v180
  %v196 = vadd.f32 %v30, %v182
  %v197 = vadd.f32 %v31, %v184
  %v198 = vadd.f32 %v32, %v188
  %v199 = vadd.f32 %v33, %v190
  %200 = vst [vmem:[#allocation2] sm:$0xff] %v194
  %201 = vst [vmem:[#allocation2 + $0x8] sm:$0xff] %v195
  %202 = vst [vmem:[#allocation2 + $0x10] sm:$0xff] %v196
  %203 = vst [vmem:[#allocation2 + $0x18] sm:$0xff] %v197
  %204 = vst [vmem:[#allocation2 + $0x20] sm:$0xff] %v198
  %205 = vst [vmem:[#allocation2 + $0x28] sm:$0xff] %v199
  // Predicated region
  $region22: #{_lambda_.36} parent=0 // pred_check
    %p206 = pneg %p18
  $region23: #{_lambda_.36} parent=0 // pred_check_branch
    %208 = sbr.rel (%p206) target = $region25
  $region24: #{_lambda_.36} parent=0 // pred_region
    %v209 = vld [vmem:[#allocation2] sm:$0xff]
    %v210 = vld [vmem:[#allocation2 + $0x8] sm:$0xff]
    %v211 = vld [vmem:[#allocation2 + $0x10] sm:$0xff]
    %v212 = vld [vmem:[#allocation2 + $0x18] sm:$0xff]
    %v213 = vld [vmem:[#allocation2 + $0x20] sm:$0xff]
    %v214 = vld [vmem:[#allocation2 + $0x28] sm:$0xff]
    %v215 = vld [vmem:[%s2] sm:$0x3]
    %v217 = vlaneseq
    %v218 = vshrl.u32 %v217, 7
    %v219 = vsub.s32 0, %v218
    %v220 = vrot.slane %v215, %v219
    %v221 = vlaneseq
    %v222 = vshrl.u32 %v221, 7
    %v223 = vsub.s32 1, %v222
    %v224 = vrot.slane %v215, %v223
    %v227 = vmul.f32 %v209, %v220
    %v228 = vmul.f32 %v210, %v224
    %v229 = vmul.f32 %v211, %v220
    %v230 = vmul.f32 %v212, %v224
    %v231 = vmul.f32 %v213, %v220
    %v232 = vmul.f32 %v214, %v224
    %v233 = vld [vmem:[%s3] sm:$0x3]
    %v235 = vlaneseq
    %v236 = vshrl.u32 %v235, 7
    %v237 = vsub.s32 0, %v236
    %v238 = vrot.slane %v233, %v237
    %v239 = vlaneseq
    %v240 = vshrl.u32 %v239, 7
    %v241 = vsub.s32 1, %v240
    %v242 = vrot.slane %v233, %v241
    %v245 = vadd.f32 %v227, %v238
    %v246 = vadd.f32 %v228, %v242
    %v247 = vadd.f32 %v229, %v238
    %v248 = vadd.f32 %v230, %v242
    %v249 = vadd.f32 %v231, %v238
    %v250 = vadd.f32 %v232, %v242
    %251 = vst [vmem:[%s4] sm:$0xff] %v245
    %252 = vst [vmem:[%s4 + $0x8] sm:$0xff] %v246
    %253 = vst [vmem:[%s4 + $0x10] sm:$0xff] %v247
    %254 = vst [vmem:[%s4 + $0x18] sm:$0xff] %v248
    %255 = vst [vmem:[%s4 + $0x20] sm:$0xff] %v249
    %256 = vst [vmem:[%s4 + $0x28] sm:$0xff] %v250
  $region25: #{_lambda_.36} parent=0 // pred_fallthru
    _
  // Predicated region
  $region26: #{_lambda_.36} parent=0 // pred_check
    _
  $region27: #{_lambda_.36} parent=0 // pred_check_branch
    %258 = sbr.rel (0) target = $region29
  $region28: #{_lambda_.36} parent=0 // pred_region
    _
  $region29: #{_lambda_.36} parent=0 // pred_fallthru
    _
  // Predicated region
  $region30: #{_lambda_.36} parent=0 // pred_check
    _
  $region31: #{_lambda_.36} parent=0 // pred_check_branch
    %260 = sbr.rel (0) target = $region33
  $region32: #{_lambda_.36} parent=0 // pred_region
    _
  $region33: #{_lambda_.36} parent=0 // pred_fallthru
    _

// kernel: _lambda_.39
$region0: #{_lambda_.39}
  #allocation0 [shape = 'u32[]', space=smem, size = 0x4, offset = 0x4, fixed_abs, tag = 'smem constant byte address 0x4 - core index']
  #allocation1 [shape = 'u32[144,128]{1,0:T(1,128)}', space=vmem, size = 0x12000, scoped, tag = 'internal scratch']
  #allocation2 [shape = 'f32[24,256]{1,0:T(8,128)}', space=vmem, size = 0x6000, scoped, tag = 'scratch operand']
  %s0 = inlined_call_operand.vmem [shape: bf16[24,64], index: 0, kind: input, shape index: {}]
  %s1 = inlined_call_operand.vmem [shape: bf16[64,256], index: 1, kind: input, shape index: {}]
  %s2 = inlined_call_operand.vmem [shape: f32[1,256], index: 2, kind: input, shape index: {}]
  %s3 = inlined_call_operand.vmem [shape: f32[1,256], index: 3, kind: input, shape index: {}]
  %s4 = inlined_call_operand.vmem [shape: f32[24,256], index: 4, kind: input, shape index: {}]
  %s5 = inlined_call_operand.vmem [shape: f32[24,256], index: 5, kind: output, shape index: {}]
  %s6 = sld [smem:[#allocation0]]
  $region38: #{_lambda_.39} parent=0
    _
  %s8 = ssub.s32 1, %s6
  %s9 = scalar_select 0, %s8, %s6
  // Predicated region
  $region2: #{_lambda_.39} parent=0 // pred_check
    _
  $region3: #{_lambda_.39} parent=0 // pred_check_branch
    %11 = sbr.rel (0) target = $region5
  $region4: #{_lambda_.39} parent=0 // pred_region
    _
  $region5: #{_lambda_.39} parent=0 // pred_fallthru
    _
  // Predicated region
  $region6: #{_lambda_.39} parent=0 // pred_check
    _
  $region7: #{_lambda_.39} parent=0 // pred_check_branch
    %13 = sbr.rel (0) target = $region9
  $region8: #{_lambda_.39} parent=0 // pred_region
    _
  $region9: #{_lambda_.39} parent=0 // pred_fallthru
    _
  // Predicated region
  $region10: #{_lambda_.39} parent=0 // pred_check
    _
  $region11: #{_lambda_.39} parent=0 // pred_check_branch
    %15 = sbr.rel (0) target = $region13
  $region12: #{_lambda_.39} parent=0 // pred_region
    _
  $region13: #{_lambda_.39} parent=0 // pred_fallthru
    _
  // Predicated region
  $region14: #{_lambda_.39} parent=0 // pred_check
    _
  $region15: #{_lambda_.39} parent=0 // pred_check_branch
    %17 = sbr.rel (0) target = $region17
  $region16: #{_lambda_.39} parent=0 // pred_region
    _
  $region17: #{_lambda_.39} parent=0 // pred_fallthru
    _
  // Predicated region
  $region18: #{_lambda_.39} parent=0 // pred_check
    _
  $region19: #{_lambda_.39} parent=0 // pred_check_branch
    %19 = sbr.rel (0) target = $region21
  $region20: #{_lambda_.39} parent=0 // pred_region
    _
  $region21: #{_lambda_.39} parent=0 // pred_fallthru
    _
  %p21 = scmp.eq.s32.totalorder 0, 0
  // Predicated region
  $region22: #{_lambda_.39} parent=0 // pred_check
    %p22 = pneg %p21
  $region23: #{_lambda_.39} parent=0 // pred_check_branch
    %24 = sbr.rel (%p22) target = $region25
  $region24: #{_lambda_.39} parent=0 // pred_region
    %25 = vst [vmem:[#allocation2] sm:$0xff] 0.0
    %26 = vst [vmem:[#allocation2 + $0x8] sm:$0xff] 0.0
    %27 = vst [vmem:[#allocation2 + $0x10] sm:$0xff] 0.0
    %28 = vst [vmem:[#allocation2 + $0x18] sm:$0xff] 0.0
    %29 = vst [vmem:[#allocation2 + $0x20] sm:$0xff] 0.0
    %30 = vst [vmem:[#allocation2 + $0x28] sm:$0xff] 0.0
  $region25: #{_lambda_.39} parent=0 // pred_fallthru
    _
  %v31 = vld [vmem:[#allocation2] sm:$0xff]
  %v32 = vld [vmem:[#allocation2 + $0x8] sm:$0xff]
  %v33 = vld [vmem:[#allocation2 + $0x10] sm:$0xff]
  %v34 = vld [vmem:[#allocation2 + $0x18] sm:$0xff]
  %v35 = vld [vmem:[#allocation2 + $0x20] sm:$0xff]
  %v36 = vld [vmem:[#allocation2 + $0x28] sm:$0xff]
  %v37 = vld [vmem:[%s0] sm:$0xf]
  %v38 = vld [vmem:[%s0 + $0x4] sm:$0xf]
  %v39 = vld [vmem:[%s0 + $0x8] sm:$0xf]
  %v40 = vld [vmem:[%s1] sm:$0xff]
  %v41 = vld [vmem:[%s1 + $0x8] sm:$0xff]
  %v42 = vld [vmem:[%s1 + $0x10] sm:$0xff]
  %v43 = vld [vmem:[%s1 + $0x18] sm:$0xff]
  %v44 = vld [vmem:[%s1 + $0x20] sm:$0xff]
  %v45 = vld [vmem:[%s1 + $0x28] sm:$0xff]
  %v46 = vld [vmem:[%s1 + $0x30] sm:$0xff]
  %v47 = vld [vmem:[%s1 + $0x38] sm:$0xff]
  %v51 = vunpack.c.l.b16 %v37
  %v52 = vunpack.c.l.b16 %v38
  %v53 = vunpack.c.l.b16 %v39
  %v54 = vpack.c.b16 %v52, %v51
  %v55 = vpack.c.b16 %v53, %v53
  %v64 = vunpack.c.l.b16 %v40
  %v65 = vunpack.c.h.b16 %v40
  %v66 = vunpack.c.l.b16 %v41
  %v67 = vunpack.c.h.b16 %v41
  %v68 = vunpack.c.l.b16 %v42
  %v69 = vunpack.c.h.b16 %v42
  %v70 = vunpack.c.l.b16 %v43
  %v71 = vunpack.c.h.b16 %v43
  %v72 = vunpack.c.l.b16 %v44
  %v73 = vunpack.c.h.b16 %v44
  %v74 = vunpack.c.l.b16 %v45
  %v75 = vunpack.c.h.b16 %v45
  %v76 = vunpack.c.l.b16 %v46
  %v77 = vunpack.c.h.b16 %v46
  %v78 = vunpack.c.l.b16 %v47
  %v79 = vunpack.c.h.b16 %v47
  %v80 = vpack.c.b16 %v66, %v64
  %v81 = vpack.c.b16 %v67, %v65
  %v82 = vpack.c.b16 %v70, %v68
  %v83 = vpack.c.b16 %v71, %v69
  %v84 = vpack.c.b16 %v74, %v72
  %v85 = vpack.c.b16 %v75, %v73
  %v86 = vpack.c.b16 %v78, %v76
  %v87 = vpack.c.b16 %v79, %v77
  %vm96 = vcmask 523264
  %v98 = vsel %vm96, %v54, 0
  %v101 = vsel %vm96, %v55, 0
  %103 = vmatprep.subr.bf16.mxu0 0
  %104 = vmatpush1.bf16.msra.mxu0 0
  %105 = vmatprep.subr.bf16.mxu0 0
  %106 = vmatpush1.bf16.msra.mxu0 0
  %107 = vmatprep.subr.bf16.mxu0 0
  %108 = vmatpush1.bf16.msra.mxu0 0
  %109 = vmatprep.subr.bf16.mxu0 0
  %110 = vmatpush1.bf16.msra.mxu0 0
  %111 = vmatprep.subr.bf16.mxu0 %v87
  %112 = vmatpush1.bf16.msra.mxu0 %v86
  %113 = vmatprep.subr.bf16.mxu0 %v85
  %114 = vmatpush1.bf16.msra.mxu0 %v84
  %115 = vmatprep.subr.bf16.mxu0 %v83
  %116 = vmatpush1.bf16.msra.mxu0 %v82
  %117 = vmatprep.subr.bf16.mxu0 %v81
  %118 = vmatpush1.bf16.msra.mxu0 %v80
  %119 = vmatprep.subr.bf16.mxu0 0
  %120 = vmatpush2.bf16.msra.mxu0 0
  %121 = vmatprep.subr.bf16.mxu0 0
  %122 = vmatpush2.bf16.msra.mxu0 0
  %123 = vmatprep.subr.bf16.mxu0 0
  %124 = vmatpush2.bf16.msra.mxu0 0
  %125 = vmatprep.subr.bf16.mxu0 0
  %126 = vmatpush2.bf16.msra.mxu0 0
  %127 = vmatprep.subr.bf16.mxu0 0
  %128 = vmatpush2.bf16.msra.mxu0 0
  %129 = vmatprep.subr.bf16.mxu0 0
  %130 = vmatpush2.bf16.msra.mxu0 0
  %131 = vmatprep.subr.bf16.mxu0 0
  %132 = vmatpush2.bf16.msra.mxu0 0
  %133 = vmatprep.subr.bf16.mxu0 0
  %134 = vmatpush2.bf16.msra.mxu0 0
  %135 = vmatprep.mubr.bf16.mxu0 0
  %136 = vmatmul.mubr.bf16.gmra.mxu0 %v98
  %v137 = vpop.f32.mrf.mxu0
  %v138 = vadd.f32 0.0, %v137
  %v139 = vpop.f32.mrf.mxu0
  %v140 = vadd.f32 0.0, %v139
  %v141 = vpop.f32.mrf.mxu0
  %v142 = vadd.f32 0.0, %v141
  %v143 = vpop.f32.mrf.mxu0
  %v144 = vadd.f32 0.0, %v143
  %145 = vmatprep.mubr.bf16.mxu0 0
  %146 = vmatmul.mubr.bf16.gmra.mxu0 %v101
  %v147 = vpop.f32.mrf.mxu0
  %v148 = vadd.f32 0.0, %v147
  %v149 = vpop.f32.mrf.mxu0
  %v150 = vadd.f32 0.0, %v149
  %v151 = vpop.f32.mrf.mxu0
  %v152 = vpop.f32.mrf.mxu0
  %153 = vdwg.mxu0
  %v154 = vadd.f32 %v31, %v138
  %v155 = vadd.f32 %v32, %v140
  %v156 = vadd.f32 %v33, %v142
  %v157 = vadd.f32 %v34, %v144
  %v158 = vadd.f32 %v35, %v148
  %v159 = vadd.f32 %v36, %v150
  %160 = vst [vmem:[#allocation2] sm:$0xff] %v154
  %161 = vst [vmem:[#allocation2 + $0x8] sm:$0xff] %v155
  %162 = vst [vmem:[#allocation2 + $0x10] sm:$0xff] %v156
  %163 = vst [vmem:[#allocation2 + $0x18] sm:$0xff] %v157
  %164 = vst [vmem:[#allocation2 + $0x20] sm:$0xff] %v158
  %165 = vst [vmem:[#allocation2 + $0x28] sm:$0xff] %v159
  // Predicated region
  $region26: #{_lambda_.39} parent=0 // pred_check
    %p166 = pneg %p21
  $region27: #{_lambda_.39} parent=0 // pred_check_branch
    %168 = sbr.rel (%p166) target = $region29
  $region28: #{_lambda_.39} parent=0 // pred_region
    %v169 = vld [vmem:[#allocation2] sm:$0xff]
    %v170 = vld [vmem:[#allocation2 + $0x8] sm:$0xff]
    %v171 = vld [vmem:[#allocation2 + $0x10] sm:$0xff]
    %v172 = vld [vmem:[#allocation2 + $0x18] sm:$0xff]
    %v173 = vld [vmem:[#allocation2 + $0x20] sm:$0xff]
    %v174 = vld [vmem:[#allocation2 + $0x28] sm:$0xff]
    %v175 = vld [vmem:[%s2] sm:$0x3]
    %v177 = vlaneseq
    %v178 = vshrl.u32 %v177, 7
    %v179 = vsub.s32 0, %v178
    %v180 = vrot.slane %v175, %v179
    %v181 = vlaneseq
    %v182 = vshrl.u32 %v181, 7
    %v183 = vsub.s32 1, %v182
    %v184 = vrot.slane %v175, %v183
    %v187 = vmul.f32 %v169, %v180
    %v188 = vmul.f32 %v170, %v184
    %v189 = vmul.f32 %v171, %v180
    %v190 = vmul.f32 %v172, %v184
    %v191 = vmul.f32 %v173, %v180
    %v192 = vmul.f32 %v174, %v184
    %v193 = vld [vmem:[%s3] sm:$0x3]
    %v195 = vlaneseq
    %v196 = vshrl.u32 %v195, 7
    %v197 = vsub.s32 0, %v196
    %v198 = vrot.slane %v193, %v197
    %v199 = vlaneseq
    %v200 = vshrl.u32 %v199, 7
    %v201 = vsub.s32 1, %v200
    %v202 = vrot.slane %v193, %v201
    %v205 = vadd.f32 %v187, %v198
    %v206 = vadd.f32 %v188, %v202
    %v207 = vadd.f32 %v189, %v198
    %v208 = vadd.f32 %v190, %v202
    %v209 = vadd.f32 %v191, %v198
    %v210 = vadd.f32 %v192, %v202
    %v211 = vld [vmem:[%s4] sm:$0xff]
    %v212 = vld [vmem:[%s4 + $0x8] sm:$0xff]
    %v213 = vld [vmem:[%s4 + $0x10] sm:$0xff]
    %v214 = vld [vmem:[%s4 + $0x18] sm:$0xff]
    %v215 = vld [vmem:[%s4 + $0x20] sm:$0xff]
    %v216 = vld [vmem:[%s4 + $0x28] sm:$0xff]
    %v217 = vadd.f32 %v205, %v211
    %v218 = vadd.f32 %v206, %v212
    %v219 = vadd.f32 %v207, %v213
    %v220 = vadd.f32 %v208, %v214
    %v221 = vadd.f32 %v209, %v215
    %v222 = vadd.f32 %v210, %v216
    %v223 = vmax.f32 %v217, 0.0
    %v224 = vmax.f32 %v218, 0.0
    %v225 = vmax.f32 %v219, 0.0
    %v226 = vmax.f32 %v220, 0.0
    %v227 = vmax.f32 %v221, 0.0
    %v228 = vmax.f32 %v222, 0.0
    %229 = vst [vmem:[%s5] sm:$0xff] %v223
    %230 = vst [vmem:[%s5 + $0x8] sm:$0xff] %v224
    %231 = vst [vmem:[%s5 + $0x10] sm:$0xff] %v225
    %232 = vst [vmem:[%s5 + $0x18] sm:$0xff] %v226
    %233 = vst [vmem:[%s5 + $0x20] sm:$0xff] %v227
    %234 = vst [vmem:[%s5 + $0x28] sm:$0xff] %v228
  $region29: #{_lambda_.39} parent=0 // pred_fallthru
    _
  // Predicated region
  $region30: #{_lambda_.39} parent=0 // pred_check
    _
  $region31: #{_lambda_.39} parent=0 // pred_check_branch
    %236 = sbr.rel (0) target = $region33
  $region32: #{_lambda_.39} parent=0 // pred_region
    _
  $region33: #{_lambda_.39} parent=0 // pred_fallthru
    _
  // Predicated region
  $region34: #{_lambda_.39} parent=0 // pred_check
    _
  $region35: #{_lambda_.39} parent=0 // pred_check_branch
    %238 = sbr.rel (0) target = $region37
  $region36: #{_lambda_.39} parent=0 // pred_region
    _
  $region37: #{_lambda_.39} parent=0 // pred_fallthru
    _

// kernel: _lambda_.41
$region0: #{_lambda_.41}
  #allocation0 [shape = 'u32[]', space=smem, size = 0x4, offset = 0x4, fixed_abs, tag = 'smem constant byte address 0x4 - core index']
  #allocation1 [shape = 'u32[144,128]{1,0:T(1,128)}', space=vmem, size = 0x12000, scoped, tag = 'internal scratch']
  %s0 = inlined_call_operand.vmem [shape: f32[2,3,3,256], index: 0, kind: input, shape index: {}]
  %s1 = inlined_call_operand.vmem [shape: f32[2,3,3,256], index: 1, kind: output, shape index: {}]
  %s2 = sld [smem:[#allocation0]]
  $region37: #{_lambda_.41} parent=0
    _
  %s4 = ssub.s32 1, %s2
  %s5 = scalar_select 0, %s4, %s2
  loop: start=0, step=1, limit=4
  $region2: #{_lambda_.41} parent=0 // loop_pre_header
    _
  $region3: #{_lambda_.41} parent=0 // loop_header
    %s7 = sphi 0, %s11
    %p8 = scmp.ge.s32.totalorder %s7, 4
    %s17 = sphi 0, %s19
    %s20 = sphi 0, %s17
    %s21 = sphi 0, %s20
    %s37 = sphi 0, %s21
    %s43 = sphi 0, %s45
    %s46 = sphi 0, %s43
    %s47 = sphi 0, %s46
    %s63 = sphi 0, %s47
  $region4: #{_lambda_.41} parent=0 // loop_header_branch
    %10 = sbr.rel (%p8) target = $region8
  $region5: #{_lambda_.41} parent=0 // loop_body
    %s12 = ssub.s32 %s7, 1
    %s13 = ssub.s32 %s7, 2
    %s14 = sadd.s32 %s7, 1
    %s15 = ssub.s32 %s7, %s14
    %p16 = scmp.eq.s32.totalorder %s15, 0
    %s18 = sadd.s32 %s17, 1
    %s19 = scalar_select %p16, %s17, %s18
    %p22 = pneg %p16
    %p23 = scmp.eq.s32.totalorder %s7, 1
    %p24 = por %p22, %p23
    %p25 = scmp.ne.s32.totalorder %s17, %s20
    %p26 = scmp.eq.s32.totalorder %s7, 0
    %p27 = por %p25, %p26
    %p28 = scmp.ne.s32.totalorder %s17, %s20
    %p29 = scmp.eq.s32.totalorder %s12, 1
    %p30 = por %p28, %p29
    %p31 = scmp.ne.s32.totalorder %s20, %s21
    %p32 = scmp.eq.s32.totalorder %s12, 0
    %p33 = por %p31, %p32
    %p34 = scmp.ne.s32.totalorder %s20, %s21
    %p35 = scmp.eq.s32.totalorder %s13, 1
    %p36 = por %p34, %p35
    %p38 = scmp.ne.s32.totalorder %s21, %s37
    %p39 = scmp.eq.s32.totalorder %s13, 0
    %p40 = por %p38, %p39
    %s41 = ssub.s32 %s7, %s14
    %p42 = scmp.eq.s32.totalorder %s41, 0
    %s44 = sadd.s32 %s43, 1
    %s45 = scalar_select %p42, %s43, %s44
    %p48 = pneg %p42
    %p49 = scmp.eq.s32.totalorder %s7, 1
    %p50 = por %p48, %p49
    %p51 = scmp.ne.s32.totalorder %s43, %s46
    %p52 = scmp.eq.s32.totalorder %s7, 0
    %p53 = por %p51, %p52
    %p54 = scmp.ne.s32.totalorder %s43, %s46
    %p55 = scmp.eq.s32.totalorder %s12, 1
    %p56 = por %p54, %p55
    %p57 = scmp.ne.s32.totalorder %s46, %s47
    %p58 = scmp.eq.s32.totalorder %s12, 0
    %p59 = por %p57, %p58
    %p60 = scmp.ne.s32.totalorder %s46, %s47
    %p61 = scmp.eq.s32.totalorder %s13, 1
    %p62 = por %p60, %p61
    %p64 = scmp.ne.s32.totalorder %s47, %s63
    %p65 = scmp.eq.s32.totalorder %s13, 0
    %p66 = por %p64, %p65
    %p67 = scmp.le.s32.totalorder 1, %s7
    %p68 = scmp.lt.s32.totalorder %s7, 3
    %p69 = pnand %p67, %p68
    %p70 = pneg %p69
    // Predicated region
    $region9: #{_lambda_.41} parent=5 // pred_check
      _
    $region10: #{_lambda_.41} parent=5 // pred_check_branch
      %72 = sbr.rel (%p69) target = $region12
    $region11: #{_lambda_.41} parent=5 // pred_region
      %s73 = ssub.s32 %s7, 1
    $region12: #{_lambda_.41} parent=5 // pred_fallthru
      _
    %p74 = scmp.lt.s32.totalorder %s7, 2
    // Predicated region
    $region13: #{_lambda_.41} parent=5 // pred_check
      %p75 = pneg %p74
    $region14: #{_lambda_.41} parent=5 // pred_check_branch
      %77 = sbr.rel (%p75) target = $region16
    $region15: #{_lambda_.41} parent=5 // pred_region
      // Predicated region
      $region17: #{_lambda_.41} parent=15 // pred_check
        %p78 = pneg %p27
      $region18: #{_lambda_.41} parent=15 // pred_check_branch
        %80 = sbr.rel (%p78) target = $region20
      $region19: #{_lambda_.41} parent=15 // pred_region
        %p81 = scmp.lt.s32.totalorder %s7, 1
        %s82 = scalar_select %p81, %s7, 1
        %s83 = smul.addr %s82, 6
        %s84 = smul.addr %s83, 4
        %s85 = scalar_lea.vmem %s0, %s84
      $region20: #{_lambda_.41} parent=15 // pred_fallthru
        _
    $region16: #{_lambda_.41} parent=5 // pred_fallthru
      _
    %p86 = scmp.le.s32.totalorder 1, %s7
    %p87 = scmp.lt.s32.totalorder %s7, 3
    %p88 = pnand %p86, %p87
    %p89 = pneg %p88
    // Predicated region
    $region21: #{_lambda_.41} parent=5 // pred_check
      _
    $region22: #{_lambda_.41} parent=5 // pred_check_branch
      %91 = sbr.rel (%p88) target = $region24
    $region23: #{_lambda_.41} parent=5 // pred_region
      %s92 = ssub.s32 %s7, 1
      %p93 = scmp.lt.s32.totalorder %s12, 1
      %s94 = scalar_select %p93, %s12, 1
      %s95 = smul.addr %s94, 6
      %s96 = smul.addr %s95, 4
      %s97 = scalar_lea.vmem %s0, %s96
      %p98 = pneg %p33
      %p99 = pneg %p30
      %p100 = pneg %p59
      %p101 = pneg %p56
      %p102 = scmp.lt.s32.totalorder %s12, 1
      %s103 = scalar_select %p102, %s12, 1
      %s104 = smul.addr %s103, 6
      %s105 = smul.addr %s104, 4
      %s106 = scalar_lea.vmem %s1, %s105
      %p107 = scmp.lt.s32.totalorder %s12, 1
      %s108 = scalar_select %p107, %s12, 1
      %s109 = smul.addr %s108, 6
      %s110 = smul.addr %s109, 4
      %s111 = scalar_lea.vmem %s0, %s110
      %p112 = scmp.lt.s32.totalorder %s12, 1
      %s113 = scalar_select %p112, %s12, 1
      %s114 = smul.addr %s113, 6
      %s115 = smul.addr %s114, 4
      %s116 = scalar_lea.vmem %s1, %s115
      %v117 = vld [vmem:[%s111] sm:$0x77]
      %v118 = vld [vmem:[%s111 + $0x8] sm:$0x77]
      %v119 = vld [vmem:[%s111 + $0x10] sm:$0x77]
      %v123 = vcombine.high %v117, %v117
      %v124 = vcombine.high %v118, %v118
      %v125 = vcombine.high %v119, %v119
      %vm129 = vcmask 1042432
      %v130 = vsel %vm129, %v117, 0.0
      %v131 = vsel %vm129, %v118, 0.0
      %v132 = vadd.f32 %v130, %v131
      %v133 = vsel %vm129, %v119, 0.0
      %v134 = vadd.f32 %v132, %v133
      %v135 = vrot.slane %v134, 4
      %v136 = vadd.f32 %v134, %v135
      %v137 = vrot.slane %v136, 2
      %v138 = vadd.f32 %v136, %v137
      %v139 = vrot.slane %v138, 1
      %v140 = vadd.f32 %v138, %v139
      %v141 = vsel %vm129, %v123, 0.0
      %v142 = vsel %vm129, %v124, 0.0
      %v143 = vadd.f32 %v141, %v142
      %v144 = vsel %vm129, %v125, 0.0
      %v145 = vadd.f32 %v143, %v144
      %v146 = vrot.slane %v145, 4
      %v147 = vadd.f32 %v145, %v146
      %v148 = vrot.slane %v147, 2
      %v149 = vadd.f32 %v147, %v148
      %v150 = vrot.slane %v149, 1
      %v151 = vadd.f32 %v149, %v150
      %v152 = vmul.f32 %v117, %v117
      %v153 = vmul.f32 %v118, %v118
      %v154 = vmul.f32 %v119, %v119
      %v158 = vcombine.high %v152, %v152
      %v159 = vcombine.high %v153, %v153
      %v160 = vcombine.high %v154, %v154
      %v164 = vsel %vm129, %v152, 0.0
      %v165 = vsel %vm129, %v153, 0.0
      %v166 = vadd.f32 %v164, %v165
      %v167 = vsel %vm129, %v154, 0.0
      %v168 = vadd.f32 %v166, %v167
      %v169 = vrot.slane %v168, 4
      %v170 = vadd.f32 %v168, %v169
      %v171 = vrot.slane %v170, 2
      %v172 = vadd.f32 %v170, %v171
      %v173 = vrot.slane %v172, 1
      %v174 = vadd.f32 %v172, %v173
      %v175 = vsel %vm129, %v158, 0.0
      %v176 = vsel %vm129, %v159, 0.0
      %v177 = vadd.f32 %v175, %v176
      %v178 = vsel %vm129, %v160, 0.0
      %v179 = vadd.f32 %v177, %v178
      %v180 = vrot.slane %v179, 4
      %v181 = vadd.f32 %v179, %v180
      %v182 = vrot.slane %v181, 2
      %v183 = vadd.f32 %v181, %v182
      %v184 = vrot.slane %v183, 1
      %v185 = vadd.f32 %v183, %v184
      %v186 = vrcp.pop 9.0
      %v187 = vmul.f32 %v140, %v186
      %v188 = vmul.f32 %v151, %v186
      %v189 = vmul.f32 %v174, %v186
      %v190 = vmul.f32 %v185, %v186
      %v191 = vmul.f32 %v187, %v187
      %v192 = vmul.f32 %v188, %v188
      %v193 = vsub.f32 %v189, %v191
      %v194 = vsub.f32 %v190, %v192
      %v195 = vmax.f32 %v193, 0.0
      %v196 = vmax.f32 %v194, 0.0
      %v199 = vcombine.low %v187, %v188
      %v201 = vsub.f32 %v117, %v199
      %v202 = vsub.f32 %v118, %v199
      %v203 = vsub.f32 %v119, %v199
      %v204 = vadd.f32 %v195, 1e-05
      %v205 = vadd.f32 %v196, 1e-05
      %v206 = vrsqrt.pop %v204
      %v207 = vrsqrt.pop %v205
      %v210 = vcombine.low %v206, %v207
      %v212 = vmul.f32 %v201, %v210
      %v213 = vmul.f32 %v202, %v210
      %v214 = vmul.f32 %v203, %v210
      %v215 = vmax.f32 %v212, 0.0
      %v216 = vmax.f32 %v213, 0.0
      %v217 = vmax.f32 %v214, 0.0
      %218 = vst [vmem:[%s116] sm:$0x77] %v215
      %219 = vst [vmem:[%s116 + $0x8] sm:$0x77] %v216
      %220 = vst [vmem:[%s116 + $0x10] sm:$0x77] %v217
      %p221 = scmp.lt.s32.totalorder %s12, 1
      %s222 = scalar_select %p221, %s12, 1
      %s223 = smul.addr %s222, 6
      %s224 = smul.addr %s223, 4
      %s225 = scalar_lea.vmem %s1, %s224
      // Predicated region
      $region25: #{_lambda_.41} parent=23 // pred_check
        %p226 = pneg %p56
      $region26: #{_lambda_.41} parent=23 // pred_check_branch
        %228 = sbr.rel (%p226) target = $region28
      $region27: #{_lambda_.41} parent=23 // pred_region
        _
      $region28: #{_lambda_.41} parent=23 // pred_fallthru
        _
    $region24: #{_lambda_.41} parent=5 // pred_fallthru
      _
    %p229 = scmp.le.s32.totalorder 2, %s7
    // Predicated region
    $region29: #{_lambda_.41} parent=5 // pred_check
      %p230 = pneg %p229
    $region30: #{_lambda_.41} parent=5 // pred_check_branch
      %232 = sbr.rel (%p230) target = $region32
    $region31: #{_lambda_.41} parent=5 // pred_region
      %s233 = ssub.s32 %s7, 2
      // Predicated region
      $region33: #{_lambda_.41} parent=31 // pred_check
        %p234 = pneg %p62
      $region34: #{_lambda_.41} parent=31 // pred_check_branch
        %236 = sbr.rel (%p234) target = $region36
      $region35: #{_lambda_.41} parent=31 // pred_region
        %p237 = scmp.lt.s32.totalorder %s13, 1
        %s238 = scalar_select %p237, %s13, 1
        %s239 = smul.addr %s238, 6
        %s240 = smul.addr %s239, 4
        %s241 = scalar_lea.vmem %s1, %s240
      $region36: #{_lambda_.41} parent=31 // pred_fallthru
        _
    $region32: #{_lambda_.41} parent=5 // pred_fallthru
      _
  $region6: #{_lambda_.41} parent=0 // loop_footer
    %s11 = sadd.s32 1, %s7
  $region7: #{_lambda_.41} parent=0 // loop_footer_branch
    %6 = sbr.rel target = $region3
  $region8: #{_lambda_.41} parent=0 // loop_exit
    _

// kernel: _lambda_.40
$region0: #{_lambda_.40}
  #allocation0 [shape = 'u32[]', space=smem, size = 0x4, offset = 0x4, fixed_abs, tag = 'smem constant byte address 0x4 - core index']
  #allocation1 [shape = 'u32[144,128]{1,0:T(1,128)}', space=vmem, size = 0x12000, scoped, tag = 'internal scratch']
  #allocation2 [shape = 'f32[24,256]{1,0:T(8,128)}', space=vmem, size = 0x6000, scoped, tag = 'scratch operand']
  %s0 = inlined_call_operand.vmem [shape: bf16[24,2304], index: 0, kind: input, shape index: {}]
  %s1 = inlined_call_operand.vmem [shape: bf16[2304,256], index: 1, kind: input, shape index: {}]
  %s2 = inlined_call_operand.vmem [shape: f32[1,256], index: 2, kind: input, shape index: {}]
  %s3 = inlined_call_operand.vmem [shape: f32[1,256], index: 3, kind: input, shape index: {}]
  %s4 = inlined_call_operand.vmem [shape: f32[24,256], index: 4, kind: output, shape index: {}]
  %s5 = sld [smem:[#allocation0]]
  $region83: #{_lambda_.40} parent=0
    _
  %s7 = ssub.s32 1, %s5
  %s8 = scalar_select 0, %s7, %s5
  $region1: #{_lambda_.40} parent=0
    #allocation3 [shape = 'u8[36864]{0}', space=vmem, size = 0x9000, scoped, tag = 'input window, operand 0']
    loop: start=0, step=1, limit=8
    $region2: #{_lambda_.40} parent=1 // loop_pre_header
      _
    $region3: #{_lambda_.40} parent=1 // loop_header
      %s10 = sphi 0, %s14
      %p11 = scmp.ge.s32.totalorder %s10, 8
      %s17 = sphi 0, %s36
      %s18 = sphi 0, %s32
      %s19 = sphi 0, %s28
      %s20 = sphi 0, %s17
      %s21 = sphi 0, %s18
      %s22 = sphi 0, %s19
      %s23 = sphi 0, %s20
      %s24 = sphi 0, %s21
      %s25 = sphi 0, %s22
      %s41 = sphi 0, %s43
      %s44 = sphi 0, %s41
      %s45 = sphi 0, %s44
      %s61 = sphi 0, %s45
      %s69 = sphi 0, %s71
      %s72 = sphi 0, %s69
      %s73 = sphi 0, %s72
      %s89 = sphi 0, %s73
      %s95 = sphi 0, %s97
      %s98 = sphi 0, %s95
      %s99 = sphi 0, %s98
      %s115 = sphi 0, %s99
      %s121 = sphi 0, %s123
      %s124 = sphi 0, %s121
      %s125 = sphi 0, %s124
      %s141 = sphi 0, %s125
      %s149 = sphi 0, %s151
      %s152 = sphi 0, %s149
      %s153 = sphi 0, %s152
      %s169 = sphi 0, %s153
    $region4: #{_lambda_.40} parent=1 // loop_header_branch
      %13 = sbr.rel (%p11) target = $region8
    $region5: #{_lambda_.40} parent=1 // loop_body
      %s15 = ssub.s32 %s10, 1
      %s16 = ssub.s32 %s10, 2
      %s26 = sadd.s32 1, %s19
      %p27 = scmp.ge.s32.totalorder %s26, 6
      %s28 = scalar_select %p27, 0, %s26
      %s29 = sadd.s32 1, %s18
      %s30 = scalar_select %p27, %s29, %s18
      %p31 = scmp.ge.s32.totalorder %s30, 1
      %s32 = scalar_select %p31, 0, %s30
      %s33 = sadd.s32 1, %s17
      %s34 = scalar_select %p31, %s33, %s17
      %p35 = scmp.ge.s32.totalorder %s34, 1
      %s36 = scalar_select %p35, 0, %s34
      %s37 = ssub.s32 %s17, %s36
      %s38 = ssub.s32 %s19, %s28
      %s39 = sor.u32 %s37, %s38
      %p40 = scmp.eq.s32.totalorder %s39, 0
      %s42 = sadd.s32 %s41, 1
      %s43 = scalar_select %p40, %s41, %s42
      %p46 = pneg %p40
      %p47 = scmp.eq.s32.totalorder %s10, 5
      %p48 = por %p46, %p47
      %p49 = scmp.ne.s32.totalorder %s41, %s44
      %p50 = scmp.eq.s32.totalorder %s10, 0
      %p51 = por %p49, %p50
      %p52 = scmp.ne.s32.totalorder %s41, %s44
      %p53 = scmp.eq.s32.totalorder %s15, 5
      %p54 = por %p52, %p53
      %p55 = scmp.ne.s32.totalorder %s44, %s45
      %p56 = scmp.eq.s32.totalorder %s15, 0
      %p57 = por %p55, %p56
      %p58 = scmp.ne.s32.totalorder %s44, %s45
      %p59 = scmp.eq.s32.totalorder %s16, 5
      %p60 = por %p58, %p59
      %p62 = scmp.ne.s32.totalorder %s45, %s61
      %p63 = scmp.eq.s32.totalorder %s16, 0
      %p64 = por %p62, %p63
      %s65 = ssub.s32 %s19, %s28
      %s66 = ssub.s32 %s18, %s32
      %s67 = sor.u32 %s65, %s66
      %p68 = scmp.eq.s32.totalorder %s67, 0
      %s70 = sadd.s32 %s69, 1
      %s71 = scalar_select %p68, %s69, %s70
      %p74 = pneg %p68
      %p75 = scmp.eq.s32.totalorder %s10, 5
      %p76 = por %p74, %p75
      %p77 = scmp.ne.s32.totalorder %s69, %s72
      %p78 = scmp.eq.s32.totalorder %s10, 0
      %p79 = por %p77, %p78
      %p80 = scmp.ne.s32.totalorder %s69, %s72
      %p81 = scmp.eq.s32.totalorder %s15, 5
      %p82 = por %p80, %p81
      %p83 = scmp.ne.s32.totalorder %s72, %s73
      %p84 = scmp.eq.s32.totalorder %s15, 0
      %p85 = por %p83, %p84
      %p86 = scmp.ne.s32.totalorder %s72, %s73
      %p87 = scmp.eq.s32.totalorder %s16, 5
      %p88 = por %p86, %p87
      %p90 = scmp.ne.s32.totalorder %s73, %s89
      %p91 = scmp.eq.s32.totalorder %s16, 0
      %p92 = por %p90, %p91
      %s93 = ssub.s32 %s18, %s32
      %p94 = scmp.eq.s32.totalorder %s93, 0
      %s96 = sadd.s32 %s95, 1
      %s97 = scalar_select %p94, %s95, %s96
      %p100 = pneg %p94
      %p101 = scmp.eq.s32.totalorder %s10, 5
      %p102 = por %p100, %p101
      %p103 = scmp.ne.s32.totalorder %s95, %s98
      %p104 = scmp.eq.s32.totalorder %s10, 0
      %p105 = por %p103, %p104
      %p106 = scmp.ne.s32.totalorder %s95, %s98
      %p107 = scmp.eq.s32.totalorder %s15, 5
      %p108 = por %p106, %p107
      %p109 = scmp.ne.s32.totalorder %s98, %s99
      %p110 = scmp.eq.s32.totalorder %s15, 0
      %p111 = por %p109, %p110
      %p112 = scmp.ne.s32.totalorder %s98, %s99
      %p113 = scmp.eq.s32.totalorder %s16, 5
      %p114 = por %p112, %p113
      %p116 = scmp.ne.s32.totalorder %s99, %s115
      %p117 = scmp.eq.s32.totalorder %s16, 0
      %p118 = por %p116, %p117
      %s119 = ssub.s32 %s18, %s32
      %p120 = scmp.eq.s32.totalorder %s119, 0
      %s122 = sadd.s32 %s121, 1
      %s123 = scalar_select %p120, %s121, %s122
      %p126 = pneg %p120
      %p127 = scmp.eq.s32.totalorder %s10, 5
      %p128 = por %p126, %p127
      %p129 = scmp.ne.s32.totalorder %s121, %s124
      %p130 = scmp.eq.s32.totalorder %s10, 0
      %p131 = por %p129, %p130
      %p132 = scmp.ne.s32.totalorder %s121, %s124
      %p133 = scmp.eq.s32.totalorder %s15, 5
      %p134 = por %p132, %p133
      %p135 = scmp.ne.s32.totalorder %s124, %s125
      %p136 = scmp.eq.s32.totalorder %s15, 0
      %p137 = por %p135, %p136
      %p138 = scmp.ne.s32.totalorder %s124, %s125
      %p139 = scmp.eq.s32.totalorder %s16, 5
      %p140 = por %p138, %p139
      %p142 = scmp.ne.s32.totalorder %s125, %s141
      %p143 = scmp.eq.s32.totalorder %s16, 0
      %p144 = por %p142, %p143
      %s145 = ssub.s32 %s17, %s36
      %s146 = ssub.s32 %s18, %s32
      %s147 = sor.u32 %s145, %s146
      %p148 = scmp.eq.s32.totalorder %s147, 0
      %s150 = sadd.s32 %s149, 1
      %s151 = scalar_select %p148, %s149, %s150
      %p154 = pneg %p148
      %p155 = scmp.eq.s32.totalorder %s10, 5
      %p156 = por %p154, %p155
      %p157 = scmp.ne.s32.totalorder %s149, %s152
      %p158 = scmp.eq.s32.totalorder %s10, 0
      %p159 = por %p157, %p158
      %p160 = scmp.ne.s32.totalorder %s149, %s152
      %p161 = scmp.eq.s32.totalorder %s15, 5
      %p162 = por %p160, %p161
      %p163 = scmp.ne.s32.totalorder %s152, %s153
      %p164 = scmp.eq.s32.totalorder %s15, 0
      %p165 = por %p163, %p164
      %p166 = scmp.ne.s32.totalorder %s152, %s153
      %p167 = scmp.eq.s32.totalorder %s16, 5
      %p168 = por %p166, %p167
      %p170 = scmp.ne.s32.totalorder %s153, %s169
      %p171 = scmp.eq.s32.totalorder %s16, 0
      %p172 = por %p170, %p171
      %p173 = scmp.le.s32.totalorder 1, %s10
      %p174 = scmp.lt.s32.totalorder %s10, 7
      %p175 = pnand %p173, %p174
      %p176 = pneg %p175
      // Predicated region
      $region9: #{_lambda_.40} parent=5 // pred_check
        _
      $region10: #{_lambda_.40} parent=5 // pred_check_branch
        %178 = sbr.rel (%p175) target = $region12
      $region11: #{_lambda_.40} parent=5 // pred_region
        %s179 = ssub.s32 %s10, 1
        // Predicated region
        $region13: #{_lambda_.40} parent=11 // pred_check
          %p180 = pneg %p111
        $region14: #{_lambda_.40} parent=11 // pred_check_branch
          %182 = sbr.rel (%p180) target = $region16
        $region15: #{_lambda_.40} parent=11 // pred_region
          %s183 = smul.u32 2, %s21
          %p184 = scmp.lt.s32.totalorder %s183, 1
          %s185 = scalar_select %p184, %s183, 1
          %s186 = scalar_lea.vmem %s2, %s185
          %s187 = smul.u32 2, %s21
        $region16: #{_lambda_.40} parent=11 // pred_fallthru
          _
        // Predicated region
        $region17: #{_lambda_.40} parent=11 // pred_check
          %p188 = pneg %p137
        $region18: #{_lambda_.40} parent=11 // pred_check_branch
          %190 = sbr.rel (%p188) target = $region20
        $region19: #{_lambda_.40} parent=11 // pred_region
          %s191 = smul.u32 2, %s21
          %p192 = scmp.lt.s32.totalorder %s191, 1
          %s193 = scalar_select %p192, %s191, 1
          %s194 = scalar_lea.vmem %s3, %s193
          %s195 = smul.u32 2, %s21
        $region20: #{_lambda_.40} parent=11 // pred_fallthru
          _
      $region12: #{_lambda_.40} parent=5 // pred_fallthru
        _
      %p196 = scmp.lt.s32.totalorder %s10, 6
      // Predicated region
      $region21: #{_lambda_.40} parent=5 // pred_check
        %p197 = pneg %p196
      $region22: #{_lambda_.40} parent=5 // pred_check_branch
        %199 = sbr.rel (%p197) target = $region24
      $region23: #{_lambda_.40} parent=5 // pred_region
        // Predicated region
        $region25: #{_lambda_.40} parent=23 // pred_check
          %p200 = pneg %p51
        $region26: #{_lambda_.40} parent=23 // pred_check_branch
          %202 = sbr.rel (%p200) target = $region28
        $region27: #{_lambda_.40} parent=23 // pred_region
          %s203 = sand.u32 %s41, 1
          %s204 = sand.u32 %s41, 1
          %s205 = smul.addr %s204, 36
          %s206 = scalar_lea.vmem [#allocation3], %s205
          %s207 = smul.u32 3, %s17
          %s208 = smul.u32 3, %s19
          %s209 = smul.addr %s207, 18
          %s210 = sadd.s32 %s208, %s209
          %s211 = smul.addr %s210, 4
          %s212 = scalar_lea.vmem %s0, %s211
          // Predicated region
          $region29: #{_lambda_.40} parent=27 // pred_check
            _
          $region30: #{_lambda_.40} parent=27 // pred_check_branch
            %214 = sbr.rel (0) target = $region32
          $region31: #{_lambda_.40} parent=27 // pred_region
            // Predicated region
            $region33: #{_lambda_.40} parent=31 // pred_check
              _
            $region34: #{_lambda_.40} parent=31 // pred_check_branch
              %216 = sbr.rel (0) target = $region36
            $region35: #{_lambda_.40} parent=31 // pred_region
              %s217 = scalar_lea.vmem %s212, 8
              %s218 = scalar_lea.vmem %s206, 8 [#allocation3]
              loop: start=0, step=1, limit=1
              $region37: #{_lambda_.40} parent=35 // loop_pre_header
                _
              $region38: #{_lambda_.40} parent=35 // loop_header
                %s220 = sphi 0, %s224
                %p221 = scmp.ge.s32.totalorder %s220, 1
                %s225 = sphi %s212, %s212
                %s226 = sphi %s206, %s206
              $region39: #{_lambda_.40} parent=35 // loop_header_branch
                %223 = sbr.rel (%p221) target = $region43
              $region40: #{_lambda_.40} parent=35 // loop_body
                %v227 = vld [vmem:[%s225] sm:$0xff]
                %228 = vst [vmem:[%s226] sm:$0xff] %v227
                %v229 = vld [vmem:[%s225 + $0x48] sm:$0xff]
                %230 = vst [vmem:[%s226 + $0xc] sm:$0xff] %v229
                %v231 = vld [vmem:[%s225 + $0x90] sm:$0xff]
                %232 = vst [vmem:[%s226 + $0x18] sm:$0xff] %v231
              $region41: #{_lambda_.40} parent=35 // loop_footer
                %s224 = sadd.s32 1, %s220
              $region42: #{_lambda_.40} parent=35 // loop_footer_branch
                %219 = sbr.rel target = $region38
              $region43: #{_lambda_.40} parent=35 // loop_exit
                _
              %s234 = ssub.s32 16, 1
              loop: start=0, step=1, limit=1
              $region44: #{_lambda_.40} parent=35 // loop_pre_header
                _
              $region45: #{_lambda_.40} parent=35 // loop_header
                %s236 = sphi 0, %s240
                %p237 = scmp.ge.s32.totalorder %s236, 1
                %s241 = sphi %s217, %s217
                %s242 = sphi %s218, %s218
              $region46: #{_lambda_.40} parent=35 // loop_header_branch
                %239 = sbr.rel (%p237) target = $region50
              $region47: #{_lambda_.40} parent=35 // loop_body
                %v243 = vld [vmem:[%s241] sm:%s234]
                %244 = vst [vmem:[%s242] sm:%s234] %v243
                %v245 = vld [vmem:[%s241 + $0x48] sm:%s234]
                %246 = vst [vmem:[%s242 + $0xc] sm:%s234] %v245
                %v247 = vld [vmem:[%s241 + $0x90] sm:%s234]
                %248 = vst [vmem:[%s242 + $0x18] sm:%s234] %v247
              $region48: #{_lambda_.40} parent=35 // loop_footer
                %s240 = sadd.s32 1, %s236
              $region49: #{_lambda_.40} parent=35 // loop_footer_branch
                %235 = sbr.rel target = $region45
              $region50: #{_lambda_.40} parent=35 // loop_exit
                _
            $region36: #{_lambda_.40} parent=31 // pred_fallthru
              _
          $region32: #{_lambda_.40} parent=27 // pred_fallthru
            _
          %249 = vnop
        $region28: #{_lambda_.40} parent=23 // pred_fallthru
          _
        // Predicated region
        $region51: #{_lambda_.40} parent=23 // pred_check
          %p250 = pneg %p79
        $region52: #{_lambda_.40} parent=23 // pred_check_branch
          %252 = sbr.rel (%p250) target = $region54
        $region53: #{_lambda_.40} parent=23 // pred_region
          %s253 = smul.u32 48, %s19
          %s254 = smul.u32 2, %s18
          %p255 = scmp.lt.s32.totalorder %s253, 287
          %s256 = scalar_select %p255, %s253, 287
          %p257 = scmp.lt.s32.totalorder %s254, 1
          %s258 = scalar_select %p257, %s254, 1
          %s259 = smul.addr %s256, 2
          %s260 = sadd.s32 %s258, %s259
          %s261 = smul.addr %s260, 4
          %s262 = scalar_lea.vmem %s1, %s261
          %s263 = smul.u32 48, %s19
          %s264 = smul.u32 2, %s18
        $region54: #{_lambda_.40} parent=23 // pred_fallthru
          _
      $region24: #{_lambda_.40} parent=5 // pred_fallthru
        _
      %p265 = scmp.le.s32.totalorder 1, %s10
      %p266 = scmp.lt.s32.totalorder %s10, 7
      %p267 = pnand %p265, %p266
      %p268 = pneg %p267
      // Predicated region
      $region55: #{_lambda_.40} parent=5 // pred_check
        _
      $region56: #{_lambda_.40} parent=5 // pred_check_branch
        %270 = sbr.rel (%p267) target = $region58
      $region57: #{_lambda_.40} parent=5 // pred_region
        %s271 = ssub.s32 %s10, 1
        %s272 = sand.u32 %s44, 1
        %s273 = sand.u32 %s44, 1
        %s274 = smul.addr %s273, 36
        %s275 = scalar_lea.vmem [#allocation3], %s274
        // Predicated region
        $region59: #{_lambda_.40} parent=57 // pred_check
          %p276 = pneg %p57
        $region60: #{_lambda_.40} parent=57 // pred_check_branch
          %278 = sbr.rel (%p276) target = $region62
        $region61: #{_lambda_.40} parent=57 // pred_region
          _
        $region62: #{_lambda_.40} parent=57 // pred_fallthru
          _
        %s279 = sand.u32 %s44, 1
        %s280 = sand.u32 %s44, 1
        %s281 = smul.addr %s280, 36
        %s282 = scalar_lea.vmem [#allocation3], %s281
        %p283 = pneg %p57
        %p284 = pneg %p54
        %s285 = smul.u32 48, %s22
        %s286 = smul.u32 2, %s21
        %p287 = scmp.lt.s32.totalorder %s285, 287
        %s288 = scalar_select %p287, %s285, 287
        %p289 = scmp.lt.s32.totalorder %s286, 1
        %s290 = scalar_select %p289, %s286, 1
        %s291 = smul.addr %s288, 2
        %s292 = sadd.s32 %s290, %s291
        %s293 = smul.addr %s292, 4
        %s294 = scalar_lea.vmem %s1, %s293
        %p295 = pneg %p85
        %p296 = pneg %p82
        %s297 = smul.u32 2, %s21
        %p298 = scmp.lt.s32.totalorder %s297, 1
        %s299 = scalar_select %p298, %s297, 1
        %s300 = scalar_lea.vmem %s2, %s299
        %p301 = pneg %p111
        %p302 = pneg %p108
        %s303 = smul.u32 2, %s21
        %p304 = scmp.lt.s32.totalorder %s303, 1
        %s305 = scalar_select %p304, %s303, 1
        %s306 = scalar_lea.vmem %s3, %s305
        %p307 = pneg %p137
        %p308 = pneg %p134
        %p309 = pneg %p165
        %p310 = pneg %p162
        %s311 = smul.u32 3, %s20
        %s312 = smul.u32 2, %s21
        %p313 = scmp.lt.s32.totalorder %s311, 2
        %s314 = scalar_select %p313, %s311, 2
        %p315 = scmp.lt.s32.totalorder %s312, 1
        %s316 = scalar_select %p315, %s312, 1
        %s317 = smul.addr %s314, 2
        %s318 = sadd.s32 %s316, %s317
        %s319 = smul.addr %s318, 8
        %s320 = scalar_lea.vmem %s4, %s319
        %s321 = smul.u32 3, %s20
        %s322 = smul.u32 3, %s22
        %s323 = smul.u32 48, %s22
        %s324 = smul.u32 2, %s21
        %p325 = scmp.lt.s32.totalorder %s323, 287
        %s326 = scalar_select %p325, %s323, 287
        %p327 = scmp.lt.s32.totalorder %s324, 1
        %s328 = scalar_select %p327, %s324, 1
        %s329 = smul.addr %s326, 2
        %s330 = sadd.s32 %s328, %s329
        %s331 = smul.addr %s330, 4
        %s332 = scalar_lea.vmem %s1, %s331
        %s333 = smul.u32 48, %s22
        %s334 = smul.u32 2, %s21
        %s335 = smul.u32 2, %s21
        %p336 = scmp.lt.s32.totalorder %s335, 1
        %s337 = scalar_select %p336, %s335, 1
        %s338 = scalar_lea.vmem %s2, %s337
        %s339 = smul.u32 2, %s21
        %s340 = smul.u32 2, %s21
        %p341 = scmp.lt.s32.totalorder %s340, 1
        %s342 = scalar_select %p341, %s340, 1
        %s343 = scalar_lea.vmem %s3, %s342
        %s344 = smul.u32 2, %s21
        %s345 = smul.u32 3, %s20
        %s346 = smul.u32 2, %s21
        %p347 = scmp.lt.s32.totalorder %s345, 2
        %s348 = scalar_select %p347, %s345, 2
        %p349 = scmp.lt.s32.totalorder %s346, 1
        %s350 = scalar_select %p349, %s346, 1
        %s351 = smul.addr %s348, 2
        %s352 = sadd.s32 %s350, %s351
        %s353 = smul.addr %s352, 8
        %s354 = scalar_lea.vmem %s4, %s353
        %s355 = smul.u32 3, %s20
        %s356 = smul.u32 2, %s21
        %p358 = scmp.eq.s32.totalorder %s22, 0
        // Predicated region
        $region63: #{_lambda_.40} parent=57 // pred_check
          %p359 = pneg %p358
        $region64: #{_lambda_.40} parent=57 // pred_check_branch
          %361 = sbr.rel (%p359) target = $region66
        $region65: #{_lambda_.40} parent=57 // pred_region
          %362 = vst [vmem:[#allocation2] sm:$0xff] 0.0
          %363 = vst [vmem:[#allocation2 + $0x8] sm:$0xff] 0.0
          %364 = vst [vmem:[#allocation2 + $0x10] sm:$0xff] 0.0
          %365 = vst [vmem:[#allocation2 + $0x18] sm:$0xff] 0.0
          %366 = vst [vmem:[#allocation2 + $0x20] sm:$0xff] 0.0
          %367 = vst [vmem:[#allocation2 + $0x28] sm:$0xff] 0.0
        $region66: #{_lambda_.40} parent=57 // pred_fallthru
          _
        %v368 = vld [vmem:[#allocation2] sm:$0xff]
        %v369 = vld [vmem:[#allocation2 + $0x8] sm:$0xff]
        %v370 = vld [vmem:[#allocation2 + $0x10] sm:$0xff]
        %v371 = vld [vmem:[#allocation2 + $0x18] sm:$0xff]
        %v372 = vld [vmem:[#allocation2 + $0x20] sm:$0xff]
        %v373 = vld [vmem:[#allocation2 + $0x28] sm:$0xff]
        %v374 = vld [vmem:[%s275] sm:$0xff]
        %v375 = vld [vmem:[%s275 + $0x8] sm:$0xf]
        %v376 = vld [vmem:[%s275 + $0xc] sm:$0xff]
        %v377 = vld [vmem:[%s275 + $0x14] sm:$0xf]
        %v378 = vld [vmem:[%s275 + $0x18] sm:$0xff]
        %v379 = vld [vmem:[%s275 + $0x20] sm:$0xf]
        %v380 = vld [vmem:[%s332] sm:$0xff]
        %v381 = vld [vmem:[%s332 + $0x8] sm:$0xff]
        %v382 = vld [vmem:[%s332 + $0x10] sm:$0xff]
        %v383 = vld [vmem:[%s332 + $0x18] sm:$0xff]
        %v384 = vld [vmem:[%s332 + $0x20] sm:$0xff]
        %v385 = vld [vmem:[%s332 + $0x28] sm:$0xff]
        %v386 = vld [vmem:[%s332 + $0x30] sm:$0xff]
        %v387 = vld [vmem:[%s332 + $0x38] sm:$0xff]
        %v388 = vld [vmem:[%s332 + $0x40] sm:$0xff]
        %v389 = vld [vmem:[%s332 + $0x48] sm:$0xff]
        %v390 = vld [vmem:[%s332 + $0x50] sm:$0xff]
        %v391 = vld [vmem:[%s332 + $0x58] sm:$0xff]
        %v392 = vld [vmem:[%s332 + $0x60] sm:$0xff]
        %v393 = vld [vmem:[%s332 + $0x68] sm:$0xff]
        %v394 = vld [vmem:[%s332 + $0x70] sm:$0xff]
        %v395 = vld [vmem:[%s332 + $0x78] sm:$0xff]
        %v396 = vld [vmem:[%s332 + $0x80] sm:$0xff]
        %v397 = vld [vmem:[%s332 + $0x88] sm:$0xff]
        %v398 = vld [vmem:[%s332 + $0x90] sm:$0xff]
        %v399 = vld [vmem:[%s332 + $0x98] sm:$0xff]
        %v400 = vld [vmem:[%s332 + $0xa0] sm:$0xff]
        %v401 = vld [vmem:[%s332 + $0xa8] sm:$0xff]
        %v402 = vld [vmem:[%s332 + $0xb0] sm:$0xff]
        %v403 = vld [vmem:[%s332 + $0xb8] sm:$0xff]
        %v404 = vld [vmem:[%s332 + $0xc0] sm:$0xff]
        %v405 = vld [vmem:[%s332 + $0xc8] sm:$0xff]
        %v406 = vld [vmem:[%s332 + $0xd0] sm:$0xff]
        %v407 = vld [vmem:[%s332 + $0xd8] sm:$0xff]
        %v408 = vld [vmem:[%s332 + $0xe0] sm:$0xff]
        %v409 = vld [vmem:[%s332 + $0xe8] sm:$0xff]
        %v410 = vld [vmem:[%s332 + $0xf0] sm:$0xff]
        %v411 = vld [vmem:[%s332 + $0xf8] sm:$0xff]
        %v412 = vld [vmem:[%s332 + $0x100] sm:$0xff]
        %v413 = vld [vmem:[%s332 + $0x108] sm:$0xff]
        %v414 = vld [vmem:[%s332 + $0x110] sm:$0xff]
        %v415 = vld [vmem:[%s332 + $0x118] sm:$0xff]
        %v416 = vld [vmem:[%s332 + $0x120] sm:$0xff]
        %v417 = vld [vmem:[%s332 + $0x128] sm:$0xff]
        %v418 = vld [vmem:[%s332 + $0x130] sm:$0xff]
        %v419 = vld [vmem:[%s332 + $0x138] sm:$0xff]
        %v420 = vld [vmem:[%s332 + $0x140] sm:$0xff]
        %v421 = vld [vmem:[%s332 + $0x148] sm:$0xff]
        %v422 = vld [vmem:[%s332 + $0x150] sm:$0xff]
        %v423 = vld [vmem:[%s332 + $0x158] sm:$0xff]
        %v424 = vld [vmem:[%s332 + $0x160] sm:$0xff]
        %v425 = vld [vmem:[%s332 + $0x168] sm:$0xff]
        %v426 = vld [vmem:[%s332 + $0x170] sm:$0xff]
        %v427 = vld [vmem:[%s332 + $0x178] sm:$0xff]
        %v434 = vunpack.c.l.b16 %v374
        %v435 = vunpack.c.h.b16 %v374
        %v436 = vunpack.c.l.b16 %v375
        %v437 = vunpack.c.l.b16 %v376
        %v438 = vunpack.c.h.b16 %v376
        %v439 = vunpack.c.l.b16 %v377
        %v440 = vunpack.c.l.b16 %v378
        %v441 = vunpack.c.h.b16 %v378
        %v442 = vunpack.c.l.b16 %v379
        %v443 = vpack.c.b16 %v437, %v434
        %v444 = vpack.c.b16 %v438, %v435
        %v445 = vpack.c.b16 %v439, %v436
        %v446 = vpack.c.b16 %v440, %v440
        %v447 = vpack.c.b16 %v441, %v441
        %v448 = vpack.c.b16 %v442, %v442
        %v503 = vunpack.c.l.b16 %v380
        %v504 = vunpack.c.h.b16 %v380
        %v505 = vunpack.c.l.b16 %v381
        %v506 = vunpack.c.h.b16 %v381
        %v507 = vunpack.c.l.b16 %v382
        %v508 = vunpack.c.h.b16 %v382
        %v509 = vunpack.c.l.b16 %v383
        %v510 = vunpack.c.h.b16 %v383
        %v511 = vunpack.c.l.b16 %v384
        %v512 = vunpack.c.h.b16 %v384
        %v513 = vunpack.c.l.b16 %v385
        %v514 = vunpack.c.h.b16 %v385
        %v515 = vunpack.c.l.b16 %v386
        %v516 = vunpack.c.h.b16 %v386
        %v517 = vunpack.c.l.b16 %v387
        %v518 = vunpack.c.h.b16 %v387
        %v519 = vunpack.c.l.b16 %v388
        %v520 = vunpack.c.h.b16 %v388
        %v521 = vunpack.c.l.b16 %v389
        %v522 = vunpack.c.h.b16 %v389
        %v523 = vunpack.c.l.b16 %v390
        %v524 = vunpack.c.h.b16 %v390
        %v525 = vunpack.c.l.b16 %v391
        %v526 = vunpack.c.h.b16 %v391
        %v527 = vunpack.c.l.b16 %v392
        %v528 = vunpack.c.h.b16 %v392
        %v529 = vunpack.c.l.b16 %v393
        %v530 = vunpack.c.h.b16 %v393
        %v531 = vunpack.c.l.b16 %v394
        %v532 = vunpack.c.h.b16 %v394
        %v533 = vunpack.c.l.b16 %v395
        %v534 = vunpack.c.h.b16 %v395
        %v535 = vunpack.c.l.b16 %v396
        %v536 = vunpack.c.h.b16 %v396
        %v537 = vunpack.c.l.b16 %v397
        %v538 = vunpack.c.h.b16 %v397
        %v539 = vunpack.c.l.b16 %v398
        %v540 = vunpack.c.h.b16 %v398
        %v541 = vunpack.c.l.b16 %v399
        %v542 = vunpack.c.h.b16 %v399
        %v543 = vunpack.c.l.b16 %v400
        %v544 = vunpack.c.h.b16 %v400
        %v545 = vunpack.c.l.b16 %v401
        %v546 = vunpack.c.h.b16 %v401
        %v547 = vunpack.c.l.b16 %v402
        %v548 = vunpack.c.h.b16 %v402
        %v549 = vunpack.c.l.b16 %v403
        %v550 = vunpack.c.h.b16 %v403
        %v551 = vunpack.c.l.b16 %v404
        %v552 = vunpack.c.h.b16 %v404
        %v553 = vunpack.c.l.b16 %v405
        %v554 = vunpack.c.h.b16 %v405
        %v555 = vunpack.c.l.b16 %v406
        %v556 = vunpack.c.h.b16 %v406
        %v557 = vunpack.c.l.b16 %v407
        %v558 = vunpack.c.h.b16 %v407
        %v559 = vunpack.c.l.b16 %v408
        %v560 = vunpack.c.h.b16 %v408
        %v561 = vunpack.c.l.b16 %v409
        %v562 = vunpack.c.h.b16 %v409
        %v563 = vunpack.c.l.b16 %v410
        %v564 = vunpack.c.h.b16 %v410
        %v565 = vunpack.c.l.b16 %v411
        %v566 = vunpack.c.h.b16 %v411
        %v567 = vunpack.c.l.b16 %v412
        %v568 = vunpack.c.h.b16 %v412
        %v569 = vunpack.c.l.b16 %v413
        %v570 = vunpack.c.h.b16 %v413
        %v571 = vunpack.c.l.b16 %v414
        %v572 = vunpack.c.h.b16 %v414
        %v573 = vunpack.c.l.b16 %v415
        %v574 = vunpack.c.h.b16 %v415
        %v575 = vunpack.c.l.b16 %v416
        %v576 = vunpack.c.h.b16 %v416
        %v577 = vunpack.c.l.b16 %v417
        %v578 = vunpack.c.h.b16 %v417
        %v579 = vunpack.c.l.b16 %v418
        %v580 = vunpack.c.h.b16 %v418
        %v581 = vunpack.c.l.b16 %v419
        %v582 = vunpack.c.h.b16 %v419
        %v583 = vunpack.c.l.b16 %v420
        %v584 = vunpack.c.h.b16 %v420
        %v585 = vunpack.c.l.b16 %v421
        %v586 = vunpack.c.h.b16 %v421
        %v587 = vunpack.c.l.b16 %v422
        %v588 = vunpack.c.h.b16 %v422
        %v589 = vunpack.c.l.b16 %v423
        %v590 = vunpack.c.h.b16 %v423
        %v591 = vunpack.c.l.b16 %v424
        %v592 = vunpack.c.h.b16 %v424
        %v593 = vunpack.c.l.b16 %v425
        %v594 = vunpack.c.h.b16 %v425
        %v595 = vunpack.c.l.b16 %v426
        %v596 = vunpack.c.h.b16 %v426
        %v597 = vunpack.c.l.b16 %v427
        %v598 = vunpack.c.h.b16 %v427
        %v599 = vpack.c.b16 %v505, %v503
        %v600 = vpack.c.b16 %v506, %v504
        %v601 = vpack.c.b16 %v509, %v507
        %v602 = vpack.c.b16 %v510, %v508
        %v603 = vpack.c.b16 %v513, %v511
        %v604 = vpack.c.b16 %v514, %v512
        %v605 = vpack.c.b16 %v517, %v515
        %v606 = vpack.c.b16 %v518, %v516
        %v607 = vpack.c.b16 %v521, %v519
        %v608 = vpack.c.b16 %v522, %v520
        %v609 = vpack.c.b16 %v525, %v523
        %v610 = vpack.c.b16 %v526, %v524
        %v611 = vpack.c.b16 %v529, %v527
        %v612 = vpack.c.b16 %v530, %v528
        %v613 = vpack.c.b16 %v533, %v531
        %v614 = vpack.c.b16 %v534, %v532
        %v615 = vpack.c.b16 %v537, %v535
        %v616 = vpack.c.b16 %v538, %v536
        %v617 = vpack.c.b16 %v541, %v539
        %v618 = vpack.c.b16 %v542, %v540
        %v619 = vpack.c.b16 %v545, %v543
        %v620 = vpack.c.b16 %v546, %v544
        %v621 = vpack.c.b16 %v549, %v547
        %v622 = vpack.c.b16 %v550, %v548
        %v623 = vpack.c.b16 %v553, %v551
        %v624 = vpack.c.b16 %v554, %v552
        %v625 = vpack.c.b16 %v557, %v555
        %v626 = vpack.c.b16 %v558, %v556
        %v627 = vpack.c.b16 %v561, %v559
        %v628 = vpack.c.b16 %v562, %v560
        %v629 = vpack.c.b16 %v565, %v563
        %v630 = vpack.c.b16 %v566, %v564
        %v631 = vpack.c.b16 %v569, %v567
        %v632 = vpack.c.b16 %v570, %v568
        %v633 = vpack.c.b16 %v573, %v571
        %v634 = vpack.c.b16 %v574, %v572
        %v635 = vpack.c.b16 %v577, %v575
        %v636 = vpack.c.b16 %v578, %v576
        %v637 = vpack.c.b16 %v581, %v579
        %v638 = vpack.c.b16 %v582, %v580
        %v639 = vpack.c.b16 %v585, %v583
        %v640 = vpack.c.b16 %v586, %v584
        %v641 = vpack.c.b16 %v589, %v587
        %v642 = vpack.c.b16 %v590, %v588
        %v643 = vpack.c.b16 %v593, %v591
        %v644 = vpack.c.b16 %v594, %v592
        %v645 = vpack.c.b16 %v597, %v595
        %v646 = vpack.c.b16 %v598, %v596
        %695 = vmatprep.subr.bf16.mxu0 %v614
        %696 = vmatpush1.bf16.msra.mxu0 %v613
        %697 = vmatprep.subr.bf16.mxu0 %v612
        %698 = vmatpush1.bf16.msra.mxu0 %v611
        %699 = vmatprep.subr.bf16.mxu0 %v610
        %700 = vmatpush1.bf16.msra.mxu0 %v609
        %701 = vmatprep.subr.bf16.mxu0 %v608
        %702 = vmatpush1.bf16.msra.mxu0 %v607
        %703 = vmatprep.subr.bf16.mxu0 %v606
        %704 = vmatpush1.bf16.msra.mxu0 %v605
        %705 = vmatprep.subr.bf16.mxu0 %v604
        %706 = vmatpush1.bf16.msra.mxu0 %v603
        %707 = vmatprep.subr.bf16.mxu0 %v602
        %708 = vmatpush1.bf16.msra.mxu0 %v601
        %709 = vmatprep.subr.bf16.mxu0 %v600
        %710 = vmatpush1.bf16.msra.mxu0 %v599
        %711 = vmatprep.subr.bf16.mxu0 %v630
        %712 = vmatpush2.bf16.msra.mxu0 %v629
        %713 = vmatprep.subr.bf16.mxu0 %v628
        %714 = vmatpush2.bf16.msra.mxu0 %v627
        %715 = vmatprep.subr.bf16.mxu0 %v626
        %716 = vmatpush2.bf16.msra.mxu0 %v625
        %717 = vmatprep.subr.bf16.mxu0 %v624
        %718 = vmatpush2.bf16.msra.mxu0 %v623
        %719 = vmatprep.subr.bf16.mxu0 %v622
        %720 = vmatpush2.bf16.msra.mxu0 %v621
        %721 = vmatprep.subr.bf16.mxu0 %v620
        %722 = vmatpush2.bf16.msra.mxu0 %v619
        %723 = vmatprep.subr.bf16.mxu0 %v618
        %724 = vmatpush2.bf16.msra.mxu0 %v617
        %725 = vmatprep.subr.bf16.mxu0 %v616
        %726 = vmatpush2.bf16.msra.mxu0 %v615
        %727 = vmatprep.mubr.bf16.mxu0 %v444
        %728 = vmatmul.mubr.bf16.gmra.mxu0 %v443
        %v729 = vpop.f32.mrf.mxu0
        %v730 = vadd.f32 0.0, %v729
        %v731 = vpop.f32.mrf.mxu0
        %v732 = vadd.f32 0.0, %v731
        %v733 = vpop.f32.mrf.mxu0
        %v734 = vadd.f32 0.0, %v733
        %v735 = vpop.f32.mrf.mxu0
        %v736 = vadd.f32 0.0, %v735
        %737 = vmatprep.mubr.bf16.mxu0 %v447
        %738 = vmatmul.mubr.bf16.gmra.mxu0 %v446
        %v739 = vpop.f32.mrf.mxu0
        %v740 = vadd.f32 0.0, %v739
        %v741 = vpop.f32.mrf.mxu0
        %v742 = vadd.f32 0.0, %v741
        %v743 = vpop.f32.mrf.mxu0
        %v744 = vpop.f32.mrf.mxu0
        %745 = vdwg.mxu0
        %746 = vmatprep.subr.bf16.mxu0 %v646
        %747 = vmatpush1.bf16.msra.mxu0 %v645
        %748 = vmatprep.subr.bf16.mxu0 %v644
        %749 = vmatpush1.bf16.msra.mxu0 %v643
        %750 = vmatprep.subr.bf16.mxu0 %v642
        %751 = vmatpush1.bf16.msra.mxu0 %v641
        %752 = vmatprep.subr.bf16.mxu0 %v640
        %753 = vmatpush1.bf16.msra.mxu0 %v639
        %754 = vmatprep.subr.bf16.mxu0 %v638
        %755 = vmatpush1.bf16.msra.mxu0 %v637
        %756 = vmatprep.subr.bf16.mxu0 %v636
        %757 = vmatpush1.bf16.msra.mxu0 %v635
        %758 = vmatprep.subr.bf16.mxu0 %v634
        %759 = vmatpush1.bf16.msra.mxu0 %v633
        %760 = vmatprep.subr.bf16.mxu0 %v632
        %761 = vmatpush1.bf16.msra.mxu0 %v631
        %762 = vmatprep.subr.bf16.mxu0 0
        %763 = vmatpush2.bf16.msra.mxu0 0
        %764 = vmatprep.subr.bf16.mxu0 0
        %765 = vmatpush2.bf16.msra.mxu0 0
        %766 = vmatprep.subr.bf16.mxu0 0
        %767 = vmatpush2.bf16.msra.mxu0 0
        %768 = vmatprep.subr.bf16.mxu0 0
        %769 = vmatpush2.bf16.msra.mxu0 0
        %770 = vmatprep.subr.bf16.mxu0 0
        %771 = vmatpush2.bf16.msra.mxu0 0
        %772 = vmatprep.subr.bf16.mxu0 0
        %773 = vmatpush2.bf16.msra.mxu0 0
        %774 = vmatprep.subr.bf16.mxu0 0
        %775 = vmatpush2.bf16.msra.mxu0 0
        %776 = vmatprep.subr.bf16.mxu0 0
        %777 = vmatpush2.bf16.msra.mxu0 0
        %778 = vmatprep.mubr.bf16.mxu0 0
        %779 = vmatmul.mubr.bf16.gmra.mxu0 %v445
        %v780 = vpop.f32.mrf.mxu0
        %v781 = vadd.f32 %v730, %v780
        %v782 = vpop.f32.mrf.mxu0
        %v783 = vadd.f32 %v732, %v782
        %v784 = vpop.f32.mrf.mxu0
        %v785 = vadd.f32 %v734, %v784
        %v786 = vpop.f32.mrf.mxu0
        %v787 = vadd.f32 %v736, %v786
        %788 = vmatprep.mubr.bf16.mxu0 0
        %789 = vmatmul.mubr.bf16.gmra.mxu0 %v448
        %v790 = vpop.f32.mrf.mxu0
        %v791 = vadd.f32 %v740, %v790
        %v792 = vpop.f32.mrf.mxu0
        %v793 = vadd.f32 %v742, %v792
        %v794 = vpop.f32.mrf.mxu0
        %v795 = vpop.f32.mrf.mxu0
        %796 = vdwg.mxu0
        %v797 = vadd.f32 %v368, %v781
        %v798 = vadd.f32 %v369, %v783
        %v799 = vadd.f32 %v370, %v785
        %v800 = vadd.f32 %v371, %v787
        %v801 = vadd.f32 %v372, %v791
        %v802 = vadd.f32 %v373, %v793
        %803 = vst [vmem:[#allocation2] sm:$0xff] %v797
        %804 = vst [vmem:[#allocation2 + $0x8] sm:$0xff] %v798
        %805 = vst [vmem:[#allocation2 + $0x10] sm:$0xff] %v799
        %806 = vst [vmem:[#allocation2 + $0x18] sm:$0xff] %v800
        %807 = vst [vmem:[#allocation2 + $0x20] sm:$0xff] %v801
        %808 = vst [vmem:[#allocation2 + $0x28] sm:$0xff] %v802
        %p809 = scmp.eq.s32.totalorder %s22, 5
        // Predicated region
        $region67: #{_lambda_.40} parent=57 // pred_check
          %p810 = pneg %p809
        $region68: #{_lambda_.40} parent=57 // pred_check_branch
          %812 = sbr.rel (%p810) target = $region70
        $region69: #{_lambda_.40} parent=57 // pred_region
          %v813 = vld [vmem:[#allocation2] sm:$0xff]
          %v814 = vld [vmem:[#allocation2 + $0x8] sm:$0xff]
          %v815 = vld [vmem:[#allocation2 + $0x10] sm:$0xff]
          %v816 = vld [vmem:[#allocation2 + $0x18] sm:$0xff]
          %v817 = vld [vmem:[#allocation2 + $0x20] sm:$0xff]
          %v818 = vld [vmem:[#allocation2 + $0x28] sm:$0xff]
          %v819 = vld [vmem:[%s338] sm:$0x3]
          %v821 = vlaneseq
          %v822 = vshrl.u32 %v821, 7
          %v823 = vsub.s32 0, %v822
          %v824 = vrot.slane %v819, %v823
          %v825 = vlaneseq
          %v826 = vshrl.u32 %v825, 7
          %v827 = vsub.s32 1, %v826
          %v828 = vrot.slane %v819, %v827
          %v831 = vmul.f32 %v813, %v824
          %v832 = vmul.f32 %v814, %v828
          %v833 = vmul.f32 %v815, %v824
          %v834 = vmul.f32 %v816, %v828
          %v835 = vmul.f32 %v817, %v824
          %v836 = vmul.f32 %v818, %v828
          %v837 = vld [vmem:[%s343] sm:$0x3]
          %v839 = vlaneseq
          %v840 = vshrl.u32 %v839, 7
          %v841 = vsub.s32 0, %v840
          %v842 = vrot.slane %v837, %v841
          %v843 = vlaneseq
          %v844 = vshrl.u32 %v843, 7
          %v845 = vsub.s32 1, %v844
          %v846 = vrot.slane %v837, %v845
          %v849 = vadd.f32 %v831, %v842
          %v850 = vadd.f32 %v832, %v846
          %v851 = vadd.f32 %v833, %v842
          %v852 = vadd.f32 %v834, %v846
          %v853 = vadd.f32 %v835, %v842
          %v854 = vadd.f32 %v836, %v846
          %855 = vst [vmem:[%s354] sm:$0xff] %v849
          %856 = vst [vmem:[%s354 + $0x8] sm:$0xff] %v850
          %857 = vst [vmem:[%s354 + $0x10] sm:$0xff] %v851
          %858 = vst [vmem:[%s354 + $0x18] sm:$0xff] %v852
          %859 = vst [vmem:[%s354 + $0x20] sm:$0xff] %v853
          %860 = vst [vmem:[%s354 + $0x28] sm:$0xff] %v854
        $region70: #{_lambda_.40} parent=57 // pred_fallthru
          _
        %s861 = smul.u32 3, %s20
        %s862 = smul.u32 2, %s21
        %p863 = scmp.lt.s32.totalorder %s861, 2
        %s864 = scalar_select %p863, %s861, 2
        %p865 = scmp.lt.s32.totalorder %s862, 1
        %s866 = scalar_select %p865, %s862, 1
        %s867 = smul.addr %s864, 2
        %s868 = sadd.s32 %s866, %s867
        %s869 = smul.addr %s868, 8
        %s870 = scalar_lea.vmem %s4, %s869
        // Predicated region
        $region71: #{_lambda_.40} parent=57 // pred_check
          %p871 = pneg %p162
        $region72: #{_lambda_.40} parent=57 // pred_check_branch
          %873 = sbr.rel (%p871) target = $region74
        $region73: #{_lambda_.40} parent=57 // pred_region
          %s874 = smul.u32 3, %s20
          %s875 = smul.u32 2, %s21
        $region74: #{_lambda_.40} parent=57 // pred_fallthru
          _
        // Predicated region
        $region75: #{_lambda_.40} parent=57 // pred_check
          %p876 = pneg %p162
        $region76: #{_lambda_.40} parent=57 // pred_check_branch
          %878 = sbr.rel (%p876) target = $region78
        $region77: #{_lambda_.40} parent=57 // pred_region
          %s879 = smul.u32 3, %s20
          %s880 = smul.u32 2, %s21
          %p881 = scmp.lt.s32.totalorder %s879, 2
          %s882 = scalar_select %p881, %s879, 2
          %p883 = scmp.lt.s32.totalorder %s880, 1
          %s884 = scalar_select %p883, %s880, 1
          %s885 = smul.addr %s882, 2
          %s886 = sadd.s32 %s884, %s885
          %s887 = smul.addr %s886, 8
          %s888 = scalar_lea.vmem %s4, %s887
        $region78: #{_lambda_.40} parent=57 // pred_fallthru
          _
      $region58: #{_lambda_.40} parent=5 // pred_fallthru
        _
      %p889 = scmp.le.s32.totalorder 2, %s10
      // Predicated region
      $region79: #{_lambda_.40} parent=5 // pred_check
        %p890 = pneg %p889
      $region80: #{_lambda_.40} parent=5 // pred_check_branch
        %892 = sbr.rel (%p890) target = $region82
      $region81: #{_lambda_.40} parent=5 // pred_region
        %s893 = ssub.s32 %s10, 2
      $region82: #{_lambda_.40} parent=5 // pred_fallthru
        _
    $region6: #{_lambda_.40} parent=1 // loop_footer
      %s14 = sadd.s32 1, %s10
    $region7: #{_lambda_.40} parent=1 // loop_footer_branch
      %9 = sbr.rel target = $region3
    $region8: #{_lambda_.40} parent=1 // loop_exit
      _

// kernel: _lambda_.43
$region0: #{_lambda_.43}
  #allocation0 [shape = 'u32[]', space=smem, size = 0x4, offset = 0x4, fixed_abs, tag = 'smem constant byte address 0x4 - core index']
  #allocation1 [shape = 'u32[144,128]{1,0:T(1,128)}', space=vmem, size = 0x12000, scoped, tag = 'internal scratch']
  %s0 = inlined_call_operand.vmem [shape: f32[2,3,3,256], index: 0, kind: input, shape index: {}]
  %s1 = inlined_call_operand.vmem [shape: f32[2,3,3,256], index: 1, kind: input, shape index: {}]
  %s2 = inlined_call_operand.vmem [shape: f32[2,3,3,256], index: 2, kind: output, shape index: {}]
  %s3 = sld [smem:[#allocation0]]
  $region41: #{_lambda_.43} parent=0
    _
  %s5 = ssub.s32 1, %s3
  %s6 = scalar_select 0, %s5, %s3
  loop: start=0, step=1, limit=4
  $region2: #{_lambda_.43} parent=0 // loop_pre_header
    _
  $region3: #{_lambda_.43} parent=0 // loop_header
    %s8 = sphi 0, %s12
    %p9 = scmp.ge.s32.totalorder %s8, 4
    %s18 = sphi 0, %s20
    %s21 = sphi 0, %s18
    %s22 = sphi 0, %s21
    %s38 = sphi 0, %s22
    %s44 = sphi 0, %s46
    %s47 = sphi 0, %s44
    %s48 = sphi 0, %s47
    %s64 = sphi 0, %s48
    %s70 = sphi 0, %s72
    %s73 = sphi 0, %s70
    %s74 = sphi 0, %s73
    %s90 = sphi 0, %s74
  $region4: #{_lambda_.43} parent=0 // loop_header_branch
    %11 = sbr.rel (%p9) target = $region8
  $region5: #{_lambda_.43} parent=0 // loop_body
    %s13 = ssub.s32 %s8, 1
    %s14 = ssub.s32 %s8, 2
    %s15 = sadd.s32 %s8, 1
    %s16 = ssub.s32 %s8, %s15
    %p17 = scmp.eq.s32.totalorder %s16, 0
    %s19 = sadd.s32 %s18, 1
    %s20 = scalar_select %p17, %s18, %s19
    %p23 = pneg %p17
    %p24 = scmp.eq.s32.totalorder %s8, 1
    %p25 = por %p23, %p24
    %p26 = scmp.ne.s32.totalorder %s18, %s21
    %p27 = scmp.eq.s32.totalorder %s8, 0
    %p28 = por %p26, %p27
    %p29 = scmp.ne.s32.totalorder %s18, %s21
    %p30 = scmp.eq.s32.totalorder %s13, 1
    %p31 = por %p29, %p30
    %p32 = scmp.ne.s32.totalorder %s21, %s22
    %p33 = scmp.eq.s32.totalorder %s13, 0
    %p34 = por %p32, %p33
    %p35 = scmp.ne.s32.totalorder %s21, %s22
    %p36 = scmp.eq.s32.totalorder %s14, 1
    %p37 = por %p35, %p36
    %p39 = scmp.ne.s32.totalorder %s22, %s38
    %p40 = scmp.eq.s32.totalorder %s14, 0
    %p41 = por %p39, %p40
    %s42 = ssub.s32 %s8, %s15
    %p43 = scmp.eq.s32.totalorder %s42, 0
    %s45 = sadd.s32 %s44, 1
    %s46 = scalar_select %p43, %s44, %s45
    %p49 = pneg %p43
    %p50 = scmp.eq.s32.totalorder %s8, 1
    %p51 = por %p49, %p50
    %p52 = scmp.ne.s32.totalorder %s44, %s47
    %p53 = scmp.eq.s32.totalorder %s8, 0
    %p54 = por %p52, %p53
    %p55 = scmp.ne.s32.totalorder %s44, %s47
    %p56 = scmp.eq.s32.totalorder %s13, 1
    %p57 = por %p55, %p56
    %p58 = scmp.ne.s32.totalorder %s47, %s48
    %p59 = scmp.eq.s32.totalorder %s13, 0
    %p60 = por %p58, %p59
    %p61 = scmp.ne.s32.totalorder %s47, %s48
    %p62 = scmp.eq.s32.totalorder %s14, 1
    %p63 = por %p61, %p62
    %p65 = scmp.ne.s32.totalorder %s48, %s64
    %p66 = scmp.eq.s32.totalorder %s14, 0
    %p67 = por %p65, %p66
    %s68 = ssub.s32 %s8, %s15
    %p69 = scmp.eq.s32.totalorder %s68, 0
    %s71 = sadd.s32 %s70, 1
    %s72 = scalar_select %p69, %s70, %s71
    %p75 = pneg %p69
    %p76 = scmp.eq.s32.totalorder %s8, 1
    %p77 = por %p75, %p76
    %p78 = scmp.ne.s32.totalorder %s70, %s73
    %p79 = scmp.eq.s32.totalorder %s8, 0
    %p80 = por %p78, %p79
    %p81 = scmp.ne.s32.totalorder %s70, %s73
    %p82 = scmp.eq.s32.totalorder %s13, 1
    %p83 = por %p81, %p82
    %p84 = scmp.ne.s32.totalorder %s73, %s74
    %p85 = scmp.eq.s32.totalorder %s13, 0
    %p86 = por %p84, %p85
    %p87 = scmp.ne.s32.totalorder %s73, %s74
    %p88 = scmp.eq.s32.totalorder %s14, 1
    %p89 = por %p87, %p88
    %p91 = scmp.ne.s32.totalorder %s74, %s90
    %p92 = scmp.eq.s32.totalorder %s14, 0
    %p93 = por %p91, %p92
    %p94 = scmp.le.s32.totalorder 1, %s8
    %p95 = scmp.lt.s32.totalorder %s8, 3
    %p96 = pnand %p94, %p95
    %p97 = pneg %p96
    // Predicated region
    $region9: #{_lambda_.43} parent=5 // pred_check
      _
    $region10: #{_lambda_.43} parent=5 // pred_check_branch
      %99 = sbr.rel (%p96) target = $region12
    $region11: #{_lambda_.43} parent=5 // pred_region
      %s100 = ssub.s32 %s8, 1
    $region12: #{_lambda_.43} parent=5 // pred_fallthru
      _
    %p101 = scmp.lt.s32.totalorder %s8, 2
    // Predicated region
    $region13: #{_lambda_.43} parent=5 // pred_check
      %p102 = pneg %p101
    $region14: #{_lambda_.43} parent=5 // pred_check_branch
      %104 = sbr.rel (%p102) target = $region16
    $region15: #{_lambda_.43} parent=5 // pred_region
      // Predicated region
      $region17: #{_lambda_.43} parent=15 // pred_check
        %p105 = pneg %p28
      $region18: #{_lambda_.43} parent=15 // pred_check_branch
        %107 = sbr.rel (%p105) target = $region20
      $region19: #{_lambda_.43} parent=15 // pred_region
        %p108 = scmp.lt.s32.totalorder %s8, 1
        %s109 = scalar_select %p108, %s8, 1
        %s110 = smul.addr %s109, 6
        %s111 = smul.addr %s110, 4
        %s112 = scalar_lea.vmem %s0, %s111
      $region20: #{_lambda_.43} parent=15 // pred_fallthru
        _
      // Predicated region
      $region21: #{_lambda_.43} parent=15 // pred_check
        %p113 = pneg %p54
      $region22: #{_lambda_.43} parent=15 // pred_check_branch
        %115 = sbr.rel (%p113) target = $region24
      $region23: #{_lambda_.43} parent=15 // pred_region
        %p116 = scmp.lt.s32.totalorder %s8, 1
        %s117 = scalar_select %p116, %s8, 1
        %s118 = smul.addr %s117, 6
        %s119 = smul.addr %s118, 4
        %s120 = scalar_lea.vmem %s1, %s119
      $region24: #{_lambda_.43} parent=15 // pred_fallthru
        _
    $region16: #{_lambda_.43} parent=5 // pred_fallthru
      _
    %p121 = scmp.le.s32.totalorder 1, %s8
    %p122 = scmp.lt.s32.totalorder %s8, 3
    %p123 = pnand %p121, %p122
    %p124 = pneg %p123
    // Predicated region
    $region25: #{_lambda_.43} parent=5 // pred_check
      _
    $region26: #{_lambda_.43} parent=5 // pred_check_branch
      %126 = sbr.rel (%p123) target = $region28
    $region27: #{_lambda_.43} parent=5 // pred_region
      %s127 = ssub.s32 %s8, 1
      %p128 = scmp.lt.s32.totalorder %s13, 1
      %s129 = scalar_select %p128, %s13, 1
      %s130 = smul.addr %s129, 6
      %s131 = smul.addr %s130, 4
      %s132 = scalar_lea.vmem %s0, %s131
      %p133 = pneg %p34
      %p134 = pneg %p31
      %p135 = scmp.lt.s32.totalorder %s13, 1
      %s136 = scalar_select %p135, %s13, 1
      %s137 = smul.addr %s136, 6
      %s138 = smul.addr %s137, 4
      %s139 = scalar_lea.vmem %s1, %s138
      %p140 = pneg %p60
      %p141 = pneg %p57
      %p142 = pneg %p86
      %p143 = pneg %p83
      %p144 = scmp.lt.s32.totalorder %s13, 1
      %s145 = scalar_select %p144, %s13, 1
      %s146 = smul.addr %s145, 6
      %s147 = smul.addr %s146, 4
      %s148 = scalar_lea.vmem %s2, %s147
      %p149 = scmp.lt.s32.totalorder %s13, 1
      %s150 = scalar_select %p149, %s13, 1
      %s151 = smul.addr %s150, 6
      %s152 = smul.addr %s151, 4
      %s153 = scalar_lea.vmem %s0, %s152
      %p154 = scmp.lt.s32.totalorder %s13, 1
      %s155 = scalar_select %p154, %s13, 1
      %s156 = smul.addr %s155, 6
      %s157 = smul.addr %s156, 4
      %s158 = scalar_lea.vmem %s1, %s157
      %p159 = scmp.lt.s32.totalorder %s13, 1
      %s160 = scalar_select %p159, %s13, 1
      %s161 = smul.addr %s160, 6
      %s162 = smul.addr %s161, 4
      %s163 = scalar_lea.vmem %s2, %s162
      %v164 = vld [vmem:[%s153] sm:$0x77]
      %v165 = vld [vmem:[%s153 + $0x8] sm:$0x77]
      %v166 = vld [vmem:[%s153 + $0x10] sm:$0x77]
      %v170 = vcombine.high %v164, %v164
      %v171 = vcombine.high %v165, %v165
      %v172 = vcombine.high %v166, %v166
      %vm176 = vcmask 1042432
      %v177 = vsel %vm176, %v164, 0.0
      %v178 = vsel %vm176, %v165, 0.0
      %v179 = vadd.f32 %v177, %v178
      %v180 = vsel %vm176, %v166, 0.0
      %v181 = vadd.f32 %v179, %v180
      %v182 = vrot.slane %v181, 4
      %v183 = vadd.f32 %v181, %v182
      %v184 = vrot.slane %v183, 2
      %v185 = vadd.f32 %v183, %v184
      %v186 = vrot.slane %v185, 1
      %v187 = vadd.f32 %v185, %v186
      %v188 = vsel %vm176, %v170, 0.0
      %v189 = vsel %vm176, %v171, 0.0
      %v190 = vadd.f32 %v188, %v189
      %v191 = vsel %vm176, %v172, 0.0
      %v192 = vadd.f32 %v190, %v191
      %v193 = vrot.slane %v192, 4
      %v194 = vadd.f32 %v192, %v193
      %v195 = vrot.slane %v194, 2
      %v196 = vadd.f32 %v194, %v195
      %v197 = vrot.slane %v196, 1
      %v198 = vadd.f32 %v196, %v197
      %v199 = vmul.f32 %v164, %v164
      %v200 = vmul.f32 %v165, %v165
      %v201 = vmul.f32 %v166, %v166
      %v205 = vcombine.high %v199, %v199
      %v206 = vcombine.high %v200, %v200
      %v207 = vcombine.high %v201, %v201
      %v211 = vsel %vm176, %v199, 0.0
      %v212 = vsel %vm176, %v200, 0.0
      %v213 = vadd.f32 %v211, %v212
      %v214 = vsel %vm176, %v201, 0.0
      %v215 = vadd.f32 %v213, %v214
      %v216 = vrot.slane %v215, 4
      %v217 = vadd.f32 %v215, %v216
      %v218 = vrot.slane %v217, 2
      %v219 = vadd.f32 %v217, %v218
      %v220 = vrot.slane %v219, 1
      %v221 = vadd.f32 %v219, %v220
      %v222 = vsel %vm176, %v205, 0.0
      %v223 = vsel %vm176, %v206, 0.0
      %v224 = vadd.f32 %v222, %v223
      %v225 = vsel %vm176, %v207, 0.0
      %v226 = vadd.f32 %v224, %v225
      %v227 = vrot.slane %v226, 4
      %v228 = vadd.f32 %v226, %v227
      %v229 = vrot.slane %v228, 2
      %v230 = vadd.f32 %v228, %v229
      %v231 = vrot.slane %v230, 1
      %v232 = vadd.f32 %v230, %v231
      %v233 = vrcp.pop 9.0
      %v234 = vmul.f32 %v187, %v233
      %v235 = vmul.f32 %v198, %v233
      %v236 = vmul.f32 %v221, %v233
      %v237 = vmul.f32 %v232, %v233
      %v238 = vmul.f32 %v234, %v234
      %v239 = vmul.f32 %v235, %v235
      %v240 = vsub.f32 %v236, %v238
      %v241 = vsub.f32 %v237, %v239
      %v242 = vmax.f32 %v240, 0.0
      %v243 = vmax.f32 %v241, 0.0
      %v246 = vcombine.low %v234, %v235
      %v248 = vsub.f32 %v164, %v246
      %v249 = vsub.f32 %v165, %v246
      %v250 = vsub.f32 %v166, %v246
      %v251 = vadd.f32 %v242, 1e-05
      %v252 = vadd.f32 %v243, 1e-05
      %v253 = vrsqrt.pop %v251
      %v254 = vrsqrt.pop %v252
      %v257 = vcombine.low %v253, %v254
      %v259 = vmul.f32 %v248, %v257
      %v260 = vmul.f32 %v249, %v257
      %v261 = vmul.f32 %v250, %v257
      %v262 = vld [vmem:[%s158] sm:$0x77]
      %v263 = vld [vmem:[%s158 + $0x8] sm:$0x77]
      %v264 = vld [vmem:[%s158 + $0x10] sm:$0x77]
      %v265 = vadd.f32 %v259, %v262
      %v266 = vadd.f32 %v260, %v263
      %v267 = vadd.f32 %v261, %v264
      %268 = vst [vmem:[%s163] sm:$0x77] %v265
      %269 = vst [vmem:[%s163 + $0x8] sm:$0x77] %v266
      %270 = vst [vmem:[%s163 + $0x10] sm:$0x77] %v267
      %p271 = scmp.lt.s32.totalorder %s13, 1
      %s272 = scalar_select %p271, %s13, 1
      %s273 = smul.addr %s272, 6
      %s274 = smul.addr %s273, 4
      %s275 = scalar_lea.vmem %s2, %s274
      // Predicated region
      $region29: #{_lambda_.43} parent=27 // pred_check
        %p276 = pneg %p83
      $region30: #{_lambda_.43} parent=27 // pred_check_branch
        %278 = sbr.rel (%p276) target = $region32
      $region31: #{_lambda_.43} parent=27 // pred_region
        _
      $region32: #{_lambda_.43} parent=27 // pred_fallthru
        _
    $region28: #{_lambda_.43} parent=5 // pred_fallthru
      _
    %p279 = scmp.le.s32.totalorder 2, %s8
    // Predicated region
    $region33: #{_lambda_.43} parent=5 // pred_check
      %p280 = pneg %p279
    $region34: #{_lambda_.43} parent=5 // pred_check_branch
      %282 = sbr.rel (%p280) target = $region36
    $region35: #{_lambda_.43} parent=5 // pred_region
      %s283 = ssub.s32 %s8, 2
      // Predicated region
      $region37: #{_lambda_.43} parent=35 // pred_check
        %p284 = pneg %p89
      $region38: #{_lambda_.43} parent=35 // pred_check_branch
        %286 = sbr.rel (%p284) target = $region40
      $region39: #{_lambda_.43} parent=35 // pred_region
        %p287 = scmp.lt.s32.totalorder %s14, 1
        %s288 = scalar_select %p287, %s14, 1
        %s289 = smul.addr %s288, 6
        %s290 = smul.addr %s289, 4
        %s291 = scalar_lea.vmem %s2, %s290
      $region40: #{_lambda_.43} parent=35 // pred_fallthru
        _
    $region36: #{_lambda_.43} parent=5 // pred_fallthru
      _
  $region6: #{_lambda_.43} parent=0 // loop_footer
    %s12 = sadd.s32 1, %s8
  $region7: #{_lambda_.43} parent=0 // loop_footer_branch
    %7 = sbr.rel target = $region3
  $region8: #{_lambda_.43} parent=0 // loop_exit
    _

</llo_original>
